<compile_context>
chip_gen: v5e
topology: v5e:2x2
jax: 0.10.0
libtpu: 0.0.40
codegen_flags: <defaults>
</compile_context>

<pallas_src>
import jax
import jax.numpy as jnp
import numpy as np
from jax.experimental import pallas as pl
from jax.experimental.pallas import tpu as pltpu

BN_EPS = 1e-5
LEAK = 0.2

# Static geometry for a (N, 9, 32, 32) input.
K = 4                          # conv kernel size
CIN = 9
S1, S2, S3 = 16, 8, 4          # per-layer output spatial sizes
P1, P2, P3 = S1 * S1, S2 * S2, S3 * S3
C1, C2, C3 = 64, 128, 256      # per-layer channel counts


# --------------- 0/1 im2col gather matrices (conv padding folded in) --------- #

def _gather_matrix(s_in, s_out):
    """Row (t*s_out^2 + oh*s_out + ow) selects unpadded input row (ih*s_in + iw)
    with ih = 2*oh + di - 1, iw = 2*ow + dj - 1 (t = di*4 + dj).  Out-of-range
    taps get an all-zero row, implementing the conv zero-padding exactly."""
    g = np.zeros((K * K * s_out * s_out, s_in * s_in), np.float32)
    for di in range(K):
        for dj in range(K):
            t = di * K + dj
            for oh in range(s_out):
                for ow in range(s_out):
                    ih = 2 * oh + di - 1
                    iw = 2 * ow + dj - 1
                    if 0 <= ih < s_in and 0 <= iw < s_in:
                        g[t * s_out * s_out + oh * s_out + ow, ih * s_in + iw] = 1.0
    return g


# ------------------------------ fused Pallas kernel -------------------------- #

def _make_kernel(n_batch):
    f32, bf16 = jnp.float32, jnp.bfloat16
    TP2, TP3 = K * K * P2, K * K * P3          # gather rows per image: 1024, 256

    def lrelu(v):
        return jnp.maximum(v, LEAK * v)

    def batch_norm(v, gamma, beta):
        # Training-mode batch stats, biased variance, two-pass (no E[x^2]-m^2).
        mean = jnp.mean(v, axis=0, keepdims=True)
        d = v - mean
        var = jnp.mean(d * d, axis=0, keepdims=True)
        return d * jax.lax.rsqrt(var + BN_EPS) * gamma + beta

    def kernel(a1_ref, w1_ref, b1_ref,
               g2_ref, w2_ref, b2_ref, gam2_ref, bet2_ref,
               g3_ref, w3_ref, b3_ref, gam3_ref, bet3_ref,
               w4_ref, b4_ref,
               o_ref,
               h1_ref, gat2_ref, h2_ref, gat3_ref):

        # ---- Layer 1: whole-batch im2col GEMM + bias + LeakyReLU -> bf16 ------
        y1 = jnp.dot(a1_ref[...], w1_ref[...], preferred_element_type=f32)
        h1_ref[...] = lrelu(y1 + b1_ref[...]).astype(bf16)      # (N*256, 64)

        # ---- Layer 2 -----------------------------------------------------------
        # Gather (padding folded into g2): one GEMM per image, contiguous store.
        for n in range(n_batch):
            g = jnp.dot(g2_ref[...], h1_ref[n * P1:(n + 1) * P1, :],
                        preferred_element_type=f32)             # (1024, 64)
            gat2_ref[n * TP2:(n + 1) * TP2, :] = g.astype(bf16)

        # 16 per-tap GEMMs with the batch folded into M; two accumulator chains
        # so the MXU pushes are not serialized by the f32 adds.
        acc_a = jnp.zeros((n_batch * P2, C2), f32)
        acc_b = jnp.zeros((n_batch * P2, C2), f32)
        for t in range(K * K):
            lhs = jnp.concatenate(
                [gat2_ref[n * TP2 + t * P2:n * TP2 + (t + 1) * P2, :]
                 for n in range(n_batch)], axis=0)              # (N*64, 64)
            d = jnp.dot(lhs, w2_ref[t * C1:(t + 1) * C1, :],
                        preferred_element_type=f32)             # (N*64, 128)
            if t % 2 == 0:
                acc_a = acc_a + d
            else:
                acc_b = acc_b + d
        y2 = acc_a + acc_b + b2_ref[...]
        h2_ref[...] = lrelu(batch_norm(y2, gam2_ref[...], bet2_ref[...])).astype(bf16)

        # ---- Layer 3 -----------------------------------------------------------
        for n in range(n_batch):
            g = jnp.dot(g3_ref[...], h2_ref[n * P2:(n + 1) * P2, :],
                        preferred_element_type=f32)             # (256, 128)
            gat3_ref[n * TP3:(n + 1) * TP3, :] = g.astype(bf16)

        acc_a = jnp.zeros((n_batch * P3, C3), f32)
        acc_b = jnp.zeros((n_batch * P3, C3), f32)
        for t in range(K * K):
            lhs = jnp.concatenate(
                [gat3_ref[n * TP3 + t * P3:n * TP3 + (t + 1) * P3, :]
                 for n in range(n_batch)], axis=0)              # (N*16, 128)
            d = jnp.dot(lhs, w3_ref[t * C2:(t + 1) * C2, :],
                        preferred_element_type=f32)             # (N*16, 256)
            if t % 2 == 0:
                acc_a = acc_a + d
            else:
                acc_b = acc_b + d
        y3 = acc_a + acc_b + b3_ref[...]
        h3 = lrelu(batch_norm(y3, gam3_ref[...], bet3_ref[...]))   # (N*16, 256) f32

        # ---- Layer 4 (Cout=1): VPU multiply + lane reductions ------------------
        # h3 rows are ordered (n, oh*4+ow) and w4_ref rows are (di*4+dj): the
        # same 4x4 tap order, so a per-image sum implements the 4x4 valid conv.
        t4 = h3.reshape(n_batch, P3, C3) * w4_ref[...][None, :, :]
        s = jnp.sum(t4, axis=2)                                 # (N, 16)
        z = jnp.sum(s, axis=1, keepdims=True) + b4_ref[...]     # (N, 1)
        # 1/(1+exp(-z)) is NaN-free in f32 (z -> -inf gives exp -> inf -> 0).
        o_ref[...] = 1.0 / (1.0 + jnp.exp(-z))

    return kernel


# --------------------------------- wrapper ----------------------------------- #

def discriminator_forward(x_nchw, p):
    n_batch = x_nchw.shape[0]
    f32, bf16 = jnp.float32, jnp.bfloat16

    # XLA-side prep: NCHW->NHWC, layer-1 im2col (touches only the network input,
    # which must be streamed from HBM anyway), weight flattening / casts.
    x = jnp.transpose(x_nchw, (0, 2, 3, 1)).astype(f32)
    xp = jnp.pad(x, ((0, 0), (1, 1), (1, 1), (0, 0)))
    cols = []
    for di in range(K):
        for dj in range(K):
            cols.append(xp[:, di:di + 2 * S1 - 1:2, dj:dj + 2 * S1 - 1:2, :])
    a1 = jnp.concatenate(cols, axis=-1).reshape(n_batch * P1, K * K * CIN).astype(f32)

    w1m = p["w1"].reshape(K * K * CIN, C1).astype(f32)     # tiny GEMM: keep f32
    w2m = p["w2"].reshape(K * K * C1, C2).astype(bf16)
    w3m = p["w3"].reshape(K * K * C2, C3).astype(bf16)
    w4m = p["w4"].reshape(K * K, C3).astype(f32)           # (16, 256), passed once

    b1 = p["b1"].reshape(1, C1).astype(f32)
    b2 = p["b2"].reshape(1, C2).astype(f32)
    b3 = p["b3"].reshape(1, C3).astype(f32)
    b4 = p["b4"].reshape(1, 1).astype(f32)
    gam2 = p["g2"].reshape(1, C2).astype(f32)
    bet2 = p["be2"].reshape(1, C2).astype(f32)
    gam3 = p["g3"].reshape(1, C3).astype(f32)
    bet3 = p["be3"].reshape(1, C3).astype(f32)

    g2sel = jnp.asarray(_gather_matrix(S1, S2), dtype=bf16)    # (1024, 256)
    g3sel = jnp.asarray(_gather_matrix(S2, S3), dtype=bf16)    # (256, 64)

    return pl.pallas_call(
        _make_kernel(n_batch),
        out_shape=jax.ShapeDtypeStruct((n_batch, 1), f32),
        in_specs=[pl.BlockSpec(memory_space=pltpu.MemorySpace.VMEM)] * 15,
        out_specs=pl.BlockSpec(memory_space=pltpu.MemorySpace.VMEM),
        scratch_shapes=[
            pltpu.VMEM((n_batch * P1, C1), bf16),              # h1 activations
            pltpu.VMEM((n_batch * K * K * P2, C1), bf16),      # layer-2 gather rows
            pltpu.VMEM((n_batch * P2, C2), bf16),              # h2 activations
            pltpu.VMEM((n_batch * K * K * P3, C2), bf16),      # layer-3 gather rows
        ],
    )(a1, w1m, b1, g2sel, w2m, b2, gam2, bet2,
      g3sel, w3m, b3, gam3, bet3, w4m, b4)


# ------------------------- deterministic parameters -------------------------- #

def init_params(key):
    ks = jax.random.split(key, 12)

    def conv_w(k, kh, kw, cin, cout):  # PyTorch-style uniform(+-1/sqrt(fan_in))
        bound = 1.0 / jnp.sqrt(kh * kw * cin)
        return jax.random.uniform(k, (kh, kw, cin, cout), jnp.float32, -bound, bound)

    def conv_b(k, kh, kw, cin, cout):
        bound = 1.0 / jnp.sqrt(kh * kw * cin)
        return jax.random.uniform(k, (cout,), jnp.float32, -bound, bound)

    return {
        "w1": conv_w(ks[0], 4, 4, 9, 64),    "b1": conv_b(ks[1], 4, 4, 9, 64),
        "w2": conv_w(ks[2], 4, 4, 64, 128),  "b2": conv_b(ks[3], 4, 4, 64, 128),
        "w3": conv_w(ks[4], 4, 4, 128, 256), "b3": conv_b(ks[5], 4, 4, 128, 256),
        "w4": conv_w(ks[6], 4, 4, 256, 1),   "b4": conv_b(ks[7], 4, 4, 256, 1),
        "g2": 1.0 + 0.1 * jax.random.normal(ks[8], (128,), jnp.float32),
        "be2": 0.1 * jax.random.normal(ks[9], (128,), jnp.float32),
        "g3": 1.0 + 0.1 * jax.random.normal(ks[10], (256,), jnp.float32),
        "be3": 0.1 * jax.random.normal(ks[11], (256,), jnp.float32),
    }


# ---------------------------- pure-JAX reference ----------------------------- #

def ref_forward(x_nchw, p):
    x = jnp.transpose(x_nchw, (0, 2, 3, 1))

    def conv(x, w, b, stride, pad):
        y = jax.lax.conv_general_dilated(
            x, w, (stride, stride), [(pad, pad), (pad, pad)],
            dimension_numbers=("NHWC", "HWIO", "NHWC"),
            precision=jax.lax.Precision.HIGHEST)
        return y + b

    def lrelu(v):
        return jnp.where(v > 0, v, LEAK * v)

    def bn(v, g, be):
        mean = jnp.mean(v, axis=(0, 1, 2), keepdims=True)
        var = jnp.mean((v - mean) ** 2, axis=(0, 1, 2), keepdims=True)
        return (v - mean) / jnp.sqrt(var + BN_EPS) * g + be

    x = lrelu(conv(x, p["w1"], p["b1"], 2, 1))
    x = lrelu(bn(conv(x, p["w2"], p["b2"], 2, 1), p["g2"], p["be2"]))
    x = lrelu(bn(conv(x, p["w3"], p["b3"], 2, 1), p["g3"], p["be3"]))
    x = jax.nn.sigmoid(conv(x, p["w4"], p["b4"], 1, 0))
    return x.reshape(-1, 1)


# ----------------------------------- main ------------------------------------ #

if __name__ == "__main__":
    key = jax.random.PRNGKey(0)
    k_x, k_p = jax.random.split(key)
    # 9 channels, 32x32 so the final 4x4 valid conv yields 1x1 -> output (N, 1).
    x = jax.random.normal(k_x, (2, 9, 32, 32), jnp.float32)
    params = init_params(k_p)

    out = jax.block_until_ready(jax.jit(discriminator_forward)(x, params))
    assert out.shape == (2, 1), out.shape
    assert bool(jnp.all(jnp.isfinite(out)))

    ref = jax.block_until_ready(ref_forward(x, params))
    # bf16 MXU operands (f32 accumulation) in layers 2-3 vs. an f32 HIGHEST
    # XLA reference: 2e-2 on sigmoid outputs (logic errors are ~0.1-0.5).
    assert jnp.allclose(out, ref, atol=2e-2, rtol=2e-2), (out, ref)

    print("KERNEL_OK")
</pallas_src>

<mosaic_0001>
module attributes {stable_mosaic.version = 11 : i64} {
  func.func @kernel(%arg0: memref<512x144xf32, #tpu.memory_space<vmem>>, %arg1: memref<144x64xf32, #tpu.memory_space<vmem>>, %arg2: memref<1x64xf32, #tpu.memory_space<vmem>>, %arg3: memref<1024x256xbf16, #tpu.memory_space<vmem>>, %arg4: memref<1024x128xbf16, #tpu.memory_space<vmem>>, %arg5: memref<1x128xf32, #tpu.memory_space<vmem>>, %arg6: memref<1x128xf32, #tpu.memory_space<vmem>>, %arg7: memref<1x128xf32, #tpu.memory_space<vmem>>, %arg8: memref<256x64xbf16, #tpu.memory_space<vmem>>, %arg9: memref<2048x256xbf16, #tpu.memory_space<vmem>>, %arg10: memref<1x256xf32, #tpu.memory_space<vmem>>, %arg11: memref<1x256xf32, #tpu.memory_space<vmem>>, %arg12: memref<1x256xf32, #tpu.memory_space<vmem>>, %arg13: memref<16x256xf32, #tpu.memory_space<vmem>>, %arg14: memref<1x1xf32, #tpu.memory_space<vmem>>, %arg15: memref<2x1xf32, #tpu.memory_space<vmem>>, %arg16: memref<512x64xbf16, #tpu.memory_space<vmem>>, %arg17: memref<2048x64xbf16, #tpu.memory_space<vmem>>, %arg18: memref<128x128xbf16, #tpu.memory_space<vmem>>, %arg19: memref<512x128xbf16, #tpu.memory_space<vmem>>) attributes {dimension_semantics = [], scalar_prefetch = 0 : i64, scratch_operands = 4 : i64, tpu.core_type = #tpu.core_type<tc>} {
    %c0 = arith.constant 0 : index
    %c0_0 = arith.constant 0 : index
    %0 = vector.load %arg0[%c0, %c0_0] : memref<512x144xf32, #tpu.memory_space<vmem>>, vector<512x144xf32>
    %c0_1 = arith.constant 0 : index
    %c0_2 = arith.constant 0 : index
    %1 = vector.load %arg1[%c0_1, %c0_2] : memref<144x64xf32, #tpu.memory_space<vmem>>, vector<144x64xf32>
    %cst = arith.constant dense<0.000000e+00> : vector<512x64xf32>
    %2 = tpu.matmul %0, %1, %cst {dimension_numbers = #tpu.dot_dimension_numbers<[1], [0], [0], [1], [0, 0, 1, 1], [], []>} : vector<512x144xf32>, vector<144x64xf32>, vector<512x64xf32> -> vector<512x64xf32>
    %c0_3 = arith.constant 0 : index
    %c0_4 = arith.constant 0 : index
    %3 = vector.load %arg2[%c0_3, %c0_4] : memref<1x64xf32, #tpu.memory_space<vmem>>, vector<1x64xf32>
    %4 = vector.broadcast %3 : vector<1x64xf32> to vector<512x64xf32>
    %5 = arith.addf %2, %4 : vector<512x64xf32>
    %cst_5 = arith.constant 2.000000e-01 : f32
    %6 = vector.broadcast %cst_5 : f32 to vector<512x64xf32>
    %7 = arith.mulf %6, %5 : vector<512x64xf32>
    %8 = arith.maximumf %5, %7 : vector<512x64xf32>
    %9 = arith.truncf %8 : vector<512x64xf32> to vector<512x64xbf16>
    %c0_6 = arith.constant 0 : index
    %c0_7 = arith.constant 0 : index
    %10 = vector.load %arg16[%c0_6, %c0_7] : memref<512x64xbf16, #tpu.memory_space<vmem>>, vector<512x64xbf16>
    tpu.vector_store %arg16[%c0_6, %c0_7], %9 {strides = array<i32>} : memref<512x64xbf16, #tpu.memory_space<vmem>>, vector<512x64xbf16>,
    %c0_8 = arith.constant 0 : index
    %c0_9 = arith.constant 0 : index
    %11 = vector.load %arg3[%c0_8, %c0_9] : memref<1024x256xbf16, #tpu.memory_space<vmem>>, vector<1024x256xbf16>
    %c0_10 = arith.constant 0 : index
    %c0_11 = arith.constant 0 : index
    %12 = vector.load %arg16[%c0_10, %c0_11] : memref<512x64xbf16, #tpu.memory_space<vmem>>, vector<256x64xbf16>
    %cst_12 = arith.constant dense<0.000000e+00> : vector<1024x64xf32>
    %13 = tpu.matmul %11, %12, %cst_12 {dimension_numbers = #tpu.dot_dimension_numbers<[1], [0], [0], [1], [0, 0, 1, 1], [], []>} : vector<1024x256xbf16>, vector<256x64xbf16>, vector<1024x64xf32> -> vector<1024x64xf32>
    %14 = arith.truncf %13 : vector<1024x64xf32> to vector<1024x64xbf16>
    %c0_13 = arith.constant 0 : index
    %c0_14 = arith.constant 0 : index
    %15 = vector.load %arg17[%c0_13, %c0_14] : memref<2048x64xbf16, #tpu.memory_space<vmem>>, vector<1024x64xbf16>
    tpu.vector_store %arg17[%c0_13, %c0_14], %14 {strides = array<i32>} : memref<2048x64xbf16, #tpu.memory_space<vmem>>, vector<1024x64xbf16>,
    %c0_15 = arith.constant 0 : index
    %c0_16 = arith.constant 0 : index
    %16 = vector.load %arg3[%c0_15, %c0_16] : memref<1024x256xbf16, #tpu.memory_space<vmem>>, vector<1024x256xbf16>
    %c256 = arith.constant 256 : index
    %c0_17 = arith.constant 0 : index
    %17 = vector.load %arg16[%c256, %c0_17] : memref<512x64xbf16, #tpu.memory_space<vmem>>, vector<256x64xbf16>
    %cst_18 = arith.constant dense<0.000000e+00> : vector<1024x64xf32>
    %18 = tpu.matmul %16, %17, %cst_18 {dimension_numbers = #tpu.dot_dimension_numbers<[1], [0], [0], [1], [0, 0, 1, 1], [], []>} : vector<1024x256xbf16>, vector<256x64xbf16>, vector<1024x64xf32> -> vector<1024x64xf32>
    %19 = arith.truncf %18 : vector<1024x64xf32> to vector<1024x64xbf16>
    %c1024 = arith.constant 1024 : index
    %c0_19 = arith.constant 0 : index
    %20 = vector.load %arg17[%c1024, %c0_19] : memref<2048x64xbf16, #tpu.memory_space<vmem>>, vector<1024x64xbf16>
    tpu.vector_store %arg17[%c1024, %c0_19], %19 {strides = array<i32>} : memref<2048x64xbf16, #tpu.memory_space<vmem>>, vector<1024x64xbf16>,
    %cst_20 = arith.constant 0.000000e+00 : f32
    %21 = vector.broadcast %cst_20 : f32 to vector<128x128xf32>
    %cst_21 = arith.constant 0.000000e+00 : f32
    %22 = vector.broadcast %cst_21 : f32 to vector<128x128xf32>
    %c0_22 = arith.constant 0 : index
    %c0_23 = arith.constant 0 : index
    %23 = vector.load %arg17[%c0_22, %c0_23] : memref<2048x64xbf16, #tpu.memory_space<vmem>>, vector<64x64xbf16>
    %c1024_24 = arith.constant 1024 : index
    %c0_25 = arith.constant 0 : index
    %24 = vector.load %arg17[%c1024_24, %c0_25] : memref<2048x64xbf16, #tpu.memory_space<vmem>>, vector<64x64xbf16>
    %25 = tpu.concatenate %23, %24 in 0 : vector<64x64xbf16>, vector<64x64xbf16> -> vector<128x64xbf16>
    %c0_26 = arith.constant 0 : index
    %c0_27 = arith.constant 0 : index
    %26 = vector.load %arg4[%c0_26, %c0_27] : memref<1024x128xbf16, #tpu.memory_space<vmem>>, vector<64x128xbf16>
    %cst_28 = arith.constant dense<0.000000e+00> : vector<128x128xf32>
    %27 = tpu.matmul %25, %26, %cst_28 {dimension_numbers = #tpu.dot_dimension_numbers<[1], [0], [0], [1], [0, 0, 1, 1], [], []>} : vector<128x64xbf16>, vector<64x128xbf16>, vector<128x128xf32> -> vector<128x128xf32>
    %28 = arith.addf %21, %27 : vector<128x128xf32>
    %c64 = arith.constant 64 : index
    %c0_29 = arith.constant 0 : index
    %29 = vector.load %arg17[%c64, %c0_29] : memref<2048x64xbf16, #tpu.memory_space<vmem>>, vector<64x64xbf16>
    %c1088 = arith.constant 1088 : index
    %c0_30 = arith.constant 0 : index
    %30 = vector.load %arg17[%c1088, %c0_30] : memref<2048x64xbf16, #tpu.memory_space<vmem>>, vector<64x64xbf16>
    %31 = tpu.concatenate %29, %30 in 0 : vector<64x64xbf16>, vector<64x64xbf16> -> vector<128x64xbf16>
    %c64_31 = arith.constant 64 : index
    %c0_32 = arith.constant 0 : index
    %32 = vector.load %arg4[%c64_31, %c0_32] : memref<1024x128xbf16, #tpu.memory_space<vmem>>, vector<64x128xbf16>
    %cst_33 = arith.constant dense<0.000000e+00> : vector<128x128xf32>
    %33 = tpu.matmul %31, %32, %cst_33 {dimension_numbers = #tpu.dot_dimension_numbers<[1], [0], [0], [1], [0, 0, 1, 1], [], []>} : vector<128x64xbf16>, vector<64x128xbf16>, vector<128x128xf32> -> vector<128x128xf32>
    %34 = arith.addf %22, %33 : vector<128x128xf32>
    %c128 = arith.constant 128 : index
    %c0_34 = arith.constant 0 : index
    %35 = vector.load %arg17[%c128, %c0_34] : memref<2048x64xbf16, #tpu.memory_space<vmem>>, vector<64x64xbf16>
    %c1152 = arith.constant 1152 : index
    %c0_35 = arith.constant 0 : index
    %36 = vector.load %arg17[%c1152, %c0_35] : memref<2048x64xbf16, #tpu.memory_space<vmem>>, vector<64x64xbf16>
    %37 = tpu.concatenate %35, %36 in 0 : vector<64x64xbf16>, vector<64x64xbf16> -> vector<128x64xbf16>
    %c128_36 = arith.constant 128 : index
    %c0_37 = arith.constant 0 : index
    %38 = vector.load %arg4[%c128_36, %c0_37] : memref<1024x128xbf16, #tpu.memory_space<vmem>>, vector<64x128xbf16>
    %cst_38 = arith.constant dense<0.000000e+00> : vector<128x128xf32>
    %39 = tpu.matmul %37, %38, %cst_38 {dimension_numbers = #tpu.dot_dimension_numbers<[1], [0], [0], [1], [0, 0, 1, 1], [], []>} : vector<128x64xbf16>, vector<64x128xbf16>, vector<128x128xf32> -> vector<128x128xf32>
    %40 = arith.addf %28, %39 : vector<128x128xf32>
    %c192 = arith.constant 192 : index
    %c0_39 = arith.constant 0 : index
    %41 = vector.load %arg17[%c192, %c0_39] : memref<2048x64xbf16, #tpu.memory_space<vmem>>, vector<64x64xbf16>
    %c1216 = arith.constant 1216 : index
    %c0_40 = arith.constant 0 : index
    %42 = vector.load %arg17[%c1216, %c0_40] : memref<2048x64xbf16, #tpu.memory_space<vmem>>, vector<64x64xbf16>
    %43 = tpu.concatenate %41, %42 in 0 : vector<64x64xbf16>, vector<64x64xbf16> -> vector<128x64xbf16>
    %c192_41 = arith.constant 192 : index
    %c0_42 = arith.constant 0 : index
    %44 = vector.load %arg4[%c192_41, %c0_42] : memref<1024x128xbf16, #tpu.memory_space<vmem>>, vector<64x128xbf16>
    %cst_43 = arith.constant dense<0.000000e+00> : vector<128x128xf32>
    %45 = tpu.matmul %43, %44, %cst_43 {dimension_numbers = #tpu.dot_dimension_numbers<[1], [0], [0], [1], [0, 0, 1, 1], [], []>} : vector<128x64xbf16>, vector<64x128xbf16>, vector<128x128xf32> -> vector<128x128xf32>
    %46 = arith.addf %34, %45 : vector<128x128xf32>
    %c256_44 = arith.constant 256 : index
    %c0_45 = arith.constant 0 : index
    %47 = vector.load %arg17[%c256_44, %c0_45] : memref<2048x64xbf16, #tpu.memory_space<vmem>>, vector<64x64xbf16>
    %c1280 = arith.constant 1280 : index
    %c0_46 = arith.constant 0 : index
    %48 = vector.load %arg17[%c1280, %c0_46] : memref<2048x64xbf16, #tpu.memory_space<vmem>>, vector<64x64xbf16>
    %49 = tpu.concatenate %47, %48 in 0 : vector<64x64xbf16>, vector<64x64xbf16> -> vector<128x64xbf16>
    %c256_47 = arith.constant 256 : index
    %c0_48 = arith.constant 0 : index
    %50 = vector.load %arg4[%c256_47, %c0_48] : memref<1024x128xbf16, #tpu.memory_space<vmem>>, vector<64x128xbf16>
    %cst_49 = arith.constant dense<0.000000e+00> : vector<128x128xf32>
    %51 = tpu.matmul %49, %50, %cst_49 {dimension_numbers = #tpu.dot_dimension_numbers<[1], [0], [0], [1], [0, 0, 1, 1], [], []>} : vector<128x64xbf16>, vector<64x128xbf16>, vector<128x128xf32> -> vector<128x128xf32>
    %52 = arith.addf %40, %51 : vector<128x128xf32>
    %c320 = arith.constant 320 : index
    %c0_50 = arith.constant 0 : index
    %53 = vector.load %arg17[%c320, %c0_50] : memref<2048x64xbf16, #tpu.memory_space<vmem>>, vector<64x64xbf16>
    %c1344 = arith.constant 1344 : index
    %c0_51 = arith.constant 0 : index
    %54 = vector.load %arg17[%c1344, %c0_51] : memref<2048x64xbf16, #tpu.memory_space<vmem>>, vector<64x64xbf16>
    %55 = tpu.concatenate %53, %54 in 0 : vector<64x64xbf16>, vector<64x64xbf16> -> vector<128x64xbf16>
    %c320_52 = arith.constant 320 : index
    %c0_53 = arith.constant 0 : index
    %56 = vector.load %arg4[%c320_52, %c0_53] : memref<1024x128xbf16, #tpu.memory_space<vmem>>, vector<64x128xbf16>
    %cst_54 = arith.constant dense<0.000000e+00> : vector<128x128xf32>
    %57 = tpu.matmul %55, %56, %cst_54 {dimension_numbers = #tpu.dot_dimension_numbers<[1], [0], [0], [1], [0, 0, 1, 1], [], []>} : vector<128x64xbf16>, vector<64x128xbf16>, vector<128x128xf32> -> vector<128x128xf32>
    %58 = arith.addf %46, %57 : vector<128x128xf32>
    %c384 = arith.constant 384 : index
    %c0_55 = arith.constant 0 : index
    %59 = vector.load %arg17[%c384, %c0_55] : memref<2048x64xbf16, #tpu.memory_space<vmem>>, vector<64x64xbf16>
    %c1408 = arith.constant 1408 : index
    %c0_56 = arith.constant 0 : index
    %60 = vector.load %arg17[%c1408, %c0_56] : memref<2048x64xbf16, #tpu.memory_space<vmem>>, vector<64x64xbf16>
    %61 = tpu.concatenate %59, %60 in 0 : vector<64x64xbf16>, vector<64x64xbf16> -> vector<128x64xbf16>
    %c384_57 = arith.constant 384 : index
    %c0_58 = arith.constant 0 : index
    %62 = vector.load %arg4[%c384_57, %c0_58] : memref<1024x128xbf16, #tpu.memory_space<vmem>>, vector<64x128xbf16>
    %cst_59 = arith.constant dense<0.000000e+00> : vector<128x128xf32>
    %63 = tpu.matmul %61, %62, %cst_59 {dimension_numbers = #tpu.dot_dimension_numbers<[1], [0], [0], [1], [0, 0, 1, 1], [], []>} : vector<128x64xbf16>, vector<64x128xbf16>, vector<128x128xf32> -> vector<128x128xf32>
    %64 = arith.addf %52, %63 : vector<128x128xf32>
    %c448 = arith.constant 448 : index
    %c0_60 = arith.constant 0 : index
    %65 = vector.load %arg17[%c448, %c0_60] : memref<2048x64xbf16, #tpu.memory_space<vmem>>, vector<64x64xbf16>
    %c1472 = arith.constant 1472 : index
    %c0_61 = arith.constant 0 : index
    %66 = vector.load %arg17[%c1472, %c0_61] : memref<2048x64xbf16, #tpu.memory_space<vmem>>, vector<64x64xbf16>
    %67 = tpu.concatenate %65, %66 in 0 : vector<64x64xbf16>, vector<64x64xbf16> -> vector<128x64xbf16>
    %c448_62 = arith.constant 448 : index
    %c0_63 = arith.constant 0 : index
    %68 = vector.load %arg4[%c448_62, %c0_63] : memref<1024x128xbf16, #tpu.memory_space<vmem>>, vector<64x128xbf16>
    %cst_64 = arith.constant dense<0.000000e+00> : vector<128x128xf32>
    %69 = tpu.matmul %67, %68, %cst_64 {dimension_numbers = #tpu.dot_dimension_numbers<[1], [0], [0], [1], [0, 0, 1, 1], [], []>} : vector<128x64xbf16>, vector<64x128xbf16>, vector<128x128xf32> -> vector<128x128xf32>
    %70 = arith.addf %58, %69 : vector<128x128xf32>
    %c512 = arith.constant 512 : index
    %c0_65 = arith.constant 0 : index
    %71 = vector.load %arg17[%c512, %c0_65] : memref<2048x64xbf16, #tpu.memory_space<vmem>>, vector<64x64xbf16>
    %c1536 = arith.constant 1536 : index
    %c0_66 = arith.constant 0 : index
    %72 = vector.load %arg17[%c1536, %c0_66] : memref<2048x64xbf16, #tpu.memory_space<vmem>>, vector<64x64xbf16>
    %73 = tpu.concatenate %71, %72 in 0 : vector<64x64xbf16>, vector<64x64xbf16> -> vector<128x64xbf16>
    %c512_67 = arith.constant 512 : index
    %c0_68 = arith.constant 0 : index
    %74 = vector.load %arg4[%c512_67, %c0_68] : memref<1024x128xbf16, #tpu.memory_space<vmem>>, vector<64x128xbf16>
    %cst_69 = arith.constant dense<0.000000e+00> : vector<128x128xf32>
    %75 = tpu.matmul %73, %74, %cst_69 {dimension_numbers = #tpu.dot_dimension_numbers<[1], [0], [0], [1], [0, 0, 1, 1], [], []>} : vector<128x64xbf16>, vector<64x128xbf16>, vector<128x128xf32> -> vector<128x128xf32>
    %76 = arith.addf %64, %75 : vector<128x128xf32>
    %c576 = arith.constant 576 : index
    %c0_70 = arith.constant 0 : index
    %77 = vector.load %arg17[%c576, %c0_70] : memref<2048x64xbf16, #tpu.memory_space<vmem>>, vector<64x64xbf16>
    %c1600 = arith.constant 1600 : index
    %c0_71 = arith.constant 0 : index
    %78 = vector.load %arg17[%c1600, %c0_71] : memref<2048x64xbf16, #tpu.memory_space<vmem>>, vector<64x64xbf16>
    %79 = tpu.concatenate %77, %78 in 0 : vector<64x64xbf16>, vector<64x64xbf16> -> vector<128x64xbf16>
    %c576_72 = arith.constant 576 : index
    %c0_73 = arith.constant 0 : index
    %80 = vector.load %arg4[%c576_72, %c0_73] : memref<1024x128xbf16, #tpu.memory_space<vmem>>, vector<64x128xbf16>
    %cst_74 = arith.constant dense<0.000000e+00> : vector<128x128xf32>
    %81 = tpu.matmul %79, %80, %cst_74 {dimension_numbers = #tpu.dot_dimension_numbers<[1], [0], [0], [1], [0, 0, 1, 1], [], []>} : vector<128x64xbf16>, vector<64x128xbf16>, vector<128x128xf32> -> vector<128x128xf32>
    %82 = arith.addf %70, %81 : vector<128x128xf32>
    %c640 = arith.constant 640 : index
    %c0_75 = arith.constant 0 : index
    %83 = vector.load %arg17[%c640, %c0_75] : memref<2048x64xbf16, #tpu.memory_space<vmem>>, vector<64x64xbf16>
    %c1664 = arith.constant 1664 : index
    %c0_76 = arith.constant 0 : index
    %84 = vector.load %arg17[%c1664, %c0_76] : memref<2048x64xbf16, #tpu.memory_space<vmem>>, vector<64x64xbf16>
    %85 = tpu.concatenate %83, %84 in 0 : vector<64x64xbf16>, vector<64x64xbf16> -> vector<128x64xbf16>
    %c640_77 = arith.constant 640 : index
    %c0_78 = arith.constant 0 : index
    %86 = vector.load %arg4[%c640_77, %c0_78] : memref<1024x128xbf16, #tpu.memory_space<vmem>>, vector<64x128xbf16>
    %cst_79 = arith.constant dense<0.000000e+00> : vector<128x128xf32>
    %87 = tpu.matmul %85, %86, %cst_79 {dimension_numbers = #tpu.dot_dimension_numbers<[1], [0], [0], [1], [0, 0, 1, 1], [], []>} : vector<128x64xbf16>, vector<64x128xbf16>, vector<128x128xf32> -> vector<128x128xf32>
    %88 = arith.addf %76, %87 : vector<128x128xf32>
    %c704 = arith.constant 704 : index
    %c0_80 = arith.constant 0 : index
    %89 = vector.load %arg17[%c704, %c0_80] : memref<2048x64xbf16, #tpu.memory_space<vmem>>, vector<64x64xbf16>
    %c1728 = arith.constant 1728 : index
    %c0_81 = arith.constant 0 : index
    %90 = vector.load %arg17[%c1728, %c0_81] : memref<2048x64xbf16, #tpu.memory_space<vmem>>, vector<64x64xbf16>
    %91 = tpu.concatenate %89, %90 in 0 : vector<64x64xbf16>, vector<64x64xbf16> -> vector<128x64xbf16>
    %c704_82 = arith.constant 704 : index
    %c0_83 = arith.constant 0 : index
    %92 = vector.load %arg4[%c704_82, %c0_83] : memref<1024x128xbf16, #tpu.memory_space<vmem>>, vector<64x128xbf16>
    %cst_84 = arith.constant dense<0.000000e+00> : vector<128x128xf32>
    %93 = tpu.matmul %91, %92, %cst_84 {dimension_numbers = #tpu.dot_dimension_numbers<[1], [0], [0], [1], [0, 0, 1, 1], [], []>} : vector<128x64xbf16>, vector<64x128xbf16>, vector<128x128xf32> -> vector<128x128xf32>
    %94 = arith.addf %82, %93 : vector<128x128xf32>
    %c768 = arith.constant 768 : index
    %c0_85 = arith.constant 0 : index
    %95 = vector.load %arg17[%c768, %c0_85] : memref<2048x64xbf16, #tpu.memory_space<vmem>>, vector<64x64xbf16>
    %c1792 = arith.constant 1792 : index
    %c0_86 = arith.constant 0 : index
    %96 = vector.load %arg17[%c1792, %c0_86] : memref<2048x64xbf16, #tpu.memory_space<vmem>>, vector<64x64xbf16>
    %97 = tpu.concatenate %95, %96 in 0 : vector<64x64xbf16>, vector<64x64xbf16> -> vector<128x64xbf16>
    %c768_87 = arith.constant 768 : index
    %c0_88 = arith.constant 0 : index
    %98 = vector.load %arg4[%c768_87, %c0_88] : memref<1024x128xbf16, #tpu.memory_space<vmem>>, vector<64x128xbf16>
    %cst_89 = arith.constant dense<0.000000e+00> : vector<128x128xf32>
    %99 = tpu.matmul %97, %98, %cst_89 {dimension_numbers = #tpu.dot_dimension_numbers<[1], [0], [0], [1], [0, 0, 1, 1], [], []>} : vector<128x64xbf16>, vector<64x128xbf16>, vector<128x128xf32> -> vector<128x128xf32>
    %100 = arith.addf %88, %99 : vector<128x128xf32>
    %c832 = arith.constant 832 : index
    %c0_90 = arith.constant 0 : index
    %101 = vector.load %arg17[%c832, %c0_90] : memref<2048x64xbf16, #tpu.memory_space<vmem>>, vector<64x64xbf16>
    %c1856 = arith.constant 1856 : index
    %c0_91 = arith.constant 0 : index
    %102 = vector.load %arg17[%c1856, %c0_91] : memref<2048x64xbf16, #tpu.memory_space<vmem>>, vector<64x64xbf16>
    %103 = tpu.concatenate %101, %102 in 0 : vector<64x64xbf16>, vector<64x64xbf16> -> vector<128x64xbf16>
    %c832_92 = arith.constant 832 : index
    %c0_93 = arith.constant 0 : index
    %104 = vector.load %arg4[%c832_92, %c0_93] : memref<1024x128xbf16, #tpu.memory_space<vmem>>, vector<64x128xbf16>
    %cst_94 = arith.constant dense<0.000000e+00> : vector<128x128xf32>
    %105 = tpu.matmul %103, %104, %cst_94 {dimension_numbers = #tpu.dot_dimension_numbers<[1], [0], [0], [1], [0, 0, 1, 1], [], []>} : vector<128x64xbf16>, vector<64x128xbf16>, vector<128x128xf32> -> vector<128x128xf32>
    %106 = arith.addf %94, %105 : vector<128x128xf32>
    %c896 = arith.constant 896 : index
    %c0_95 = arith.constant 0 : index
    %107 = vector.load %arg17[%c896, %c0_95] : memref<2048x64xbf16, #tpu.memory_space<vmem>>, vector<64x64xbf16>
    %c1920 = arith.constant 1920 : index
    %c0_96 = arith.constant 0 : index
    %108 = vector.load %arg17[%c1920, %c0_96] : memref<2048x64xbf16, #tpu.memory_space<vmem>>, vector<64x64xbf16>
    %109 = tpu.concatenate %107, %108 in 0 : vector<64x64xbf16>, vector<64x64xbf16> -> vector<128x64xbf16>
    %c896_97 = arith.constant 896 : index
    %c0_98 = arith.constant 0 : index
    %110 = vector.load %arg4[%c896_97, %c0_98] : memref<1024x128xbf16, #tpu.memory_space<vmem>>, vector<64x128xbf16>
    %cst_99 = arith.constant dense<0.000000e+00> : vector<128x128xf32>
    %111 = tpu.matmul %109, %110, %cst_99 {dimension_numbers = #tpu.dot_dimension_numbers<[1], [0], [0], [1], [0, 0, 1, 1], [], []>} : vector<128x64xbf16>, vector<64x128xbf16>, vector<128x128xf32> -> vector<128x128xf32>
    %112 = arith.addf %100, %111 : vector<128x128xf32>
    %c960 = arith.constant 960 : index
    %c0_100 = arith.constant 0 : index
    %113 = vector.load %arg17[%c960, %c0_100] : memref<2048x64xbf16, #tpu.memory_space<vmem>>, vector<64x64xbf16>
    %c1984 = arith.constant 1984 : index
    %c0_101 = arith.constant 0 : index
    %114 = vector.load %arg17[%c1984, %c0_101] : memref<2048x64xbf16, #tpu.memory_space<vmem>>, vector<64x64xbf16>
    %115 = tpu.concatenate %113, %114 in 0 : vector<64x64xbf16>, vector<64x64xbf16> -> vector<128x64xbf16>
    %c960_102 = arith.constant 960 : index
    %c0_103 = arith.constant 0 : index
    %116 = vector.load %arg4[%c960_102, %c0_103] : memref<1024x128xbf16, #tpu.memory_space<vmem>>, vector<64x128xbf16>
    %cst_104 = arith.constant dense<0.000000e+00> : vector<128x128xf32>
    %117 = tpu.matmul %115, %116, %cst_104 {dimension_numbers = #tpu.dot_dimension_numbers<[1], [0], [0], [1], [0, 0, 1, 1], [], []>} : vector<128x64xbf16>, vector<64x128xbf16>, vector<128x128xf32> -> vector<128x128xf32>
    %118 = arith.addf %106, %117 : vector<128x128xf32>
    %119 = arith.addf %112, %118 : vector<128x128xf32>
    %c0_105 = arith.constant 0 : index
    %c0_106 = arith.constant 0 : index
    %120 = vector.load %arg5[%c0_105, %c0_106] : memref<1x128xf32, #tpu.memory_space<vmem>>, vector<1x128xf32>
    %121 = vector.broadcast %120 : vector<1x128xf32> to vector<128x128xf32>
    %122 = arith.addf %119, %121 : vector<128x128xf32>
    %c0_107 = arith.constant 0 : index
    %c0_108 = arith.constant 0 : index
    %123 = vector.load %arg6[%c0_107, %c0_108] : memref<1x128xf32, #tpu.memory_space<vmem>>, vector<1x128xf32>
    %c0_109 = arith.constant 0 : index
    %c0_110 = arith.constant 0 : index
    %124 = vector.load %arg7[%c0_109, %c0_110] : memref<1x128xf32, #tpu.memory_space<vmem>>, vector<1x128xf32>
    %cst_111 = arith.constant dense<0.000000e+00> : vector<128xf32>
    %125 = vector.multi_reduction <add>, %122, %cst_111 [0] : vector<128x128xf32> to vector<128xf32>
    %126 = vector.shape_cast %125 : vector<128xf32> to vector<1x128xf32>
    %cst_112 = arith.constant 1.280000e+02 : f32
    %127 = vector.broadcast %cst_112 : f32 to vector<1x128xf32>
    %128 = arith.divf %126, %127 : vector<1x128xf32>
    %129 = vector.broadcast %128 : vector<1x128xf32> to vector<128x128xf32>
    %130 = arith.subf %122, %129 : vector<128x128xf32>
    %131 = arith.mulf %130, %130 : vector<128x128xf32>
    %cst_113 = arith.constant dense<0.000000e+00> : vector<128xf32>
    %132 = vector.multi_reduction <add>, %131, %cst_113 [0] : vector<128x128xf32> to vector<128xf32>
    %133 = vector.shape_cast %132 : vector<128xf32> to vector<1x128xf32>
    %cst_114 = arith.constant 1.280000e+02 : f32
    %134 = vector.broadcast %cst_114 : f32 to vector<1x128xf32>
    %135 = arith.divf %133, %134 : vector<1x128xf32>
    %cst_115 = arith.constant 9.99999974E-6 : f32
    %136 = vector.broadcast %cst_115 : f32 to vector<1x128xf32>
    %137 = arith.addf %135, %136 : vector<1x128xf32>
    %138 = math.rsqrt %137 : vector<1x128xf32>
    %139 = vector.broadcast %138 : vector<1x128xf32> to vector<128x128xf32>
    %140 = arith.mulf %130, %139 : vector<128x128xf32>
    %141 = vector.broadcast %123 : vector<1x128xf32> to vector<128x128xf32>
    %142 = arith.mulf %140, %141 : vector<128x128xf32>
    %143 = vector.broadcast %124 : vector<1x128xf32> to vector<128x128xf32>
    %144 = arith.addf %142, %143 : vector<128x128xf32>
    %cst_116 = arith.constant 2.000000e-01 : f32
    %145 = vector.broadcast %cst_116 : f32 to vector<128x128xf32>
    %146 = arith.mulf %145, %144 : vector<128x128xf32>
    %147 = arith.maximumf %144, %146 : vector<128x128xf32>
    %148 = arith.truncf %147 : vector<128x128xf32> to vector<128x128xbf16>
    %c0_117 = arith.constant 0 : index
    %c0_118 = arith.constant 0 : index
    %149 = vector.load %arg18[%c0_117, %c0_118] : memref<128x128xbf16, #tpu.memory_space<vmem>>, vector<128x128xbf16>
    tpu.vector_store %arg18[%c0_117, %c0_118], %148 {strides = array<i32>} : memref<128x128xbf16, #tpu.memory_space<vmem>>, vector<128x128xbf16>,
    %c0_119 = arith.constant 0 : index
    %c0_120 = arith.constant 0 : index
    %150 = vector.load %arg8[%c0_119, %c0_120] : memref<256x64xbf16, #tpu.memory_space<vmem>>, vector<256x64xbf16>
    %c0_121 = arith.constant 0 : index
    %c0_122 = arith.constant 0 : index
    %151 = vector.load %arg18[%c0_121, %c0_122] : memref<128x128xbf16, #tpu.memory_space<vmem>>, vector<64x128xbf16>
    %cst_123 = arith.constant dense<0.000000e+00> : vector<256x128xf32>
    %152 = tpu.matmul %150, %151, %cst_123 {dimension_numbers = #tpu.dot_dimension_numbers<[1], [0], [0], [1], [0, 0, 1, 1], [], []>} : vector<256x64xbf16>, vector<64x128xbf16>, vector<256x128xf32> -> vector<256x128xf32>
    %153 = arith.truncf %152 : vector<256x128xf32> to vector<256x128xbf16>
    %c0_124 = arith.constant 0 : index
    %c0_125 = arith.constant 0 : index
    %154 = vector.load %arg19[%c0_124, %c0_125] : memref<512x128xbf16, #tpu.memory_space<vmem>>, vector<256x128xbf16>
    tpu.vector_store %arg19[%c0_124, %c0_125], %153 {strides = array<i32>} : memref<512x128xbf16, #tpu.memory_space<vmem>>, vector<256x128xbf16>,
    %c0_126 = arith.constant 0 : index
    %c0_127 = arith.constant 0 : index
    %155 = vector.load %arg8[%c0_126, %c0_127] : memref<256x64xbf16, #tpu.memory_space<vmem>>, vector<256x64xbf16>
    %c64_128 = arith.constant 64 : index
    %c0_129 = arith.constant 0 : index
    %156 = vector.load %arg18[%c64_128, %c0_129] : memref<128x128xbf16, #tpu.memory_space<vmem>>, vector<64x128xbf16>
    %cst_130 = arith.constant dense<0.000000e+00> : vector<256x128xf32>
    %157 = tpu.matmul %155, %156, %cst_130 {dimension_numbers = #tpu.dot_dimension_numbers<[1], [0], [0], [1], [0, 0, 1, 1], [], []>} : vector<256x64xbf16>, vector<64x128xbf16>, vector<256x128xf32> -> vector<256x128xf32>
    %158 = arith.truncf %157 : vector<256x128xf32> to vector<256x128xbf16>
    %c256_131 = arith.constant 256 : index
    %c0_132 = arith.constant 0 : index
    %159 = vector.load %arg19[%c256_131, %c0_132] : memref<512x128xbf16, #tpu.memory_space<vmem>>, vector<256x128xbf16>
    tpu.vector_store %arg19[%c256_131, %c0_132], %158 {strides = array<i32>} : memref<512x128xbf16, #tpu.memory_space<vmem>>, vector<256x128xbf16>,
    %cst_133 = arith.constant 0.000000e+00 : f32
    %160 = vector.broadcast %cst_133 : f32 to vector<32x256xf32>
    %cst_134 = arith.constant 0.000000e+00 : f32
    %161 = vector.broadcast %cst_134 : f32 to vector<32x256xf32>
    %c0_135 = arith.constant 0 : index
    %c0_136 = arith.constant 0 : index
    %162 = vector.load %arg19[%c0_135, %c0_136] : memref<512x128xbf16, #tpu.memory_space<vmem>>, vector<16x128xbf16>
    %c256_137 = arith.constant 256 : index
    %c0_138 = arith.constant 0 : index
    %163 = vector.load %arg19[%c256_137, %c0_138] : memref<512x128xbf16, #tpu.memory_space<vmem>>, vector<16x128xbf16>
    %164 = tpu.concatenate %162, %163 in 0 : vector<16x128xbf16>, vector<16x128xbf16> -> vector<32x128xbf16>
    %c0_139 = arith.constant 0 : index
    %c0_140 = arith.constant 0 : index
    %165 = vector.load %arg9[%c0_139, %c0_140] : memref<2048x256xbf16, #tpu.memory_space<vmem>>, vector<128x256xbf16>
    %cst_141 = arith.constant dense<0.000000e+00> : vector<32x256xf32>
    %166 = tpu.matmul %164, %165, %cst_141 {dimension_numbers = #tpu.dot_dimension_numbers<[1], [0], [0], [1], [0, 0, 1, 1], [], []>} : vector<32x128xbf16>, vector<128x256xbf16>, vector<32x256xf32> -> vector<32x256xf32>
    %167 = arith.addf %160, %166 : vector<32x256xf32>
    %c16 = arith.constant 16 : index
    %c0_142 = arith.constant 0 : index
    %168 = vector.load %arg19[%c16, %c0_142] : memref<512x128xbf16, #tpu.memory_space<vmem>>, vector<16x128xbf16>
    %c272 = arith.constant 272 : index
    %c0_143 = arith.constant 0 : index
    %169 = vector.load %arg19[%c272, %c0_143] : memref<512x128xbf16, #tpu.memory_space<vmem>>, vector<16x128xbf16>
    %170 = tpu.concatenate %168, %169 in 0 : vector<16x128xbf16>, vector<16x128xbf16> -> vector<32x128xbf16>
    %c128_144 = arith.constant 128 : index
    %c0_145 = arith.constant 0 : index
    %171 = vector.load %arg9[%c128_144, %c0_145] : memref<2048x256xbf16, #tpu.memory_space<vmem>>, vector<128x256xbf16>
    %cst_146 = arith.constant dense<0.000000e+00> : vector<32x256xf32>
    %172 = tpu.matmul %170, %171, %cst_146 {dimension_numbers = #tpu.dot_dimension_numbers<[1], [0], [0], [1], [0, 0, 1, 1], [], []>} : vector<32x128xbf16>, vector<128x256xbf16>, vector<32x256xf32> -> vector<32x256xf32>
    %173 = arith.addf %161, %172 : vector<32x256xf32>
    %c32 = arith.constant 32 : index
    %c0_147 = arith.constant 0 : index
    %174 = vector.load %arg19[%c32, %c0_147] : memref<512x128xbf16, #tpu.memory_space<vmem>>, vector<16x128xbf16>
    %c288 = arith.constant 288 : index
    %c0_148 = arith.constant 0 : index
    %175 = vector.load %arg19[%c288, %c0_148] : memref<512x128xbf16, #tpu.memory_space<vmem>>, vector<16x128xbf16>
    %176 = tpu.concatenate %174, %175 in 0 : vector<16x128xbf16>, vector<16x128xbf16> -> vector<32x128xbf16>
    %c256_149 = arith.constant 256 : index
    %c0_150 = arith.constant 0 : index
    %177 = vector.load %arg9[%c256_149, %c0_150] : memref<2048x256xbf16, #tpu.memory_space<vmem>>, vector<128x256xbf16>
    %cst_151 = arith.constant dense<0.000000e+00> : vector<32x256xf32>
    %178 = tpu.matmul %176, %177, %cst_151 {dimension_numbers = #tpu.dot_dimension_numbers<[1], [0], [0], [1], [0, 0, 1, 1], [], []>} : vector<32x128xbf16>, vector<128x256xbf16>, vector<32x256xf32> -> vector<32x256xf32>
    %179 = arith.addf %167, %178 : vector<32x256xf32>
    %c48 = arith.constant 48 : index
    %c0_152 = arith.constant 0 : index
    %180 = vector.load %arg19[%c48, %c0_152] : memref<512x128xbf16, #tpu.memory_space<vmem>>, vector<16x128xbf16>
    %c304 = arith.constant 304 : index
    %c0_153 = arith.constant 0 : index
    %181 = vector.load %arg19[%c304, %c0_153] : memref<512x128xbf16, #tpu.memory_space<vmem>>, vector<16x128xbf16>
    %182 = tpu.concatenate %180, %181 in 0 : vector<16x128xbf16>, vector<16x128xbf16> -> vector<32x128xbf16>
    %c384_154 = arith.constant 384 : index
    %c0_155 = arith.constant 0 : index
    %183 = vector.load %arg9[%c384_154, %c0_155] : memref<2048x256xbf16, #tpu.memory_space<vmem>>, vector<128x256xbf16>
    %cst_156 = arith.constant dense<0.000000e+00> : vector<32x256xf32>
    %184 = tpu.matmul %182, %183, %cst_156 {dimension_numbers = #tpu.dot_dimension_numbers<[1], [0], [0], [1], [0, 0, 1, 1], [], []>} : vector<32x128xbf16>, vector<128x256xbf16>, vector<32x256xf32> -> vector<32x256xf32>
    %185 = arith.addf %173, %184 : vector<32x256xf32>
    %c64_157 = arith.constant 64 : index
    %c0_158 = arith.constant 0 : index
    %186 = vector.load %arg19[%c64_157, %c0_158] : memref<512x128xbf16, #tpu.memory_space<vmem>>, vector<16x128xbf16>
    %c320_159 = arith.constant 320 : index
    %c0_160 = arith.constant 0 : index
    %187 = vector.load %arg19[%c320_159, %c0_160] : memref<512x128xbf16, #tpu.memory_space<vmem>>, vector<16x128xbf16>
    %188 = tpu.concatenate %186, %187 in 0 : vector<16x128xbf16>, vector<16x128xbf16> -> vector<32x128xbf16>
    %c512_161 = arith.constant 512 : index
    %c0_162 = arith.constant 0 : index
    %189 = vector.load %arg9[%c512_161, %c0_162] : memref<2048x256xbf16, #tpu.memory_space<vmem>>, vector<128x256xbf16>
    %cst_163 = arith.constant dense<0.000000e+00> : vector<32x256xf32>
    %190 = tpu.matmul %188, %189, %cst_163 {dimension_numbers = #tpu.dot_dimension_numbers<[1], [0], [0], [1], [0, 0, 1, 1], [], []>} : vector<32x128xbf16>, vector<128x256xbf16>, vector<32x256xf32> -> vector<32x256xf32>
    %191 = arith.addf %179, %190 : vector<32x256xf32>
    %c80 = arith.constant 80 : index
    %c0_164 = arith.constant 0 : index
    %192 = vector.load %arg19[%c80, %c0_164] : memref<512x128xbf16, #tpu.memory_space<vmem>>, vector<16x128xbf16>
    %c336 = arith.constant 336 : index
    %c0_165 = arith.constant 0 : index
    %193 = vector.load %arg19[%c336, %c0_165] : memref<512x128xbf16, #tpu.memory_space<vmem>>, vector<16x128xbf16>
    %194 = tpu.concatenate %192, %193 in 0 : vector<16x128xbf16>, vector<16x128xbf16> -> vector<32x128xbf16>
    %c640_166 = arith.constant 640 : index
    %c0_167 = arith.constant 0 : index
    %195 = vector.load %arg9[%c640_166, %c0_167] : memref<2048x256xbf16, #tpu.memory_space<vmem>>, vector<128x256xbf16>
    %cst_168 = arith.constant dense<0.000000e+00> : vector<32x256xf32>
    %196 = tpu.matmul %194, %195, %cst_168 {dimension_numbers = #tpu.dot_dimension_numbers<[1], [0], [0], [1], [0, 0, 1, 1], [], []>} : vector<32x128xbf16>, vector<128x256xbf16>, vector<32x256xf32> -> vector<32x256xf32>
    %197 = arith.addf %185, %196 : vector<32x256xf32>
    %c96 = arith.constant 96 : index
    %c0_169 = arith.constant 0 : index
    %198 = vector.load %arg19[%c96, %c0_169] : memref<512x128xbf16, #tpu.memory_space<vmem>>, vector<16x128xbf16>
    %c352 = arith.constant 352 : index
    %c0_170 = arith.constant 0 : index
    %199 = vector.load %arg19[%c352, %c0_170] : memref<512x128xbf16, #tpu.memory_space<vmem>>, vector<16x128xbf16>
    %200 = tpu.concatenate %198, %199 in 0 : vector<16x128xbf16>, vector<16x128xbf16> -> vector<32x128xbf16>
    %c768_171 = arith.constant 768 : index
    %c0_172 = arith.constant 0 : index
    %201 = vector.load %arg9[%c768_171, %c0_172] : memref<2048x256xbf16, #tpu.memory_space<vmem>>, vector<128x256xbf16>
    %cst_173 = arith.constant dense<0.000000e+00> : vector<32x256xf32>
    %202 = tpu.matmul %200, %201, %cst_173 {dimension_numbers = #tpu.dot_dimension_numbers<[1], [0], [0], [1], [0, 0, 1, 1], [], []>} : vector<32x128xbf16>, vector<128x256xbf16>, vector<32x256xf32> -> vector<32x256xf32>
    %203 = arith.addf %191, %202 : vector<32x256xf32>
    %c112 = arith.constant 112 : index
    %c0_174 = arith.constant 0 : index
    %204 = vector.load %arg19[%c112, %c0_174] : memref<512x128xbf16, #tpu.memory_space<vmem>>, vector<16x128xbf16>
    %c368 = arith.constant 368 : index
    %c0_175 = arith.constant 0 : index
    %205 = vector.load %arg19[%c368, %c0_175] : memref<512x128xbf16, #tpu.memory_space<vmem>>, vector<16x128xbf16>
    %206 = tpu.concatenate %204, %205 in 0 : vector<16x128xbf16>, vector<16x128xbf16> -> vector<32x128xbf16>
    %c896_176 = arith.constant 896 : index
    %c0_177 = arith.constant 0 : index
    %207 = vector.load %arg9[%c896_176, %c0_177] : memref<2048x256xbf16, #tpu.memory_space<vmem>>, vector<128x256xbf16>
    %cst_178 = arith.constant dense<0.000000e+00> : vector<32x256xf32>
    %208 = tpu.matmul %206, %207, %cst_178 {dimension_numbers = #tpu.dot_dimension_numbers<[1], [0], [0], [1], [0, 0, 1, 1], [], []>} : vector<32x128xbf16>, vector<128x256xbf16>, vector<32x256xf32> -> vector<32x256xf32>
    %209 = arith.addf %197, %208 : vector<32x256xf32>
    %c128_179 = arith.constant 128 : index
    %c0_180 = arith.constant 0 : index
    %210 = vector.load %arg19[%c128_179, %c0_180] : memref<512x128xbf16, #tpu.memory_space<vmem>>, vector<16x128xbf16>
    %c384_181 = arith.constant 384 : index
    %c0_182 = arith.constant 0 : index
    %211 = vector.load %arg19[%c384_181, %c0_182] : memref<512x128xbf16, #tpu.memory_space<vmem>>, vector<16x128xbf16>
    %212 = tpu.concatenate %210, %211 in 0 : vector<16x128xbf16>, vector<16x128xbf16> -> vector<32x128xbf16>
    %c1024_183 = arith.constant 1024 : index
    %c0_184 = arith.constant 0 : index
    %213 = vector.load %arg9[%c1024_183, %c0_184] : memref<2048x256xbf16, #tpu.memory_space<vmem>>, vector<128x256xbf16>
    %cst_185 = arith.constant dense<0.000000e+00> : vector<32x256xf32>
    %214 = tpu.matmul %212, %213, %cst_185 {dimension_numbers = #tpu.dot_dimension_numbers<[1], [0], [0], [1], [0, 0, 1, 1], [], []>} : vector<32x128xbf16>, vector<128x256xbf16>, vector<32x256xf32> -> vector<32x256xf32>
    %215 = arith.addf %203, %214 : vector<32x256xf32>
    %c144 = arith.constant 144 : index
    %c0_186 = arith.constant 0 : index
    %216 = vector.load %arg19[%c144, %c0_186] : memref<512x128xbf16, #tpu.memory_space<vmem>>, vector<16x128xbf16>
    %c400 = arith.constant 400 : index
    %c0_187 = arith.constant 0 : index
    %217 = vector.load %arg19[%c400, %c0_187] : memref<512x128xbf16, #tpu.memory_space<vmem>>, vector<16x128xbf16>
    %218 = tpu.concatenate %216, %217 in 0 : vector<16x128xbf16>, vector<16x128xbf16> -> vector<32x128xbf16>
    %c1152_188 = arith.constant 1152 : index
    %c0_189 = arith.constant 0 : index
    %219 = vector.load %arg9[%c1152_188, %c0_189] : memref<2048x256xbf16, #tpu.memory_space<vmem>>, vector<128x256xbf16>
    %cst_190 = arith.constant dense<0.000000e+00> : vector<32x256xf32>
    %220 = tpu.matmul %218, %219, %cst_190 {dimension_numbers = #tpu.dot_dimension_numbers<[1], [0], [0], [1], [0, 0, 1, 1], [], []>} : vector<32x128xbf16>, vector<128x256xbf16>, vector<32x256xf32> -> vector<32x256xf32>
    %221 = arith.addf %209, %220 : vector<32x256xf32>
    %c160 = arith.constant 160 : index
    %c0_191 = arith.constant 0 : index
    %222 = vector.load %arg19[%c160, %c0_191] : memref<512x128xbf16, #tpu.memory_space<vmem>>, vector<16x128xbf16>
    %c416 = arith.constant 416 : index
    %c0_192 = arith.constant 0 : index
    %223 = vector.load %arg19[%c416, %c0_192] : memref<512x128xbf16, #tpu.memory_space<vmem>>, vector<16x128xbf16>
    %224 = tpu.concatenate %222, %223 in 0 : vector<16x128xbf16>, vector<16x128xbf16> -> vector<32x128xbf16>
    %c1280_193 = arith.constant 1280 : index
    %c0_194 = arith.constant 0 : index
    %225 = vector.load %arg9[%c1280_193, %c0_194] : memref<2048x256xbf16, #tpu.memory_space<vmem>>, vector<128x256xbf16>
    %cst_195 = arith.constant dense<0.000000e+00> : vector<32x256xf32>
    %226 = tpu.matmul %224, %225, %cst_195 {dimension_numbers = #tpu.dot_dimension_numbers<[1], [0], [0], [1], [0, 0, 1, 1], [], []>} : vector<32x128xbf16>, vector<128x256xbf16>, vector<32x256xf32> -> vector<32x256xf32>
    %227 = arith.addf %215, %226 : vector<32x256xf32>
    %c176 = arith.constant 176 : index
    %c0_196 = arith.constant 0 : index
    %228 = vector.load %arg19[%c176, %c0_196] : memref<512x128xbf16, #tpu.memory_space<vmem>>, vector<16x128xbf16>
    %c432 = arith.constant 432 : index
    %c0_197 = arith.constant 0 : index
    %229 = vector.load %arg19[%c432, %c0_197] : memref<512x128xbf16, #tpu.memory_space<vmem>>, vector<16x128xbf16>
    %230 = tpu.concatenate %228, %229 in 0 : vector<16x128xbf16>, vector<16x128xbf16> -> vector<32x128xbf16>
    %c1408_198 = arith.constant 1408 : index
    %c0_199 = arith.constant 0 : index
    %231 = vector.load %arg9[%c1408_198, %c0_199] : memref<2048x256xbf16, #tpu.memory_space<vmem>>, vector<128x256xbf16>
    %cst_200 = arith.constant dense<0.000000e+00> : vector<32x256xf32>
    %232 = tpu.matmul %230, %231, %cst_200 {dimension_numbers = #tpu.dot_dimension_numbers<[1], [0], [0], [1], [0, 0, 1, 1], [], []>} : vector<32x128xbf16>, vector<128x256xbf16>, vector<32x256xf32> -> vector<32x256xf32>
    %233 = arith.addf %221, %232 : vector<32x256xf32>
    %c192_201 = arith.constant 192 : index
    %c0_202 = arith.constant 0 : index
    %234 = vector.load %arg19[%c192_201, %c0_202] : memref<512x128xbf16, #tpu.memory_space<vmem>>, vector<16x128xbf16>
    %c448_203 = arith.constant 448 : index
    %c0_204 = arith.constant 0 : index
    %235 = vector.load %arg19[%c448_203, %c0_204] : memref<512x128xbf16, #tpu.memory_space<vmem>>, vector<16x128xbf16>
    %236 = tpu.concatenate %234, %235 in 0 : vector<16x128xbf16>, vector<16x128xbf16> -> vector<32x128xbf16>
    %c1536_205 = arith.constant 1536 : index
    %c0_206 = arith.constant 0 : index
    %237 = vector.load %arg9[%c1536_205, %c0_206] : memref<2048x256xbf16, #tpu.memory_space<vmem>>, vector<128x256xbf16>
    %cst_207 = arith.constant dense<0.000000e+00> : vector<32x256xf32>
    %238 = tpu.matmul %236, %237, %cst_207 {dimension_numbers = #tpu.dot_dimension_numbers<[1], [0], [0], [1], [0, 0, 1, 1], [], []>} : vector<32x128xbf16>, vector<128x256xbf16>, vector<32x256xf32> -> vector<32x256xf32>
    %239 = arith.addf %227, %238 : vector<32x256xf32>
    %c208 = arith.constant 208 : index
    %c0_208 = arith.constant 0 : index
    %240 = vector.load %arg19[%c208, %c0_208] : memref<512x128xbf16, #tpu.memory_space<vmem>>, vector<16x128xbf16>
    %c464 = arith.constant 464 : index
    %c0_209 = arith.constant 0 : index
    %241 = vector.load %arg19[%c464, %c0_209] : memref<512x128xbf16, #tpu.memory_space<vmem>>, vector<16x128xbf16>
    %242 = tpu.concatenate %240, %241 in 0 : vector<16x128xbf16>, vector<16x128xbf16> -> vector<32x128xbf16>
    %c1664_210 = arith.constant 1664 : index
    %c0_211 = arith.constant 0 : index
    %243 = vector.load %arg9[%c1664_210, %c0_211] : memref<2048x256xbf16, #tpu.memory_space<vmem>>, vector<128x256xbf16>
    %cst_212 = arith.constant dense<0.000000e+00> : vector<32x256xf32>
    %244 = tpu.matmul %242, %243, %cst_212 {dimension_numbers = #tpu.dot_dimension_numbers<[1], [0], [0], [1], [0, 0, 1, 1], [], []>} : vector<32x128xbf16>, vector<128x256xbf16>, vector<32x256xf32> -> vector<32x256xf32>
    %245 = arith.addf %233, %244 : vector<32x256xf32>
    %c224 = arith.constant 224 : index
    %c0_213 = arith.constant 0 : index
    %246 = vector.load %arg19[%c224, %c0_213] : memref<512x128xbf16, #tpu.memory_space<vmem>>, vector<16x128xbf16>
    %c480 = arith.constant 480 : index
    %c0_214 = arith.constant 0 : index
    %247 = vector.load %arg19[%c480, %c0_214] : memref<512x128xbf16, #tpu.memory_space<vmem>>, vector<16x128xbf16>
    %248 = tpu.concatenate %246, %247 in 0 : vector<16x128xbf16>, vector<16x128xbf16> -> vector<32x128xbf16>
    %c1792_215 = arith.constant 1792 : index
    %c0_216 = arith.constant 0 : index
    %249 = vector.load %arg9[%c1792_215, %c0_216] : memref<2048x256xbf16, #tpu.memory_space<vmem>>, vector<128x256xbf16>
    %cst_217 = arith.constant dense<0.000000e+00> : vector<32x256xf32>
    %250 = tpu.matmul %248, %249, %cst_217 {dimension_numbers = #tpu.dot_dimension_numbers<[1], [0], [0], [1], [0, 0, 1, 1], [], []>} : vector<32x128xbf16>, vector<128x256xbf16>, vector<32x256xf32> -> vector<32x256xf32>
    %251 = arith.addf %239, %250 : vector<32x256xf32>
    %c240 = arith.constant 240 : index
    %c0_218 = arith.constant 0 : index
    %252 = vector.load %arg19[%c240, %c0_218] : memref<512x128xbf16, #tpu.memory_space<vmem>>, vector<16x128xbf16>
    %c496 = arith.constant 496 : index
    %c0_219 = arith.constant 0 : index
    %253 = vector.load %arg19[%c496, %c0_219] : memref<512x128xbf16, #tpu.memory_space<vmem>>, vector<16x128xbf16>
    %254 = tpu.concatenate %252, %253 in 0 : vector<16x128xbf16>, vector<16x128xbf16> -> vector<32x128xbf16>
    %c1920_220 = arith.constant 1920 : index
    %c0_221 = arith.constant 0 : index
    %255 = vector.load %arg9[%c1920_220, %c0_221] : memref<2048x256xbf16, #tpu.memory_space<vmem>>, vector<128x256xbf16>
    %cst_222 = arith.constant dense<0.000000e+00> : vector<32x256xf32>
    %256 = tpu.matmul %254, %255, %cst_222 {dimension_numbers = #tpu.dot_dimension_numbers<[1], [0], [0], [1], [0, 0, 1, 1], [], []>} : vector<32x128xbf16>, vector<128x256xbf16>, vector<32x256xf32> -> vector<32x256xf32>
    %257 = arith.addf %245, %256 : vector<32x256xf32>
    %258 = arith.addf %251, %257 : vector<32x256xf32>
    %c0_223 = arith.constant 0 : index
    %c0_224 = arith.constant 0 : index
    %259 = vector.load %arg10[%c0_223, %c0_224] : memref<1x256xf32, #tpu.memory_space<vmem>>, vector<1x256xf32>
    %260 = vector.broadcast %259 : vector<1x256xf32> to vector<32x256xf32>
    %261 = arith.addf %258, %260 : vector<32x256xf32>
    %c0_225 = arith.constant 0 : index
    %c0_226 = arith.constant 0 : index
    %262 = vector.load %arg11[%c0_225, %c0_226] : memref<1x256xf32, #tpu.memory_space<vmem>>, vector<1x256xf32>
    %c0_227 = arith.constant 0 : index
    %c0_228 = arith.constant 0 : index
    %263 = vector.load %arg12[%c0_227, %c0_228] : memref<1x256xf32, #tpu.memory_space<vmem>>, vector<1x256xf32>
    %cst_229 = arith.constant dense<0.000000e+00> : vector<256xf32>
    %264 = vector.multi_reduction <add>, %261, %cst_229 [0] : vector<32x256xf32> to vector<256xf32>
    %265 = vector.shape_cast %264 : vector<256xf32> to vector<1x256xf32>
    %cst_230 = arith.constant 3.200000e+01 : f32
    %266 = vector.broadcast %cst_230 : f32 to vector<1x256xf32>
    %267 = arith.divf %265, %266 : vector<1x256xf32>
    %268 = vector.broadcast %267 : vector<1x256xf32> to vector<32x256xf32>
    %269 = arith.subf %261, %268 : vector<32x256xf32>
    %270 = arith.mulf %269, %269 : vector<32x256xf32>
    %cst_231 = arith.constant dense<0.000000e+00> : vector<256xf32>
    %271 = vector.multi_reduction <add>, %270, %cst_231 [0] : vector<32x256xf32> to vector<256xf32>
    %272 = vector.shape_cast %271 : vector<256xf32> to vector<1x256xf32>
    %cst_232 = arith.constant 3.200000e+01 : f32
    %273 = vector.broadcast %cst_232 : f32 to vector<1x256xf32>
    %274 = arith.divf %272, %273 : vector<1x256xf32>
    %cst_233 = arith.constant 9.99999974E-6 : f32
    %275 = vector.broadcast %cst_233 : f32 to vector<1x256xf32>
    %276 = arith.addf %274, %275 : vector<1x256xf32>
    %277 = math.rsqrt %276 : vector<1x256xf32>
    %278 = vector.broadcast %277 : vector<1x256xf32> to vector<32x256xf32>
    %279 = arith.mulf %269, %278 : vector<32x256xf32>
    %280 = vector.broadcast %262 : vector<1x256xf32> to vector<32x256xf32>
    %281 = arith.mulf %279, %280 : vector<32x256xf32>
    %282 = vector.broadcast %263 : vector<1x256xf32> to vector<32x256xf32>
    %283 = arith.addf %281, %282 : vector<32x256xf32>
    %cst_234 = arith.constant 2.000000e-01 : f32
    %284 = vector.broadcast %cst_234 : f32 to vector<32x256xf32>
    %285 = arith.mulf %284, %283 : vector<32x256xf32>
    %286 = arith.maximumf %283, %285 : vector<32x256xf32>
    %287 = vector.shape_cast %286 : vector<32x256xf32> to vector<2x16x256xf32>
    %c0_235 = arith.constant 0 : index
    %c0_236 = arith.constant 0 : index
    %288 = vector.load %arg13[%c0_235, %c0_236] : memref<16x256xf32, #tpu.memory_space<vmem>>, vector<16x256xf32>
    %289 = vector.shape_cast %288 : vector<16x256xf32> to vector<1x16x256xf32>
    %290 = vector.broadcast %289 : vector<1x16x256xf32> to vector<2x16x256xf32>
    %291 = arith.mulf %287, %290 : vector<2x16x256xf32>
    %cst_237 = arith.constant dense<0.000000e+00> : vector<2x16xf32>
    %292 = vector.multi_reduction <add>, %291, %cst_237 [2] : vector<2x16x256xf32> to vector<2x16xf32>
    %cst_238 = arith.constant dense<0.000000e+00> : vector<2xf32>
    %293 = vector.multi_reduction <add>, %292, %cst_238 [1] : vector<2x16xf32> to vector<2xf32>
    %294 = vector.shape_cast %293 : vector<2xf32> to vector<2x1xf32>
    %c0_239 = arith.constant 0 : index
    %c0_240 = arith.constant 0 : index
    %295 = vector.load %arg14[%c0_239, %c0_240] : memref<1x1xf32, #tpu.memory_space<vmem>>, vector<1x1xf32>
    %296 = vector.broadcast %295 : vector<1x1xf32> to vector<2x1xf32>
    %297 = arith.addf %294, %296 : vector<2x1xf32>
    %cst_241 = arith.constant 0.000000e+00 : f32
    %298 = vector.broadcast %cst_241 : f32 to vector<2x1xf32>
    %299 = arith.subf %298, %297 : vector<2x1xf32>
    %300 = math.exp %299 : vector<2x1xf32>
    %cst_242 = arith.constant 1.000000e+00 : f32
    %301 = vector.broadcast %cst_242 : f32 to vector<2x1xf32>
    %302 = arith.addf %301, %300 : vector<2x1xf32>
    %cst_243 = arith.constant 1.000000e+00 : f32
    %303 = vector.broadcast %cst_243 : f32 to vector<2x1xf32>
    %304 = arith.divf %303, %302 : vector<2x1xf32>
    %c0_244 = arith.constant 0 : index
    %c0_245 = arith.constant 0 : index
    %305 = vector.load %arg15[%c0_244, %c0_245] : memref<2x1xf32, #tpu.memory_space<vmem>>, vector<2x1xf32>
    tpu.vector_store %arg15[%c0_244, %c0_245], %304 {strides = array<i32>} : memref<2x1xf32, #tpu.memory_space<vmem>>, vector<2x1xf32>,
    return
  }
}

</mosaic_0001>

<llo_original>
// kernel: discriminator_forward.1
$region0: #{discriminator_forward.1}
  #allocation0 [shape = 'u32[]', space=smem, size = 0x4, offset = 0x4, fixed_abs, tag = 'smem constant byte address 0x4 - core index']
  #allocation1 [shape = 'u32[72,128]{1,0:T(1,128)}', space=vmem, size = 0x9000, scoped, tag = 'internal scratch']
  #allocation2 [shape = 'bf16[512,64]{1,0:T(8,128)(2,1)}', space=vmem, size = 0x20000, scoped, tag = 'scratch operand']
  #allocation3 [shape = 'bf16[2048,64]{1,0:T(8,128)(2,1)}', space=vmem, size = 0x80000, scoped, tag = 'scratch operand']
  #allocation4 [shape = 'bf16[128,128]{1,0:T(8,128)(2,1)}', space=vmem, size = 0x8000, scoped, tag = 'scratch operand']
  #allocation5 [shape = 'bf16[512,128]{1,0:T(8,128)(2,1)}', space=vmem, size = 0x20000, scoped, tag = 'scratch operand']
  #allocation6 [shape = 'f32[1,1]{1,0:T(1,128)S(1)}', space=vmem, size = 0x200, scoped, tag = 'scoped memory for discriminator_forward.1']
  %s0 = inlined_call_operand.vmem [shape: f32[512,144], index: 0, kind: input, shape index: {}]
  %s1 = inlined_call_operand.vmem [shape: f32[144,64], index: 1, kind: input, shape index: {}]
  %s2 = inlined_call_operand.vmem [shape: f32[1,64], index: 2, kind: input, shape index: {}]
  %s3 = inlined_call_operand.vmem [shape: bf16[1024,256], index: 3, kind: input, shape index: {}]
  %s4 = inlined_call_operand.vmem [shape: bf16[1024,128], index: 4, kind: input, shape index: {}]
  %s5 = inlined_call_operand.vmem [shape: f32[1,128], index: 5, kind: input, shape index: {}]
  %s6 = inlined_call_operand.vmem [shape: f32[1,128], index: 6, kind: input, shape index: {}]
  %s7 = inlined_call_operand.vmem [shape: f32[1,128], index: 7, kind: input, shape index: {}]
  %s8 = inlined_call_operand.vmem [shape: bf16[256,64], index: 8, kind: input, shape index: {}]
  %s9 = inlined_call_operand.vmem [shape: bf16[2048,256], index: 9, kind: input, shape index: {}]
  %s10 = inlined_call_operand.vmem [shape: f32[1,256], index: 10, kind: input, shape index: {}]
  %s11 = inlined_call_operand.vmem [shape: f32[1,256], index: 11, kind: input, shape index: {}]
  %s12 = inlined_call_operand.vmem [shape: f32[1,256], index: 12, kind: input, shape index: {}]
  %s13 = inlined_call_operand.vmem [shape: f32[16,256], index: 13, kind: input, shape index: {}]
  %s14 = inlined_call_operand.<no memory space> [shape: f32[1,1], index: 14, kind: input, shape index: {}]
  %s15 = inlined_call_operand.vmem [shape: f32[2,1], index: 15, kind: output, shape index: {}]
  %s16 = sld [smem:[#allocation0]]
  $region70: #{discriminator_forward.1} parent=0
    _
  %s18 = ssub.s32 1, %s16
  %s19 = scalar_select 0, %s18, %s16
  %v20 = vstv %s14
  %21 = vst [vmem:[#allocation6] sm:$0x1] %v20
  // Predicated region
  $region2: #{discriminator_forward.1} parent=0 // pred_check
    _
  $region3: #{discriminator_forward.1} parent=0 // pred_check_branch
    %23 = sbr.rel (0) target = $region5
  $region4: #{discriminator_forward.1} parent=0 // pred_region
    _
  $region5: #{discriminator_forward.1} parent=0 // pred_fallthru
    _
  // Predicated region
  $region6: #{discriminator_forward.1} parent=0 // pred_check
    _
  $region7: #{discriminator_forward.1} parent=0 // pred_check_branch
    %25 = sbr.rel (0) target = $region9
  $region8: #{discriminator_forward.1} parent=0 // pred_region
    _
  $region9: #{discriminator_forward.1} parent=0 // pred_fallthru
    _
  // Predicated region
  $region10: #{discriminator_forward.1} parent=0 // pred_check
    _
  $region11: #{discriminator_forward.1} parent=0 // pred_check_branch
    %27 = sbr.rel (0) target = $region13
  $region12: #{discriminator_forward.1} parent=0 // pred_region
    _
  $region13: #{discriminator_forward.1} parent=0 // pred_fallthru
    _
  // Predicated region
  $region14: #{discriminator_forward.1} parent=0 // pred_check
    _
  $region15: #{discriminator_forward.1} parent=0 // pred_check_branch
    %29 = sbr.rel (0) target = $region17
  $region16: #{discriminator_forward.1} parent=0 // pred_region
    _
  $region17: #{discriminator_forward.1} parent=0 // pred_fallthru
    _
  // Predicated region
  $region18: #{discriminator_forward.1} parent=0 // pred_check
    _
  $region19: #{discriminator_forward.1} parent=0 // pred_check_branch
    %31 = sbr.rel (0) target = $region21
  $region20: #{discriminator_forward.1} parent=0 // pred_region
    _
  $region21: #{discriminator_forward.1} parent=0 // pred_fallthru
    _
  // Predicated region
  $region22: #{discriminator_forward.1} parent=0 // pred_check
    _
  $region23: #{discriminator_forward.1} parent=0 // pred_check_branch
    %33 = sbr.rel (0) target = $region25
  $region24: #{discriminator_forward.1} parent=0 // pred_region
    _
  $region25: #{discriminator_forward.1} parent=0 // pred_fallthru
    _
  // Predicated region
  $region26: #{discriminator_forward.1} parent=0 // pred_check
    _
  $region27: #{discriminator_forward.1} parent=0 // pred_check_branch
    %35 = sbr.rel (0) target = $region29
  $region28: #{discriminator_forward.1} parent=0 // pred_region
    _
  $region29: #{discriminator_forward.1} parent=0 // pred_fallthru
    _
  // Predicated region
  $region30: #{discriminator_forward.1} parent=0 // pred_check
    _
  $region31: #{discriminator_forward.1} parent=0 // pred_check_branch
    %37 = sbr.rel (0) target = $region33
  $region32: #{discriminator_forward.1} parent=0 // pred_region
    _
  $region33: #{discriminator_forward.1} parent=0 // pred_fallthru
    _
  // Predicated region
  $region34: #{discriminator_forward.1} parent=0 // pred_check
    _
  $region35: #{discriminator_forward.1} parent=0 // pred_check_branch
    %39 = sbr.rel (0) target = $region37
  $region36: #{discriminator_forward.1} parent=0 // pred_region
    _
  $region37: #{discriminator_forward.1} parent=0 // pred_fallthru
    _
  // Predicated region
  $region38: #{discriminator_forward.1} parent=0 // pred_check
    _
  $region39: #{discriminator_forward.1} parent=0 // pred_check_branch
    %41 = sbr.rel (0) target = $region41
  $region40: #{discriminator_forward.1} parent=0 // pred_region
    _
  $region41: #{discriminator_forward.1} parent=0 // pred_fallthru
    _
  // Predicated region
  $region42: #{discriminator_forward.1} parent=0 // pred_check
    _
  $region43: #{discriminator_forward.1} parent=0 // pred_check_branch
    %43 = sbr.rel (0) target = $region45
  $region44: #{discriminator_forward.1} parent=0 // pred_region
    _
  $region45: #{discriminator_forward.1} parent=0 // pred_fallthru
    _
  // Predicated region
  $region46: #{discriminator_forward.1} parent=0 // pred_check
    _
  $region47: #{discriminator_forward.1} parent=0 // pred_check_branch
    %45 = sbr.rel (0) target = $region49
  $region48: #{discriminator_forward.1} parent=0 // pred_region
    _
  $region49: #{discriminator_forward.1} parent=0 // pred_fallthru
    _
  // Predicated region
  $region50: #{discriminator_forward.1} parent=0 // pred_check
    _
  $region51: #{discriminator_forward.1} parent=0 // pred_check_branch
    %47 = sbr.rel (0) target = $region53
  $region52: #{discriminator_forward.1} parent=0 // pred_region
    _
  $region53: #{discriminator_forward.1} parent=0 // pred_fallthru
    _
  // Predicated region
  $region54: #{discriminator_forward.1} parent=0 // pred_check
    _
  $region55: #{discriminator_forward.1} parent=0 // pred_check_branch
    %49 = sbr.rel (0) target = $region57
  $region56: #{discriminator_forward.1} parent=0 // pred_region
    _
  $region57: #{discriminator_forward.1} parent=0 // pred_fallthru
    _
  // Predicated region
  $region58: #{discriminator_forward.1} parent=0 // pred_check
    _
  $region59: #{discriminator_forward.1} parent=0 // pred_check_branch
    %51 = sbr.rel (0) target = $region61
  $region60: #{discriminator_forward.1} parent=0 // pred_region
    _
  $region61: #{discriminator_forward.1} parent=0 // pred_fallthru
    _
  %v53 = vld [vmem:[%s0] sm:$0xff]
  %v54 = vld [vmem:[%s0 + $0x8] sm:$0xff]
  %v55 = vld [vmem:[%s0 + $0x10] sm:$0xff]
  %v56 = vld [vmem:[%s0 + $0x18] sm:$0xff]
  %v57 = vld [vmem:[%s0 + $0x20] sm:$0xff]
  %v58 = vld [vmem:[%s0 + $0x28] sm:$0xff]
  %v59 = vld [vmem:[%s0 + $0x30] sm:$0xff]
  %v60 = vld [vmem:[%s0 + $0x38] sm:$0xff]
  %v61 = vld [vmem:[%s0 + $0x40] sm:$0xff]
  %v62 = vld [vmem:[%s0 + $0x48] sm:$0xff]
  %v63 = vld [vmem:[%s0 + $0x50] sm:$0xff]
  %v64 = vld [vmem:[%s0 + $0x58] sm:$0xff]
  %v65 = vld [vmem:[%s0 + $0x60] sm:$0xff]
  %v66 = vld [vmem:[%s0 + $0x68] sm:$0xff]
  %v67 = vld [vmem:[%s0 + $0x70] sm:$0xff]
  %v68 = vld [vmem:[%s0 + $0x78] sm:$0xff]
  %v69 = vld [vmem:[%s0 + $0x80] sm:$0xff]
  %v70 = vld [vmem:[%s0 + $0x88] sm:$0xff]
  %v71 = vld [vmem:[%s0 + $0x90] sm:$0xff]
  %v72 = vld [vmem:[%s0 + $0x98] sm:$0xff]
  %v73 = vld [vmem:[%s0 + $0xa0] sm:$0xff]
  %v74 = vld [vmem:[%s0 + $0xa8] sm:$0xff]
  %v75 = vld [vmem:[%s0 + $0xb0] sm:$0xff]
  %v76 = vld [vmem:[%s0 + $0xb8] sm:$0xff]
  %v77 = vld [vmem:[%s0 + $0xc0] sm:$0xff]
  %v78 = vld [vmem:[%s0 + $0xc8] sm:$0xff]
  %v79 = vld [vmem:[%s0 + $0xd0] sm:$0xff]
  %v80 = vld [vmem:[%s0 + $0xd8] sm:$0xff]
  %v81 = vld [vmem:[%s0 + $0xe0] sm:$0xff]
  %v82 = vld [vmem:[%s0 + $0xe8] sm:$0xff]
  %v83 = vld [vmem:[%s0 + $0xf0] sm:$0xff]
  %v84 = vld [vmem:[%s0 + $0xf8] sm:$0xff]
  %v85 = vld [vmem:[%s0 + $0x100] sm:$0xff]
  %v86 = vld [vmem:[%s0 + $0x108] sm:$0xff]
  %v87 = vld [vmem:[%s0 + $0x110] sm:$0xff]
  %v88 = vld [vmem:[%s0 + $0x118] sm:$0xff]
  %v89 = vld [vmem:[%s0 + $0x120] sm:$0xff]
  %v90 = vld [vmem:[%s0 + $0x128] sm:$0xff]
  %v91 = vld [vmem:[%s0 + $0x130] sm:$0xff]
  %v92 = vld [vmem:[%s0 + $0x138] sm:$0xff]
  %v93 = vld [vmem:[%s0 + $0x140] sm:$0xff]
  %v94 = vld [vmem:[%s0 + $0x148] sm:$0xff]
  %v95 = vld [vmem:[%s0 + $0x150] sm:$0xff]
  %v96 = vld [vmem:[%s0 + $0x158] sm:$0xff]
  %v97 = vld [vmem:[%s0 + $0x160] sm:$0xff]
  %v98 = vld [vmem:[%s0 + $0x168] sm:$0xff]
  %v99 = vld [vmem:[%s0 + $0x170] sm:$0xff]
  %v100 = vld [vmem:[%s0 + $0x178] sm:$0xff]
  %v101 = vld [vmem:[%s0 + $0x180] sm:$0xff]
  %v102 = vld [vmem:[%s0 + $0x188] sm:$0xff]
  %v103 = vld [vmem:[%s0 + $0x190] sm:$0xff]
  %v104 = vld [vmem:[%s0 + $0x198] sm:$0xff]
  %v105 = vld [vmem:[%s0 + $0x1a0] sm:$0xff]
  %v106 = vld [vmem:[%s0 + $0x1a8] sm:$0xff]
  %v107 = vld [vmem:[%s0 + $0x1b0] sm:$0xff]
  %v108 = vld [vmem:[%s0 + $0x1b8] sm:$0xff]
  %v109 = vld [vmem:[%s0 + $0x1c0] sm:$0xff]
  %v110 = vld [vmem:[%s0 + $0x1c8] sm:$0xff]
  %v111 = vld [vmem:[%s0 + $0x1d0] sm:$0xff]
  %v112 = vld [vmem:[%s0 + $0x1d8] sm:$0xff]
  %v113 = vld [vmem:[%s0 + $0x1e0] sm:$0xff]
  %v114 = vld [vmem:[%s0 + $0x1e8] sm:$0xff]
  %v115 = vld [vmem:[%s0 + $0x1f0] sm:$0xff]
  %v116 = vld [vmem:[%s0 + $0x1f8] sm:$0xff]
  %v117 = vld [vmem:[%s0 + $0x200] sm:$0xff]
  %v118 = vld [vmem:[%s0 + $0x208] sm:$0xff]
  %v119 = vld [vmem:[%s0 + $0x210] sm:$0xff]
  %v120 = vld [vmem:[%s0 + $0x218] sm:$0xff]
  %v121 = vld [vmem:[%s0 + $0x220] sm:$0xff]
  %v122 = vld [vmem:[%s0 + $0x228] sm:$0xff]
  %v123 = vld [vmem:[%s0 + $0x230] sm:$0xff]
  %v124 = vld [vmem:[%s0 + $0x238] sm:$0xff]
  %v125 = vld [vmem:[%s0 + $0x240] sm:$0xff]
  %v126 = vld [vmem:[%s0 + $0x248] sm:$0xff]
  %v127 = vld [vmem:[%s0 + $0x250] sm:$0xff]
  %v128 = vld [vmem:[%s0 + $0x258] sm:$0xff]
  %v129 = vld [vmem:[%s0 + $0x260] sm:$0xff]
  %v130 = vld [vmem:[%s0 + $0x268] sm:$0xff]
  %v131 = vld [vmem:[%s0 + $0x270] sm:$0xff]
  %v132 = vld [vmem:[%s0 + $0x278] sm:$0xff]
  %v133 = vld [vmem:[%s0 + $0x280] sm:$0xff]
  %v134 = vld [vmem:[%s0 + $0x288] sm:$0xff]
  %v135 = vld [vmem:[%s0 + $0x290] sm:$0xff]
  %v136 = vld [vmem:[%s0 + $0x298] sm:$0xff]
  %v137 = vld [vmem:[%s0 + $0x2a0] sm:$0xff]
  %v138 = vld [vmem:[%s0 + $0x2a8] sm:$0xff]
  %v139 = vld [vmem:[%s0 + $0x2b0] sm:$0xff]
  %v140 = vld [vmem:[%s0 + $0x2b8] sm:$0xff]
  %v141 = vld [vmem:[%s0 + $0x2c0] sm:$0xff]
  %v142 = vld [vmem:[%s0 + $0x2c8] sm:$0xff]
  %v143 = vld [vmem:[%s0 + $0x2d0] sm:$0xff]
  %v144 = vld [vmem:[%s0 + $0x2d8] sm:$0xff]
  %v145 = vld [vmem:[%s0 + $0x2e0] sm:$0xff]
  %v146 = vld [vmem:[%s0 + $0x2e8] sm:$0xff]
  %v147 = vld [vmem:[%s0 + $0x2f0] sm:$0xff]
  %v148 = vld [vmem:[%s0 + $0x2f8] sm:$0xff]
  %v149 = vld [vmem:[%s0 + $0x300] sm:$0xff]
  %v150 = vld [vmem:[%s0 + $0x308] sm:$0xff]
  %v151 = vld [vmem:[%s0 + $0x310] sm:$0xff]
  %v152 = vld [vmem:[%s0 + $0x318] sm:$0xff]
  %v153 = vld [vmem:[%s0 + $0x320] sm:$0xff]
  %v154 = vld [vmem:[%s0 + $0x328] sm:$0xff]
  %v155 = vld [vmem:[%s0 + $0x330] sm:$0xff]
  %v156 = vld [vmem:[%s0 + $0x338] sm:$0xff]
  %v157 = vld [vmem:[%s0 + $0x340] sm:$0xff]
  %v158 = vld [vmem:[%s0 + $0x348] sm:$0xff]
  %v159 = vld [vmem:[%s0 + $0x350] sm:$0xff]
  %v160 = vld [vmem:[%s0 + $0x358] sm:$0xff]
  %v161 = vld [vmem:[%s0 + $0x360] sm:$0xff]
  %v162 = vld [vmem:[%s0 + $0x368] sm:$0xff]
  %v163 = vld [vmem:[%s0 + $0x370] sm:$0xff]
  %v164 = vld [vmem:[%s0 + $0x378] sm:$0xff]
  %v165 = vld [vmem:[%s0 + $0x380] sm:$0xff]
  %v166 = vld [vmem:[%s0 + $0x388] sm:$0xff]
  %v167 = vld [vmem:[%s0 + $0x390] sm:$0xff]
  %v168 = vld [vmem:[%s0 + $0x398] sm:$0xff]
  %v169 = vld [vmem:[%s0 + $0x3a0] sm:$0xff]
  %v170 = vld [vmem:[%s0 + $0x3a8] sm:$0xff]
  %v171 = vld [vmem:[%s0 + $0x3b0] sm:$0xff]
  %v172 = vld [vmem:[%s0 + $0x3b8] sm:$0xff]
  %v173 = vld [vmem:[%s0 + $0x3c0] sm:$0xff]
  %v174 = vld [vmem:[%s0 + $0x3c8] sm:$0xff]
  %v175 = vld [vmem:[%s0 + $0x3d0] sm:$0xff]
  %v176 = vld [vmem:[%s0 + $0x3d8] sm:$0xff]
  %v177 = vld [vmem:[%s0 + $0x3e0] sm:$0xff]
  %v178 = vld [vmem:[%s0 + $0x3e8] sm:$0xff]
  %v179 = vld [vmem:[%s0 + $0x3f0] sm:$0xff]
  %v180 = vld [vmem:[%s0 + $0x3f8] sm:$0xff]
  %v181 = vld [vmem:[%s1] sm:$0xff]
  %v182 = vld [vmem:[%s1 + $0x8] sm:$0xff]
  %v183 = vld [vmem:[%s1 + $0x10] sm:$0xff]
  %v184 = vld [vmem:[%s1 + $0x18] sm:$0xff]
  %v185 = vld [vmem:[%s1 + $0x20] sm:$0xff]
  %v186 = vld [vmem:[%s1 + $0x28] sm:$0xff]
  %v187 = vld [vmem:[%s1 + $0x30] sm:$0xff]
  %v188 = vld [vmem:[%s1 + $0x38] sm:$0xff]
  %v189 = vld [vmem:[%s1 + $0x40] sm:$0xff]
  %v190 = vld [vmem:[%s1 + $0x48] sm:$0xff]
  %v191 = vld [vmem:[%s1 + $0x50] sm:$0xff]
  %v192 = vld [vmem:[%s1 + $0x58] sm:$0xff]
  %v193 = vld [vmem:[%s1 + $0x60] sm:$0xff]
  %v194 = vld [vmem:[%s1 + $0x68] sm:$0xff]
  %v195 = vld [vmem:[%s1 + $0x70] sm:$0xff]
  %v196 = vld [vmem:[%s1 + $0x78] sm:$0xff]
  %v197 = vld [vmem:[%s1 + $0x80] sm:$0xff]
  %v198 = vld [vmem:[%s1 + $0x88] sm:$0xff]
  %v199 = vld [vmem:[%s2] sm:$0x1]
  %v201 = vperm.slane %v199, 0
  %vm203 = vcmask 130048
  %v205 = vsel %vm203, %v54, 0
  %v208 = vsel %vm203, %v56, 0
  %v211 = vsel %vm203, %v58, 0
  %v214 = vsel %vm203, %v60, 0
  %v217 = vsel %vm203, %v62, 0
  %v220 = vsel %vm203, %v64, 0
  %v223 = vsel %vm203, %v66, 0
  %v226 = vsel %vm203, %v68, 0
  %v229 = vsel %vm203, %v70, 0
  %v232 = vsel %vm203, %v72, 0
  %v235 = vsel %vm203, %v74, 0
  %v238 = vsel %vm203, %v76, 0
  %v241 = vsel %vm203, %v78, 0
  %v244 = vsel %vm203, %v80, 0
  %v247 = vsel %vm203, %v82, 0
  %v250 = vsel %vm203, %v84, 0
  %v253 = vsel %vm203, %v86, 0
  %v256 = vsel %vm203, %v88, 0
  %v259 = vsel %vm203, %v90, 0
  %v262 = vsel %vm203, %v92, 0
  %v265 = vsel %vm203, %v94, 0
  %v268 = vsel %vm203, %v96, 0
  %v271 = vsel %vm203, %v98, 0
  %v274 = vsel %vm203, %v100, 0
  %v277 = vsel %vm203, %v102, 0
  %v280 = vsel %vm203, %v104, 0
  %v283 = vsel %vm203, %v106, 0
  %v286 = vsel %vm203, %v108, 0
  %v289 = vsel %vm203, %v110, 0
  %v292 = vsel %vm203, %v112, 0
  %v295 = vsel %vm203, %v114, 0
  %v298 = vsel %vm203, %v116, 0
  %v301 = vsel %vm203, %v118, 0
  %v304 = vsel %vm203, %v120, 0
  %v307 = vsel %vm203, %v122, 0
  %v310 = vsel %vm203, %v124, 0
  %v313 = vsel %vm203, %v126, 0
  %v316 = vsel %vm203, %v128, 0
  %v319 = vsel %vm203, %v130, 0
  %v322 = vsel %vm203, %v132, 0
  %v325 = vsel %vm203, %v134, 0
  %v328 = vsel %vm203, %v136, 0
  %v331 = vsel %vm203, %v138, 0
  %v334 = vsel %vm203, %v140, 0
  %v337 = vsel %vm203, %v142, 0
  %v340 = vsel %vm203, %v144, 0
  %v343 = vsel %vm203, %v146, 0
  %v346 = vsel %vm203, %v148, 0
  %v349 = vsel %vm203, %v150, 0
  %v352 = vsel %vm203, %v152, 0
  %v355 = vsel %vm203, %v154, 0
  %v358 = vsel %vm203, %v156, 0
  %v361 = vsel %vm203, %v158, 0
  %v364 = vsel %vm203, %v160, 0
  %v367 = vsel %vm203, %v162, 0
  %v370 = vsel %vm203, %v164, 0
  %v373 = vsel %vm203, %v166, 0
  %v376 = vsel %vm203, %v168, 0
  %v379 = vsel %vm203, %v170, 0
  %v382 = vsel %vm203, %v172, 0
  %v385 = vsel %vm203, %v174, 0
  %v388 = vsel %vm203, %v176, 0
  %v391 = vsel %vm203, %v178, 0
  %v394 = vsel %vm203, %v180, 0
  %396 = vmatpush.msra.mxu0 %v196
  %397 = vmatpush.msra.mxu0 %v195
  %398 = vmatpush.msra.mxu0 %v194
  %399 = vmatpush.msra.mxu0 %v193
  %400 = vmatpush.msra.mxu0 %v192
  %401 = vmatpush.msra.mxu0 %v191
  %402 = vmatpush.msra.mxu0 %v190
  %403 = vmatpush.msra.mxu0 %v189
  %404 = vmatpush.msra.mxu0 %v188
  %405 = vmatpush.msra.mxu0 %v187
  %406 = vmatpush.msra.mxu0 %v186
  %407 = vmatpush.msra.mxu0 %v185
  %408 = vmatpush.msra.mxu0 %v184
  %409 = vmatpush.msra.mxu0 %v183
  %410 = vmatpush.msra.mxu0 %v182
  %411 = vmatpush.msra.mxu0 %v181
  %412 = vmatmul.f32.gmra.mxu0 %v53
  %v413 = vpop.f32.mrf.mxu0
  %v414 = vadd.f32 %v201, %v413
  %415 = vmatmul.f32.gmra.mxu0 %v55
  %v416 = vpop.f32.mrf.mxu0
  %v417 = vadd.f32 %v201, %v416
  %418 = vmatmul.f32.gmra.mxu0 %v57
  %v419 = vpop.f32.mrf.mxu0
  %v420 = vadd.f32 %v201, %v419
  %421 = vmatmul.f32.gmra.mxu0 %v59
  %v422 = vpop.f32.mrf.mxu0
  %v423 = vadd.f32 %v201, %v422
  %424 = vmatmul.f32.gmra.mxu0 %v61
  %v425 = vpop.f32.mrf.mxu0
  %v426 = vadd.f32 %v201, %v425
  %427 = vmatmul.f32.gmra.mxu0 %v63
  %v428 = vpop.f32.mrf.mxu0
  %v429 = vadd.f32 %v201, %v428
  %430 = vmatmul.f32.gmra.mxu0 %v65
  %v431 = vpop.f32.mrf.mxu0
  %v432 = vadd.f32 %v201, %v431
  %433 = vmatmul.f32.gmra.mxu0 %v67
  %v434 = vpop.f32.mrf.mxu0
  %v435 = vadd.f32 %v201, %v434
  %436 = vmatmul.f32.gmra.mxu0 %v69
  %v437 = vpop.f32.mrf.mxu0
  %v438 = vadd.f32 %v201, %v437
  %439 = vmatmul.f32.gmra.mxu0 %v71
  %v440 = vpop.f32.mrf.mxu0
  %v441 = vadd.f32 %v201, %v440
  %442 = vmatmul.f32.gmra.mxu0 %v73
  %v443 = vpop.f32.mrf.mxu0
  %v444 = vadd.f32 %v201, %v443
  %445 = vmatmul.f32.gmra.mxu0 %v75
  %v446 = vpop.f32.mrf.mxu0
  %v447 = vadd.f32 %v201, %v446
  %448 = vmatmul.f32.gmra.mxu0 %v77
  %v449 = vpop.f32.mrf.mxu0
  %v450 = vadd.f32 %v201, %v449
  %451 = vmatmul.f32.gmra.mxu0 %v79
  %v452 = vpop.f32.mrf.mxu0
  %v453 = vadd.f32 %v201, %v452
  %454 = vmatmul.f32.gmra.mxu0 %v81
  %v455 = vpop.f32.mrf.mxu0
  %v456 = vadd.f32 %v201, %v455
  %457 = vmatmul.f32.gmra.mxu0 %v83
  %v458 = vpop.f32.mrf.mxu0
  %v459 = vadd.f32 %v201, %v458
  %460 = vmatmul.f32.gmra.mxu0 %v85
  %v461 = vpop.f32.mrf.mxu0
  %v462 = vadd.f32 %v201, %v461
  %463 = vmatmul.f32.gmra.mxu0 %v87
  %v464 = vpop.f32.mrf.mxu0
  %v465 = vadd.f32 %v201, %v464
  %466 = vmatmul.f32.gmra.mxu0 %v89
  %v467 = vpop.f32.mrf.mxu0
  %v468 = vadd.f32 %v201, %v467
  %469 = vmatmul.f32.gmra.mxu0 %v91
  %v470 = vpop.f32.mrf.mxu0
  %v471 = vadd.f32 %v201, %v470
  %472 = vmatmul.f32.gmra.mxu0 %v93
  %v473 = vpop.f32.mrf.mxu0
  %v474 = vadd.f32 %v201, %v473
  %475 = vmatmul.f32.gmra.mxu0 %v95
  %v476 = vpop.f32.mrf.mxu0
  %v477 = vadd.f32 %v201, %v476
  %478 = vmatmul.f32.gmra.mxu0 %v97
  %v479 = vpop.f32.mrf.mxu0
  %v480 = vadd.f32 %v201, %v479
  %481 = vmatmul.f32.gmra.mxu0 %v99
  %v482 = vpop.f32.mrf.mxu0
  %v483 = vadd.f32 %v201, %v482
  %484 = vmatmul.f32.gmra.mxu0 %v101
  %v485 = vpop.f32.mrf.mxu0
  %v486 = vadd.f32 %v201, %v485
  %487 = vmatmul.f32.gmra.mxu0 %v103
  %v488 = vpop.f32.mrf.mxu0
  %v489 = vadd.f32 %v201, %v488
  %490 = vmatmul.f32.gmra.mxu0 %v105
  %v491 = vpop.f32.mrf.mxu0
  %v492 = vadd.f32 %v201, %v491
  %493 = vmatmul.f32.gmra.mxu0 %v107
  %v494 = vpop.f32.mrf.mxu0
  %v495 = vadd.f32 %v201, %v494
  %496 = vmatmul.f32.gmra.mxu0 %v109
  %v497 = vpop.f32.mrf.mxu0
  %v498 = vadd.f32 %v201, %v497
  %499 = vmatmul.f32.gmra.mxu0 %v111
  %v500 = vpop.f32.mrf.mxu0
  %v501 = vadd.f32 %v201, %v500
  %502 = vmatmul.f32.gmra.mxu0 %v113
  %v503 = vpop.f32.mrf.mxu0
  %v504 = vadd.f32 %v201, %v503
  %505 = vmatmul.f32.gmra.mxu0 %v115
  %v506 = vpop.f32.mrf.mxu0
  %v507 = vadd.f32 %v201, %v506
  %508 = vmatmul.f32.gmra.mxu0 %v117
  %v509 = vpop.f32.mrf.mxu0
  %v510 = vadd.f32 %v201, %v509
  %511 = vmatmul.f32.gmra.mxu0 %v119
  %v512 = vpop.f32.mrf.mxu0
  %v513 = vadd.f32 %v201, %v512
  %514 = vmatmul.f32.gmra.mxu0 %v121
  %v515 = vpop.f32.mrf.mxu0
  %v516 = vadd.f32 %v201, %v515
  %517 = vmatmul.f32.gmra.mxu0 %v123
  %v518 = vpop.f32.mrf.mxu0
  %v519 = vadd.f32 %v201, %v518
  %520 = vmatmul.f32.gmra.mxu0 %v125
  %v521 = vpop.f32.mrf.mxu0
  %v522 = vadd.f32 %v201, %v521
  %523 = vmatmul.f32.gmra.mxu0 %v127
  %v524 = vpop.f32.mrf.mxu0
  %v525 = vadd.f32 %v201, %v524
  %526 = vmatmul.f32.gmra.mxu0 %v129
  %v527 = vpop.f32.mrf.mxu0
  %v528 = vadd.f32 %v201, %v527
  %529 = vmatmul.f32.gmra.mxu0 %v131
  %v530 = vpop.f32.mrf.mxu0
  %v531 = vadd.f32 %v201, %v530
  %532 = vmatmul.f32.gmra.mxu0 %v133
  %v533 = vpop.f32.mrf.mxu0
  %v534 = vadd.f32 %v201, %v533
  %535 = vmatmul.f32.gmra.mxu0 %v135
  %v536 = vpop.f32.mrf.mxu0
  %v537 = vadd.f32 %v201, %v536
  %538 = vmatmul.f32.gmra.mxu0 %v137
  %v539 = vpop.f32.mrf.mxu0
  %v540 = vadd.f32 %v201, %v539
  %541 = vmatmul.f32.gmra.mxu0 %v139
  %v542 = vpop.f32.mrf.mxu0
  %v543 = vadd.f32 %v201, %v542
  %544 = vmatmul.f32.gmra.mxu0 %v141
  %v545 = vpop.f32.mrf.mxu0
  %v546 = vadd.f32 %v201, %v545
  %547 = vmatmul.f32.gmra.mxu0 %v143
  %v548 = vpop.f32.mrf.mxu0
  %v549 = vadd.f32 %v201, %v548
  %550 = vmatmul.f32.gmra.mxu0 %v145
  %v551 = vpop.f32.mrf.mxu0
  %v552 = vadd.f32 %v201, %v551
  %553 = vmatmul.f32.gmra.mxu0 %v147
  %v554 = vpop.f32.mrf.mxu0
  %v555 = vadd.f32 %v201, %v554
  %556 = vmatmul.f32.gmra.mxu0 %v149
  %v557 = vpop.f32.mrf.mxu0
  %v558 = vadd.f32 %v201, %v557
  %559 = vmatmul.f32.gmra.mxu0 %v151
  %v560 = vpop.f32.mrf.mxu0
  %v561 = vadd.f32 %v201, %v560
  %562 = vmatmul.f32.gmra.mxu0 %v153
  %v563 = vpop.f32.mrf.mxu0
  %v564 = vadd.f32 %v201, %v563
  %565 = vmatmul.f32.gmra.mxu0 %v155
  %v566 = vpop.f32.mrf.mxu0
  %v567 = vadd.f32 %v201, %v566
  %568 = vmatmul.f32.gmra.mxu0 %v157
  %v569 = vpop.f32.mrf.mxu0
  %v570 = vadd.f32 %v201, %v569
  %571 = vmatmul.f32.gmra.mxu0 %v159
  %v572 = vpop.f32.mrf.mxu0
  %v573 = vadd.f32 %v201, %v572
  %574 = vmatmul.f32.gmra.mxu0 %v161
  %v575 = vpop.f32.mrf.mxu0
  %v576 = vadd.f32 %v201, %v575
  %577 = vmatmul.f32.gmra.mxu0 %v163
  %v578 = vpop.f32.mrf.mxu0
  %v579 = vadd.f32 %v201, %v578
  %580 = vmatmul.f32.gmra.mxu0 %v165
  %v581 = vpop.f32.mrf.mxu0
  %v582 = vadd.f32 %v201, %v581
  %583 = vmatmul.f32.gmra.mxu0 %v167
  %v584 = vpop.f32.mrf.mxu0
  %v585 = vadd.f32 %v201, %v584
  %586 = vmatmul.f32.gmra.mxu0 %v169
  %v587 = vpop.f32.mrf.mxu0
  %v588 = vadd.f32 %v201, %v587
  %589 = vmatmul.f32.gmra.mxu0 %v171
  %v590 = vpop.f32.mrf.mxu0
  %v591 = vadd.f32 %v201, %v590
  %592 = vmatmul.f32.gmra.mxu0 %v173
  %v593 = vpop.f32.mrf.mxu0
  %v594 = vadd.f32 %v201, %v593
  %595 = vmatmul.f32.gmra.mxu0 %v175
  %v596 = vpop.f32.mrf.mxu0
  %v597 = vadd.f32 %v201, %v596
  %598 = vmatmul.f32.gmra.mxu0 %v177
  %v599 = vpop.f32.mrf.mxu0
  %v600 = vadd.f32 %v201, %v599
  %601 = vmatmul.f32.gmra.mxu0 %v179
  %v602 = vpop.f32.mrf.mxu0
  %v603 = vadd.f32 %v201, %v602
  %604 = vdwg.mxu0
  %605 = vmatpush.msra.mxu0 0.0
  %606 = vmatpush.msra.mxu0 0.0
  %607 = vmatpush.msra.mxu0 0.0
  %608 = vmatpush.msra.mxu0 0.0
  %609 = vmatpush.msra.mxu0 0.0
  %610 = vmatpush.msra.mxu0 0.0
  %611 = vmatpush.msra.mxu0 0.0
  %612 = vmatpush.msra.mxu0 0.0
  %613 = vmatpush.msra.mxu0 0.0
  %614 = vmatpush.msra.mxu0 0.0
  %615 = vmatpush.msra.mxu0 0.0
  %616 = vmatpush.msra.mxu0 0.0
  %617 = vmatpush.msra.mxu0 0.0
  %618 = vmatpush.msra.mxu0 0.0
  %619 = vmatpush.msra.mxu0 %v198
  %620 = vmatpush.msra.mxu0 %v197
  %621 = vmatmul.f32.gmra.mxu0 %v205
  %v622 = vpop.f32.mrf.mxu0
  %v623 = vadd.f32 %v414, %v622
  %624 = vmatmul.f32.gmra.mxu0 %v208
  %v625 = vpop.f32.mrf.mxu0
  %v626 = vadd.f32 %v417, %v625
  %627 = vmatmul.f32.gmra.mxu0 %v211
  %v628 = vpop.f32.mrf.mxu0
  %v629 = vadd.f32 %v420, %v628
  %630 = vmatmul.f32.gmra.mxu0 %v214
  %v631 = vpop.f32.mrf.mxu0
  %v632 = vadd.f32 %v423, %v631
  %633 = vmatmul.f32.gmra.mxu0 %v217
  %v634 = vpop.f32.mrf.mxu0
  %v635 = vadd.f32 %v426, %v634
  %636 = vmatmul.f32.gmra.mxu0 %v220
  %v637 = vpop.f32.mrf.mxu0
  %v638 = vadd.f32 %v429, %v637
  %639 = vmatmul.f32.gmra.mxu0 %v223
  %v640 = vpop.f32.mrf.mxu0
  %v641 = vadd.f32 %v432, %v640
  %642 = vmatmul.f32.gmra.mxu0 %v226
  %v643 = vpop.f32.mrf.mxu0
  %v644 = vadd.f32 %v435, %v643
  %645 = vmatmul.f32.gmra.mxu0 %v229
  %v646 = vpop.f32.mrf.mxu0
  %v647 = vadd.f32 %v438, %v646
  %648 = vmatmul.f32.gmra.mxu0 %v232
  %v649 = vpop.f32.mrf.mxu0
  %v650 = vadd.f32 %v441, %v649
  %651 = vmatmul.f32.gmra.mxu0 %v235
  %v652 = vpop.f32.mrf.mxu0
  %v653 = vadd.f32 %v444, %v652
  %654 = vmatmul.f32.gmra.mxu0 %v238
  %v655 = vpop.f32.mrf.mxu0
  %v656 = vadd.f32 %v447, %v655
  %657 = vmatmul.f32.gmra.mxu0 %v241
  %v658 = vpop.f32.mrf.mxu0
  %v659 = vadd.f32 %v450, %v658
  %660 = vmatmul.f32.gmra.mxu0 %v244
  %v661 = vpop.f32.mrf.mxu0
  %v662 = vadd.f32 %v453, %v661
  %663 = vmatmul.f32.gmra.mxu0 %v247
  %v664 = vpop.f32.mrf.mxu0
  %v665 = vadd.f32 %v456, %v664
  %666 = vmatmul.f32.gmra.mxu0 %v250
  %v667 = vpop.f32.mrf.mxu0
  %v668 = vadd.f32 %v459, %v667
  %669 = vmatmul.f32.gmra.mxu0 %v253
  %v670 = vpop.f32.mrf.mxu0
  %v671 = vadd.f32 %v462, %v670
  %672 = vmatmul.f32.gmra.mxu0 %v256
  %v673 = vpop.f32.mrf.mxu0
  %v674 = vadd.f32 %v465, %v673
  %675 = vmatmul.f32.gmra.mxu0 %v259
  %v676 = vpop.f32.mrf.mxu0
  %v677 = vadd.f32 %v468, %v676
  %678 = vmatmul.f32.gmra.mxu0 %v262
  %v679 = vpop.f32.mrf.mxu0
  %v680 = vadd.f32 %v471, %v679
  %681 = vmatmul.f32.gmra.mxu0 %v265
  %v682 = vpop.f32.mrf.mxu0
  %v683 = vadd.f32 %v474, %v682
  %684 = vmatmul.f32.gmra.mxu0 %v268
  %v685 = vpop.f32.mrf.mxu0
  %v686 = vadd.f32 %v477, %v685
  %687 = vmatmul.f32.gmra.mxu0 %v271
  %v688 = vpop.f32.mrf.mxu0
  %v689 = vadd.f32 %v480, %v688
  %690 = vmatmul.f32.gmra.mxu0 %v274
  %v691 = vpop.f32.mrf.mxu0
  %v692 = vadd.f32 %v483, %v691
  %693 = vmatmul.f32.gmra.mxu0 %v277
  %v694 = vpop.f32.mrf.mxu0
  %v695 = vadd.f32 %v486, %v694
  %696 = vmatmul.f32.gmra.mxu0 %v280
  %v697 = vpop.f32.mrf.mxu0
  %v698 = vadd.f32 %v489, %v697
  %699 = vmatmul.f32.gmra.mxu0 %v283
  %v700 = vpop.f32.mrf.mxu0
  %v701 = vadd.f32 %v492, %v700
  %702 = vmatmul.f32.gmra.mxu0 %v286
  %v703 = vpop.f32.mrf.mxu0
  %v704 = vadd.f32 %v495, %v703
  %705 = vmatmul.f32.gmra.mxu0 %v289
  %v706 = vpop.f32.mrf.mxu0
  %v707 = vadd.f32 %v498, %v706
  %708 = vmatmul.f32.gmra.mxu0 %v292
  %v709 = vpop.f32.mrf.mxu0
  %v710 = vadd.f32 %v501, %v709
  %711 = vmatmul.f32.gmra.mxu0 %v295
  %v712 = vpop.f32.mrf.mxu0
  %v713 = vadd.f32 %v504, %v712
  %714 = vmatmul.f32.gmra.mxu0 %v298
  %v715 = vpop.f32.mrf.mxu0
  %v716 = vadd.f32 %v507, %v715
  %717 = vmatmul.f32.gmra.mxu0 %v301
  %v718 = vpop.f32.mrf.mxu0
  %v719 = vadd.f32 %v510, %v718
  %720 = vmatmul.f32.gmra.mxu0 %v304
  %v721 = vpop.f32.mrf.mxu0
  %v722 = vadd.f32 %v513, %v721
  %723 = vmatmul.f32.gmra.mxu0 %v307
  %v724 = vpop.f32.mrf.mxu0
  %v725 = vadd.f32 %v516, %v724
  %726 = vmatmul.f32.gmra.mxu0 %v310
  %v727 = vpop.f32.mrf.mxu0
  %v728 = vadd.f32 %v519, %v727
  %729 = vmatmul.f32.gmra.mxu0 %v313
  %v730 = vpop.f32.mrf.mxu0
  %v731 = vadd.f32 %v522, %v730
  %732 = vmatmul.f32.gmra.mxu0 %v316
  %v733 = vpop.f32.mrf.mxu0
  %v734 = vadd.f32 %v525, %v733
  %735 = vmatmul.f32.gmra.mxu0 %v319
  %v736 = vpop.f32.mrf.mxu0
  %v737 = vadd.f32 %v528, %v736
  %738 = vmatmul.f32.gmra.mxu0 %v322
  %v739 = vpop.f32.mrf.mxu0
  %v740 = vadd.f32 %v531, %v739
  %741 = vmatmul.f32.gmra.mxu0 %v325
  %v742 = vpop.f32.mrf.mxu0
  %v743 = vadd.f32 %v534, %v742
  %744 = vmatmul.f32.gmra.mxu0 %v328
  %v745 = vpop.f32.mrf.mxu0
  %v746 = vadd.f32 %v537, %v745
  %747 = vmatmul.f32.gmra.mxu0 %v331
  %v748 = vpop.f32.mrf.mxu0
  %v749 = vadd.f32 %v540, %v748
  %750 = vmatmul.f32.gmra.mxu0 %v334
  %v751 = vpop.f32.mrf.mxu0
  %v752 = vadd.f32 %v543, %v751
  %753 = vmatmul.f32.gmra.mxu0 %v337
  %v754 = vpop.f32.mrf.mxu0
  %v755 = vadd.f32 %v546, %v754
  %756 = vmatmul.f32.gmra.mxu0 %v340
  %v757 = vpop.f32.mrf.mxu0
  %v758 = vadd.f32 %v549, %v757
  %759 = vmatmul.f32.gmra.mxu0 %v343
  %v760 = vpop.f32.mrf.mxu0
  %v761 = vadd.f32 %v552, %v760
  %762 = vmatmul.f32.gmra.mxu0 %v346
  %v763 = vpop.f32.mrf.mxu0
  %v764 = vadd.f32 %v555, %v763
  %765 = vmatmul.f32.gmra.mxu0 %v349
  %v766 = vpop.f32.mrf.mxu0
  %v767 = vadd.f32 %v558, %v766
  %768 = vmatmul.f32.gmra.mxu0 %v352
  %v769 = vpop.f32.mrf.mxu0
  %v770 = vadd.f32 %v561, %v769
  %771 = vmatmul.f32.gmra.mxu0 %v355
  %v772 = vpop.f32.mrf.mxu0
  %v773 = vadd.f32 %v564, %v772
  %774 = vmatmul.f32.gmra.mxu0 %v358
  %v775 = vpop.f32.mrf.mxu0
  %v776 = vadd.f32 %v567, %v775
  %777 = vmatmul.f32.gmra.mxu0 %v361
  %v778 = vpop.f32.mrf.mxu0
  %v779 = vadd.f32 %v570, %v778
  %780 = vmatmul.f32.gmra.mxu0 %v364
  %v781 = vpop.f32.mrf.mxu0
  %v782 = vadd.f32 %v573, %v781
  %783 = vmatmul.f32.gmra.mxu0 %v367
  %v784 = vpop.f32.mrf.mxu0
  %v785 = vadd.f32 %v576, %v784
  %786 = vmatmul.f32.gmra.mxu0 %v370
  %v787 = vpop.f32.mrf.mxu0
  %v788 = vadd.f32 %v579, %v787
  %789 = vmatmul.f32.gmra.mxu0 %v373
  %v790 = vpop.f32.mrf.mxu0
  %v791 = vadd.f32 %v582, %v790
  %792 = vmatmul.f32.gmra.mxu0 %v376
  %v793 = vpop.f32.mrf.mxu0
  %v794 = vadd.f32 %v585, %v793
  %795 = vmatmul.f32.gmra.mxu0 %v379
  %v796 = vpop.f32.mrf.mxu0
  %v797 = vadd.f32 %v588, %v796
  %798 = vmatmul.f32.gmra.mxu0 %v382
  %v799 = vpop.f32.mrf.mxu0
  %v800 = vadd.f32 %v591, %v799
  %801 = vmatmul.f32.gmra.mxu0 %v385
  %v802 = vpop.f32.mrf.mxu0
  %v803 = vadd.f32 %v594, %v802
  %804 = vmatmul.f32.gmra.mxu0 %v388
  %v805 = vpop.f32.mrf.mxu0
  %v806 = vadd.f32 %v597, %v805
  %807 = vmatmul.f32.gmra.mxu0 %v391
  %v808 = vpop.f32.mrf.mxu0
  %v809 = vadd.f32 %v600, %v808
  %810 = vmatmul.f32.gmra.mxu0 %v394
  %v811 = vpop.f32.mrf.mxu0
  %v812 = vadd.f32 %v603, %v811
  %813 = vdwg.mxu0
  %v814 = vmul.f32 %v623, 0.2
  %v815 = vmul.f32 %v626, 0.2
  %v816 = vmul.f32 %v629, 0.2
  %v817 = vmul.f32 %v632, 0.2
  %v818 = vmul.f32 %v635, 0.2
  %v819 = vmul.f32 %v638, 0.2
  %v820 = vmul.f32 %v641, 0.2
  %v821 = vmul.f32 %v644, 0.2
  %v822 = vmul.f32 %v647, 0.2
  %v823 = vmul.f32 %v650, 0.2
  %v824 = vmul.f32 %v653, 0.2
  %v825 = vmul.f32 %v656, 0.2
  %v826 = vmul.f32 %v659, 0.2
  %v827 = vmul.f32 %v662, 0.2
  %v828 = vmul.f32 %v665, 0.2
  %v829 = vmul.f32 %v668, 0.2
  %v830 = vmul.f32 %v671, 0.2
  %v831 = vmul.f32 %v674, 0.2
  %v832 = vmul.f32 %v677, 0.2
  %v833 = vmul.f32 %v680, 0.2
  %v834 = vmul.f32 %v683, 0.2
  %v835 = vmul.f32 %v686, 0.2
  %v836 = vmul.f32 %v689, 0.2
  %v837 = vmul.f32 %v692, 0.2
  %v838 = vmul.f32 %v695, 0.2
  %v839 = vmul.f32 %v698, 0.2
  %v840 = vmul.f32 %v701, 0.2
  %v841 = vmul.f32 %v704, 0.2
  %v842 = vmul.f32 %v707, 0.2
  %v843 = vmul.f32 %v710, 0.2
  %v844 = vmul.f32 %v713, 0.2
  %v845 = vmul.f32 %v716, 0.2
  %v846 = vmul.f32 %v719, 0.2
  %v847 = vmul.f32 %v722, 0.2
  %v848 = vmul.f32 %v725, 0.2
  %v849 = vmul.f32 %v728, 0.2
  %v850 = vmul.f32 %v731, 0.2
  %v851 = vmul.f32 %v734, 0.2
  %v852 = vmul.f32 %v737, 0.2
  %v853 = vmul.f32 %v740, 0.2
  %v854 = vmul.f32 %v743, 0.2
  %v855 = vmul.f32 %v746, 0.2
  %v856 = vmul.f32 %v749, 0.2
  %v857 = vmul.f32 %v752, 0.2
  %v858 = vmul.f32 %v755, 0.2
  %v859 = vmul.f32 %v758, 0.2
  %v860 = vmul.f32 %v761, 0.2
  %v861 = vmul.f32 %v764, 0.2
  %v862 = vmul.f32 %v767, 0.2
  %v863 = vmul.f32 %v770, 0.2
  %v864 = vmul.f32 %v773, 0.2
  %v865 = vmul.f32 %v776, 0.2
  %v866 = vmul.f32 %v779, 0.2
  %v867 = vmul.f32 %v782, 0.2
  %v868 = vmul.f32 %v785, 0.2
  %v869 = vmul.f32 %v788, 0.2
  %v870 = vmul.f32 %v791, 0.2
  %v871 = vmul.f32 %v794, 0.2
  %v872 = vmul.f32 %v797, 0.2
  %v873 = vmul.f32 %v800, 0.2
  %v874 = vmul.f32 %v803, 0.2
  %v875 = vmul.f32 %v806, 0.2
  %v876 = vmul.f32 %v809, 0.2
  %v877 = vmul.f32 %v812, 0.2
  %v878 = vmax.f32 %v623, %v814
  %v879 = vmax.f32 %v626, %v815
  %v880 = vmax.f32 %v629, %v816
  %v881 = vmax.f32 %v632, %v817
  %v882 = vmax.f32 %v635, %v818
  %v883 = vmax.f32 %v638, %v819
  %v884 = vmax.f32 %v641, %v820
  %v885 = vmax.f32 %v644, %v821
  %v886 = vmax.f32 %v647, %v822
  %v887 = vmax.f32 %v650, %v823
  %v888 = vmax.f32 %v653, %v824
  %v889 = vmax.f32 %v656, %v825
  %v890 = vmax.f32 %v659, %v826
  %v891 = vmax.f32 %v662, %v827
  %v892 = vmax.f32 %v665, %v828
  %v893 = vmax.f32 %v668, %v829
  %v894 = vmax.f32 %v671, %v830
  %v895 = vmax.f32 %v674, %v831
  %v896 = vmax.f32 %v677, %v832
  %v897 = vmax.f32 %v680, %v833
  %v898 = vmax.f32 %v683, %v834
  %v899 = vmax.f32 %v686, %v835
  %v900 = vmax.f32 %v689, %v836
  %v901 = vmax.f32 %v692, %v837
  %v902 = vmax.f32 %v695, %v838
  %v903 = vmax.f32 %v698, %v839
  %v904 = vmax.f32 %v701, %v840
  %v905 = vmax.f32 %v704, %v841
  %v906 = vmax.f32 %v707, %v842
  %v907 = vmax.f32 %v710, %v843
  %v908 = vmax.f32 %v713, %v844
  %v909 = vmax.f32 %v716, %v845
  %v910 = vmax.f32 %v719, %v846
  %v911 = vmax.f32 %v722, %v847
  %v912 = vmax.f32 %v725, %v848
  %v913 = vmax.f32 %v728, %v849
  %v914 = vmax.f32 %v731, %v850
  %v915 = vmax.f32 %v734, %v851
  %v916 = vmax.f32 %v737, %v852
  %v917 = vmax.f32 %v740, %v853
  %v918 = vmax.f32 %v743, %v854
  %v919 = vmax.f32 %v746, %v855
  %v920 = vmax.f32 %v749, %v856
  %v921 = vmax.f32 %v752, %v857
  %v922 = vmax.f32 %v755, %v858
  %v923 = vmax.f32 %v758, %v859
  %v924 = vmax.f32 %v761, %v860
  %v925 = vmax.f32 %v764, %v861
  %v926 = vmax.f32 %v767, %v862
  %v927 = vmax.f32 %v770, %v863
  %v928 = vmax.f32 %v773, %v864
  %v929 = vmax.f32 %v776, %v865
  %v930 = vmax.f32 %v779, %v866
  %v931 = vmax.f32 %v782, %v867
  %v932 = vmax.f32 %v785, %v868
  %v933 = vmax.f32 %v788, %v869
  %v934 = vmax.f32 %v791, %v870
  %v935 = vmax.f32 %v794, %v871
  %v936 = vmax.f32 %v797, %v872
  %v937 = vmax.f32 %v800, %v873
  %v938 = vmax.f32 %v803, %v874
  %v939 = vmax.f32 %v806, %v875
  %v940 = vmax.f32 %v809, %v876
  %v941 = vmax.f32 %v812, %v877
  %v942 = vpack.c.bf16 %v878, %v878
  %v943 = vpack.c.bf16 %v879, %v879
  %v944 = vpack.c.bf16 %v880, %v880
  %v945 = vpack.c.bf16 %v881, %v881
  %v946 = vpack.c.bf16 %v882, %v882
  %v947 = vpack.c.bf16 %v883, %v883
  %v948 = vpack.c.bf16 %v884, %v884
  %v949 = vpack.c.bf16 %v885, %v885
  %v950 = vpack.c.bf16 %v886, %v886
  %v951 = vpack.c.bf16 %v887, %v887
  %v952 = vpack.c.bf16 %v888, %v888
  %v953 = vpack.c.bf16 %v889, %v889
  %v954 = vpack.c.bf16 %v890, %v890
  %v955 = vpack.c.bf16 %v891, %v891
  %v956 = vpack.c.bf16 %v892, %v892
  %v957 = vpack.c.bf16 %v893, %v893
  %v958 = vpack.c.bf16 %v894, %v894
  %v959 = vpack.c.bf16 %v895, %v895
  %v960 = vpack.c.bf16 %v896, %v896
  %v961 = vpack.c.bf16 %v897, %v897
  %v962 = vpack.c.bf16 %v898, %v898
  %v963 = vpack.c.bf16 %v899, %v899
  %v964 = vpack.c.bf16 %v900, %v900
  %v965 = vpack.c.bf16 %v901, %v901
  %v966 = vpack.c.bf16 %v902, %v902
  %v967 = vpack.c.bf16 %v903, %v903
  %v968 = vpack.c.bf16 %v904, %v904
  %v969 = vpack.c.bf16 %v905, %v905
  %v970 = vpack.c.bf16 %v906, %v906
  %v971 = vpack.c.bf16 %v907, %v907
  %v972 = vpack.c.bf16 %v908, %v908
  %v973 = vpack.c.bf16 %v909, %v909
  %v974 = vpack.c.bf16 %v910, %v910
  %v975 = vpack.c.bf16 %v911, %v911
  %v976 = vpack.c.bf16 %v912, %v912
  %v977 = vpack.c.bf16 %v913, %v913
  %v978 = vpack.c.bf16 %v914, %v914
  %v979 = vpack.c.bf16 %v915, %v915
  %v980 = vpack.c.bf16 %v916, %v916
  %v981 = vpack.c.bf16 %v917, %v917
  %v982 = vpack.c.bf16 %v918, %v918
  %v983 = vpack.c.bf16 %v919, %v919
  %v984 = vpack.c.bf16 %v920, %v920
  %v985 = vpack.c.bf16 %v921, %v921
  %v986 = vpack.c.bf16 %v922, %v922
  %v987 = vpack.c.bf16 %v923, %v923
  %v988 = vpack.c.bf16 %v924, %v924
  %v989 = vpack.c.bf16 %v925, %v925
  %v990 = vpack.c.bf16 %v926, %v926
  %v991 = vpack.c.bf16 %v927, %v927
  %v992 = vpack.c.bf16 %v928, %v928
  %v993 = vpack.c.bf16 %v929, %v929
  %v994 = vpack.c.bf16 %v930, %v930
  %v995 = vpack.c.bf16 %v931, %v931
  %v996 = vpack.c.bf16 %v932, %v932
  %v997 = vpack.c.bf16 %v933, %v933
  %v998 = vpack.c.bf16 %v934, %v934
  %v999 = vpack.c.bf16 %v935, %v935
  %v1000 = vpack.c.bf16 %v936, %v936
  %v1001 = vpack.c.bf16 %v937, %v937
  %v1002 = vpack.c.bf16 %v938, %v938
  %v1003 = vpack.c.bf16 %v939, %v939
  %v1004 = vpack.c.bf16 %v940, %v940
  %v1005 = vpack.c.bf16 %v941, %v941
  %vm1006 = vcmask 519168
  %1007 = vst.msk [vmem:[#allocation2] sm:$0xf] %vm1006, %v942
  %1008 = vst.msk [vmem:[#allocation2 + $0x4] sm:$0xf] %vm1006, %v943
  %1009 = vst.msk [vmem:[#allocation2 + $0x8] sm:$0xf] %vm1006, %v944
  %1010 = vst.msk [vmem:[#allocation2 + $0xc] sm:$0xf] %vm1006, %v945
  %1011 = vst.msk [vmem:[#allocation2 + $0x10] sm:$0xf] %vm1006, %v946
  %1012 = vst.msk [vmem:[#allocation2 + $0x14] sm:$0xf] %vm1006, %v947
  %1013 = vst.msk [vmem:[#allocation2 + $0x18] sm:$0xf] %vm1006, %v948
  %1014 = vst.msk [vmem:[#allocation2 + $0x1c] sm:$0xf] %vm1006, %v949
  %1015 = vst.msk [vmem:[#allocation2 + $0x20] sm:$0xf] %vm1006, %v950
  %1016 = vst.msk [vmem:[#allocation2 + $0x24] sm:$0xf] %vm1006, %v951
  %1017 = vst.msk [vmem:[#allocation2 + $0x28] sm:$0xf] %vm1006, %v952
  %1018 = vst.msk [vmem:[#allocation2 + $0x2c] sm:$0xf] %vm1006, %v953
  %1019 = vst.msk [vmem:[#allocation2 + $0x30] sm:$0xf] %vm1006, %v954
  %1020 = vst.msk [vmem:[#allocation2 + $0x34] sm:$0xf] %vm1006, %v955
  %1021 = vst.msk [vmem:[#allocation2 + $0x38] sm:$0xf] %vm1006, %v956
  %1022 = vst.msk [vmem:[#allocation2 + $0x3c] sm:$0xf] %vm1006, %v957
  %1023 = vst.msk [vmem:[#allocation2 + $0x40] sm:$0xf] %vm1006, %v958
  %1024 = vst.msk [vmem:[#allocation2 + $0x44] sm:$0xf] %vm1006, %v959
  %1025 = vst.msk [vmem:[#allocation2 + $0x48] sm:$0xf] %vm1006, %v960
  %1026 = vst.msk [vmem:[#allocation2 + $0x4c] sm:$0xf] %vm1006, %v961
  %1027 = vst.msk [vmem:[#allocation2 + $0x50] sm:$0xf] %vm1006, %v962
  %1028 = vst.msk [vmem:[#allocation2 + $0x54] sm:$0xf] %vm1006, %v963
  %1029 = vst.msk [vmem:[#allocation2 + $0x58] sm:$0xf] %vm1006, %v964
  %1030 = vst.msk [vmem:[#allocation2 + $0x5c] sm:$0xf] %vm1006, %v965
  %1031 = vst.msk [vmem:[#allocation2 + $0x60] sm:$0xf] %vm1006, %v966
  %1032 = vst.msk [vmem:[#allocation2 + $0x64] sm:$0xf] %vm1006, %v967
  %1033 = vst.msk [vmem:[#allocation2 + $0x68] sm:$0xf] %vm1006, %v968
  %1034 = vst.msk [vmem:[#allocation2 + $0x6c] sm:$0xf] %vm1006, %v969
  %1035 = vst.msk [vmem:[#allocation2 + $0x70] sm:$0xf] %vm1006, %v970
  %1036 = vst.msk [vmem:[#allocation2 + $0x74] sm:$0xf] %vm1006, %v971
  %1037 = vst.msk [vmem:[#allocation2 + $0x78] sm:$0xf] %vm1006, %v972
  %1038 = vst.msk [vmem:[#allocation2 + $0x7c] sm:$0xf] %vm1006, %v973
  %1039 = vst.msk [vmem:[#allocation2 + $0x80] sm:$0xf] %vm1006, %v974
  %1040 = vst.msk [vmem:[#allocation2 + $0x84] sm:$0xf] %vm1006, %v975
  %1041 = vst.msk [vmem:[#allocation2 + $0x88] sm:$0xf] %vm1006, %v976
  %1042 = vst.msk [vmem:[#allocation2 + $0x8c] sm:$0xf] %vm1006, %v977
  %1043 = vst.msk [vmem:[#allocation2 + $0x90] sm:$0xf] %vm1006, %v978
  %1044 = vst.msk [vmem:[#allocation2 + $0x94] sm:$0xf] %vm1006, %v979
  %1045 = vst.msk [vmem:[#allocation2 + $0x98] sm:$0xf] %vm1006, %v980
  %1046 = vst.msk [vmem:[#allocation2 + $0x9c] sm:$0xf] %vm1006, %v981
  %1047 = vst.msk [vmem:[#allocation2 + $0xa0] sm:$0xf] %vm1006, %v982
  %1048 = vst.msk [vmem:[#allocation2 + $0xa4] sm:$0xf] %vm1006, %v983
  %1049 = vst.msk [vmem:[#allocation2 + $0xa8] sm:$0xf] %vm1006, %v984
  %1050 = vst.msk [vmem:[#allocation2 + $0xac] sm:$0xf] %vm1006, %v985
  %1051 = vst.msk [vmem:[#allocation2 + $0xb0] sm:$0xf] %vm1006, %v986
  %1052 = vst.msk [vmem:[#allocation2 + $0xb4] sm:$0xf] %vm1006, %v987
  %1053 = vst.msk [vmem:[#allocation2 + $0xb8] sm:$0xf] %vm1006, %v988
  %1054 = vst.msk [vmem:[#allocation2 + $0xbc] sm:$0xf] %vm1006, %v989
  %1055 = vst.msk [vmem:[#allocation2 + $0xc0] sm:$0xf] %vm1006, %v990
  %1056 = vst.msk [vmem:[#allocation2 + $0xc4] sm:$0xf] %vm1006, %v991
  %1057 = vst.msk [vmem:[#allocation2 + $0xc8] sm:$0xf] %vm1006, %v992
  %1058 = vst.msk [vmem:[#allocation2 + $0xcc] sm:$0xf] %vm1006, %v993
  %1059 = vst.msk [vmem:[#allocation2 + $0xd0] sm:$0xf] %vm1006, %v994
  %1060 = vst.msk [vmem:[#allocation2 + $0xd4] sm:$0xf] %vm1006, %v995
  %1061 = vst.msk [vmem:[#allocation2 + $0xd8] sm:$0xf] %vm1006, %v996
  %1062 = vst.msk [vmem:[#allocation2 + $0xdc] sm:$0xf] %vm1006, %v997
  %1063 = vst.msk [vmem:[#allocation2 + $0xe0] sm:$0xf] %vm1006, %v998
  %1064 = vst.msk [vmem:[#allocation2 + $0xe4] sm:$0xf] %vm1006, %v999
  %1065 = vst.msk [vmem:[#allocation2 + $0xe8] sm:$0xf] %vm1006, %v1000
  %1066 = vst.msk [vmem:[#allocation2 + $0xec] sm:$0xf] %vm1006, %v1001
  %1067 = vst.msk [vmem:[#allocation2 + $0xf0] sm:$0xf] %vm1006, %v1002
  %1068 = vst.msk [vmem:[#allocation2 + $0xf4] sm:$0xf] %vm1006, %v1003
  %1069 = vst.msk [vmem:[#allocation2 + $0xf8] sm:$0xf] %vm1006, %v1004
  %1070 = vst.msk [vmem:[#allocation2 + $0xfc] sm:$0xf] %vm1006, %v1005
  %v1071 = vld [vmem:[%s3] sm:$0xff]
  %v1072 = vld [vmem:[%s3 + $0x8] sm:$0xff]
  %v1073 = vld [vmem:[%s3 + $0x10] sm:$0xff]
  %v1074 = vld [vmem:[%s3 + $0x18] sm:$0xff]
  %v1075 = vld [vmem:[%s3 + $0x20] sm:$0xff]
  %v1076 = vld [vmem:[%s3 + $0x28] sm:$0xff]
  %v1077 = vld [vmem:[%s3 + $0x30] sm:$0xff]
  %v1078 = vld [vmem:[%s3 + $0x38] sm:$0xff]
  %v1079 = vld [vmem:[%s3 + $0x40] sm:$0xff]
  %v1080 = vld [vmem:[%s3 + $0x48] sm:$0xff]
  %v1081 = vld [vmem:[%s3 + $0x50] sm:$0xff]
  %v1082 = vld [vmem:[%s3 + $0x58] sm:$0xff]
  %v1083 = vld [vmem:[%s3 + $0x60] sm:$0xff]
  %v1084 = vld [vmem:[%s3 + $0x68] sm:$0xff]
  %v1085 = vld [vmem:[%s3 + $0x70] sm:$0xff]
  %v1086 = vld [vmem:[%s3 + $0x78] sm:$0xff]
  %v1087 = vld [vmem:[%s3 + $0x80] sm:$0xff]
  %v1088 = vld [vmem:[%s3 + $0x88] sm:$0xff]
  %v1089 = vld [vmem:[%s3 + $0x90] sm:$0xff]
  %v1090 = vld [vmem:[%s3 + $0x98] sm:$0xff]
  %v1091 = vld [vmem:[%s3 + $0xa0] sm:$0xff]
  %v1092 = vld [vmem:[%s3 + $0xa8] sm:$0xff]
  %v1093 = vld [vmem:[%s3 + $0xb0] sm:$0xff]
  %v1094 = vld [vmem:[%s3 + $0xb8] sm:$0xff]
  %v1095 = vld [vmem:[%s3 + $0xc0] sm:$0xff]
  %v1096 = vld [vmem:[%s3 + $0xc8] sm:$0xff]
  %v1097 = vld [vmem:[%s3 + $0xd0] sm:$0xff]
  %v1098 = vld [vmem:[%s3 + $0xd8] sm:$0xff]
  %v1099 = vld [vmem:[%s3 + $0xe0] sm:$0xff]
  %v1100 = vld [vmem:[%s3 + $0xe8] sm:$0xff]
  %v1101 = vld [vmem:[%s3 + $0xf0] sm:$0xff]
  %v1102 = vld [vmem:[%s3 + $0xf8] sm:$0xff]
  %v1103 = vld [vmem:[%s3 + $0x100] sm:$0xff]
  %v1104 = vld [vmem:[%s3 + $0x108] sm:$0xff]
  %v1105 = vld [vmem:[%s3 + $0x110] sm:$0xff]
  %v1106 = vld [vmem:[%s3 + $0x118] sm:$0xff]
  %v1107 = vld [vmem:[%s3 + $0x120] sm:$0xff]
  %v1108 = vld [vmem:[%s3 + $0x128] sm:$0xff]
  %v1109 = vld [vmem:[%s3 + $0x130] sm:$0xff]
  %v1110 = vld [vmem:[%s3 + $0x138] sm:$0xff]
  %v1111 = vld [vmem:[%s3 + $0x140] sm:$0xff]
  %v1112 = vld [vmem:[%s3 + $0x148] sm:$0xff]
  %v1113 = vld [vmem:[%s3 + $0x150] sm:$0xff]
  %v1114 = vld [vmem:[%s3 + $0x158] sm:$0xff]
  %v1115 = vld [vmem:[%s3 + $0x160] sm:$0xff]
  %v1116 = vld [vmem:[%s3 + $0x168] sm:$0xff]
  %v1117 = vld [vmem:[%s3 + $0x170] sm:$0xff]
  %v1118 = vld [vmem:[%s3 + $0x178] sm:$0xff]
  %v1119 = vld [vmem:[%s3 + $0x180] sm:$0xff]
  %v1120 = vld [vmem:[%s3 + $0x188] sm:$0xff]
  %v1121 = vld [vmem:[%s3 + $0x190] sm:$0xff]
  %v1122 = vld [vmem:[%s3 + $0x198] sm:$0xff]
  %v1123 = vld [vmem:[%s3 + $0x1a0] sm:$0xff]
  %v1124 = vld [vmem:[%s3 + $0x1a8] sm:$0xff]
  %v1125 = vld [vmem:[%s3 + $0x1b0] sm:$0xff]
  %v1126 = vld [vmem:[%s3 + $0x1b8] sm:$0xff]
  %v1127 = vld [vmem:[%s3 + $0x1c0] sm:$0xff]
  %v1128 = vld [vmem:[%s3 + $0x1c8] sm:$0xff]
  %v1129 = vld [vmem:[%s3 + $0x1d0] sm:$0xff]
  %v1130 = vld [vmem:[%s3 + $0x1d8] sm:$0xff]
  %v1131 = vld [vmem:[%s3 + $0x1e0] sm:$0xff]
  %v1132 = vld [vmem:[%s3 + $0x1e8] sm:$0xff]
  %v1133 = vld [vmem:[%s3 + $0x1f0] sm:$0xff]
  %v1134 = vld [vmem:[%s3 + $0x1f8] sm:$0xff]
  %v1135 = vld [vmem:[%s3 + $0x200] sm:$0xff]
  %v1136 = vld [vmem:[%s3 + $0x208] sm:$0xff]
  %v1137 = vld [vmem:[%s3 + $0x210] sm:$0xff]
  %v1138 = vld [vmem:[%s3 + $0x218] sm:$0xff]
  %v1139 = vld [vmem:[%s3 + $0x220] sm:$0xff]
  %v1140 = vld [vmem:[%s3 + $0x228] sm:$0xff]
  %v1141 = vld [vmem:[%s3 + $0x230] sm:$0xff]
  %v1142 = vld [vmem:[%s3 + $0x238] sm:$0xff]
  %v1143 = vld [vmem:[%s3 + $0x240] sm:$0xff]
  %v1144 = vld [vmem:[%s3 + $0x248] sm:$0xff]
  %v1145 = vld [vmem:[%s3 + $0x250] sm:$0xff]
  %v1146 = vld [vmem:[%s3 + $0x258] sm:$0xff]
  %v1147 = vld [vmem:[%s3 + $0x260] sm:$0xff]
  %v1148 = vld [vmem:[%s3 + $0x268] sm:$0xff]
  %v1149 = vld [vmem:[%s3 + $0x270] sm:$0xff]
  %v1150 = vld [vmem:[%s3 + $0x278] sm:$0xff]
  %v1151 = vld [vmem:[%s3 + $0x280] sm:$0xff]
  %v1152 = vld [vmem:[%s3 + $0x288] sm:$0xff]
  %v1153 = vld [vmem:[%s3 + $0x290] sm:$0xff]
  %v1154 = vld [vmem:[%s3 + $0x298] sm:$0xff]
  %v1155 = vld [vmem:[%s3 + $0x2a0] sm:$0xff]
  %v1156 = vld [vmem:[%s3 + $0x2a8] sm:$0xff]
  %v1157 = vld [vmem:[%s3 + $0x2b0] sm:$0xff]
  %v1158 = vld [vmem:[%s3 + $0x2b8] sm:$0xff]
  %v1159 = vld [vmem:[%s3 + $0x2c0] sm:$0xff]
  %v1160 = vld [vmem:[%s3 + $0x2c8] sm:$0xff]
  %v1161 = vld [vmem:[%s3 + $0x2d0] sm:$0xff]
  %v1162 = vld [vmem:[%s3 + $0x2d8] sm:$0xff]
  %v1163 = vld [vmem:[%s3 + $0x2e0] sm:$0xff]
  %v1164 = vld [vmem:[%s3 + $0x2e8] sm:$0xff]
  %v1165 = vld [vmem:[%s3 + $0x2f0] sm:$0xff]
  %v1166 = vld [vmem:[%s3 + $0x2f8] sm:$0xff]
  %v1167 = vld [vmem:[%s3 + $0x300] sm:$0xff]
  %v1168 = vld [vmem:[%s3 + $0x308] sm:$0xff]
  %v1169 = vld [vmem:[%s3 + $0x310] sm:$0xff]
  %v1170 = vld [vmem:[%s3 + $0x318] sm:$0xff]
  %v1171 = vld [vmem:[%s3 + $0x320] sm:$0xff]
  %v1172 = vld [vmem:[%s3 + $0x328] sm:$0xff]
  %v1173 = vld [vmem:[%s3 + $0x330] sm:$0xff]
  %v1174 = vld [vmem:[%s3 + $0x338] sm:$0xff]
  %v1175 = vld [vmem:[%s3 + $0x340] sm:$0xff]
  %v1176 = vld [vmem:[%s3 + $0x348] sm:$0xff]
  %v1177 = vld [vmem:[%s3 + $0x350] sm:$0xff]
  %v1178 = vld [vmem:[%s3 + $0x358] sm:$0xff]
  %v1179 = vld [vmem:[%s3 + $0x360] sm:$0xff]
  %v1180 = vld [vmem:[%s3 + $0x368] sm:$0xff]
  %v1181 = vld [vmem:[%s3 + $0x370] sm:$0xff]
  %v1182 = vld [vmem:[%s3 + $0x378] sm:$0xff]
  %v1183 = vld [vmem:[%s3 + $0x380] sm:$0xff]
  %v1184 = vld [vmem:[%s3 + $0x388] sm:$0xff]
  %v1185 = vld [vmem:[%s3 + $0x390] sm:$0xff]
  %v1186 = vld [vmem:[%s3 + $0x398] sm:$0xff]
  %v1187 = vld [vmem:[%s3 + $0x3a0] sm:$0xff]
  %v1188 = vld [vmem:[%s3 + $0x3a8] sm:$0xff]
  %v1189 = vld [vmem:[%s3 + $0x3b0] sm:$0xff]
  %v1190 = vld [vmem:[%s3 + $0x3b8] sm:$0xff]
  %v1191 = vld [vmem:[%s3 + $0x3c0] sm:$0xff]
  %v1192 = vld [vmem:[%s3 + $0x3c8] sm:$0xff]
  %v1193 = vld [vmem:[%s3 + $0x3d0] sm:$0xff]
  %v1194 = vld [vmem:[%s3 + $0x3d8] sm:$0xff]
  %v1195 = vld [vmem:[%s3 + $0x3e0] sm:$0xff]
  %v1196 = vld [vmem:[%s3 + $0x3e8] sm:$0xff]
  %v1197 = vld [vmem:[%s3 + $0x3f0] sm:$0xff]
  %v1198 = vld [vmem:[%s3 + $0x3f8] sm:$0xff]
  %v1199 = vld [vmem:[#allocation2] sm:$0xf]
  %v1200 = vld [vmem:[#allocation2 + $0x4] sm:$0xf]
  %v1201 = vld [vmem:[#allocation2 + $0x8] sm:$0xf]
  %v1202 = vld [vmem:[#allocation2 + $0xc] sm:$0xf]
  %v1203 = vld [vmem:[#allocation2 + $0x10] sm:$0xf]
  %v1204 = vld [vmem:[#allocation2 + $0x14] sm:$0xf]
  %v1205 = vld [vmem:[#allocation2 + $0x18] sm:$0xf]
  %v1206 = vld [vmem:[#allocation2 + $0x1c] sm:$0xf]
  %v1207 = vld [vmem:[#allocation2 + $0x20] sm:$0xf]
  %v1208 = vld [vmem:[#allocation2 + $0x24] sm:$0xf]
  %v1209 = vld [vmem:[#allocation2 + $0x28] sm:$0xf]
  %v1210 = vld [vmem:[#allocation2 + $0x2c] sm:$0xf]
  %v1211 = vld [vmem:[#allocation2 + $0x30] sm:$0xf]
  %v1212 = vld [vmem:[#allocation2 + $0x34] sm:$0xf]
  %v1213 = vld [vmem:[#allocation2 + $0x38] sm:$0xf]
  %v1214 = vld [vmem:[#allocation2 + $0x3c] sm:$0xf]
  %v1215 = vld [vmem:[#allocation2 + $0x40] sm:$0xf]
  %v1216 = vld [vmem:[#allocation2 + $0x44] sm:$0xf]
  %v1217 = vld [vmem:[#allocation2 + $0x48] sm:$0xf]
  %v1218 = vld [vmem:[#allocation2 + $0x4c] sm:$0xf]
  %v1219 = vld [vmem:[#allocation2 + $0x50] sm:$0xf]
  %v1220 = vld [vmem:[#allocation2 + $0x54] sm:$0xf]
  %v1221 = vld [vmem:[#allocation2 + $0x58] sm:$0xf]
  %v1222 = vld [vmem:[#allocation2 + $0x5c] sm:$0xf]
  %v1223 = vld [vmem:[#allocation2 + $0x60] sm:$0xf]
  %v1224 = vld [vmem:[#allocation2 + $0x64] sm:$0xf]
  %v1225 = vld [vmem:[#allocation2 + $0x68] sm:$0xf]
  %v1226 = vld [vmem:[#allocation2 + $0x6c] sm:$0xf]
  %v1227 = vld [vmem:[#allocation2 + $0x70] sm:$0xf]
  %v1228 = vld [vmem:[#allocation2 + $0x74] sm:$0xf]
  %v1229 = vld [vmem:[#allocation2 + $0x78] sm:$0xf]
  %v1230 = vld [vmem:[#allocation2 + $0x7c] sm:$0xf]
  %v1359 = vunpack.c.l.b16 %v1071
  %v1360 = vunpack.c.h.b16 %v1071
  %v1361 = vunpack.c.l.b16 %v1072
  %v1362 = vunpack.c.h.b16 %v1072
  %v1363 = vunpack.c.l.b16 %v1073
  %v1364 = vunpack.c.h.b16 %v1073
  %v1365 = vunpack.c.l.b16 %v1074
  %v1366 = vunpack.c.h.b16 %v1074
  %v1367 = vunpack.c.l.b16 %v1075
  %v1368 = vunpack.c.h.b16 %v1075
  %v1369 = vunpack.c.l.b16 %v1076
  %v1370 = vunpack.c.h.b16 %v1076
  %v1371 = vunpack.c.l.b16 %v1077
  %v1372 = vunpack.c.h.b16 %v1077
  %v1373 = vunpack.c.l.b16 %v1078
  %v1374 = vunpack.c.h.b16 %v1078
  %v1375 = vunpack.c.l.b16 %v1079
  %v1376 = vunpack.c.h.b16 %v1079
  %v1377 = vunpack.c.l.b16 %v1080
  %v1378 = vunpack.c.h.b16 %v1080
  %v1379 = vunpack.c.l.b16 %v1081
  %v1380 = vunpack.c.h.b16 %v1081
  %v1381 = vunpack.c.l.b16 %v1082
  %v1382 = vunpack.c.h.b16 %v1082
  %v1383 = vunpack.c.l.b16 %v1083
  %v1384 = vunpack.c.h.b16 %v1083
  %v1385 = vunpack.c.l.b16 %v1084
  %v1386 = vunpack.c.h.b16 %v1084
  %v1387 = vunpack.c.l.b16 %v1085
  %v1388 = vunpack.c.h.b16 %v1085
  %v1389 = vunpack.c.l.b16 %v1086
  %v1390 = vunpack.c.h.b16 %v1086
  %v1391 = vunpack.c.l.b16 %v1087
  %v1392 = vunpack.c.h.b16 %v1087
  %v1393 = vunpack.c.l.b16 %v1088
  %v1394 = vunpack.c.h.b16 %v1088
  %v1395 = vunpack.c.l.b16 %v1089
  %v1396 = vunpack.c.h.b16 %v1089
  %v1397 = vunpack.c.l.b16 %v1090
  %v1398 = vunpack.c.h.b16 %v1090
  %v1399 = vunpack.c.l.b16 %v1091
  %v1400 = vunpack.c.h.b16 %v1091
  %v1401 = vunpack.c.l.b16 %v1092
  %v1402 = vunpack.c.h.b16 %v1092
  %v1403 = vunpack.c.l.b16 %v1093
  %v1404 = vunpack.c.h.b16 %v1093
  %v1405 = vunpack.c.l.b16 %v1094
  %v1406 = vunpack.c.h.b16 %v1094
  %v1407 = vunpack.c.l.b16 %v1095
  %v1408 = vunpack.c.h.b16 %v1095
  %v1409 = vunpack.c.l.b16 %v1096
  %v1410 = vunpack.c.h.b16 %v1096
  %v1411 = vunpack.c.l.b16 %v1097
  %v1412 = vunpack.c.h.b16 %v1097
  %v1413 = vunpack.c.l.b16 %v1098
  %v1414 = vunpack.c.h.b16 %v1098
  %v1415 = vunpack.c.l.b16 %v1099
  %v1416 = vunpack.c.h.b16 %v1099
  %v1417 = vunpack.c.l.b16 %v1100
  %v1418 = vunpack.c.h.b16 %v1100
  %v1419 = vunpack.c.l.b16 %v1101
  %v1420 = vunpack.c.h.b16 %v1101
  %v1421 = vunpack.c.l.b16 %v1102
  %v1422 = vunpack.c.h.b16 %v1102
  %v1423 = vunpack.c.l.b16 %v1103
  %v1424 = vunpack.c.h.b16 %v1103
  %v1425 = vunpack.c.l.b16 %v1104
  %v1426 = vunpack.c.h.b16 %v1104
  %v1427 = vunpack.c.l.b16 %v1105
  %v1428 = vunpack.c.h.b16 %v1105
  %v1429 = vunpack.c.l.b16 %v1106
  %v1430 = vunpack.c.h.b16 %v1106
  %v1431 = vunpack.c.l.b16 %v1107
  %v1432 = vunpack.c.h.b16 %v1107
  %v1433 = vunpack.c.l.b16 %v1108
  %v1434 = vunpack.c.h.b16 %v1108
  %v1435 = vunpack.c.l.b16 %v1109
  %v1436 = vunpack.c.h.b16 %v1109
  %v1437 = vunpack.c.l.b16 %v1110
  %v1438 = vunpack.c.h.b16 %v1110
  %v1439 = vunpack.c.l.b16 %v1111
  %v1440 = vunpack.c.h.b16 %v1111
  %v1441 = vunpack.c.l.b16 %v1112
  %v1442 = vunpack.c.h.b16 %v1112
  %v1443 = vunpack.c.l.b16 %v1113
  %v1444 = vunpack.c.h.b16 %v1113
  %v1445 = vunpack.c.l.b16 %v1114
  %v1446 = vunpack.c.h.b16 %v1114
  %v1447 = vunpack.c.l.b16 %v1115
  %v1448 = vunpack.c.h.b16 %v1115
  %v1449 = vunpack.c.l.b16 %v1116
  %v1450 = vunpack.c.h.b16 %v1116
  %v1451 = vunpack.c.l.b16 %v1117
  %v1452 = vunpack.c.h.b16 %v1117
  %v1453 = vunpack.c.l.b16 %v1118
  %v1454 = vunpack.c.h.b16 %v1118
  %v1455 = vunpack.c.l.b16 %v1119
  %v1456 = vunpack.c.h.b16 %v1119
  %v1457 = vunpack.c.l.b16 %v1120
  %v1458 = vunpack.c.h.b16 %v1120
  %v1459 = vunpack.c.l.b16 %v1121
  %v1460 = vunpack.c.h.b16 %v1121
  %v1461 = vunpack.c.l.b16 %v1122
  %v1462 = vunpack.c.h.b16 %v1122
  %v1463 = vunpack.c.l.b16 %v1123
  %v1464 = vunpack.c.h.b16 %v1123
  %v1465 = vunpack.c.l.b16 %v1124
  %v1466 = vunpack.c.h.b16 %v1124
  %v1467 = vunpack.c.l.b16 %v1125
  %v1468 = vunpack.c.h.b16 %v1125
  %v1469 = vunpack.c.l.b16 %v1126
  %v1470 = vunpack.c.h.b16 %v1126
  %v1471 = vunpack.c.l.b16 %v1127
  %v1472 = vunpack.c.h.b16 %v1127
  %v1473 = vunpack.c.l.b16 %v1128
  %v1474 = vunpack.c.h.b16 %v1128
  %v1475 = vunpack.c.l.b16 %v1129
  %v1476 = vunpack.c.h.b16 %v1129
  %v1477 = vunpack.c.l.b16 %v1130
  %v1478 = vunpack.c.h.b16 %v1130
  %v1479 = vunpack.c.l.b16 %v1131
  %v1480 = vunpack.c.h.b16 %v1131
  %v1481 = vunpack.c.l.b16 %v1132
  %v1482 = vunpack.c.h.b16 %v1132
  %v1483 = vunpack.c.l.b16 %v1133
  %v1484 = vunpack.c.h.b16 %v1133
  %v1485 = vunpack.c.l.b16 %v1134
  %v1486 = vunpack.c.h.b16 %v1134
  %v1487 = vunpack.c.l.b16 %v1135
  %v1488 = vunpack.c.h.b16 %v1135
  %v1489 = vunpack.c.l.b16 %v1136
  %v1490 = vunpack.c.h.b16 %v1136
  %v1491 = vunpack.c.l.b16 %v1137
  %v1492 = vunpack.c.h.b16 %v1137
  %v1493 = vunpack.c.l.b16 %v1138
  %v1494 = vunpack.c.h.b16 %v1138
  %v1495 = vunpack.c.l.b16 %v1139
  %v1496 = vunpack.c.h.b16 %v1139
  %v1497 = vunpack.c.l.b16 %v1140
  %v1498 = vunpack.c.h.b16 %v1140
  %v1499 = vunpack.c.l.b16 %v1141
  %v1500 = vunpack.c.h.b16 %v1141
  %v1501 = vunpack.c.l.b16 %v1142
  %v1502 = vunpack.c.h.b16 %v1142
  %v1503 = vunpack.c.l.b16 %v1143
  %v1504 = vunpack.c.h.b16 %v1143
  %v1505 = vunpack.c.l.b16 %v1144
  %v1506 = vunpack.c.h.b16 %v1144
  %v1507 = vunpack.c.l.b16 %v1145
  %v1508 = vunpack.c.h.b16 %v1145
  %v1509 = vunpack.c.l.b16 %v1146
  %v1510 = vunpack.c.h.b16 %v1146
  %v1511 = vunpack.c.l.b16 %v1147
  %v1512 = vunpack.c.h.b16 %v1147
  %v1513 = vunpack.c.l.b16 %v1148
  %v1514 = vunpack.c.h.b16 %v1148
  %v1515 = vunpack.c.l.b16 %v1149
  %v1516 = vunpack.c.h.b16 %v1149
  %v1517 = vunpack.c.l.b16 %v1150
  %v1518 = vunpack.c.h.b16 %v1150
  %v1519 = vunpack.c.l.b16 %v1151
  %v1520 = vunpack.c.h.b16 %v1151
  %v1521 = vunpack.c.l.b16 %v1152
  %v1522 = vunpack.c.h.b16 %v1152
  %v1523 = vunpack.c.l.b16 %v1153
  %v1524 = vunpack.c.h.b16 %v1153
  %v1525 = vunpack.c.l.b16 %v1154
  %v1526 = vunpack.c.h.b16 %v1154
  %v1527 = vunpack.c.l.b16 %v1155
  %v1528 = vunpack.c.h.b16 %v1155
  %v1529 = vunpack.c.l.b16 %v1156
  %v1530 = vunpack.c.h.b16 %v1156
  %v1531 = vunpack.c.l.b16 %v1157
  %v1532 = vunpack.c.h.b16 %v1157
  %v1533 = vunpack.c.l.b16 %v1158
  %v1534 = vunpack.c.h.b16 %v1158
  %v1535 = vunpack.c.l.b16 %v1159
  %v1536 = vunpack.c.h.b16 %v1159
  %v1537 = vunpack.c.l.b16 %v1160
  %v1538 = vunpack.c.h.b16 %v1160
  %v1539 = vunpack.c.l.b16 %v1161
  %v1540 = vunpack.c.h.b16 %v1161
  %v1541 = vunpack.c.l.b16 %v1162
  %v1542 = vunpack.c.h.b16 %v1162
  %v1543 = vunpack.c.l.b16 %v1163
  %v1544 = vunpack.c.h.b16 %v1163
  %v1545 = vunpack.c.l.b16 %v1164
  %v1546 = vunpack.c.h.b16 %v1164
  %v1547 = vunpack.c.l.b16 %v1165
  %v1548 = vunpack.c.h.b16 %v1165
  %v1549 = vunpack.c.l.b16 %v1166
  %v1550 = vunpack.c.h.b16 %v1166
  %v1551 = vunpack.c.l.b16 %v1167
  %v1552 = vunpack.c.h.b16 %v1167
  %v1553 = vunpack.c.l.b16 %v1168
  %v1554 = vunpack.c.h.b16 %v1168
  %v1555 = vunpack.c.l.b16 %v1169
  %v1556 = vunpack.c.h.b16 %v1169
  %v1557 = vunpack.c.l.b16 %v1170
  %v1558 = vunpack.c.h.b16 %v1170
  %v1559 = vunpack.c.l.b16 %v1171
  %v1560 = vunpack.c.h.b16 %v1171
  %v1561 = vunpack.c.l.b16 %v1172
  %v1562 = vunpack.c.h.b16 %v1172
  %v1563 = vunpack.c.l.b16 %v1173
  %v1564 = vunpack.c.h.b16 %v1173
  %v1565 = vunpack.c.l.b16 %v1174
  %v1566 = vunpack.c.h.b16 %v1174
  %v1567 = vunpack.c.l.b16 %v1175
  %v1568 = vunpack.c.h.b16 %v1175
  %v1569 = vunpack.c.l.b16 %v1176
  %v1570 = vunpack.c.h.b16 %v1176
  %v1571 = vunpack.c.l.b16 %v1177
  %v1572 = vunpack.c.h.b16 %v1177
  %v1573 = vunpack.c.l.b16 %v1178
  %v1574 = vunpack.c.h.b16 %v1178
  %v1575 = vunpack.c.l.b16 %v1179
  %v1576 = vunpack.c.h.b16 %v1179
  %v1577 = vunpack.c.l.b16 %v1180
  %v1578 = vunpack.c.h.b16 %v1180
  %v1579 = vunpack.c.l.b16 %v1181
  %v1580 = vunpack.c.h.b16 %v1181
  %v1581 = vunpack.c.l.b16 %v1182
  %v1582 = vunpack.c.h.b16 %v1182
  %v1583 = vunpack.c.l.b16 %v1183
  %v1584 = vunpack.c.h.b16 %v1183
  %v1585 = vunpack.c.l.b16 %v1184
  %v1586 = vunpack.c.h.b16 %v1184
  %v1587 = vunpack.c.l.b16 %v1185
  %v1588 = vunpack.c.h.b16 %v1185
  %v1589 = vunpack.c.l.b16 %v1186
  %v1590 = vunpack.c.h.b16 %v1186
  %v1591 = vunpack.c.l.b16 %v1187
  %v1592 = vunpack.c.h.b16 %v1187
  %v1593 = vunpack.c.l.b16 %v1188
  %v1594 = vunpack.c.h.b16 %v1188
  %v1595 = vunpack.c.l.b16 %v1189
  %v1596 = vunpack.c.h.b16 %v1189
  %v1597 = vunpack.c.l.b16 %v1190
  %v1598 = vunpack.c.h.b16 %v1190
  %v1599 = vunpack.c.l.b16 %v1191
  %v1600 = vunpack.c.h.b16 %v1191
  %v1601 = vunpack.c.l.b16 %v1192
  %v1602 = vunpack.c.h.b16 %v1192
  %v1603 = vunpack.c.l.b16 %v1193
  %v1604 = vunpack.c.h.b16 %v1193
  %v1605 = vunpack.c.l.b16 %v1194
  %v1606 = vunpack.c.h.b16 %v1194
  %v1607 = vunpack.c.l.b16 %v1195
  %v1608 = vunpack.c.h.b16 %v1195
  %v1609 = vunpack.c.l.b16 %v1196
  %v1610 = vunpack.c.h.b16 %v1196
  %v1611 = vunpack.c.l.b16 %v1197
  %v1612 = vunpack.c.h.b16 %v1197
  %v1613 = vunpack.c.l.b16 %v1198
  %v1614 = vunpack.c.h.b16 %v1198
  %v1615 = vpack.c.b16 %v1361, %v1359
  %v1616 = vpack.c.b16 %v1362, %v1360
  %v1617 = vpack.c.b16 %v1365, %v1363
  %v1618 = vpack.c.b16 %v1366, %v1364
  %v1619 = vpack.c.b16 %v1369, %v1367
  %v1620 = vpack.c.b16 %v1370, %v1368
  %v1621 = vpack.c.b16 %v1373, %v1371
  %v1622 = vpack.c.b16 %v1374, %v1372
  %v1623 = vpack.c.b16 %v1377, %v1375
  %v1624 = vpack.c.b16 %v1378, %v1376
  %v1625 = vpack.c.b16 %v1381, %v1379
  %v1626 = vpack.c.b16 %v1382, %v1380
  %v1627 = vpack.c.b16 %v1385, %v1383
  %v1628 = vpack.c.b16 %v1386, %v1384
  %v1629 = vpack.c.b16 %v1389, %v1387
  %v1630 = vpack.c.b16 %v1390, %v1388
  %v1631 = vpack.c.b16 %v1393, %v1391
  %v1632 = vpack.c.b16 %v1394, %v1392
  %v1633 = vpack.c.b16 %v1397, %v1395
  %v1634 = vpack.c.b16 %v1398, %v1396
  %v1635 = vpack.c.b16 %v1401, %v1399
  %v1636 = vpack.c.b16 %v1402, %v1400
  %v1637 = vpack.c.b16 %v1405, %v1403
  %v1638 = vpack.c.b16 %v1406, %v1404
  %v1639 = vpack.c.b16 %v1409, %v1407
  %v1640 = vpack.c.b16 %v1410, %v1408
  %v1641 = vpack.c.b16 %v1413, %v1411
  %v1642 = vpack.c.b16 %v1414, %v1412
  %v1643 = vpack.c.b16 %v1417, %v1415
  %v1644 = vpack.c.b16 %v1418, %v1416
  %v1645 = vpack.c.b16 %v1421, %v1419
  %v1646 = vpack.c.b16 %v1422, %v1420
  %v1647 = vpack.c.b16 %v1425, %v1423
  %v1648 = vpack.c.b16 %v1426, %v1424
  %v1649 = vpack.c.b16 %v1429, %v1427
  %v1650 = vpack.c.b16 %v1430, %v1428
  %v1651 = vpack.c.b16 %v1433, %v1431
  %v1652 = vpack.c.b16 %v1434, %v1432
  %v1653 = vpack.c.b16 %v1437, %v1435
  %v1654 = vpack.c.b16 %v1438, %v1436
  %v1655 = vpack.c.b16 %v1441, %v1439
  %v1656 = vpack.c.b16 %v1442, %v1440
  %v1657 = vpack.c.b16 %v1445, %v1443
  %v1658 = vpack.c.b16 %v1446, %v1444
  %v1659 = vpack.c.b16 %v1449, %v1447
  %v1660 = vpack.c.b16 %v1450, %v1448
  %v1661 = vpack.c.b16 %v1453, %v1451
  %v1662 = vpack.c.b16 %v1454, %v1452
  %v1663 = vpack.c.b16 %v1457, %v1455
  %v1664 = vpack.c.b16 %v1458, %v1456
  %v1665 = vpack.c.b16 %v1461, %v1459
  %v1666 = vpack.c.b16 %v1462, %v1460
  %v1667 = vpack.c.b16 %v1465, %v1463
  %v1668 = vpack.c.b16 %v1466, %v1464
  %v1669 = vpack.c.b16 %v1469, %v1467
  %v1670 = vpack.c.b16 %v1470, %v1468
  %v1671 = vpack.c.b16 %v1473, %v1471
  %v1672 = vpack.c.b16 %v1474, %v1472
  %v1673 = vpack.c.b16 %v1477, %v1475
  %v1674 = vpack.c.b16 %v1478, %v1476
  %v1675 = vpack.c.b16 %v1481, %v1479
  %v1676 = vpack.c.b16 %v1482, %v1480
  %v1677 = vpack.c.b16 %v1485, %v1483
  %v1678 = vpack.c.b16 %v1486, %v1484
  %v1679 = vpack.c.b16 %v1489, %v1487
  %v1680 = vpack.c.b16 %v1490, %v1488
  %v1681 = vpack.c.b16 %v1493, %v1491
  %v1682 = vpack.c.b16 %v1494, %v1492
  %v1683 = vpack.c.b16 %v1497, %v1495
  %v1684 = vpack.c.b16 %v1498, %v1496
  %v1685 = vpack.c.b16 %v1501, %v1499
  %v1686 = vpack.c.b16 %v1502, %v1500
  %v1687 = vpack.c.b16 %v1505, %v1503
  %v1688 = vpack.c.b16 %v1506, %v1504
  %v1689 = vpack.c.b16 %v1509, %v1507
  %v1690 = vpack.c.b16 %v1510, %v1508
  %v1691 = vpack.c.b16 %v1513, %v1511
  %v1692 = vpack.c.b16 %v1514, %v1512
  %v1693 = vpack.c.b16 %v1517, %v1515
  %v1694 = vpack.c.b16 %v1518, %v1516
  %v1695 = vpack.c.b16 %v1521, %v1519
  %v1696 = vpack.c.b16 %v1522, %v1520
  %v1697 = vpack.c.b16 %v1525, %v1523
  %v1698 = vpack.c.b16 %v1526, %v1524
  %v1699 = vpack.c.b16 %v1529, %v1527
  %v1700 = vpack.c.b16 %v1530, %v1528
  %v1701 = vpack.c.b16 %v1533, %v1531
  %v1702 = vpack.c.b16 %v1534, %v1532
  %v1703 = vpack.c.b16 %v1537, %v1535
  %v1704 = vpack.c.b16 %v1538, %v1536
  %v1705 = vpack.c.b16 %v1541, %v1539
  %v1706 = vpack.c.b16 %v1542, %v1540
  %v1707 = vpack.c.b16 %v1545, %v1543
  %v1708 = vpack.c.b16 %v1546, %v1544
  %v1709 = vpack.c.b16 %v1549, %v1547
  %v1710 = vpack.c.b16 %v1550, %v1548
  %v1711 = vpack.c.b16 %v1553, %v1551
  %v1712 = vpack.c.b16 %v1554, %v1552
  %v1713 = vpack.c.b16 %v1557, %v1555
  %v1714 = vpack.c.b16 %v1558, %v1556
  %v1715 = vpack.c.b16 %v1561, %v1559
  %v1716 = vpack.c.b16 %v1562, %v1560
  %v1717 = vpack.c.b16 %v1565, %v1563
  %v1718 = vpack.c.b16 %v1566, %v1564
  %v1719 = vpack.c.b16 %v1569, %v1567
  %v1720 = vpack.c.b16 %v1570, %v1568
  %v1721 = vpack.c.b16 %v1573, %v1571
  %v1722 = vpack.c.b16 %v1574, %v1572
  %v1723 = vpack.c.b16 %v1577, %v1575
  %v1724 = vpack.c.b16 %v1578, %v1576
  %v1725 = vpack.c.b16 %v1581, %v1579
  %v1726 = vpack.c.b16 %v1582, %v1580
  %v1727 = vpack.c.b16 %v1585, %v1583
  %v1728 = vpack.c.b16 %v1586, %v1584
  %v1729 = vpack.c.b16 %v1589, %v1587
  %v1730 = vpack.c.b16 %v1590, %v1588
  %v1731 = vpack.c.b16 %v1593, %v1591
  %v1732 = vpack.c.b16 %v1594, %v1592
  %v1733 = vpack.c.b16 %v1597, %v1595
  %v1734 = vpack.c.b16 %v1598, %v1596
  %v1735 = vpack.c.b16 %v1601, %v1599
  %v1736 = vpack.c.b16 %v1602, %v1600
  %v1737 = vpack.c.b16 %v1605, %v1603
  %v1738 = vpack.c.b16 %v1606, %v1604
  %v1739 = vpack.c.b16 %v1609, %v1607
  %v1740 = vpack.c.b16 %v1610, %v1608
  %v1741 = vpack.c.b16 %v1613, %v1611
  %v1742 = vpack.c.b16 %v1614, %v1612
  %v1903 = vunpack.c.l.b16 %v1199
  %v1904 = vunpack.c.l.b16 %v1200
  %v1905 = vunpack.c.l.b16 %v1201
  %v1906 = vunpack.c.l.b16 %v1202
  %v1907 = vunpack.c.l.b16 %v1203
  %v1908 = vunpack.c.l.b16 %v1204
  %v1909 = vunpack.c.l.b16 %v1205
  %v1910 = vunpack.c.l.b16 %v1206
  %v1911 = vunpack.c.l.b16 %v1207
  %v1912 = vunpack.c.l.b16 %v1208
  %v1913 = vunpack.c.l.b16 %v1209
  %v1914 = vunpack.c.l.b16 %v1210
  %v1915 = vunpack.c.l.b16 %v1211
  %v1916 = vunpack.c.l.b16 %v1212
  %v1917 = vunpack.c.l.b16 %v1213
  %v1918 = vunpack.c.l.b16 %v1214
  %v1919 = vunpack.c.l.b16 %v1215
  %v1920 = vunpack.c.l.b16 %v1216
  %v1921 = vunpack.c.l.b16 %v1217
  %v1922 = vunpack.c.l.b16 %v1218
  %v1923 = vunpack.c.l.b16 %v1219
  %v1924 = vunpack.c.l.b16 %v1220
  %v1925 = vunpack.c.l.b16 %v1221
  %v1926 = vunpack.c.l.b16 %v1222
  %v1927 = vunpack.c.l.b16 %v1223
  %v1928 = vunpack.c.l.b16 %v1224
  %v1929 = vunpack.c.l.b16 %v1225
  %v1930 = vunpack.c.l.b16 %v1226
  %v1931 = vunpack.c.l.b16 %v1227
  %v1932 = vunpack.c.l.b16 %v1228
  %v1933 = vunpack.c.l.b16 %v1229
  %v1934 = vunpack.c.l.b16 %v1230
  %v1935 = vpack.c.b16 %v1904, %v1903
  %v1936 = vpack.c.b16 %v1906, %v1905
  %v1937 = vpack.c.b16 %v1908, %v1907
  %v1938 = vpack.c.b16 %v1910, %v1909
  %v1939 = vpack.c.b16 %v1912, %v1911
  %v1940 = vpack.c.b16 %v1914, %v1913
  %v1941 = vpack.c.b16 %v1916, %v1915
  %v1942 = vpack.c.b16 %v1918, %v1917
  %v1943 = vpack.c.b16 %v1920, %v1919
  %v1944 = vpack.c.b16 %v1922, %v1921
  %v1945 = vpack.c.b16 %v1924, %v1923
  %v1946 = vpack.c.b16 %v1926, %v1925
  %v1947 = vpack.c.b16 %v1928, %v1927
  %v1948 = vpack.c.b16 %v1930, %v1929
  %v1949 = vpack.c.b16 %v1932, %v1931
  %v1950 = vpack.c.b16 %v1934, %v1933
  %1967 = vmatpush.bf16.msra.mxu0 %v1942
  %1968 = vmatpush.bf16.msra.mxu0 %v1941
  %1969 = vmatpush.bf16.msra.mxu0 %v1940
  %1970 = vmatpush.bf16.msra.mxu0 %v1939
  %1971 = vmatpush.bf16.msra.mxu0 %v1938
  %1972 = vmatpush.bf16.msra.mxu0 %v1937
  %1973 = vmatpush.bf16.msra.mxu0 %v1936
  %1974 = vmatpush.bf16.msra.mxu0 %v1935
  %1975 = vmatmul.bf16.gmra.mxu0 %v1615
  %v1976 = vpop.f32.mrf.mxu0
  %v1977 = vadd.f32 0.0, %v1976
  %v1978 = vpop.f32.mrf.mxu0
  %v1979 = vadd.f32 0.0, %v1978
  %1980 = vmatmul.bf16.gmra.mxu0 %v1617
  %v1981 = vpop.f32.mrf.mxu0
  %v1982 = vadd.f32 0.0, %v1981
  %v1983 = vpop.f32.mrf.mxu0
  %v1984 = vadd.f32 0.0, %v1983
  %1985 = vmatmul.bf16.gmra.mxu0 %v1619
  %v1986 = vpop.f32.mrf.mxu0
  %v1987 = vadd.f32 0.0, %v1986
  %v1988 = vpop.f32.mrf.mxu0
  %v1989 = vadd.f32 0.0, %v1988
  %1990 = vmatmul.bf16.gmra.mxu0 %v1621
  %v1991 = vpop.f32.mrf.mxu0
  %v1992 = vadd.f32 0.0, %v1991
  %v1993 = vpop.f32.mrf.mxu0
  %v1994 = vadd.f32 0.0, %v1993
  %1995 = vmatmul.bf16.gmra.mxu0 %v1623
  %v1996 = vpop.f32.mrf.mxu0
  %v1997 = vadd.f32 0.0, %v1996
  %v1998 = vpop.f32.mrf.mxu0
  %v1999 = vadd.f32 0.0, %v1998
  %2000 = vmatmul.bf16.gmra.mxu0 %v1625
  %v2001 = vpop.f32.mrf.mxu0
  %v2002 = vadd.f32 0.0, %v2001
  %v2003 = vpop.f32.mrf.mxu0
  %v2004 = vadd.f32 0.0, %v2003
  %2005 = vmatmul.bf16.gmra.mxu0 %v1627
  %v2006 = vpop.f32.mrf.mxu0
  %v2007 = vadd.f32 0.0, %v2006
  %v2008 = vpop.f32.mrf.mxu0
  %v2009 = vadd.f32 0.0, %v2008
  %2010 = vmatmul.bf16.gmra.mxu0 %v1629
  %v2011 = vpop.f32.mrf.mxu0
  %v2012 = vadd.f32 0.0, %v2011
  %v2013 = vpop.f32.mrf.mxu0
  %v2014 = vadd.f32 0.0, %v2013
  %2015 = vmatmul.bf16.gmra.mxu0 %v1631
  %v2016 = vpop.f32.mrf.mxu0
  %v2017 = vadd.f32 0.0, %v2016
  %v2018 = vpop.f32.mrf.mxu0
  %v2019 = vadd.f32 0.0, %v2018
  %2020 = vmatmul.bf16.gmra.mxu0 %v1633
  %v2021 = vpop.f32.mrf.mxu0
  %v2022 = vadd.f32 0.0, %v2021
  %v2023 = vpop.f32.mrf.mxu0
  %v2024 = vadd.f32 0.0, %v2023
  %2025 = vmatmul.bf16.gmra.mxu0 %v1635
  %v2026 = vpop.f32.mrf.mxu0
  %v2027 = vadd.f32 0.0, %v2026
  %v2028 = vpop.f32.mrf.mxu0
  %v2029 = vadd.f32 0.0, %v2028
  %2030 = vmatmul.bf16.gmra.mxu0 %v1637
  %v2031 = vpop.f32.mrf.mxu0
  %v2032 = vadd.f32 0.0, %v2031
  %v2033 = vpop.f32.mrf.mxu0
  %v2034 = vadd.f32 0.0, %v2033
  %2035 = vmatmul.bf16.gmra.mxu0 %v1639
  %v2036 = vpop.f32.mrf.mxu0
  %v2037 = vadd.f32 0.0, %v2036
  %v2038 = vpop.f32.mrf.mxu0
  %v2039 = vadd.f32 0.0, %v2038
  %2040 = vmatmul.bf16.gmra.mxu0 %v1641
  %v2041 = vpop.f32.mrf.mxu0
  %v2042 = vadd.f32 0.0, %v2041
  %v2043 = vpop.f32.mrf.mxu0
  %v2044 = vadd.f32 0.0, %v2043
  %2045 = vmatmul.bf16.gmra.mxu0 %v1643
  %v2046 = vpop.f32.mrf.mxu0
  %v2047 = vadd.f32 0.0, %v2046
  %v2048 = vpop.f32.mrf.mxu0
  %v2049 = vadd.f32 0.0, %v2048
  %2050 = vmatmul.bf16.gmra.mxu0 %v1645
  %v2051 = vpop.f32.mrf.mxu0
  %v2052 = vadd.f32 0.0, %v2051
  %v2053 = vpop.f32.mrf.mxu0
  %v2054 = vadd.f32 0.0, %v2053
  %2055 = vmatmul.bf16.gmra.mxu0 %v1647
  %v2056 = vpop.f32.mrf.mxu0
  %v2057 = vadd.f32 0.0, %v2056
  %v2058 = vpop.f32.mrf.mxu0
  %v2059 = vadd.f32 0.0, %v2058
  %2060 = vmatmul.bf16.gmra.mxu0 %v1649
  %v2061 = vpop.f32.mrf.mxu0
  %v2062 = vadd.f32 0.0, %v2061
  %v2063 = vpop.f32.mrf.mxu0
  %v2064 = vadd.f32 0.0, %v2063
  %2065 = vmatmul.bf16.gmra.mxu0 %v1651
  %v2066 = vpop.f32.mrf.mxu0
  %v2067 = vadd.f32 0.0, %v2066
  %v2068 = vpop.f32.mrf.mxu0
  %v2069 = vadd.f32 0.0, %v2068
  %2070 = vmatmul.bf16.gmra.mxu0 %v1653
  %v2071 = vpop.f32.mrf.mxu0
  %v2072 = vadd.f32 0.0, %v2071
  %v2073 = vpop.f32.mrf.mxu0
  %v2074 = vadd.f32 0.0, %v2073
  %2075 = vmatmul.bf16.gmra.mxu0 %v1655
  %v2076 = vpop.f32.mrf.mxu0
  %v2077 = vadd.f32 0.0, %v2076
  %v2078 = vpop.f32.mrf.mxu0
  %v2079 = vadd.f32 0.0, %v2078
  %2080 = vmatmul.bf16.gmra.mxu0 %v1657
  %v2081 = vpop.f32.mrf.mxu0
  %v2082 = vadd.f32 0.0, %v2081
  %v2083 = vpop.f32.mrf.mxu0
  %v2084 = vadd.f32 0.0, %v2083
  %2085 = vmatmul.bf16.gmra.mxu0 %v1659
  %v2086 = vpop.f32.mrf.mxu0
  %v2087 = vadd.f32 0.0, %v2086
  %v2088 = vpop.f32.mrf.mxu0
  %v2089 = vadd.f32 0.0, %v2088
  %2090 = vmatmul.bf16.gmra.mxu0 %v1661
  %v2091 = vpop.f32.mrf.mxu0
  %v2092 = vadd.f32 0.0, %v2091
  %v2093 = vpop.f32.mrf.mxu0
  %v2094 = vadd.f32 0.0, %v2093
  %2095 = vmatmul.bf16.gmra.mxu0 %v1663
  %v2096 = vpop.f32.mrf.mxu0
  %v2097 = vadd.f32 0.0, %v2096
  %v2098 = vpop.f32.mrf.mxu0
  %v2099 = vadd.f32 0.0, %v2098
  %2100 = vmatmul.bf16.gmra.mxu0 %v1665
  %v2101 = vpop.f32.mrf.mxu0
  %v2102 = vadd.f32 0.0, %v2101
  %v2103 = vpop.f32.mrf.mxu0
  %v2104 = vadd.f32 0.0, %v2103
  %2105 = vmatmul.bf16.gmra.mxu0 %v1667
  %v2106 = vpop.f32.mrf.mxu0
  %v2107 = vadd.f32 0.0, %v2106
  %v2108 = vpop.f32.mrf.mxu0
  %v2109 = vadd.f32 0.0, %v2108
  %2110 = vmatmul.bf16.gmra.mxu0 %v1669
  %v2111 = vpop.f32.mrf.mxu0
  %v2112 = vadd.f32 0.0, %v2111
  %v2113 = vpop.f32.mrf.mxu0
  %v2114 = vadd.f32 0.0, %v2113
  %2115 = vmatmul.bf16.gmra.mxu0 %v1671
  %v2116 = vpop.f32.mrf.mxu0
  %v2117 = vadd.f32 0.0, %v2116
  %v2118 = vpop.f32.mrf.mxu0
  %v2119 = vadd.f32 0.0, %v2118
  %2120 = vmatmul.bf16.gmra.mxu0 %v1673
  %v2121 = vpop.f32.mrf.mxu0
  %v2122 = vadd.f32 0.0, %v2121
  %v2123 = vpop.f32.mrf.mxu0
  %v2124 = vadd.f32 0.0, %v2123
  %2125 = vmatmul.bf16.gmra.mxu0 %v1675
  %v2126 = vpop.f32.mrf.mxu0
  %v2127 = vadd.f32 0.0, %v2126
  %v2128 = vpop.f32.mrf.mxu0
  %v2129 = vadd.f32 0.0, %v2128
  %2130 = vmatmul.bf16.gmra.mxu0 %v1677
  %v2131 = vpop.f32.mrf.mxu0
  %v2132 = vadd.f32 0.0, %v2131
  %v2133 = vpop.f32.mrf.mxu0
  %v2134 = vadd.f32 0.0, %v2133
  %2135 = vmatmul.bf16.gmra.mxu0 %v1679
  %v2136 = vpop.f32.mrf.mxu0
  %v2137 = vadd.f32 0.0, %v2136
  %v2138 = vpop.f32.mrf.mxu0
  %v2139 = vadd.f32 0.0, %v2138
  %2140 = vmatmul.bf16.gmra.mxu0 %v1681
  %v2141 = vpop.f32.mrf.mxu0
  %v2142 = vadd.f32 0.0, %v2141
  %v2143 = vpop.f32.mrf.mxu0
  %v2144 = vadd.f32 0.0, %v2143
  %2145 = vmatmul.bf16.gmra.mxu0 %v1683
  %v2146 = vpop.f32.mrf.mxu0
  %v2147 = vadd.f32 0.0, %v2146
  %v2148 = vpop.f32.mrf.mxu0
  %v2149 = vadd.f32 0.0, %v2148
  %2150 = vmatmul.bf16.gmra.mxu0 %v1685
  %v2151 = vpop.f32.mrf.mxu0
  %v2152 = vadd.f32 0.0, %v2151
  %v2153 = vpop.f32.mrf.mxu0
  %v2154 = vadd.f32 0.0, %v2153
  %2155 = vmatmul.bf16.gmra.mxu0 %v1687
  %v2156 = vpop.f32.mrf.mxu0
  %v2157 = vadd.f32 0.0, %v2156
  %v2158 = vpop.f32.mrf.mxu0
  %v2159 = vadd.f32 0.0, %v2158
  %2160 = vmatmul.bf16.gmra.mxu0 %v1689
  %v2161 = vpop.f32.mrf.mxu0
  %v2162 = vadd.f32 0.0, %v2161
  %v2163 = vpop.f32.mrf.mxu0
  %v2164 = vadd.f32 0.0, %v2163
  %2165 = vmatmul.bf16.gmra.mxu0 %v1691
  %v2166 = vpop.f32.mrf.mxu0
  %v2167 = vadd.f32 0.0, %v2166
  %v2168 = vpop.f32.mrf.mxu0
  %v2169 = vadd.f32 0.0, %v2168
  %2170 = vmatmul.bf16.gmra.mxu0 %v1693
  %v2171 = vpop.f32.mrf.mxu0
  %v2172 = vadd.f32 0.0, %v2171
  %v2173 = vpop.f32.mrf.mxu0
  %v2174 = vadd.f32 0.0, %v2173
  %2175 = vmatmul.bf16.gmra.mxu0 %v1695
  %v2176 = vpop.f32.mrf.mxu0
  %v2177 = vadd.f32 0.0, %v2176
  %v2178 = vpop.f32.mrf.mxu0
  %v2179 = vadd.f32 0.0, %v2178
  %2180 = vmatmul.bf16.gmra.mxu0 %v1697
  %v2181 = vpop.f32.mrf.mxu0
  %v2182 = vadd.f32 0.0, %v2181
  %v2183 = vpop.f32.mrf.mxu0
  %v2184 = vadd.f32 0.0, %v2183
  %2185 = vmatmul.bf16.gmra.mxu0 %v1699
  %v2186 = vpop.f32.mrf.mxu0
  %v2187 = vadd.f32 0.0, %v2186
  %v2188 = vpop.f32.mrf.mxu0
  %v2189 = vadd.f32 0.0, %v2188
  %2190 = vmatmul.bf16.gmra.mxu0 %v1701
  %v2191 = vpop.f32.mrf.mxu0
  %v2192 = vadd.f32 0.0, %v2191
  %v2193 = vpop.f32.mrf.mxu0
  %v2194 = vadd.f32 0.0, %v2193
  %2195 = vmatmul.bf16.gmra.mxu0 %v1703
  %v2196 = vpop.f32.mrf.mxu0
  %v2197 = vadd.f32 0.0, %v2196
  %v2198 = vpop.f32.mrf.mxu0
  %v2199 = vadd.f32 0.0, %v2198
  %2200 = vmatmul.bf16.gmra.mxu0 %v1705
  %v2201 = vpop.f32.mrf.mxu0
  %v2202 = vadd.f32 0.0, %v2201
  %v2203 = vpop.f32.mrf.mxu0
  %v2204 = vadd.f32 0.0, %v2203
  %2205 = vmatmul.bf16.gmra.mxu0 %v1707
  %v2206 = vpop.f32.mrf.mxu0
  %v2207 = vadd.f32 0.0, %v2206
  %v2208 = vpop.f32.mrf.mxu0
  %v2209 = vadd.f32 0.0, %v2208
  %2210 = vmatmul.bf16.gmra.mxu0 %v1709
  %v2211 = vpop.f32.mrf.mxu0
  %v2212 = vadd.f32 0.0, %v2211
  %v2213 = vpop.f32.mrf.mxu0
  %v2214 = vadd.f32 0.0, %v2213
  %2215 = vmatmul.bf16.gmra.mxu0 %v1711
  %v2216 = vpop.f32.mrf.mxu0
  %v2217 = vadd.f32 0.0, %v2216
  %v2218 = vpop.f32.mrf.mxu0
  %v2219 = vadd.f32 0.0, %v2218
  %2220 = vmatmul.bf16.gmra.mxu0 %v1713
  %v2221 = vpop.f32.mrf.mxu0
  %v2222 = vadd.f32 0.0, %v2221
  %v2223 = vpop.f32.mrf.mxu0
  %v2224 = vadd.f32 0.0, %v2223
  %2225 = vmatmul.bf16.gmra.mxu0 %v1715
  %v2226 = vpop.f32.mrf.mxu0
  %v2227 = vadd.f32 0.0, %v2226
  %v2228 = vpop.f32.mrf.mxu0
  %v2229 = vadd.f32 0.0, %v2228
  %2230 = vmatmul.bf16.gmra.mxu0 %v1717
  %v2231 = vpop.f32.mrf.mxu0
  %v2232 = vadd.f32 0.0, %v2231
  %v2233 = vpop.f32.mrf.mxu0
  %v2234 = vadd.f32 0.0, %v2233
  %2235 = vmatmul.bf16.gmra.mxu0 %v1719
  %v2236 = vpop.f32.mrf.mxu0
  %v2237 = vadd.f32 0.0, %v2236
  %v2238 = vpop.f32.mrf.mxu0
  %v2239 = vadd.f32 0.0, %v2238
  %2240 = vmatmul.bf16.gmra.mxu0 %v1721
  %v2241 = vpop.f32.mrf.mxu0
  %v2242 = vadd.f32 0.0, %v2241
  %v2243 = vpop.f32.mrf.mxu0
  %v2244 = vadd.f32 0.0, %v2243
  %2245 = vmatmul.bf16.gmra.mxu0 %v1723
  %v2246 = vpop.f32.mrf.mxu0
  %v2247 = vadd.f32 0.0, %v2246
  %v2248 = vpop.f32.mrf.mxu0
  %v2249 = vadd.f32 0.0, %v2248
  %2250 = vmatmul.bf16.gmra.mxu0 %v1725
  %v2251 = vpop.f32.mrf.mxu0
  %v2252 = vadd.f32 0.0, %v2251
  %v2253 = vpop.f32.mrf.mxu0
  %v2254 = vadd.f32 0.0, %v2253
  %2255 = vmatmul.bf16.gmra.mxu0 %v1727
  %v2256 = vpop.f32.mrf.mxu0
  %v2257 = vadd.f32 0.0, %v2256
  %v2258 = vpop.f32.mrf.mxu0
  %v2259 = vadd.f32 0.0, %v2258
  %2260 = vmatmul.bf16.gmra.mxu0 %v1729
  %v2261 = vpop.f32.mrf.mxu0
  %v2262 = vadd.f32 0.0, %v2261
  %v2263 = vpop.f32.mrf.mxu0
  %v2264 = vadd.f32 0.0, %v2263
  %2265 = vmatmul.bf16.gmra.mxu0 %v1731
  %v2266 = vpop.f32.mrf.mxu0
  %v2267 = vadd.f32 0.0, %v2266
  %v2268 = vpop.f32.mrf.mxu0
  %v2269 = vadd.f32 0.0, %v2268
  %2270 = vmatmul.bf16.gmra.mxu0 %v1733
  %v2271 = vpop.f32.mrf.mxu0
  %v2272 = vadd.f32 0.0, %v2271
  %v2273 = vpop.f32.mrf.mxu0
  %v2274 = vadd.f32 0.0, %v2273
  %2275 = vmatmul.bf16.gmra.mxu0 %v1735
  %v2276 = vpop.f32.mrf.mxu0
  %v2277 = vadd.f32 0.0, %v2276
  %v2278 = vpop.f32.mrf.mxu0
  %v2279 = vadd.f32 0.0, %v2278
  %2280 = vmatmul.bf16.gmra.mxu0 %v1737
  %v2281 = vpop.f32.mrf.mxu0
  %v2282 = vadd.f32 0.0, %v2281
  %v2283 = vpop.f32.mrf.mxu0
  %v2284 = vadd.f32 0.0, %v2283
  %2285 = vmatmul.bf16.gmra.mxu0 %v1739
  %v2286 = vpop.f32.mrf.mxu0
  %v2287 = vadd.f32 0.0, %v2286
  %v2288 = vpop.f32.mrf.mxu0
  %v2289 = vadd.f32 0.0, %v2288
  %2290 = vmatmul.bf16.gmra.mxu0 %v1741
  %v2291 = vpop.f32.mrf.mxu0
  %v2292 = vadd.f32 0.0, %v2291
  %v2293 = vpop.f32.mrf.mxu0
  %v2294 = vadd.f32 0.0, %v2293
  %2295 = vdwg.mxu0
  %2296 = vmatpush.bf16.msra.mxu0 %v1950
  %2297 = vmatpush.bf16.msra.mxu0 %v1949
  %2298 = vmatpush.bf16.msra.mxu0 %v1948
  %2299 = vmatpush.bf16.msra.mxu0 %v1947
  %2300 = vmatpush.bf16.msra.mxu0 %v1946
  %2301 = vmatpush.bf16.msra.mxu0 %v1945
  %2302 = vmatpush.bf16.msra.mxu0 %v1944
  %2303 = vmatpush.bf16.msra.mxu0 %v1943
  %2304 = vmatmul.bf16.gmra.mxu0 %v1616
  %v2305 = vpop.f32.mrf.mxu0
  %v2306 = vadd.f32 %v1977, %v2305
  %v2307 = vpop.f32.mrf.mxu0
  %v2308 = vadd.f32 %v1979, %v2307
  %2309 = vmatmul.bf16.gmra.mxu0 %v1618
  %v2310 = vpop.f32.mrf.mxu0
  %v2311 = vadd.f32 %v1982, %v2310
  %v2312 = vpop.f32.mrf.mxu0
  %v2313 = vadd.f32 %v1984, %v2312
  %2314 = vmatmul.bf16.gmra.mxu0 %v1620
  %v2315 = vpop.f32.mrf.mxu0
  %v2316 = vadd.f32 %v1987, %v2315
  %v2317 = vpop.f32.mrf.mxu0
  %v2318 = vadd.f32 %v1989, %v2317
  %2319 = vmatmul.bf16.gmra.mxu0 %v1622
  %v2320 = vpop.f32.mrf.mxu0
  %v2321 = vadd.f32 %v1992, %v2320
  %v2322 = vpop.f32.mrf.mxu0
  %v2323 = vadd.f32 %v1994, %v2322
  %2324 = vmatmul.bf16.gmra.mxu0 %v1624
  %v2325 = vpop.f32.mrf.mxu0
  %v2326 = vadd.f32 %v1997, %v2325
  %v2327 = vpop.f32.mrf.mxu0
  %v2328 = vadd.f32 %v1999, %v2327
  %2329 = vmatmul.bf16.gmra.mxu0 %v1626
  %v2330 = vpop.f32.mrf.mxu0
  %v2331 = vadd.f32 %v2002, %v2330
  %v2332 = vpop.f32.mrf.mxu0
  %v2333 = vadd.f32 %v2004, %v2332
  %2334 = vmatmul.bf16.gmra.mxu0 %v1628
  %v2335 = vpop.f32.mrf.mxu0
  %v2336 = vadd.f32 %v2007, %v2335
  %v2337 = vpop.f32.mrf.mxu0
  %v2338 = vadd.f32 %v2009, %v2337
  %2339 = vmatmul.bf16.gmra.mxu0 %v1630
  %v2340 = vpop.f32.mrf.mxu0
  %v2341 = vadd.f32 %v2012, %v2340
  %v2342 = vpop.f32.mrf.mxu0
  %v2343 = vadd.f32 %v2014, %v2342
  %2344 = vmatmul.bf16.gmra.mxu0 %v1632
  %v2345 = vpop.f32.mrf.mxu0
  %v2346 = vadd.f32 %v2017, %v2345
  %v2347 = vpop.f32.mrf.mxu0
  %v2348 = vadd.f32 %v2019, %v2347
  %2349 = vmatmul.bf16.gmra.mxu0 %v1634
  %v2350 = vpop.f32.mrf.mxu0
  %v2351 = vadd.f32 %v2022, %v2350
  %v2352 = vpop.f32.mrf.mxu0
  %v2353 = vadd.f32 %v2024, %v2352
  %2354 = vmatmul.bf16.gmra.mxu0 %v1636
  %v2355 = vpop.f32.mrf.mxu0
  %v2356 = vadd.f32 %v2027, %v2355
  %v2357 = vpop.f32.mrf.mxu0
  %v2358 = vadd.f32 %v2029, %v2357
  %2359 = vmatmul.bf16.gmra.mxu0 %v1638
  %v2360 = vpop.f32.mrf.mxu0
  %v2361 = vadd.f32 %v2032, %v2360
  %v2362 = vpop.f32.mrf.mxu0
  %v2363 = vadd.f32 %v2034, %v2362
  %2364 = vmatmul.bf16.gmra.mxu0 %v1640
  %v2365 = vpop.f32.mrf.mxu0
  %v2366 = vadd.f32 %v2037, %v2365
  %v2367 = vpop.f32.mrf.mxu0
  %v2368 = vadd.f32 %v2039, %v2367
  %2369 = vmatmul.bf16.gmra.mxu0 %v1642
  %v2370 = vpop.f32.mrf.mxu0
  %v2371 = vadd.f32 %v2042, %v2370
  %v2372 = vpop.f32.mrf.mxu0
  %v2373 = vadd.f32 %v2044, %v2372
  %2374 = vmatmul.bf16.gmra.mxu0 %v1644
  %v2375 = vpop.f32.mrf.mxu0
  %v2376 = vadd.f32 %v2047, %v2375
  %v2377 = vpop.f32.mrf.mxu0
  %v2378 = vadd.f32 %v2049, %v2377
  %2379 = vmatmul.bf16.gmra.mxu0 %v1646
  %v2380 = vpop.f32.mrf.mxu0
  %v2381 = vadd.f32 %v2052, %v2380
  %v2382 = vpop.f32.mrf.mxu0
  %v2383 = vadd.f32 %v2054, %v2382
  %2384 = vmatmul.bf16.gmra.mxu0 %v1648
  %v2385 = vpop.f32.mrf.mxu0
  %v2386 = vadd.f32 %v2057, %v2385
  %v2387 = vpop.f32.mrf.mxu0
  %v2388 = vadd.f32 %v2059, %v2387
  %2389 = vmatmul.bf16.gmra.mxu0 %v1650
  %v2390 = vpop.f32.mrf.mxu0
  %v2391 = vadd.f32 %v2062, %v2390
  %v2392 = vpop.f32.mrf.mxu0
  %v2393 = vadd.f32 %v2064, %v2392
  %2394 = vmatmul.bf16.gmra.mxu0 %v1652
  %v2395 = vpop.f32.mrf.mxu0
  %v2396 = vadd.f32 %v2067, %v2395
  %v2397 = vpop.f32.mrf.mxu0
  %v2398 = vadd.f32 %v2069, %v2397
  %2399 = vmatmul.bf16.gmra.mxu0 %v1654
  %v2400 = vpop.f32.mrf.mxu0
  %v2401 = vadd.f32 %v2072, %v2400
  %v2402 = vpop.f32.mrf.mxu0
  %v2403 = vadd.f32 %v2074, %v2402
  %2404 = vmatmul.bf16.gmra.mxu0 %v1656
  %v2405 = vpop.f32.mrf.mxu0
  %v2406 = vadd.f32 %v2077, %v2405
  %v2407 = vpop.f32.mrf.mxu0
  %v2408 = vadd.f32 %v2079, %v2407
  %2409 = vmatmul.bf16.gmra.mxu0 %v1658
  %v2410 = vpop.f32.mrf.mxu0
  %v2411 = vadd.f32 %v2082, %v2410
  %v2412 = vpop.f32.mrf.mxu0
  %v2413 = vadd.f32 %v2084, %v2412
  %2414 = vmatmul.bf16.gmra.mxu0 %v1660
  %v2415 = vpop.f32.mrf.mxu0
  %v2416 = vadd.f32 %v2087, %v2415
  %v2417 = vpop.f32.mrf.mxu0
  %v2418 = vadd.f32 %v2089, %v2417
  %2419 = vmatmul.bf16.gmra.mxu0 %v1662
  %v2420 = vpop.f32.mrf.mxu0
  %v2421 = vadd.f32 %v2092, %v2420
  %v2422 = vpop.f32.mrf.mxu0
  %v2423 = vadd.f32 %v2094, %v2422
  %2424 = vmatmul.bf16.gmra.mxu0 %v1664
  %v2425 = vpop.f32.mrf.mxu0
  %v2426 = vadd.f32 %v2097, %v2425
  %v2427 = vpop.f32.mrf.mxu0
  %v2428 = vadd.f32 %v2099, %v2427
  %2429 = vmatmul.bf16.gmra.mxu0 %v1666
  %v2430 = vpop.f32.mrf.mxu0
  %v2431 = vadd.f32 %v2102, %v2430
  %v2432 = vpop.f32.mrf.mxu0
  %v2433 = vadd.f32 %v2104, %v2432
  %2434 = vmatmul.bf16.gmra.mxu0 %v1668
  %v2435 = vpop.f32.mrf.mxu0
  %v2436 = vadd.f32 %v2107, %v2435
  %v2437 = vpop.f32.mrf.mxu0
  %v2438 = vadd.f32 %v2109, %v2437
  %2439 = vmatmul.bf16.gmra.mxu0 %v1670
  %v2440 = vpop.f32.mrf.mxu0
  %v2441 = vadd.f32 %v2112, %v2440
  %v2442 = vpop.f32.mrf.mxu0
  %v2443 = vadd.f32 %v2114, %v2442
  %2444 = vmatmul.bf16.gmra.mxu0 %v1672
  %v2445 = vpop.f32.mrf.mxu0
  %v2446 = vadd.f32 %v2117, %v2445
  %v2447 = vpop.f32.mrf.mxu0
  %v2448 = vadd.f32 %v2119, %v2447
  %2449 = vmatmul.bf16.gmra.mxu0 %v1674
  %v2450 = vpop.f32.mrf.mxu0
  %v2451 = vadd.f32 %v2122, %v2450
  %v2452 = vpop.f32.mrf.mxu0
  %v2453 = vadd.f32 %v2124, %v2452
  %2454 = vmatmul.bf16.gmra.mxu0 %v1676
  %v2455 = vpop.f32.mrf.mxu0
  %v2456 = vadd.f32 %v2127, %v2455
  %v2457 = vpop.f32.mrf.mxu0
  %v2458 = vadd.f32 %v2129, %v2457
  %2459 = vmatmul.bf16.gmra.mxu0 %v1678
  %v2460 = vpop.f32.mrf.mxu0
  %v2461 = vadd.f32 %v2132, %v2460
  %v2462 = vpop.f32.mrf.mxu0
  %v2463 = vadd.f32 %v2134, %v2462
  %2464 = vmatmul.bf16.gmra.mxu0 %v1680
  %v2465 = vpop.f32.mrf.mxu0
  %v2466 = vadd.f32 %v2137, %v2465
  %v2467 = vpop.f32.mrf.mxu0
  %v2468 = vadd.f32 %v2139, %v2467
  %2469 = vmatmul.bf16.gmra.mxu0 %v1682
  %v2470 = vpop.f32.mrf.mxu0
  %v2471 = vadd.f32 %v2142, %v2470
  %v2472 = vpop.f32.mrf.mxu0
  %v2473 = vadd.f32 %v2144, %v2472
  %2474 = vmatmul.bf16.gmra.mxu0 %v1684
  %v2475 = vpop.f32.mrf.mxu0
  %v2476 = vadd.f32 %v2147, %v2475
  %v2477 = vpop.f32.mrf.mxu0
  %v2478 = vadd.f32 %v2149, %v2477
  %2479 = vmatmul.bf16.gmra.mxu0 %v1686
  %v2480 = vpop.f32.mrf.mxu0
  %v2481 = vadd.f32 %v2152, %v2480
  %v2482 = vpop.f32.mrf.mxu0
  %v2483 = vadd.f32 %v2154, %v2482
  %2484 = vmatmul.bf16.gmra.mxu0 %v1688
  %v2485 = vpop.f32.mrf.mxu0
  %v2486 = vadd.f32 %v2157, %v2485
  %v2487 = vpop.f32.mrf.mxu0
  %v2488 = vadd.f32 %v2159, %v2487
  %2489 = vmatmul.bf16.gmra.mxu0 %v1690
  %v2490 = vpop.f32.mrf.mxu0
  %v2491 = vadd.f32 %v2162, %v2490
  %v2492 = vpop.f32.mrf.mxu0
  %v2493 = vadd.f32 %v2164, %v2492
  %2494 = vmatmul.bf16.gmra.mxu0 %v1692
  %v2495 = vpop.f32.mrf.mxu0
  %v2496 = vadd.f32 %v2167, %v2495
  %v2497 = vpop.f32.mrf.mxu0
  %v2498 = vadd.f32 %v2169, %v2497
  %2499 = vmatmul.bf16.gmra.mxu0 %v1694
  %v2500 = vpop.f32.mrf.mxu0
  %v2501 = vadd.f32 %v2172, %v2500
  %v2502 = vpop.f32.mrf.mxu0
  %v2503 = vadd.f32 %v2174, %v2502
  %2504 = vmatmul.bf16.gmra.mxu0 %v1696
  %v2505 = vpop.f32.mrf.mxu0
  %v2506 = vadd.f32 %v2177, %v2505
  %v2507 = vpop.f32.mrf.mxu0
  %v2508 = vadd.f32 %v2179, %v2507
  %2509 = vmatmul.bf16.gmra.mxu0 %v1698
  %v2510 = vpop.f32.mrf.mxu0
  %v2511 = vadd.f32 %v2182, %v2510
  %v2512 = vpop.f32.mrf.mxu0
  %v2513 = vadd.f32 %v2184, %v2512
  %2514 = vmatmul.bf16.gmra.mxu0 %v1700
  %v2515 = vpop.f32.mrf.mxu0
  %v2516 = vadd.f32 %v2187, %v2515
  %v2517 = vpop.f32.mrf.mxu0
  %v2518 = vadd.f32 %v2189, %v2517
  %2519 = vmatmul.bf16.gmra.mxu0 %v1702
  %v2520 = vpop.f32.mrf.mxu0
  %v2521 = vadd.f32 %v2192, %v2520
  %v2522 = vpop.f32.mrf.mxu0
  %v2523 = vadd.f32 %v2194, %v2522
  %2524 = vmatmul.bf16.gmra.mxu0 %v1704
  %v2525 = vpop.f32.mrf.mxu0
  %v2526 = vadd.f32 %v2197, %v2525
  %v2527 = vpop.f32.mrf.mxu0
  %v2528 = vadd.f32 %v2199, %v2527
  %2529 = vmatmul.bf16.gmra.mxu0 %v1706
  %v2530 = vpop.f32.mrf.mxu0
  %v2531 = vadd.f32 %v2202, %v2530
  %v2532 = vpop.f32.mrf.mxu0
  %v2533 = vadd.f32 %v2204, %v2532
  %2534 = vmatmul.bf16.gmra.mxu0 %v1708
  %v2535 = vpop.f32.mrf.mxu0
  %v2536 = vadd.f32 %v2207, %v2535
  %v2537 = vpop.f32.mrf.mxu0
  %v2538 = vadd.f32 %v2209, %v2537
  %2539 = vmatmul.bf16.gmra.mxu0 %v1710
  %v2540 = vpop.f32.mrf.mxu0
  %v2541 = vadd.f32 %v2212, %v2540
  %v2542 = vpop.f32.mrf.mxu0
  %v2543 = vadd.f32 %v2214, %v2542
  %2544 = vmatmul.bf16.gmra.mxu0 %v1712
  %v2545 = vpop.f32.mrf.mxu0
  %v2546 = vadd.f32 %v2217, %v2545
  %v2547 = vpop.f32.mrf.mxu0
  %v2548 = vadd.f32 %v2219, %v2547
  %2549 = vmatmul.bf16.gmra.mxu0 %v1714
  %v2550 = vpop.f32.mrf.mxu0
  %v2551 = vadd.f32 %v2222, %v2550
  %v2552 = vpop.f32.mrf.mxu0
  %v2553 = vadd.f32 %v2224, %v2552
  %2554 = vmatmul.bf16.gmra.mxu0 %v1716
  %v2555 = vpop.f32.mrf.mxu0
  %v2556 = vadd.f32 %v2227, %v2555
  %v2557 = vpop.f32.mrf.mxu0
  %v2558 = vadd.f32 %v2229, %v2557
  %2559 = vmatmul.bf16.gmra.mxu0 %v1718
  %v2560 = vpop.f32.mrf.mxu0
  %v2561 = vadd.f32 %v2232, %v2560
  %v2562 = vpop.f32.mrf.mxu0
  %v2563 = vadd.f32 %v2234, %v2562
  %2564 = vmatmul.bf16.gmra.mxu0 %v1720
  %v2565 = vpop.f32.mrf.mxu0
  %v2566 = vadd.f32 %v2237, %v2565
  %v2567 = vpop.f32.mrf.mxu0
  %v2568 = vadd.f32 %v2239, %v2567
  %2569 = vmatmul.bf16.gmra.mxu0 %v1722
  %v2570 = vpop.f32.mrf.mxu0
  %v2571 = vadd.f32 %v2242, %v2570
  %v2572 = vpop.f32.mrf.mxu0
  %v2573 = vadd.f32 %v2244, %v2572
  %2574 = vmatmul.bf16.gmra.mxu0 %v1724
  %v2575 = vpop.f32.mrf.mxu0
  %v2576 = vadd.f32 %v2247, %v2575
  %v2577 = vpop.f32.mrf.mxu0
  %v2578 = vadd.f32 %v2249, %v2577
  %2579 = vmatmul.bf16.gmra.mxu0 %v1726
  %v2580 = vpop.f32.mrf.mxu0
  %v2581 = vadd.f32 %v2252, %v2580
  %v2582 = vpop.f32.mrf.mxu0
  %v2583 = vadd.f32 %v2254, %v2582
  %2584 = vmatmul.bf16.gmra.mxu0 %v1728
  %v2585 = vpop.f32.mrf.mxu0
  %v2586 = vadd.f32 %v2257, %v2585
  %v2587 = vpop.f32.mrf.mxu0
  %v2588 = vadd.f32 %v2259, %v2587
  %2589 = vmatmul.bf16.gmra.mxu0 %v1730
  %v2590 = vpop.f32.mrf.mxu0
  %v2591 = vadd.f32 %v2262, %v2590
  %v2592 = vpop.f32.mrf.mxu0
  %v2593 = vadd.f32 %v2264, %v2592
  %2594 = vmatmul.bf16.gmra.mxu0 %v1732
  %v2595 = vpop.f32.mrf.mxu0
  %v2596 = vadd.f32 %v2267, %v2595
  %v2597 = vpop.f32.mrf.mxu0
  %v2598 = vadd.f32 %v2269, %v2597
  %2599 = vmatmul.bf16.gmra.mxu0 %v1734
  %v2600 = vpop.f32.mrf.mxu0
  %v2601 = vadd.f32 %v2272, %v2600
  %v2602 = vpop.f32.mrf.mxu0
  %v2603 = vadd.f32 %v2274, %v2602
  %2604 = vmatmul.bf16.gmra.mxu0 %v1736
  %v2605 = vpop.f32.mrf.mxu0
  %v2606 = vadd.f32 %v2277, %v2605
  %v2607 = vpop.f32.mrf.mxu0
  %v2608 = vadd.f32 %v2279, %v2607
  %2609 = vmatmul.bf16.gmra.mxu0 %v1738
  %v2610 = vpop.f32.mrf.mxu0
  %v2611 = vadd.f32 %v2282, %v2610
  %v2612 = vpop.f32.mrf.mxu0
  %v2613 = vadd.f32 %v2284, %v2612
  %2614 = vmatmul.bf16.gmra.mxu0 %v1740
  %v2615 = vpop.f32.mrf.mxu0
  %v2616 = vadd.f32 %v2287, %v2615
  %v2617 = vpop.f32.mrf.mxu0
  %v2618 = vadd.f32 %v2289, %v2617
  %2619 = vmatmul.bf16.gmra.mxu0 %v1742
  %v2620 = vpop.f32.mrf.mxu0
  %v2621 = vadd.f32 %v2292, %v2620
  %v2622 = vpop.f32.mrf.mxu0
  %v2623 = vadd.f32 %v2294, %v2622
  %2624 = vdwg.mxu0
  %v2625 = vpack.c.bf16 %v2306, %v2306
  %v2626 = vpack.c.bf16 %v2308, %v2308
  %v2627 = vpack.c.bf16 %v2311, %v2311
  %v2628 = vpack.c.bf16 %v2313, %v2313
  %v2629 = vpack.c.bf16 %v2316, %v2316
  %v2630 = vpack.c.bf16 %v2318, %v2318
  %v2631 = vpack.c.bf16 %v2321, %v2321
  %v2632 = vpack.c.bf16 %v2323, %v2323
  %v2633 = vpack.c.bf16 %v2326, %v2326
  %v2634 = vpack.c.bf16 %v2328, %v2328
  %v2635 = vpack.c.bf16 %v2331, %v2331
  %v2636 = vpack.c.bf16 %v2333, %v2333
  %v2637 = vpack.c.bf16 %v2336, %v2336
  %v2638 = vpack.c.bf16 %v2338, %v2338
  %v2639 = vpack.c.bf16 %v2341, %v2341
  %v2640 = vpack.c.bf16 %v2343, %v2343
  %v2641 = vpack.c.bf16 %v2346, %v2346
  %v2642 = vpack.c.bf16 %v2348, %v2348
  %v2643 = vpack.c.bf16 %v2351, %v2351
  %v2644 = vpack.c.bf16 %v2353, %v2353
  %v2645 = vpack.c.bf16 %v2356, %v2356
  %v2646 = vpack.c.bf16 %v2358, %v2358
  %v2647 = vpack.c.bf16 %v2361, %v2361
  %v2648 = vpack.c.bf16 %v2363, %v2363
  %v2649 = vpack.c.bf16 %v2366, %v2366
  %v2650 = vpack.c.bf16 %v2368, %v2368
  %v2651 = vpack.c.bf16 %v2371, %v2371
  %v2652 = vpack.c.bf16 %v2373, %v2373
  %v2653 = vpack.c.bf16 %v2376, %v2376
  %v2654 = vpack.c.bf16 %v2378, %v2378
  %v2655 = vpack.c.bf16 %v2381, %v2381
  %v2656 = vpack.c.bf16 %v2383, %v2383
  %v2657 = vpack.c.bf16 %v2386, %v2386
  %v2658 = vpack.c.bf16 %v2388, %v2388
  %v2659 = vpack.c.bf16 %v2391, %v2391
  %v2660 = vpack.c.bf16 %v2393, %v2393
  %v2661 = vpack.c.bf16 %v2396, %v2396
  %v2662 = vpack.c.bf16 %v2398, %v2398
  %v2663 = vpack.c.bf16 %v2401, %v2401
  %v2664 = vpack.c.bf16 %v2403, %v2403
  %v2665 = vpack.c.bf16 %v2406, %v2406
  %v2666 = vpack.c.bf16 %v2408, %v2408
  %v2667 = vpack.c.bf16 %v2411, %v2411
  %v2668 = vpack.c.bf16 %v2413, %v2413
  %v2669 = vpack.c.bf16 %v2416, %v2416
  %v2670 = vpack.c.bf16 %v2418, %v2418
  %v2671 = vpack.c.bf16 %v2421, %v2421
  %v2672 = vpack.c.bf16 %v2423, %v2423
  %v2673 = vpack.c.bf16 %v2426, %v2426
  %v2674 = vpack.c.bf16 %v2428, %v2428
  %v2675 = vpack.c.bf16 %v2431, %v2431
  %v2676 = vpack.c.bf16 %v2433, %v2433
  %v2677 = vpack.c.bf16 %v2436, %v2436
  %v2678 = vpack.c.bf16 %v2438, %v2438
  %v2679 = vpack.c.bf16 %v2441, %v2441
  %v2680 = vpack.c.bf16 %v2443, %v2443
  %v2681 = vpack.c.bf16 %v2446, %v2446
  %v2682 = vpack.c.bf16 %v2448, %v2448
  %v2683 = vpack.c.bf16 %v2451, %v2451
  %v2684 = vpack.c.bf16 %v2453, %v2453
  %v2685 = vpack.c.bf16 %v2456, %v2456
  %v2686 = vpack.c.bf16 %v2458, %v2458
  %v2687 = vpack.c.bf16 %v2461, %v2461
  %v2688 = vpack.c.bf16 %v2463, %v2463
  %v2689 = vpack.c.bf16 %v2466, %v2466
  %v2690 = vpack.c.bf16 %v2468, %v2468
  %v2691 = vpack.c.bf16 %v2471, %v2471
  %v2692 = vpack.c.bf16 %v2473, %v2473
  %v2693 = vpack.c.bf16 %v2476, %v2476
  %v2694 = vpack.c.bf16 %v2478, %v2478
  %v2695 = vpack.c.bf16 %v2481, %v2481
  %v2696 = vpack.c.bf16 %v2483, %v2483
  %v2697 = vpack.c.bf16 %v2486, %v2486
  %v2698 = vpack.c.bf16 %v2488, %v2488
  %v2699 = vpack.c.bf16 %v2491, %v2491
  %v2700 = vpack.c.bf16 %v2493, %v2493
  %v2701 = vpack.c.bf16 %v2496, %v2496
  %v2702 = vpack.c.bf16 %v2498, %v2498
  %v2703 = vpack.c.bf16 %v2501, %v2501
  %v2704 = vpack.c.bf16 %v2503, %v2503
  %v2705 = vpack.c.bf16 %v2506, %v2506
  %v2706 = vpack.c.bf16 %v2508, %v2508
  %v2707 = vpack.c.bf16 %v2511, %v2511
  %v2708 = vpack.c.bf16 %v2513, %v2513
  %v2709 = vpack.c.bf16 %v2516, %v2516
  %v2710 = vpack.c.bf16 %v2518, %v2518
  %v2711 = vpack.c.bf16 %v2521, %v2521
  %v2712 = vpack.c.bf16 %v2523, %v2523
  %v2713 = vpack.c.bf16 %v2526, %v2526
  %v2714 = vpack.c.bf16 %v2528, %v2528
  %v2715 = vpack.c.bf16 %v2531, %v2531
  %v2716 = vpack.c.bf16 %v2533, %v2533
  %v2717 = vpack.c.bf16 %v2536, %v2536
  %v2718 = vpack.c.bf16 %v2538, %v2538
  %v2719 = vpack.c.bf16 %v2541, %v2541
  %v2720 = vpack.c.bf16 %v2543, %v2543
  %v2721 = vpack.c.bf16 %v2546, %v2546
  %v2722 = vpack.c.bf16 %v2548, %v2548
  %v2723 = vpack.c.bf16 %v2551, %v2551
  %v2724 = vpack.c.bf16 %v2553, %v2553
  %v2725 = vpack.c.bf16 %v2556, %v2556
  %v2726 = vpack.c.bf16 %v2558, %v2558
  %v2727 = vpack.c.bf16 %v2561, %v2561
  %v2728 = vpack.c.bf16 %v2563, %v2563
  %v2729 = vpack.c.bf16 %v2566, %v2566
  %v2730 = vpack.c.bf16 %v2568, %v2568
  %v2731 = vpack.c.bf16 %v2571, %v2571
  %v2732 = vpack.c.bf16 %v2573, %v2573
  %v2733 = vpack.c.bf16 %v2576, %v2576
  %v2734 = vpack.c.bf16 %v2578, %v2578
  %v2735 = vpack.c.bf16 %v2581, %v2581
  %v2736 = vpack.c.bf16 %v2583, %v2583
  %v2737 = vpack.c.bf16 %v2586, %v2586
  %v2738 = vpack.c.bf16 %v2588, %v2588
  %v2739 = vpack.c.bf16 %v2591, %v2591
  %v2740 = vpack.c.bf16 %v2593, %v2593
  %v2741 = vpack.c.bf16 %v2596, %v2596
  %v2742 = vpack.c.bf16 %v2598, %v2598
  %v2743 = vpack.c.bf16 %v2601, %v2601
  %v2744 = vpack.c.bf16 %v2603, %v2603
  %v2745 = vpack.c.bf16 %v2606, %v2606
  %v2746 = vpack.c.bf16 %v2608, %v2608
  %v2747 = vpack.c.bf16 %v2611, %v2611
  %v2748 = vpack.c.bf16 %v2613, %v2613
  %v2749 = vpack.c.bf16 %v2616, %v2616
  %v2750 = vpack.c.bf16 %v2618, %v2618
  %v2751 = vpack.c.bf16 %v2621, %v2621
  %v2752 = vpack.c.bf16 %v2623, %v2623
  %2753 = vst.msk [vmem:[#allocation3] sm:$0xf] %vm1006, %v2625
  %2754 = vst.msk [vmem:[#allocation3 + $0x4] sm:$0xf] %vm1006, %v2626
  %2755 = vst.msk [vmem:[#allocation3 + $0x8] sm:$0xf] %vm1006, %v2627
  %2756 = vst.msk [vmem:[#allocation3 + $0xc] sm:$0xf] %vm1006, %v2628
  %2757 = vst.msk [vmem:[#allocation3 + $0x10] sm:$0xf] %vm1006, %v2629
  %2758 = vst.msk [vmem:[#allocation3 + $0x14] sm:$0xf] %vm1006, %v2630
  %2759 = vst.msk [vmem:[#allocation3 + $0x18] sm:$0xf] %vm1006, %v2631
  %2760 = vst.msk [vmem:[#allocation3 + $0x1c] sm:$0xf] %vm1006, %v2632
  %2761 = vst.msk [vmem:[#allocation3 + $0x20] sm:$0xf] %vm1006, %v2633
  %2762 = vst.msk [vmem:[#allocation3 + $0x24] sm:$0xf] %vm1006, %v2634
  %2763 = vst.msk [vmem:[#allocation3 + $0x28] sm:$0xf] %vm1006, %v2635
  %2764 = vst.msk [vmem:[#allocation3 + $0x2c] sm:$0xf] %vm1006, %v2636
  %2765 = vst.msk [vmem:[#allocation3 + $0x30] sm:$0xf] %vm1006, %v2637
  %2766 = vst.msk [vmem:[#allocation3 + $0x34] sm:$0xf] %vm1006, %v2638
  %2767 = vst.msk [vmem:[#allocation3 + $0x38] sm:$0xf] %vm1006, %v2639
  %2768 = vst.msk [vmem:[#allocation3 + $0x3c] sm:$0xf] %vm1006, %v2640
  %2769 = vst.msk [vmem:[#allocation3 + $0x40] sm:$0xf] %vm1006, %v2641
  %2770 = vst.msk [vmem:[#allocation3 + $0x44] sm:$0xf] %vm1006, %v2642
  %2771 = vst.msk [vmem:[#allocation3 + $0x48] sm:$0xf] %vm1006, %v2643
  %2772 = vst.msk [vmem:[#allocation3 + $0x4c] sm:$0xf] %vm1006, %v2644
  %2773 = vst.msk [vmem:[#allocation3 + $0x50] sm:$0xf] %vm1006, %v2645
  %2774 = vst.msk [vmem:[#allocation3 + $0x54] sm:$0xf] %vm1006, %v2646
  %2775 = vst.msk [vmem:[#allocation3 + $0x58] sm:$0xf] %vm1006, %v2647
  %2776 = vst.msk [vmem:[#allocation3 + $0x5c] sm:$0xf] %vm1006, %v2648
  %2777 = vst.msk [vmem:[#allocation3 + $0x60] sm:$0xf] %vm1006, %v2649
  %2778 = vst.msk [vmem:[#allocation3 + $0x64] sm:$0xf] %vm1006, %v2650
  %2779 = vst.msk [vmem:[#allocation3 + $0x68] sm:$0xf] %vm1006, %v2651
  %2780 = vst.msk [vmem:[#allocation3 + $0x6c] sm:$0xf] %vm1006, %v2652
  %2781 = vst.msk [vmem:[#allocation3 + $0x70] sm:$0xf] %vm1006, %v2653
  %2782 = vst.msk [vmem:[#allocation3 + $0x74] sm:$0xf] %vm1006, %v2654
  %2783 = vst.msk [vmem:[#allocation3 + $0x78] sm:$0xf] %vm1006, %v2655
  %2784 = vst.msk [vmem:[#allocation3 + $0x7c] sm:$0xf] %vm1006, %v2656
  %2785 = vst.msk [vmem:[#allocation3 + $0x80] sm:$0xf] %vm1006, %v2657
  %2786 = vst.msk [vmem:[#allocation3 + $0x84] sm:$0xf] %vm1006, %v2658
  %2787 = vst.msk [vmem:[#allocation3 + $0x88] sm:$0xf] %vm1006, %v2659
  %2788 = vst.msk [vmem:[#allocation3 + $0x8c] sm:$0xf] %vm1006, %v2660
  %2789 = vst.msk [vmem:[#allocation3 + $0x90] sm:$0xf] %vm1006, %v2661
  %2790 = vst.msk [vmem:[#allocation3 + $0x94] sm:$0xf] %vm1006, %v2662
  %2791 = vst.msk [vmem:[#allocation3 + $0x98] sm:$0xf] %vm1006, %v2663
  %2792 = vst.msk [vmem:[#allocation3 + $0x9c] sm:$0xf] %vm1006, %v2664
  %2793 = vst.msk [vmem:[#allocation3 + $0xa0] sm:$0xf] %vm1006, %v2665
  %2794 = vst.msk [vmem:[#allocation3 + $0xa4] sm:$0xf] %vm1006, %v2666
  %2795 = vst.msk [vmem:[#allocation3 + $0xa8] sm:$0xf] %vm1006, %v2667
  %2796 = vst.msk [vmem:[#allocation3 + $0xac] sm:$0xf] %vm1006, %v2668
  %2797 = vst.msk [vmem:[#allocation3 + $0xb0] sm:$0xf] %vm1006, %v2669
  %2798 = vst.msk [vmem:[#allocation3 + $0xb4] sm:$0xf] %vm1006, %v2670
  %2799 = vst.msk [vmem:[#allocation3 + $0xb8] sm:$0xf] %vm1006, %v2671
  %2800 = vst.msk [vmem:[#allocation3 + $0xbc] sm:$0xf] %vm1006, %v2672
  %2801 = vst.msk [vmem:[#allocation3 + $0xc0] sm:$0xf] %vm1006, %v2673
  %2802 = vst.msk [vmem:[#allocation3 + $0xc4] sm:$0xf] %vm1006, %v2674
  %2803 = vst.msk [vmem:[#allocation3 + $0xc8] sm:$0xf] %vm1006, %v2675
  %2804 = vst.msk [vmem:[#allocation3 + $0xcc] sm:$0xf] %vm1006, %v2676
  %2805 = vst.msk [vmem:[#allocation3 + $0xd0] sm:$0xf] %vm1006, %v2677
  %2806 = vst.msk [vmem:[#allocation3 + $0xd4] sm:$0xf] %vm1006, %v2678
  %2807 = vst.msk [vmem:[#allocation3 + $0xd8] sm:$0xf] %vm1006, %v2679
  %2808 = vst.msk [vmem:[#allocation3 + $0xdc] sm:$0xf] %vm1006, %v2680
  %2809 = vst.msk [vmem:[#allocation3 + $0xe0] sm:$0xf] %vm1006, %v2681
  %2810 = vst.msk [vmem:[#allocation3 + $0xe4] sm:$0xf] %vm1006, %v2682
  %2811 = vst.msk [vmem:[#allocation3 + $0xe8] sm:$0xf] %vm1006, %v2683
  %2812 = vst.msk [vmem:[#allocation3 + $0xec] sm:$0xf] %vm1006, %v2684
  %2813 = vst.msk [vmem:[#allocation3 + $0xf0] sm:$0xf] %vm1006, %v2685
  %2814 = vst.msk [vmem:[#allocation3 + $0xf4] sm:$0xf] %vm1006, %v2686
  %2815 = vst.msk [vmem:[#allocation3 + $0xf8] sm:$0xf] %vm1006, %v2687
  %2816 = vst.msk [vmem:[#allocation3 + $0xfc] sm:$0xf] %vm1006, %v2688
  %2817 = vst.msk [vmem:[#allocation3 + $0x100] sm:$0xf] %vm1006, %v2689
  %2818 = vst.msk [vmem:[#allocation3 + $0x104] sm:$0xf] %vm1006, %v2690
  %2819 = vst.msk [vmem:[#allocation3 + $0x108] sm:$0xf] %vm1006, %v2691
  %2820 = vst.msk [vmem:[#allocation3 + $0x10c] sm:$0xf] %vm1006, %v2692
  %2821 = vst.msk [vmem:[#allocation3 + $0x110] sm:$0xf] %vm1006, %v2693
  %2822 = vst.msk [vmem:[#allocation3 + $0x114] sm:$0xf] %vm1006, %v2694
  %2823 = vst.msk [vmem:[#allocation3 + $0x118] sm:$0xf] %vm1006, %v2695
  %2824 = vst.msk [vmem:[#allocation3 + $0x11c] sm:$0xf] %vm1006, %v2696
  %2825 = vst.msk [vmem:[#allocation3 + $0x120] sm:$0xf] %vm1006, %v2697
  %2826 = vst.msk [vmem:[#allocation3 + $0x124] sm:$0xf] %vm1006, %v2698
  %2827 = vst.msk [vmem:[#allocation3 + $0x128] sm:$0xf] %vm1006, %v2699
  %2828 = vst.msk [vmem:[#allocation3 + $0x12c] sm:$0xf] %vm1006, %v2700
  %2829 = vst.msk [vmem:[#allocation3 + $0x130] sm:$0xf] %vm1006, %v2701
  %2830 = vst.msk [vmem:[#allocation3 + $0x134] sm:$0xf] %vm1006, %v2702
  %2831 = vst.msk [vmem:[#allocation3 + $0x138] sm:$0xf] %vm1006, %v2703
  %2832 = vst.msk [vmem:[#allocation3 + $0x13c] sm:$0xf] %vm1006, %v2704
  %2833 = vst.msk [vmem:[#allocation3 + $0x140] sm:$0xf] %vm1006, %v2705
  %2834 = vst.msk [vmem:[#allocation3 + $0x144] sm:$0xf] %vm1006, %v2706
  %2835 = vst.msk [vmem:[#allocation3 + $0x148] sm:$0xf] %vm1006, %v2707
  %2836 = vst.msk [vmem:[#allocation3 + $0x14c] sm:$0xf] %vm1006, %v2708
  %2837 = vst.msk [vmem:[#allocation3 + $0x150] sm:$0xf] %vm1006, %v2709
  %2838 = vst.msk [vmem:[#allocation3 + $0x154] sm:$0xf] %vm1006, %v2710
  %2839 = vst.msk [vmem:[#allocation3 + $0x158] sm:$0xf] %vm1006, %v2711
  %2840 = vst.msk [vmem:[#allocation3 + $0x15c] sm:$0xf] %vm1006, %v2712
  %2841 = vst.msk [vmem:[#allocation3 + $0x160] sm:$0xf] %vm1006, %v2713
  %2842 = vst.msk [vmem:[#allocation3 + $0x164] sm:$0xf] %vm1006, %v2714
  %2843 = vst.msk [vmem:[#allocation3 + $0x168] sm:$0xf] %vm1006, %v2715
  %2844 = vst.msk [vmem:[#allocation3 + $0x16c] sm:$0xf] %vm1006, %v2716
  %2845 = vst.msk [vmem:[#allocation3 + $0x170] sm:$0xf] %vm1006, %v2717
  %2846 = vst.msk [vmem:[#allocation3 + $0x174] sm:$0xf] %vm1006, %v2718
  %2847 = vst.msk [vmem:[#allocation3 + $0x178] sm:$0xf] %vm1006, %v2719
  %2848 = vst.msk [vmem:[#allocation3 + $0x17c] sm:$0xf] %vm1006, %v2720
  %2849 = vst.msk [vmem:[#allocation3 + $0x180] sm:$0xf] %vm1006, %v2721
  %2850 = vst.msk [vmem:[#allocation3 + $0x184] sm:$0xf] %vm1006, %v2722
  %2851 = vst.msk [vmem:[#allocation3 + $0x188] sm:$0xf] %vm1006, %v2723
  %2852 = vst.msk [vmem:[#allocation3 + $0x18c] sm:$0xf] %vm1006, %v2724
  %2853 = vst.msk [vmem:[#allocation3 + $0x190] sm:$0xf] %vm1006, %v2725
  %2854 = vst.msk [vmem:[#allocation3 + $0x194] sm:$0xf] %vm1006, %v2726
  %2855 = vst.msk [vmem:[#allocation3 + $0x198] sm:$0xf] %vm1006, %v2727
  %2856 = vst.msk [vmem:[#allocation3 + $0x19c] sm:$0xf] %vm1006, %v2728
  %2857 = vst.msk [vmem:[#allocation3 + $0x1a0] sm:$0xf] %vm1006, %v2729
  %2858 = vst.msk [vmem:[#allocation3 + $0x1a4] sm:$0xf] %vm1006, %v2730
  %2859 = vst.msk [vmem:[#allocation3 + $0x1a8] sm:$0xf] %vm1006, %v2731
  %2860 = vst.msk [vmem:[#allocation3 + $0x1ac] sm:$0xf] %vm1006, %v2732
  %2861 = vst.msk [vmem:[#allocation3 + $0x1b0] sm:$0xf] %vm1006, %v2733
  %2862 = vst.msk [vmem:[#allocation3 + $0x1b4] sm:$0xf] %vm1006, %v2734
  %2863 = vst.msk [vmem:[#allocation3 + $0x1b8] sm:$0xf] %vm1006, %v2735
  %2864 = vst.msk [vmem:[#allocation3 + $0x1bc] sm:$0xf] %vm1006, %v2736
  %2865 = vst.msk [vmem:[#allocation3 + $0x1c0] sm:$0xf] %vm1006, %v2737
  %2866 = vst.msk [vmem:[#allocation3 + $0x1c4] sm:$0xf] %vm1006, %v2738
  %2867 = vst.msk [vmem:[#allocation3 + $0x1c8] sm:$0xf] %vm1006, %v2739
  %2868 = vst.msk [vmem:[#allocation3 + $0x1cc] sm:$0xf] %vm1006, %v2740
  %2869 = vst.msk [vmem:[#allocation3 + $0x1d0] sm:$0xf] %vm1006, %v2741
  %2870 = vst.msk [vmem:[#allocation3 + $0x1d4] sm:$0xf] %vm1006, %v2742
  %2871 = vst.msk [vmem:[#allocation3 + $0x1d8] sm:$0xf] %vm1006, %v2743
  %2872 = vst.msk [vmem:[#allocation3 + $0x1dc] sm:$0xf] %vm1006, %v2744
  %2873 = vst.msk [vmem:[#allocation3 + $0x1e0] sm:$0xf] %vm1006, %v2745
  %2874 = vst.msk [vmem:[#allocation3 + $0x1e4] sm:$0xf] %vm1006, %v2746
  %2875 = vst.msk [vmem:[#allocation3 + $0x1e8] sm:$0xf] %vm1006, %v2747
  %2876 = vst.msk [vmem:[#allocation3 + $0x1ec] sm:$0xf] %vm1006, %v2748
  %2877 = vst.msk [vmem:[#allocation3 + $0x1f0] sm:$0xf] %vm1006, %v2749
  %2878 = vst.msk [vmem:[#allocation3 + $0x1f4] sm:$0xf] %vm1006, %v2750
  %2879 = vst.msk [vmem:[#allocation3 + $0x1f8] sm:$0xf] %vm1006, %v2751
  %2880 = vst.msk [vmem:[#allocation3 + $0x1fc] sm:$0xf] %vm1006, %v2752
  %v2881 = vld [vmem:[%s3] sm:$0xff]
  %v2882 = vld [vmem:[%s3 + $0x8] sm:$0xff]
  %v2883 = vld [vmem:[%s3 + $0x10] sm:$0xff]
  %v2884 = vld [vmem:[%s3 + $0x18] sm:$0xff]
  %v2885 = vld [vmem:[%s3 + $0x20] sm:$0xff]
  %v2886 = vld [vmem:[%s3 + $0x28] sm:$0xff]
  %v2887 = vld [vmem:[%s3 + $0x30] sm:$0xff]
  %v2888 = vld [vmem:[%s3 + $0x38] sm:$0xff]
  %v2889 = vld [vmem:[%s3 + $0x40] sm:$0xff]
  %v2890 = vld [vmem:[%s3 + $0x48] sm:$0xff]
  %v2891 = vld [vmem:[%s3 + $0x50] sm:$0xff]
  %v2892 = vld [vmem:[%s3 + $0x58] sm:$0xff]
  %v2893 = vld [vmem:[%s3 + $0x60] sm:$0xff]
  %v2894 = vld [vmem:[%s3 + $0x68] sm:$0xff]
  %v2895 = vld [vmem:[%s3 + $0x70] sm:$0xff]
  %v2896 = vld [vmem:[%s3 + $0x78] sm:$0xff]
  %v2897 = vld [vmem:[%s3 + $0x80] sm:$0xff]
  %v2898 = vld [vmem:[%s3 + $0x88] sm:$0xff]
  %v2899 = vld [vmem:[%s3 + $0x90] sm:$0xff]
  %v2900 = vld [vmem:[%s3 + $0x98] sm:$0xff]
  %v2901 = vld [vmem:[%s3 + $0xa0] sm:$0xff]
  %v2902 = vld [vmem:[%s3 + $0xa8] sm:$0xff]
  %v2903 = vld [vmem:[%s3 + $0xb0] sm:$0xff]
  %v2904 = vld [vmem:[%s3 + $0xb8] sm:$0xff]
  %v2905 = vld [vmem:[%s3 + $0xc0] sm:$0xff]
  %v2906 = vld [vmem:[%s3 + $0xc8] sm:$0xff]
  %v2907 = vld [vmem:[%s3 + $0xd0] sm:$0xff]
  %v2908 = vld [vmem:[%s3 + $0xd8] sm:$0xff]
  %v2909 = vld [vmem:[%s3 + $0xe0] sm:$0xff]
  %v2910 = vld [vmem:[%s3 + $0xe8] sm:$0xff]
  %v2911 = vld [vmem:[%s3 + $0xf0] sm:$0xff]
  %v2912 = vld [vmem:[%s3 + $0xf8] sm:$0xff]
  %v2913 = vld [vmem:[%s3 + $0x100] sm:$0xff]
  %v2914 = vld [vmem:[%s3 + $0x108] sm:$0xff]
  %v2915 = vld [vmem:[%s3 + $0x110] sm:$0xff]
  %v2916 = vld [vmem:[%s3 + $0x118] sm:$0xff]
  %v2917 = vld [vmem:[%s3 + $0x120] sm:$0xff]
  %v2918 = vld [vmem:[%s3 + $0x128] sm:$0xff]
  %v2919 = vld [vmem:[%s3 + $0x130] sm:$0xff]
  %v2920 = vld [vmem:[%s3 + $0x138] sm:$0xff]
  %v2921 = vld [vmem:[%s3 + $0x140] sm:$0xff]
  %v2922 = vld [vmem:[%s3 + $0x148] sm:$0xff]
  %v2923 = vld [vmem:[%s3 + $0x150] sm:$0xff]
  %v2924 = vld [vmem:[%s3 + $0x158] sm:$0xff]
  %v2925 = vld [vmem:[%s3 + $0x160] sm:$0xff]
  %v2926 = vld [vmem:[%s3 + $0x168] sm:$0xff]
  %v2927 = vld [vmem:[%s3 + $0x170] sm:$0xff]
  %v2928 = vld [vmem:[%s3 + $0x178] sm:$0xff]
  %v2929 = vld [vmem:[%s3 + $0x180] sm:$0xff]
  %v2930 = vld [vmem:[%s3 + $0x188] sm:$0xff]
  %v2931 = vld [vmem:[%s3 + $0x190] sm:$0xff]
  %v2932 = vld [vmem:[%s3 + $0x198] sm:$0xff]
  %v2933 = vld [vmem:[%s3 + $0x1a0] sm:$0xff]
  %v2934 = vld [vmem:[%s3 + $0x1a8] sm:$0xff]
  %v2935 = vld [vmem:[%s3 + $0x1b0] sm:$0xff]
  %v2936 = vld [vmem:[%s3 + $0x1b8] sm:$0xff]
  %v2937 = vld [vmem:[%s3 + $0x1c0] sm:$0xff]
  %v2938 = vld [vmem:[%s3 + $0x1c8] sm:$0xff]
  %v2939 = vld [vmem:[%s3 + $0x1d0] sm:$0xff]
  %v2940 = vld [vmem:[%s3 + $0x1d8] sm:$0xff]
  %v2941 = vld [vmem:[%s3 + $0x1e0] sm:$0xff]
  %v2942 = vld [vmem:[%s3 + $0x1e8] sm:$0xff]
  %v2943 = vld [vmem:[%s3 + $0x1f0] sm:$0xff]
  %v2944 = vld [vmem:[%s3 + $0x1f8] sm:$0xff]
  %v2945 = vld [vmem:[%s3 + $0x200] sm:$0xff]
  %v2946 = vld [vmem:[%s3 + $0x208] sm:$0xff]
  %v2947 = vld [vmem:[%s3 + $0x210] sm:$0xff]
  %v2948 = vld [vmem:[%s3 + $0x218] sm:$0xff]
  %v2949 = vld [vmem:[%s3 + $0x220] sm:$0xff]
  %v2950 = vld [vmem:[%s3 + $0x228] sm:$0xff]
  %v2951 = vld [vmem:[%s3 + $0x230] sm:$0xff]
  %v2952 = vld [vmem:[%s3 + $0x238] sm:$0xff]
  %v2953 = vld [vmem:[%s3 + $0x240] sm:$0xff]
  %v2954 = vld [vmem:[%s3 + $0x248] sm:$0xff]
  %v2955 = vld [vmem:[%s3 + $0x250] sm:$0xff]
  %v2956 = vld [vmem:[%s3 + $0x258] sm:$0xff]
  %v2957 = vld [vmem:[%s3 + $0x260] sm:$0xff]
  %v2958 = vld [vmem:[%s3 + $0x268] sm:$0xff]
  %v2959 = vld [vmem:[%s3 + $0x270] sm:$0xff]
  %v2960 = vld [vmem:[%s3 + $0x278] sm:$0xff]
  %v2961 = vld [vmem:[%s3 + $0x280] sm:$0xff]
  %v2962 = vld [vmem:[%s3 + $0x288] sm:$0xff]
  %v2963 = vld [vmem:[%s3 + $0x290] sm:$0xff]
  %v2964 = vld [vmem:[%s3 + $0x298] sm:$0xff]
  %v2965 = vld [vmem:[%s3 + $0x2a0] sm:$0xff]
  %v2966 = vld [vmem:[%s3 + $0x2a8] sm:$0xff]
  %v2967 = vld [vmem:[%s3 + $0x2b0] sm:$0xff]
  %v2968 = vld [vmem:[%s3 + $0x2b8] sm:$0xff]
  %v2969 = vld [vmem:[%s3 + $0x2c0] sm:$0xff]
  %v2970 = vld [vmem:[%s3 + $0x2c8] sm:$0xff]
  %v2971 = vld [vmem:[%s3 + $0x2d0] sm:$0xff]
  %v2972 = vld [vmem:[%s3 + $0x2d8] sm:$0xff]
  %v2973 = vld [vmem:[%s3 + $0x2e0] sm:$0xff]
  %v2974 = vld [vmem:[%s3 + $0x2e8] sm:$0xff]
  %v2975 = vld [vmem:[%s3 + $0x2f0] sm:$0xff]
  %v2976 = vld [vmem:[%s3 + $0x2f8] sm:$0xff]
  %v2977 = vld [vmem:[%s3 + $0x300] sm:$0xff]
  %v2978 = vld [vmem:[%s3 + $0x308] sm:$0xff]
  %v2979 = vld [vmem:[%s3 + $0x310] sm:$0xff]
  %v2980 = vld [vmem:[%s3 + $0x318] sm:$0xff]
  %v2981 = vld [vmem:[%s3 + $0x320] sm:$0xff]
  %v2982 = vld [vmem:[%s3 + $0x328] sm:$0xff]
  %v2983 = vld [vmem:[%s3 + $0x330] sm:$0xff]
  %v2984 = vld [vmem:[%s3 + $0x338] sm:$0xff]
  %v2985 = vld [vmem:[%s3 + $0x340] sm:$0xff]
  %v2986 = vld [vmem:[%s3 + $0x348] sm:$0xff]
  %v2987 = vld [vmem:[%s3 + $0x350] sm:$0xff]
  %v2988 = vld [vmem:[%s3 + $0x358] sm:$0xff]
  %v2989 = vld [vmem:[%s3 + $0x360] sm:$0xff]
  %v2990 = vld [vmem:[%s3 + $0x368] sm:$0xff]
  %v2991 = vld [vmem:[%s3 + $0x370] sm:$0xff]
  %v2992 = vld [vmem:[%s3 + $0x378] sm:$0xff]
  %v2993 = vld [vmem:[%s3 + $0x380] sm:$0xff]
  %v2994 = vld [vmem:[%s3 + $0x388] sm:$0xff]
  %v2995 = vld [vmem:[%s3 + $0x390] sm:$0xff]
  %v2996 = vld [vmem:[%s3 + $0x398] sm:$0xff]
  %v2997 = vld [vmem:[%s3 + $0x3a0] sm:$0xff]
  %v2998 = vld [vmem:[%s3 + $0x3a8] sm:$0xff]
  %v2999 = vld [vmem:[%s3 + $0x3b0] sm:$0xff]
  %v3000 = vld [vmem:[%s3 + $0x3b8] sm:$0xff]
  %v3001 = vld [vmem:[%s3 + $0x3c0] sm:$0xff]
  %v3002 = vld [vmem:[%s3 + $0x3c8] sm:$0xff]
  %v3003 = vld [vmem:[%s3 + $0x3d0] sm:$0xff]
  %v3004 = vld [vmem:[%s3 + $0x3d8] sm:$0xff]
  %v3005 = vld [vmem:[%s3 + $0x3e0] sm:$0xff]
  %v3006 = vld [vmem:[%s3 + $0x3e8] sm:$0xff]
  %v3007 = vld [vmem:[%s3 + $0x3f0] sm:$0xff]
  %v3008 = vld [vmem:[%s3 + $0x3f8] sm:$0xff]
  %v3009 = vld [vmem:[#allocation2 + $0x80] sm:$0xf]
  %v3010 = vld [vmem:[#allocation2 + $0x84] sm:$0xf]
  %v3011 = vld [vmem:[#allocation2 + $0x88] sm:$0xf]
  %v3012 = vld [vmem:[#allocation2 + $0x8c] sm:$0xf]
  %v3013 = vld [vmem:[#allocation2 + $0x90] sm:$0xf]
  %v3014 = vld [vmem:[#allocation2 + $0x94] sm:$0xf]
  %v3015 = vld [vmem:[#allocation2 + $0x98] sm:$0xf]
  %v3016 = vld [vmem:[#allocation2 + $0x9c] sm:$0xf]
  %v3017 = vld [vmem:[#allocation2 + $0xa0] sm:$0xf]
  %v3018 = vld [vmem:[#allocation2 + $0xa4] sm:$0xf]
  %v3019 = vld [vmem:[#allocation2 + $0xa8] sm:$0xf]
  %v3020 = vld [vmem:[#allocation2 + $0xac] sm:$0xf]
  %v3021 = vld [vmem:[#allocation2 + $0xb0] sm:$0xf]
  %v3022 = vld [vmem:[#allocation2 + $0xb4] sm:$0xf]
  %v3023 = vld [vmem:[#allocation2 + $0xb8] sm:$0xf]
  %v3024 = vld [vmem:[#allocation2 + $0xbc] sm:$0xf]
  %v3025 = vld [vmem:[#allocation2 + $0xc0] sm:$0xf]
  %v3026 = vld [vmem:[#allocation2 + $0xc4] sm:$0xf]
  %v3027 = vld [vmem:[#allocation2 + $0xc8] sm:$0xf]
  %v3028 = vld [vmem:[#allocation2 + $0xcc] sm:$0xf]
  %v3029 = vld [vmem:[#allocation2 + $0xd0] sm:$0xf]
  %v3030 = vld [vmem:[#allocation2 + $0xd4] sm:$0xf]
  %v3031 = vld [vmem:[#allocation2 + $0xd8] sm:$0xf]
  %v3032 = vld [vmem:[#allocation2 + $0xdc] sm:$0xf]
  %v3033 = vld [vmem:[#allocation2 + $0xe0] sm:$0xf]
  %v3034 = vld [vmem:[#allocation2 + $0xe4] sm:$0xf]
  %v3035 = vld [vmem:[#allocation2 + $0xe8] sm:$0xf]
  %v3036 = vld [vmem:[#allocation2 + $0xec] sm:$0xf]
  %v3037 = vld [vmem:[#allocation2 + $0xf0] sm:$0xf]
  %v3038 = vld [vmem:[#allocation2 + $0xf4] sm:$0xf]
  %v3039 = vld [vmem:[#allocation2 + $0xf8] sm:$0xf]
  %v3040 = vld [vmem:[#allocation2 + $0xfc] sm:$0xf]
  %v3169 = vunpack.c.l.b16 %v2881
  %v3170 = vunpack.c.h.b16 %v2881
  %v3171 = vunpack.c.l.b16 %v2882
  %v3172 = vunpack.c.h.b16 %v2882
  %v3173 = vunpack.c.l.b16 %v2883
  %v3174 = vunpack.c.h.b16 %v2883
  %v3175 = vunpack.c.l.b16 %v2884
  %v3176 = vunpack.c.h.b16 %v2884
  %v3177 = vunpack.c.l.b16 %v2885
  %v3178 = vunpack.c.h.b16 %v2885
  %v3179 = vunpack.c.l.b16 %v2886
  %v3180 = vunpack.c.h.b16 %v2886
  %v3181 = vunpack.c.l.b16 %v2887
  %v3182 = vunpack.c.h.b16 %v2887
  %v3183 = vunpack.c.l.b16 %v2888
  %v3184 = vunpack.c.h.b16 %v2888
  %v3185 = vunpack.c.l.b16 %v2889
  %v3186 = vunpack.c.h.b16 %v2889
  %v3187 = vunpack.c.l.b16 %v2890
  %v3188 = vunpack.c.h.b16 %v2890
  %v3189 = vunpack.c.l.b16 %v2891
  %v3190 = vunpack.c.h.b16 %v2891
  %v3191 = vunpack.c.l.b16 %v2892
  %v3192 = vunpack.c.h.b16 %v2892
  %v3193 = vunpack.c.l.b16 %v2893
  %v3194 = vunpack.c.h.b16 %v2893
  %v3195 = vunpack.c.l.b16 %v2894
  %v3196 = vunpack.c.h.b16 %v2894
  %v3197 = vunpack.c.l.b16 %v2895
  %v3198 = vunpack.c.h.b16 %v2895
  %v3199 = vunpack.c.l.b16 %v2896
  %v3200 = vunpack.c.h.b16 %v2896
  %v3201 = vunpack.c.l.b16 %v2897
  %v3202 = vunpack.c.h.b16 %v2897
  %v3203 = vunpack.c.l.b16 %v2898
  %v3204 = vunpack.c.h.b16 %v2898
  %v3205 = vunpack.c.l.b16 %v2899
  %v3206 = vunpack.c.h.b16 %v2899
  %v3207 = vunpack.c.l.b16 %v2900
  %v3208 = vunpack.c.h.b16 %v2900
  %v3209 = vunpack.c.l.b16 %v2901
  %v3210 = vunpack.c.h.b16 %v2901
  %v3211 = vunpack.c.l.b16 %v2902
  %v3212 = vunpack.c.h.b16 %v2902
  %v3213 = vunpack.c.l.b16 %v2903
  %v3214 = vunpack.c.h.b16 %v2903
  %v3215 = vunpack.c.l.b16 %v2904
  %v3216 = vunpack.c.h.b16 %v2904
  %v3217 = vunpack.c.l.b16 %v2905
  %v3218 = vunpack.c.h.b16 %v2905
  %v3219 = vunpack.c.l.b16 %v2906
  %v3220 = vunpack.c.h.b16 %v2906
  %v3221 = vunpack.c.l.b16 %v2907
  %v3222 = vunpack.c.h.b16 %v2907
  %v3223 = vunpack.c.l.b16 %v2908
  %v3224 = vunpack.c.h.b16 %v2908
  %v3225 = vunpack.c.l.b16 %v2909
  %v3226 = vunpack.c.h.b16 %v2909
  %v3227 = vunpack.c.l.b16 %v2910
  %v3228 = vunpack.c.h.b16 %v2910
  %v3229 = vunpack.c.l.b16 %v2911
  %v3230 = vunpack.c.h.b16 %v2911
  %v3231 = vunpack.c.l.b16 %v2912
  %v3232 = vunpack.c.h.b16 %v2912
  %v3233 = vunpack.c.l.b16 %v2913
  %v3234 = vunpack.c.h.b16 %v2913
  %v3235 = vunpack.c.l.b16 %v2914
  %v3236 = vunpack.c.h.b16 %v2914
  %v3237 = vunpack.c.l.b16 %v2915
  %v3238 = vunpack.c.h.b16 %v2915
  %v3239 = vunpack.c.l.b16 %v2916
  %v3240 = vunpack.c.h.b16 %v2916
  %v3241 = vunpack.c.l.b16 %v2917
  %v3242 = vunpack.c.h.b16 %v2917
  %v3243 = vunpack.c.l.b16 %v2918
  %v3244 = vunpack.c.h.b16 %v2918
  %v3245 = vunpack.c.l.b16 %v2919
  %v3246 = vunpack.c.h.b16 %v2919
  %v3247 = vunpack.c.l.b16 %v2920
  %v3248 = vunpack.c.h.b16 %v2920
  %v3249 = vunpack.c.l.b16 %v2921
  %v3250 = vunpack.c.h.b16 %v2921
  %v3251 = vunpack.c.l.b16 %v2922
  %v3252 = vunpack.c.h.b16 %v2922
  %v3253 = vunpack.c.l.b16 %v2923
  %v3254 = vunpack.c.h.b16 %v2923
  %v3255 = vunpack.c.l.b16 %v2924
  %v3256 = vunpack.c.h.b16 %v2924
  %v3257 = vunpack.c.l.b16 %v2925
  %v3258 = vunpack.c.h.b16 %v2925
  %v3259 = vunpack.c.l.b16 %v2926
  %v3260 = vunpack.c.h.b16 %v2926
  %v3261 = vunpack.c.l.b16 %v2927
  %v3262 = vunpack.c.h.b16 %v2927
  %v3263 = vunpack.c.l.b16 %v2928
  %v3264 = vunpack.c.h.b16 %v2928
  %v3265 = vunpack.c.l.b16 %v2929
  %v3266 = vunpack.c.h.b16 %v2929
  %v3267 = vunpack.c.l.b16 %v2930
  %v3268 = vunpack.c.h.b16 %v2930
  %v3269 = vunpack.c.l.b16 %v2931
  %v3270 = vunpack.c.h.b16 %v2931
  %v3271 = vunpack.c.l.b16 %v2932
  %v3272 = vunpack.c.h.b16 %v2932
  %v3273 = vunpack.c.l.b16 %v2933
  %v3274 = vunpack.c.h.b16 %v2933
  %v3275 = vunpack.c.l.b16 %v2934
  %v3276 = vunpack.c.h.b16 %v2934
  %v3277 = vunpack.c.l.b16 %v2935
  %v3278 = vunpack.c.h.b16 %v2935
  %v3279 = vunpack.c.l.b16 %v2936
  %v3280 = vunpack.c.h.b16 %v2936
  %v3281 = vunpack.c.l.b16 %v2937
  %v3282 = vunpack.c.h.b16 %v2937
  %v3283 = vunpack.c.l.b16 %v2938
  %v3284 = vunpack.c.h.b16 %v2938
  %v3285 = vunpack.c.l.b16 %v2939
  %v3286 = vunpack.c.h.b16 %v2939
  %v3287 = vunpack.c.l.b16 %v2940
  %v3288 = vunpack.c.h.b16 %v2940
  %v3289 = vunpack.c.l.b16 %v2941
  %v3290 = vunpack.c.h.b16 %v2941
  %v3291 = vunpack.c.l.b16 %v2942
  %v3292 = vunpack.c.h.b16 %v2942
  %v3293 = vunpack.c.l.b16 %v2943
  %v3294 = vunpack.c.h.b16 %v2943
  %v3295 = vunpack.c.l.b16 %v2944
  %v3296 = vunpack.c.h.b16 %v2944
  %v3297 = vunpack.c.l.b16 %v2945
  %v3298 = vunpack.c.h.b16 %v2945
  %v3299 = vunpack.c.l.b16 %v2946
  %v3300 = vunpack.c.h.b16 %v2946
  %v3301 = vunpack.c.l.b16 %v2947
  %v3302 = vunpack.c.h.b16 %v2947
  %v3303 = vunpack.c.l.b16 %v2948
  %v3304 = vunpack.c.h.b16 %v2948
  %v3305 = vunpack.c.l.b16 %v2949
  %v3306 = vunpack.c.h.b16 %v2949
  %v3307 = vunpack.c.l.b16 %v2950
  %v3308 = vunpack.c.h.b16 %v2950
  %v3309 = vunpack.c.l.b16 %v2951
  %v3310 = vunpack.c.h.b16 %v2951
  %v3311 = vunpack.c.l.b16 %v2952
  %v3312 = vunpack.c.h.b16 %v2952
  %v3313 = vunpack.c.l.b16 %v2953
  %v3314 = vunpack.c.h.b16 %v2953
  %v3315 = vunpack.c.l.b16 %v2954
  %v3316 = vunpack.c.h.b16 %v2954
  %v3317 = vunpack.c.l.b16 %v2955
  %v3318 = vunpack.c.h.b16 %v2955
  %v3319 = vunpack.c.l.b16 %v2956
  %v3320 = vunpack.c.h.b16 %v2956
  %v3321 = vunpack.c.l.b16 %v2957
  %v3322 = vunpack.c.h.b16 %v2957
  %v3323 = vunpack.c.l.b16 %v2958
  %v3324 = vunpack.c.h.b16 %v2958
  %v3325 = vunpack.c.l.b16 %v2959
  %v3326 = vunpack.c.h.b16 %v2959
  %v3327 = vunpack.c.l.b16 %v2960
  %v3328 = vunpack.c.h.b16 %v2960
  %v3329 = vunpack.c.l.b16 %v2961
  %v3330 = vunpack.c.h.b16 %v2961
  %v3331 = vunpack.c.l.b16 %v2962
  %v3332 = vunpack.c.h.b16 %v2962
  %v3333 = vunpack.c.l.b16 %v2963
  %v3334 = vunpack.c.h.b16 %v2963
  %v3335 = vunpack.c.l.b16 %v2964
  %v3336 = vunpack.c.h.b16 %v2964
  %v3337 = vunpack.c.l.b16 %v2965
  %v3338 = vunpack.c.h.b16 %v2965
  %v3339 = vunpack.c.l.b16 %v2966
  %v3340 = vunpack.c.h.b16 %v2966
  %v3341 = vunpack.c.l.b16 %v2967
  %v3342 = vunpack.c.h.b16 %v2967
  %v3343 = vunpack.c.l.b16 %v2968
  %v3344 = vunpack.c.h.b16 %v2968
  %v3345 = vunpack.c.l.b16 %v2969
  %v3346 = vunpack.c.h.b16 %v2969
  %v3347 = vunpack.c.l.b16 %v2970
  %v3348 = vunpack.c.h.b16 %v2970
  %v3349 = vunpack.c.l.b16 %v2971
  %v3350 = vunpack.c.h.b16 %v2971
  %v3351 = vunpack.c.l.b16 %v2972
  %v3352 = vunpack.c.h.b16 %v2972
  %v3353 = vunpack.c.l.b16 %v2973
  %v3354 = vunpack.c.h.b16 %v2973
  %v3355 = vunpack.c.l.b16 %v2974
  %v3356 = vunpack.c.h.b16 %v2974
  %v3357 = vunpack.c.l.b16 %v2975
  %v3358 = vunpack.c.h.b16 %v2975
  %v3359 = vunpack.c.l.b16 %v2976
  %v3360 = vunpack.c.h.b16 %v2976
  %v3361 = vunpack.c.l.b16 %v2977
  %v3362 = vunpack.c.h.b16 %v2977
  %v3363 = vunpack.c.l.b16 %v2978
  %v3364 = vunpack.c.h.b16 %v2978
  %v3365 = vunpack.c.l.b16 %v2979
  %v3366 = vunpack.c.h.b16 %v2979
  %v3367 = vunpack.c.l.b16 %v2980
  %v3368 = vunpack.c.h.b16 %v2980
  %v3369 = vunpack.c.l.b16 %v2981
  %v3370 = vunpack.c.h.b16 %v2981
  %v3371 = vunpack.c.l.b16 %v2982
  %v3372 = vunpack.c.h.b16 %v2982
  %v3373 = vunpack.c.l.b16 %v2983
  %v3374 = vunpack.c.h.b16 %v2983
  %v3375 = vunpack.c.l.b16 %v2984
  %v3376 = vunpack.c.h.b16 %v2984
  %v3377 = vunpack.c.l.b16 %v2985
  %v3378 = vunpack.c.h.b16 %v2985
  %v3379 = vunpack.c.l.b16 %v2986
  %v3380 = vunpack.c.h.b16 %v2986
  %v3381 = vunpack.c.l.b16 %v2987
  %v3382 = vunpack.c.h.b16 %v2987
  %v3383 = vunpack.c.l.b16 %v2988
  %v3384 = vunpack.c.h.b16 %v2988
  %v3385 = vunpack.c.l.b16 %v2989
  %v3386 = vunpack.c.h.b16 %v2989
  %v3387 = vunpack.c.l.b16 %v2990
  %v3388 = vunpack.c.h.b16 %v2990
  %v3389 = vunpack.c.l.b16 %v2991
  %v3390 = vunpack.c.h.b16 %v2991
  %v3391 = vunpack.c.l.b16 %v2992
  %v3392 = vunpack.c.h.b16 %v2992
  %v3393 = vunpack.c.l.b16 %v2993
  %v3394 = vunpack.c.h.b16 %v2993
  %v3395 = vunpack.c.l.b16 %v2994
  %v3396 = vunpack.c.h.b16 %v2994
  %v3397 = vunpack.c.l.b16 %v2995
  %v3398 = vunpack.c.h.b16 %v2995
  %v3399 = vunpack.c.l.b16 %v2996
  %v3400 = vunpack.c.h.b16 %v2996
  %v3401 = vunpack.c.l.b16 %v2997
  %v3402 = vunpack.c.h.b16 %v2997
  %v3403 = vunpack.c.l.b16 %v2998
  %v3404 = vunpack.c.h.b16 %v2998
  %v3405 = vunpack.c.l.b16 %v2999
  %v3406 = vunpack.c.h.b16 %v2999
  %v3407 = vunpack.c.l.b16 %v3000
  %v3408 = vunpack.c.h.b16 %v3000
  %v3409 = vunpack.c.l.b16 %v3001
  %v3410 = vunpack.c.h.b16 %v3001
  %v3411 = vunpack.c.l.b16 %v3002
  %v3412 = vunpack.c.h.b16 %v3002
  %v3413 = vunpack.c.l.b16 %v3003
  %v3414 = vunpack.c.h.b16 %v3003
  %v3415 = vunpack.c.l.b16 %v3004
  %v3416 = vunpack.c.h.b16 %v3004
  %v3417 = vunpack.c.l.b16 %v3005
  %v3418 = vunpack.c.h.b16 %v3005
  %v3419 = vunpack.c.l.b16 %v3006
  %v3420 = vunpack.c.h.b16 %v3006
  %v3421 = vunpack.c.l.b16 %v3007
  %v3422 = vunpack.c.h.b16 %v3007
  %v3423 = vunpack.c.l.b16 %v3008
  %v3424 = vunpack.c.h.b16 %v3008
  %v3425 = vpack.c.b16 %v3171, %v3169
  %v3426 = vpack.c.b16 %v3172, %v3170
  %v3427 = vpack.c.b16 %v3175, %v3173
  %v3428 = vpack.c.b16 %v3176, %v3174
  %v3429 = vpack.c.b16 %v3179, %v3177
  %v3430 = vpack.c.b16 %v3180, %v3178
  %v3431 = vpack.c.b16 %v3183, %v3181
  %v3432 = vpack.c.b16 %v3184, %v3182
  %v3433 = vpack.c.b16 %v3187, %v3185
  %v3434 = vpack.c.b16 %v3188, %v3186
  %v3435 = vpack.c.b16 %v3191, %v3189
  %v3436 = vpack.c.b16 %v3192, %v3190
  %v3437 = vpack.c.b16 %v3195, %v3193
  %v3438 = vpack.c.b16 %v3196, %v3194
  %v3439 = vpack.c.b16 %v3199, %v3197
  %v3440 = vpack.c.b16 %v3200, %v3198
  %v3441 = vpack.c.b16 %v3203, %v3201
  %v3442 = vpack.c.b16 %v3204, %v3202
  %v3443 = vpack.c.b16 %v3207, %v3205
  %v3444 = vpack.c.b16 %v3208, %v3206
  %v3445 = vpack.c.b16 %v3211, %v3209
  %v3446 = vpack.c.b16 %v3212, %v3210
  %v3447 = vpack.c.b16 %v3215, %v3213
  %v3448 = vpack.c.b16 %v3216, %v3214
  %v3449 = vpack.c.b16 %v3219, %v3217
  %v3450 = vpack.c.b16 %v3220, %v3218
  %v3451 = vpack.c.b16 %v3223, %v3221
  %v3452 = vpack.c.b16 %v3224, %v3222
  %v3453 = vpack.c.b16 %v3227, %v3225
  %v3454 = vpack.c.b16 %v3228, %v3226
  %v3455 = vpack.c.b16 %v3231, %v3229
  %v3456 = vpack.c.b16 %v3232, %v3230
  %v3457 = vpack.c.b16 %v3235, %v3233
  %v3458 = vpack.c.b16 %v3236, %v3234
  %v3459 = vpack.c.b16 %v3239, %v3237
  %v3460 = vpack.c.b16 %v3240, %v3238
  %v3461 = vpack.c.b16 %v3243, %v3241
  %v3462 = vpack.c.b16 %v3244, %v3242
  %v3463 = vpack.c.b16 %v3247, %v3245
  %v3464 = vpack.c.b16 %v3248, %v3246
  %v3465 = vpack.c.b16 %v3251, %v3249
  %v3466 = vpack.c.b16 %v3252, %v3250
  %v3467 = vpack.c.b16 %v3255, %v3253
  %v3468 = vpack.c.b16 %v3256, %v3254
  %v3469 = vpack.c.b16 %v3259, %v3257
  %v3470 = vpack.c.b16 %v3260, %v3258
  %v3471 = vpack.c.b16 %v3263, %v3261
  %v3472 = vpack.c.b16 %v3264, %v3262
  %v3473 = vpack.c.b16 %v3267, %v3265
  %v3474 = vpack.c.b16 %v3268, %v3266
  %v3475 = vpack.c.b16 %v3271, %v3269
  %v3476 = vpack.c.b16 %v3272, %v3270
  %v3477 = vpack.c.b16 %v3275, %v3273
  %v3478 = vpack.c.b16 %v3276, %v3274
  %v3479 = vpack.c.b16 %v3279, %v3277
  %v3480 = vpack.c.b16 %v3280, %v3278
  %v3481 = vpack.c.b16 %v3283, %v3281
  %v3482 = vpack.c.b16 %v3284, %v3282
  %v3483 = vpack.c.b16 %v3287, %v3285
  %v3484 = vpack.c.b16 %v3288, %v3286
  %v3485 = vpack.c.b16 %v3291, %v3289
  %v3486 = vpack.c.b16 %v3292, %v3290
  %v3487 = vpack.c.b16 %v3295, %v3293
  %v3488 = vpack.c.b16 %v3296, %v3294
  %v3489 = vpack.c.b16 %v3299, %v3297
  %v3490 = vpack.c.b16 %v3300, %v3298
  %v3491 = vpack.c.b16 %v3303, %v3301
  %v3492 = vpack.c.b16 %v3304, %v3302
  %v3493 = vpack.c.b16 %v3307, %v3305
  %v3494 = vpack.c.b16 %v3308, %v3306
  %v3495 = vpack.c.b16 %v3311, %v3309
  %v3496 = vpack.c.b16 %v3312, %v3310
  %v3497 = vpack.c.b16 %v3315, %v3313
  %v3498 = vpack.c.b16 %v3316, %v3314
  %v3499 = vpack.c.b16 %v3319, %v3317
  %v3500 = vpack.c.b16 %v3320, %v3318
  %v3501 = vpack.c.b16 %v3323, %v3321
  %v3502 = vpack.c.b16 %v3324, %v3322
  %v3503 = vpack.c.b16 %v3327, %v3325
  %v3504 = vpack.c.b16 %v3328, %v3326
  %v3505 = vpack.c.b16 %v3331, %v3329
  %v3506 = vpack.c.b16 %v3332, %v3330
  %v3507 = vpack.c.b16 %v3335, %v3333
  %v3508 = vpack.c.b16 %v3336, %v3334
  %v3509 = vpack.c.b16 %v3339, %v3337
  %v3510 = vpack.c.b16 %v3340, %v3338
  %v3511 = vpack.c.b16 %v3343, %v3341
  %v3512 = vpack.c.b16 %v3344, %v3342
  %v3513 = vpack.c.b16 %v3347, %v3345
  %v3514 = vpack.c.b16 %v3348, %v3346
  %v3515 = vpack.c.b16 %v3351, %v3349
  %v3516 = vpack.c.b16 %v3352, %v3350
  %v3517 = vpack.c.b16 %v3355, %v3353
  %v3518 = vpack.c.b16 %v3356, %v3354
  %v3519 = vpack.c.b16 %v3359, %v3357
  %v3520 = vpack.c.b16 %v3360, %v3358
  %v3521 = vpack.c.b16 %v3363, %v3361
  %v3522 = vpack.c.b16 %v3364, %v3362
  %v3523 = vpack.c.b16 %v3367, %v3365
  %v3524 = vpack.c.b16 %v3368, %v3366
  %v3525 = vpack.c.b16 %v3371, %v3369
  %v3526 = vpack.c.b16 %v3372, %v3370
  %v3527 = vpack.c.b16 %v3375, %v3373
  %v3528 = vpack.c.b16 %v3376, %v3374
  %v3529 = vpack.c.b16 %v3379, %v3377
  %v3530 = vpack.c.b16 %v3380, %v3378
  %v3531 = vpack.c.b16 %v3383, %v3381
  %v3532 = vpack.c.b16 %v3384, %v3382
  %v3533 = vpack.c.b16 %v3387, %v3385
  %v3534 = vpack.c.b16 %v3388, %v3386
  %v3535 = vpack.c.b16 %v3391, %v3389
  %v3536 = vpack.c.b16 %v3392, %v3390
  %v3537 = vpack.c.b16 %v3395, %v3393
  %v3538 = vpack.c.b16 %v3396, %v3394
  %v3539 = vpack.c.b16 %v3399, %v3397
  %v3540 = vpack.c.b16 %v3400, %v3398
  %v3541 = vpack.c.b16 %v3403, %v3401
  %v3542 = vpack.c.b16 %v3404, %v3402
  %v3543 = vpack.c.b16 %v3407, %v3405
  %v3544 = vpack.c.b16 %v3408, %v3406
  %v3545 = vpack.c.b16 %v3411, %v3409
  %v3546 = vpack.c.b16 %v3412, %v3410
  %v3547 = vpack.c.b16 %v3415, %v3413
  %v3548 = vpack.c.b16 %v3416, %v3414
  %v3549 = vpack.c.b16 %v3419, %v3417
  %v3550 = vpack.c.b16 %v3420, %v3418
  %v3551 = vpack.c.b16 %v3423, %v3421
  %v3552 = vpack.c.b16 %v3424, %v3422
  %v3713 = vunpack.c.l.b16 %v3009
  %v3714 = vunpack.c.l.b16 %v3010
  %v3715 = vunpack.c.l.b16 %v3011
  %v3716 = vunpack.c.l.b16 %v3012
  %v3717 = vunpack.c.l.b16 %v3013
  %v3718 = vunpack.c.l.b16 %v3014
  %v3719 = vunpack.c.l.b16 %v3015
  %v3720 = vunpack.c.l.b16 %v3016
  %v3721 = vunpack.c.l.b16 %v3017
  %v3722 = vunpack.c.l.b16 %v3018
  %v3723 = vunpack.c.l.b16 %v3019
  %v3724 = vunpack.c.l.b16 %v3020
  %v3725 = vunpack.c.l.b16 %v3021
  %v3726 = vunpack.c.l.b16 %v3022
  %v3727 = vunpack.c.l.b16 %v3023
  %v3728 = vunpack.c.l.b16 %v3024
  %v3729 = vunpack.c.l.b16 %v3025
  %v3730 = vunpack.c.l.b16 %v3026
  %v3731 = vunpack.c.l.b16 %v3027
  %v3732 = vunpack.c.l.b16 %v3028
  %v3733 = vunpack.c.l.b16 %v3029
  %v3734 = vunpack.c.l.b16 %v3030
  %v3735 = vunpack.c.l.b16 %v3031
  %v3736 = vunpack.c.l.b16 %v3032
  %v3737 = vunpack.c.l.b16 %v3033
  %v3738 = vunpack.c.l.b16 %v3034
  %v3739 = vunpack.c.l.b16 %v3035
  %v3740 = vunpack.c.l.b16 %v3036
  %v3741 = vunpack.c.l.b16 %v3037
  %v3742 = vunpack.c.l.b16 %v3038
  %v3743 = vunpack.c.l.b16 %v3039
  %v3744 = vunpack.c.l.b16 %v3040
  %v3745 = vpack.c.b16 %v3714, %v3713
  %v3746 = vpack.c.b16 %v3716, %v3715
  %v3747 = vpack.c.b16 %v3718, %v3717
  %v3748 = vpack.c.b16 %v3720, %v3719
  %v3749 = vpack.c.b16 %v3722, %v3721
  %v3750 = vpack.c.b16 %v3724, %v3723
  %v3751 = vpack.c.b16 %v3726, %v3725
  %v3752 = vpack.c.b16 %v3728, %v3727
  %v3753 = vpack.c.b16 %v3730, %v3729
  %v3754 = vpack.c.b16 %v3732, %v3731
  %v3755 = vpack.c.b16 %v3734, %v3733
  %v3756 = vpack.c.b16 %v3736, %v3735
  %v3757 = vpack.c.b16 %v3738, %v3737
  %v3758 = vpack.c.b16 %v3740, %v3739
  %v3759 = vpack.c.b16 %v3742, %v3741
  %v3760 = vpack.c.b16 %v3744, %v3743
  %3777 = vmatpush.bf16.msra.mxu0 %v3752
  %3778 = vmatpush.bf16.msra.mxu0 %v3751
  %3779 = vmatpush.bf16.msra.mxu0 %v3750
  %3780 = vmatpush.bf16.msra.mxu0 %v3749
  %3781 = vmatpush.bf16.msra.mxu0 %v3748
  %3782 = vmatpush.bf16.msra.mxu0 %v3747
  %3783 = vmatpush.bf16.msra.mxu0 %v3746
  %3784 = vmatpush.bf16.msra.mxu0 %v3745
  %3785 = vmatmul.bf16.gmra.mxu0 %v3425
  %v3786 = vpop.f32.mrf.mxu0
  %v3787 = vadd.f32 0.0, %v3786
  %v3788 = vpop.f32.mrf.mxu0
  %v3789 = vadd.f32 0.0, %v3788
  %3790 = vmatmul.bf16.gmra.mxu0 %v3427
  %v3791 = vpop.f32.mrf.mxu0
  %v3792 = vadd.f32 0.0, %v3791
  %v3793 = vpop.f32.mrf.mxu0
  %v3794 = vadd.f32 0.0, %v3793
  %3795 = vmatmul.bf16.gmra.mxu0 %v3429
  %v3796 = vpop.f32.mrf.mxu0
  %v3797 = vadd.f32 0.0, %v3796
  %v3798 = vpop.f32.mrf.mxu0
  %v3799 = vadd.f32 0.0, %v3798
  %3800 = vmatmul.bf16.gmra.mxu0 %v3431
  %v3801 = vpop.f32.mrf.mxu0
  %v3802 = vadd.f32 0.0, %v3801
  %v3803 = vpop.f32.mrf.mxu0
  %v3804 = vadd.f32 0.0, %v3803
  %3805 = vmatmul.bf16.gmra.mxu0 %v3433
  %v3806 = vpop.f32.mrf.mxu0
  %v3807 = vadd.f32 0.0, %v3806
  %v3808 = vpop.f32.mrf.mxu0
  %v3809 = vadd.f32 0.0, %v3808
  %3810 = vmatmul.bf16.gmra.mxu0 %v3435
  %v3811 = vpop.f32.mrf.mxu0
  %v3812 = vadd.f32 0.0, %v3811
  %v3813 = vpop.f32.mrf.mxu0
  %v3814 = vadd.f32 0.0, %v3813
  %3815 = vmatmul.bf16.gmra.mxu0 %v3437
  %v3816 = vpop.f32.mrf.mxu0
  %v3817 = vadd.f32 0.0, %v3816
  %v3818 = vpop.f32.mrf.mxu0
  %v3819 = vadd.f32 0.0, %v3818
  %3820 = vmatmul.bf16.gmra.mxu0 %v3439
  %v3821 = vpop.f32.mrf.mxu0
  %v3822 = vadd.f32 0.0, %v3821
  %v3823 = vpop.f32.mrf.mxu0
  %v3824 = vadd.f32 0.0, %v3823
  %3825 = vmatmul.bf16.gmra.mxu0 %v3441
  %v3826 = vpop.f32.mrf.mxu0
  %v3827 = vadd.f32 0.0, %v3826
  %v3828 = vpop.f32.mrf.mxu0
  %v3829 = vadd.f32 0.0, %v3828
  %3830 = vmatmul.bf16.gmra.mxu0 %v3443
  %v3831 = vpop.f32.mrf.mxu0
  %v3832 = vadd.f32 0.0, %v3831
  %v3833 = vpop.f32.mrf.mxu0
  %v3834 = vadd.f32 0.0, %v3833
  %3835 = vmatmul.bf16.gmra.mxu0 %v3445
  %v3836 = vpop.f32.mrf.mxu0
  %v3837 = vadd.f32 0.0, %v3836
  %v3838 = vpop.f32.mrf.mxu0
  %v3839 = vadd.f32 0.0, %v3838
  %3840 = vmatmul.bf16.gmra.mxu0 %v3447
  %v3841 = vpop.f32.mrf.mxu0
  %v3842 = vadd.f32 0.0, %v3841
  %v3843 = vpop.f32.mrf.mxu0
  %v3844 = vadd.f32 0.0, %v3843
  %3845 = vmatmul.bf16.gmra.mxu0 %v3449
  %v3846 = vpop.f32.mrf.mxu0
  %v3847 = vadd.f32 0.0, %v3846
  %v3848 = vpop.f32.mrf.mxu0
  %v3849 = vadd.f32 0.0, %v3848
  %3850 = vmatmul.bf16.gmra.mxu0 %v3451
  %v3851 = vpop.f32.mrf.mxu0
  %v3852 = vadd.f32 0.0, %v3851
  %v3853 = vpop.f32.mrf.mxu0
  %v3854 = vadd.f32 0.0, %v3853
  %3855 = vmatmul.bf16.gmra.mxu0 %v3453
  %v3856 = vpop.f32.mrf.mxu0
  %v3857 = vadd.f32 0.0, %v3856
  %v3858 = vpop.f32.mrf.mxu0
  %v3859 = vadd.f32 0.0, %v3858
  %3860 = vmatmul.bf16.gmra.mxu0 %v3455
  %v3861 = vpop.f32.mrf.mxu0
  %v3862 = vadd.f32 0.0, %v3861
  %v3863 = vpop.f32.mrf.mxu0
  %v3864 = vadd.f32 0.0, %v3863
  %3865 = vmatmul.bf16.gmra.mxu0 %v3457
  %v3866 = vpop.f32.mrf.mxu0
  %v3867 = vadd.f32 0.0, %v3866
  %v3868 = vpop.f32.mrf.mxu0
  %v3869 = vadd.f32 0.0, %v3868
  %3870 = vmatmul.bf16.gmra.mxu0 %v3459
  %v3871 = vpop.f32.mrf.mxu0
  %v3872 = vadd.f32 0.0, %v3871
  %v3873 = vpop.f32.mrf.mxu0
  %v3874 = vadd.f32 0.0, %v3873
  %3875 = vmatmul.bf16.gmra.mxu0 %v3461
  %v3876 = vpop.f32.mrf.mxu0
  %v3877 = vadd.f32 0.0, %v3876
  %v3878 = vpop.f32.mrf.mxu0
  %v3879 = vadd.f32 0.0, %v3878
  %3880 = vmatmul.bf16.gmra.mxu0 %v3463
  %v3881 = vpop.f32.mrf.mxu0
  %v3882 = vadd.f32 0.0, %v3881
  %v3883 = vpop.f32.mrf.mxu0
  %v3884 = vadd.f32 0.0, %v3883
  %3885 = vmatmul.bf16.gmra.mxu0 %v3465
  %v3886 = vpop.f32.mrf.mxu0
  %v3887 = vadd.f32 0.0, %v3886
  %v3888 = vpop.f32.mrf.mxu0
  %v3889 = vadd.f32 0.0, %v3888
  %3890 = vmatmul.bf16.gmra.mxu0 %v3467
  %v3891 = vpop.f32.mrf.mxu0
  %v3892 = vadd.f32 0.0, %v3891
  %v3893 = vpop.f32.mrf.mxu0
  %v3894 = vadd.f32 0.0, %v3893
  %3895 = vmatmul.bf16.gmra.mxu0 %v3469
  %v3896 = vpop.f32.mrf.mxu0
  %v3897 = vadd.f32 0.0, %v3896
  %v3898 = vpop.f32.mrf.mxu0
  %v3899 = vadd.f32 0.0, %v3898
  %3900 = vmatmul.bf16.gmra.mxu0 %v3471
  %v3901 = vpop.f32.mrf.mxu0
  %v3902 = vadd.f32 0.0, %v3901
  %v3903 = vpop.f32.mrf.mxu0
  %v3904 = vadd.f32 0.0, %v3903
  %3905 = vmatmul.bf16.gmra.mxu0 %v3473
  %v3906 = vpop.f32.mrf.mxu0
  %v3907 = vadd.f32 0.0, %v3906
  %v3908 = vpop.f32.mrf.mxu0
  %v3909 = vadd.f32 0.0, %v3908
  %3910 = vmatmul.bf16.gmra.mxu0 %v3475
  %v3911 = vpop.f32.mrf.mxu0
  %v3912 = vadd.f32 0.0, %v3911
  %v3913 = vpop.f32.mrf.mxu0
  %v3914 = vadd.f32 0.0, %v3913
  %3915 = vmatmul.bf16.gmra.mxu0 %v3477
  %v3916 = vpop.f32.mrf.mxu0
  %v3917 = vadd.f32 0.0, %v3916
  %v3918 = vpop.f32.mrf.mxu0
  %v3919 = vadd.f32 0.0, %v3918
  %3920 = vmatmul.bf16.gmra.mxu0 %v3479
  %v3921 = vpop.f32.mrf.mxu0
  %v3922 = vadd.f32 0.0, %v3921
  %v3923 = vpop.f32.mrf.mxu0
  %v3924 = vadd.f32 0.0, %v3923
  %3925 = vmatmul.bf16.gmra.mxu0 %v3481
  %v3926 = vpop.f32.mrf.mxu0
  %v3927 = vadd.f32 0.0, %v3926
  %v3928 = vpop.f32.mrf.mxu0
  %v3929 = vadd.f32 0.0, %v3928
  %3930 = vmatmul.bf16.gmra.mxu0 %v3483
  %v3931 = vpop.f32.mrf.mxu0
  %v3932 = vadd.f32 0.0, %v3931
  %v3933 = vpop.f32.mrf.mxu0
  %v3934 = vadd.f32 0.0, %v3933
  %3935 = vmatmul.bf16.gmra.mxu0 %v3485
  %v3936 = vpop.f32.mrf.mxu0
  %v3937 = vadd.f32 0.0, %v3936
  %v3938 = vpop.f32.mrf.mxu0
  %v3939 = vadd.f32 0.0, %v3938
  %3940 = vmatmul.bf16.gmra.mxu0 %v3487
  %v3941 = vpop.f32.mrf.mxu0
  %v3942 = vadd.f32 0.0, %v3941
  %v3943 = vpop.f32.mrf.mxu0
  %v3944 = vadd.f32 0.0, %v3943
  %3945 = vmatmul.bf16.gmra.mxu0 %v3489
  %v3946 = vpop.f32.mrf.mxu0
  %v3947 = vadd.f32 0.0, %v3946
  %v3948 = vpop.f32.mrf.mxu0
  %v3949 = vadd.f32 0.0, %v3948
  %3950 = vmatmul.bf16.gmra.mxu0 %v3491
  %v3951 = vpop.f32.mrf.mxu0
  %v3952 = vadd.f32 0.0, %v3951
  %v3953 = vpop.f32.mrf.mxu0
  %v3954 = vadd.f32 0.0, %v3953
  %3955 = vmatmul.bf16.gmra.mxu0 %v3493
  %v3956 = vpop.f32.mrf.mxu0
  %v3957 = vadd.f32 0.0, %v3956
  %v3958 = vpop.f32.mrf.mxu0
  %v3959 = vadd.f32 0.0, %v3958
  %3960 = vmatmul.bf16.gmra.mxu0 %v3495
  %v3961 = vpop.f32.mrf.mxu0
  %v3962 = vadd.f32 0.0, %v3961
  %v3963 = vpop.f32.mrf.mxu0
  %v3964 = vadd.f32 0.0, %v3963
  %3965 = vmatmul.bf16.gmra.mxu0 %v3497
  %v3966 = vpop.f32.mrf.mxu0
  %v3967 = vadd.f32 0.0, %v3966
  %v3968 = vpop.f32.mrf.mxu0
  %v3969 = vadd.f32 0.0, %v3968
  %3970 = vmatmul.bf16.gmra.mxu0 %v3499
  %v3971 = vpop.f32.mrf.mxu0
  %v3972 = vadd.f32 0.0, %v3971
  %v3973 = vpop.f32.mrf.mxu0
  %v3974 = vadd.f32 0.0, %v3973
  %3975 = vmatmul.bf16.gmra.mxu0 %v3501
  %v3976 = vpop.f32.mrf.mxu0
  %v3977 = vadd.f32 0.0, %v3976
  %v3978 = vpop.f32.mrf.mxu0
  %v3979 = vadd.f32 0.0, %v3978
  %3980 = vmatmul.bf16.gmra.mxu0 %v3503
  %v3981 = vpop.f32.mrf.mxu0
  %v3982 = vadd.f32 0.0, %v3981
  %v3983 = vpop.f32.mrf.mxu0
  %v3984 = vadd.f32 0.0, %v3983
  %3985 = vmatmul.bf16.gmra.mxu0 %v3505
  %v3986 = vpop.f32.mrf.mxu0
  %v3987 = vadd.f32 0.0, %v3986
  %v3988 = vpop.f32.mrf.mxu0
  %v3989 = vadd.f32 0.0, %v3988
  %3990 = vmatmul.bf16.gmra.mxu0 %v3507
  %v3991 = vpop.f32.mrf.mxu0
  %v3992 = vadd.f32 0.0, %v3991
  %v3993 = vpop.f32.mrf.mxu0
  %v3994 = vadd.f32 0.0, %v3993
  %3995 = vmatmul.bf16.gmra.mxu0 %v3509
  %v3996 = vpop.f32.mrf.mxu0
  %v3997 = vadd.f32 0.0, %v3996
  %v3998 = vpop.f32.mrf.mxu0
  %v3999 = vadd.f32 0.0, %v3998
  %4000 = vmatmul.bf16.gmra.mxu0 %v3511
  %v4001 = vpop.f32.mrf.mxu0
  %v4002 = vadd.f32 0.0, %v4001
  %v4003 = vpop.f32.mrf.mxu0
  %v4004 = vadd.f32 0.0, %v4003
  %4005 = vmatmul.bf16.gmra.mxu0 %v3513
  %v4006 = vpop.f32.mrf.mxu0
  %v4007 = vadd.f32 0.0, %v4006
  %v4008 = vpop.f32.mrf.mxu0
  %v4009 = vadd.f32 0.0, %v4008
  %4010 = vmatmul.bf16.gmra.mxu0 %v3515
  %v4011 = vpop.f32.mrf.mxu0
  %v4012 = vadd.f32 0.0, %v4011
  %v4013 = vpop.f32.mrf.mxu0
  %v4014 = vadd.f32 0.0, %v4013
  %4015 = vmatmul.bf16.gmra.mxu0 %v3517
  %v4016 = vpop.f32.mrf.mxu0
  %v4017 = vadd.f32 0.0, %v4016
  %v4018 = vpop.f32.mrf.mxu0
  %v4019 = vadd.f32 0.0, %v4018
  %4020 = vmatmul.bf16.gmra.mxu0 %v3519
  %v4021 = vpop.f32.mrf.mxu0
  %v4022 = vadd.f32 0.0, %v4021
  %v4023 = vpop.f32.mrf.mxu0
  %v4024 = vadd.f32 0.0, %v4023
  %4025 = vmatmul.bf16.gmra.mxu0 %v3521
  %v4026 = vpop.f32.mrf.mxu0
  %v4027 = vadd.f32 0.0, %v4026
  %v4028 = vpop.f32.mrf.mxu0
  %v4029 = vadd.f32 0.0, %v4028
  %4030 = vmatmul.bf16.gmra.mxu0 %v3523
  %v4031 = vpop.f32.mrf.mxu0
  %v4032 = vadd.f32 0.0, %v4031
  %v4033 = vpop.f32.mrf.mxu0
  %v4034 = vadd.f32 0.0, %v4033
  %4035 = vmatmul.bf16.gmra.mxu0 %v3525
  %v4036 = vpop.f32.mrf.mxu0
  %v4037 = vadd.f32 0.0, %v4036
  %v4038 = vpop.f32.mrf.mxu0
  %v4039 = vadd.f32 0.0, %v4038
  %4040 = vmatmul.bf16.gmra.mxu0 %v3527
  %v4041 = vpop.f32.mrf.mxu0
  %v4042 = vadd.f32 0.0, %v4041
  %v4043 = vpop.f32.mrf.mxu0
  %v4044 = vadd.f32 0.0, %v4043
  %4045 = vmatmul.bf16.gmra.mxu0 %v3529
  %v4046 = vpop.f32.mrf.mxu0
  %v4047 = vadd.f32 0.0, %v4046
  %v4048 = vpop.f32.mrf.mxu0
  %v4049 = vadd.f32 0.0, %v4048
  %4050 = vmatmul.bf16.gmra.mxu0 %v3531
  %v4051 = vpop.f32.mrf.mxu0
  %v4052 = vadd.f32 0.0, %v4051
  %v4053 = vpop.f32.mrf.mxu0
  %v4054 = vadd.f32 0.0, %v4053
  %4055 = vmatmul.bf16.gmra.mxu0 %v3533
  %v4056 = vpop.f32.mrf.mxu0
  %v4057 = vadd.f32 0.0, %v4056
  %v4058 = vpop.f32.mrf.mxu0
  %v4059 = vadd.f32 0.0, %v4058
  %4060 = vmatmul.bf16.gmra.mxu0 %v3535
  %v4061 = vpop.f32.mrf.mxu0
  %v4062 = vadd.f32 0.0, %v4061
  %v4063 = vpop.f32.mrf.mxu0
  %v4064 = vadd.f32 0.0, %v4063
  %4065 = vmatmul.bf16.gmra.mxu0 %v3537
  %v4066 = vpop.f32.mrf.mxu0
  %v4067 = vadd.f32 0.0, %v4066
  %v4068 = vpop.f32.mrf.mxu0
  %v4069 = vadd.f32 0.0, %v4068
  %4070 = vmatmul.bf16.gmra.mxu0 %v3539
  %v4071 = vpop.f32.mrf.mxu0
  %v4072 = vadd.f32 0.0, %v4071
  %v4073 = vpop.f32.mrf.mxu0
  %v4074 = vadd.f32 0.0, %v4073
  %4075 = vmatmul.bf16.gmra.mxu0 %v3541
  %v4076 = vpop.f32.mrf.mxu0
  %v4077 = vadd.f32 0.0, %v4076
  %v4078 = vpop.f32.mrf.mxu0
  %v4079 = vadd.f32 0.0, %v4078
  %4080 = vmatmul.bf16.gmra.mxu0 %v3543
  %v4081 = vpop.f32.mrf.mxu0
  %v4082 = vadd.f32 0.0, %v4081
  %v4083 = vpop.f32.mrf.mxu0
  %v4084 = vadd.f32 0.0, %v4083
  %4085 = vmatmul.bf16.gmra.mxu0 %v3545
  %v4086 = vpop.f32.mrf.mxu0
  %v4087 = vadd.f32 0.0, %v4086
  %v4088 = vpop.f32.mrf.mxu0
  %v4089 = vadd.f32 0.0, %v4088
  %4090 = vmatmul.bf16.gmra.mxu0 %v3547
  %v4091 = vpop.f32.mrf.mxu0
  %v4092 = vadd.f32 0.0, %v4091
  %v4093 = vpop.f32.mrf.mxu0
  %v4094 = vadd.f32 0.0, %v4093
  %4095 = vmatmul.bf16.gmra.mxu0 %v3549
  %v4096 = vpop.f32.mrf.mxu0
  %v4097 = vadd.f32 0.0, %v4096
  %v4098 = vpop.f32.mrf.mxu0
  %v4099 = vadd.f32 0.0, %v4098
  %4100 = vmatmul.bf16.gmra.mxu0 %v3551
  %v4101 = vpop.f32.mrf.mxu0
  %v4102 = vadd.f32 0.0, %v4101
  %v4103 = vpop.f32.mrf.mxu0
  %v4104 = vadd.f32 0.0, %v4103
  %4105 = vdwg.mxu0
  %4106 = vmatpush.bf16.msra.mxu0 %v3760
  %4107 = vmatpush.bf16.msra.mxu0 %v3759
  %4108 = vmatpush.bf16.msra.mxu0 %v3758
  %4109 = vmatpush.bf16.msra.mxu0 %v3757
  %4110 = vmatpush.bf16.msra.mxu0 %v3756
  %4111 = vmatpush.bf16.msra.mxu0 %v3755
  %4112 = vmatpush.bf16.msra.mxu0 %v3754
  %4113 = vmatpush.bf16.msra.mxu0 %v3753
  %4114 = vmatmul.bf16.gmra.mxu0 %v3426
  %v4115 = vpop.f32.mrf.mxu0
  %v4116 = vadd.f32 %v3787, %v4115
  %v4117 = vpop.f32.mrf.mxu0
  %v4118 = vadd.f32 %v3789, %v4117
  %4119 = vmatmul.bf16.gmra.mxu0 %v3428
  %v4120 = vpop.f32.mrf.mxu0
  %v4121 = vadd.f32 %v3792, %v4120
  %v4122 = vpop.f32.mrf.mxu0
  %v4123 = vadd.f32 %v3794, %v4122
  %4124 = vmatmul.bf16.gmra.mxu0 %v3430
  %v4125 = vpop.f32.mrf.mxu0
  %v4126 = vadd.f32 %v3797, %v4125
  %v4127 = vpop.f32.mrf.mxu0
  %v4128 = vadd.f32 %v3799, %v4127
  %4129 = vmatmul.bf16.gmra.mxu0 %v3432
  %v4130 = vpop.f32.mrf.mxu0
  %v4131 = vadd.f32 %v3802, %v4130
  %v4132 = vpop.f32.mrf.mxu0
  %v4133 = vadd.f32 %v3804, %v4132
  %4134 = vmatmul.bf16.gmra.mxu0 %v3434
  %v4135 = vpop.f32.mrf.mxu0
  %v4136 = vadd.f32 %v3807, %v4135
  %v4137 = vpop.f32.mrf.mxu0
  %v4138 = vadd.f32 %v3809, %v4137
  %4139 = vmatmul.bf16.gmra.mxu0 %v3436
  %v4140 = vpop.f32.mrf.mxu0
  %v4141 = vadd.f32 %v3812, %v4140
  %v4142 = vpop.f32.mrf.mxu0
  %v4143 = vadd.f32 %v3814, %v4142
  %4144 = vmatmul.bf16.gmra.mxu0 %v3438
  %v4145 = vpop.f32.mrf.mxu0
  %v4146 = vadd.f32 %v3817, %v4145
  %v4147 = vpop.f32.mrf.mxu0
  %v4148 = vadd.f32 %v3819, %v4147
  %4149 = vmatmul.bf16.gmra.mxu0 %v3440
  %v4150 = vpop.f32.mrf.mxu0
  %v4151 = vadd.f32 %v3822, %v4150
  %v4152 = vpop.f32.mrf.mxu0
  %v4153 = vadd.f32 %v3824, %v4152
  %4154 = vmatmul.bf16.gmra.mxu0 %v3442
  %v4155 = vpop.f32.mrf.mxu0
  %v4156 = vadd.f32 %v3827, %v4155
  %v4157 = vpop.f32.mrf.mxu0
  %v4158 = vadd.f32 %v3829, %v4157
  %4159 = vmatmul.bf16.gmra.mxu0 %v3444
  %v4160 = vpop.f32.mrf.mxu0
  %v4161 = vadd.f32 %v3832, %v4160
  %v4162 = vpop.f32.mrf.mxu0
  %v4163 = vadd.f32 %v3834, %v4162
  %4164 = vmatmul.bf16.gmra.mxu0 %v3446
  %v4165 = vpop.f32.mrf.mxu0
  %v4166 = vadd.f32 %v3837, %v4165
  %v4167 = vpop.f32.mrf.mxu0
  %v4168 = vadd.f32 %v3839, %v4167
  %4169 = vmatmul.bf16.gmra.mxu0 %v3448
  %v4170 = vpop.f32.mrf.mxu0
  %v4171 = vadd.f32 %v3842, %v4170
  %v4172 = vpop.f32.mrf.mxu0
  %v4173 = vadd.f32 %v3844, %v4172
  %4174 = vmatmul.bf16.gmra.mxu0 %v3450
  %v4175 = vpop.f32.mrf.mxu0
  %v4176 = vadd.f32 %v3847, %v4175
  %v4177 = vpop.f32.mrf.mxu0
  %v4178 = vadd.f32 %v3849, %v4177
  %4179 = vmatmul.bf16.gmra.mxu0 %v3452
  %v4180 = vpop.f32.mrf.mxu0
  %v4181 = vadd.f32 %v3852, %v4180
  %v4182 = vpop.f32.mrf.mxu0
  %v4183 = vadd.f32 %v3854, %v4182
  %4184 = vmatmul.bf16.gmra.mxu0 %v3454
  %v4185 = vpop.f32.mrf.mxu0
  %v4186 = vadd.f32 %v3857, %v4185
  %v4187 = vpop.f32.mrf.mxu0
  %v4188 = vadd.f32 %v3859, %v4187
  %4189 = vmatmul.bf16.gmra.mxu0 %v3456
  %v4190 = vpop.f32.mrf.mxu0
  %v4191 = vadd.f32 %v3862, %v4190
  %v4192 = vpop.f32.mrf.mxu0
  %v4193 = vadd.f32 %v3864, %v4192
  %4194 = vmatmul.bf16.gmra.mxu0 %v3458
  %v4195 = vpop.f32.mrf.mxu0
  %v4196 = vadd.f32 %v3867, %v4195
  %v4197 = vpop.f32.mrf.mxu0
  %v4198 = vadd.f32 %v3869, %v4197
  %4199 = vmatmul.bf16.gmra.mxu0 %v3460
  %v4200 = vpop.f32.mrf.mxu0
  %v4201 = vadd.f32 %v3872, %v4200
  %v4202 = vpop.f32.mrf.mxu0
  %v4203 = vadd.f32 %v3874, %v4202
  %4204 = vmatmul.bf16.gmra.mxu0 %v3462
  %v4205 = vpop.f32.mrf.mxu0
  %v4206 = vadd.f32 %v3877, %v4205
  %v4207 = vpop.f32.mrf.mxu0
  %v4208 = vadd.f32 %v3879, %v4207
  %4209 = vmatmul.bf16.gmra.mxu0 %v3464
  %v4210 = vpop.f32.mrf.mxu0
  %v4211 = vadd.f32 %v3882, %v4210
  %v4212 = vpop.f32.mrf.mxu0
  %v4213 = vadd.f32 %v3884, %v4212
  %4214 = vmatmul.bf16.gmra.mxu0 %v3466
  %v4215 = vpop.f32.mrf.mxu0
  %v4216 = vadd.f32 %v3887, %v4215
  %v4217 = vpop.f32.mrf.mxu0
  %v4218 = vadd.f32 %v3889, %v4217
  %4219 = vmatmul.bf16.gmra.mxu0 %v3468
  %v4220 = vpop.f32.mrf.mxu0
  %v4221 = vadd.f32 %v3892, %v4220
  %v4222 = vpop.f32.mrf.mxu0
  %v4223 = vadd.f32 %v3894, %v4222
  %4224 = vmatmul.bf16.gmra.mxu0 %v3470
  %v4225 = vpop.f32.mrf.mxu0
  %v4226 = vadd.f32 %v3897, %v4225
  %v4227 = vpop.f32.mrf.mxu0
  %v4228 = vadd.f32 %v3899, %v4227
  %4229 = vmatmul.bf16.gmra.mxu0 %v3472
  %v4230 = vpop.f32.mrf.mxu0
  %v4231 = vadd.f32 %v3902, %v4230
  %v4232 = vpop.f32.mrf.mxu0
  %v4233 = vadd.f32 %v3904, %v4232
  %4234 = vmatmul.bf16.gmra.mxu0 %v3474
  %v4235 = vpop.f32.mrf.mxu0
  %v4236 = vadd.f32 %v3907, %v4235
  %v4237 = vpop.f32.mrf.mxu0
  %v4238 = vadd.f32 %v3909, %v4237
  %4239 = vmatmul.bf16.gmra.mxu0 %v3476
  %v4240 = vpop.f32.mrf.mxu0
  %v4241 = vadd.f32 %v3912, %v4240
  %v4242 = vpop.f32.mrf.mxu0
  %v4243 = vadd.f32 %v3914, %v4242
  %4244 = vmatmul.bf16.gmra.mxu0 %v3478
  %v4245 = vpop.f32.mrf.mxu0
  %v4246 = vadd.f32 %v3917, %v4245
  %v4247 = vpop.f32.mrf.mxu0
  %v4248 = vadd.f32 %v3919, %v4247
  %4249 = vmatmul.bf16.gmra.mxu0 %v3480
  %v4250 = vpop.f32.mrf.mxu0
  %v4251 = vadd.f32 %v3922, %v4250
  %v4252 = vpop.f32.mrf.mxu0
  %v4253 = vadd.f32 %v3924, %v4252
  %4254 = vmatmul.bf16.gmra.mxu0 %v3482
  %v4255 = vpop.f32.mrf.mxu0
  %v4256 = vadd.f32 %v3927, %v4255
  %v4257 = vpop.f32.mrf.mxu0
  %v4258 = vadd.f32 %v3929, %v4257
  %4259 = vmatmul.bf16.gmra.mxu0 %v3484
  %v4260 = vpop.f32.mrf.mxu0
  %v4261 = vadd.f32 %v3932, %v4260
  %v4262 = vpop.f32.mrf.mxu0
  %v4263 = vadd.f32 %v3934, %v4262
  %4264 = vmatmul.bf16.gmra.mxu0 %v3486
  %v4265 = vpop.f32.mrf.mxu0
  %v4266 = vadd.f32 %v3937, %v4265
  %v4267 = vpop.f32.mrf.mxu0
  %v4268 = vadd.f32 %v3939, %v4267
  %4269 = vmatmul.bf16.gmra.mxu0 %v3488
  %v4270 = vpop.f32.mrf.mxu0
  %v4271 = vadd.f32 %v3942, %v4270
  %v4272 = vpop.f32.mrf.mxu0
  %v4273 = vadd.f32 %v3944, %v4272
  %4274 = vmatmul.bf16.gmra.mxu0 %v3490
  %v4275 = vpop.f32.mrf.mxu0
  %v4276 = vadd.f32 %v3947, %v4275
  %v4277 = vpop.f32.mrf.mxu0
  %v4278 = vadd.f32 %v3949, %v4277
  %4279 = vmatmul.bf16.gmra.mxu0 %v3492
  %v4280 = vpop.f32.mrf.mxu0
  %v4281 = vadd.f32 %v3952, %v4280
  %v4282 = vpop.f32.mrf.mxu0
  %v4283 = vadd.f32 %v3954, %v4282
  %4284 = vmatmul.bf16.gmra.mxu0 %v3494
  %v4285 = vpop.f32.mrf.mxu0
  %v4286 = vadd.f32 %v3957, %v4285
  %v4287 = vpop.f32.mrf.mxu0
  %v4288 = vadd.f32 %v3959, %v4287
  %4289 = vmatmul.bf16.gmra.mxu0 %v3496
  %v4290 = vpop.f32.mrf.mxu0
  %v4291 = vadd.f32 %v3962, %v4290
  %v4292 = vpop.f32.mrf.mxu0
  %v4293 = vadd.f32 %v3964, %v4292
  %4294 = vmatmul.bf16.gmra.mxu0 %v3498
  %v4295 = vpop.f32.mrf.mxu0
  %v4296 = vadd.f32 %v3967, %v4295
  %v4297 = vpop.f32.mrf.mxu0
  %v4298 = vadd.f32 %v3969, %v4297
  %4299 = vmatmul.bf16.gmra.mxu0 %v3500
  %v4300 = vpop.f32.mrf.mxu0
  %v4301 = vadd.f32 %v3972, %v4300
  %v4302 = vpop.f32.mrf.mxu0
  %v4303 = vadd.f32 %v3974, %v4302
  %4304 = vmatmul.bf16.gmra.mxu0 %v3502
  %v4305 = vpop.f32.mrf.mxu0
  %v4306 = vadd.f32 %v3977, %v4305
  %v4307 = vpop.f32.mrf.mxu0
  %v4308 = vadd.f32 %v3979, %v4307
  %4309 = vmatmul.bf16.gmra.mxu0 %v3504
  %v4310 = vpop.f32.mrf.mxu0
  %v4311 = vadd.f32 %v3982, %v4310
  %v4312 = vpop.f32.mrf.mxu0
  %v4313 = vadd.f32 %v3984, %v4312
  %4314 = vmatmul.bf16.gmra.mxu0 %v3506
  %v4315 = vpop.f32.mrf.mxu0
  %v4316 = vadd.f32 %v3987, %v4315
  %v4317 = vpop.f32.mrf.mxu0
  %v4318 = vadd.f32 %v3989, %v4317
  %4319 = vmatmul.bf16.gmra.mxu0 %v3508
  %v4320 = vpop.f32.mrf.mxu0
  %v4321 = vadd.f32 %v3992, %v4320
  %v4322 = vpop.f32.mrf.mxu0
  %v4323 = vadd.f32 %v3994, %v4322
  %4324 = vmatmul.bf16.gmra.mxu0 %v3510
  %v4325 = vpop.f32.mrf.mxu0
  %v4326 = vadd.f32 %v3997, %v4325
  %v4327 = vpop.f32.mrf.mxu0
  %v4328 = vadd.f32 %v3999, %v4327
  %4329 = vmatmul.bf16.gmra.mxu0 %v3512
  %v4330 = vpop.f32.mrf.mxu0
  %v4331 = vadd.f32 %v4002, %v4330
  %v4332 = vpop.f32.mrf.mxu0
  %v4333 = vadd.f32 %v4004, %v4332
  %4334 = vmatmul.bf16.gmra.mxu0 %v3514
  %v4335 = vpop.f32.mrf.mxu0
  %v4336 = vadd.f32 %v4007, %v4335
  %v4337 = vpop.f32.mrf.mxu0
  %v4338 = vadd.f32 %v4009, %v4337
  %4339 = vmatmul.bf16.gmra.mxu0 %v3516
  %v4340 = vpop.f32.mrf.mxu0
  %v4341 = vadd.f32 %v4012, %v4340
  %v4342 = vpop.f32.mrf.mxu0
  %v4343 = vadd.f32 %v4014, %v4342
  %4344 = vmatmul.bf16.gmra.mxu0 %v3518
  %v4345 = vpop.f32.mrf.mxu0
  %v4346 = vadd.f32 %v4017, %v4345
  %v4347 = vpop.f32.mrf.mxu0
  %v4348 = vadd.f32 %v4019, %v4347
  %4349 = vmatmul.bf16.gmra.mxu0 %v3520
  %v4350 = vpop.f32.mrf.mxu0
  %v4351 = vadd.f32 %v4022, %v4350
  %v4352 = vpop.f32.mrf.mxu0
  %v4353 = vadd.f32 %v4024, %v4352
  %4354 = vmatmul.bf16.gmra.mxu0 %v3522
  %v4355 = vpop.f32.mrf.mxu0
  %v4356 = vadd.f32 %v4027, %v4355
  %v4357 = vpop.f32.mrf.mxu0
  %v4358 = vadd.f32 %v4029, %v4357
  %4359 = vmatmul.bf16.gmra.mxu0 %v3524
  %v4360 = vpop.f32.mrf.mxu0
  %v4361 = vadd.f32 %v4032, %v4360
  %v4362 = vpop.f32.mrf.mxu0
  %v4363 = vadd.f32 %v4034, %v4362
  %4364 = vmatmul.bf16.gmra.mxu0 %v3526
  %v4365 = vpop.f32.mrf.mxu0
  %v4366 = vadd.f32 %v4037, %v4365
  %v4367 = vpop.f32.mrf.mxu0
  %v4368 = vadd.f32 %v4039, %v4367
  %4369 = vmatmul.bf16.gmra.mxu0 %v3528
  %v4370 = vpop.f32.mrf.mxu0
  %v4371 = vadd.f32 %v4042, %v4370
  %v4372 = vpop.f32.mrf.mxu0
  %v4373 = vadd.f32 %v4044, %v4372
  %4374 = vmatmul.bf16.gmra.mxu0 %v3530
  %v4375 = vpop.f32.mrf.mxu0
  %v4376 = vadd.f32 %v4047, %v4375
  %v4377 = vpop.f32.mrf.mxu0
  %v4378 = vadd.f32 %v4049, %v4377
  %4379 = vmatmul.bf16.gmra.mxu0 %v3532
  %v4380 = vpop.f32.mrf.mxu0
  %v4381 = vadd.f32 %v4052, %v4380
  %v4382 = vpop.f32.mrf.mxu0
  %v4383 = vadd.f32 %v4054, %v4382
  %4384 = vmatmul.bf16.gmra.mxu0 %v3534
  %v4385 = vpop.f32.mrf.mxu0
  %v4386 = vadd.f32 %v4057, %v4385
  %v4387 = vpop.f32.mrf.mxu0
  %v4388 = vadd.f32 %v4059, %v4387
  %4389 = vmatmul.bf16.gmra.mxu0 %v3536
  %v4390 = vpop.f32.mrf.mxu0
  %v4391 = vadd.f32 %v4062, %v4390
  %v4392 = vpop.f32.mrf.mxu0
  %v4393 = vadd.f32 %v4064, %v4392
  %4394 = vmatmul.bf16.gmra.mxu0 %v3538
  %v4395 = vpop.f32.mrf.mxu0
  %v4396 = vadd.f32 %v4067, %v4395
  %v4397 = vpop.f32.mrf.mxu0
  %v4398 = vadd.f32 %v4069, %v4397
  %4399 = vmatmul.bf16.gmra.mxu0 %v3540
  %v4400 = vpop.f32.mrf.mxu0
  %v4401 = vadd.f32 %v4072, %v4400
  %v4402 = vpop.f32.mrf.mxu0
  %v4403 = vadd.f32 %v4074, %v4402
  %4404 = vmatmul.bf16.gmra.mxu0 %v3542
  %v4405 = vpop.f32.mrf.mxu0
  %v4406 = vadd.f32 %v4077, %v4405
  %v4407 = vpop.f32.mrf.mxu0
  %v4408 = vadd.f32 %v4079, %v4407
  %4409 = vmatmul.bf16.gmra.mxu0 %v3544
  %v4410 = vpop.f32.mrf.mxu0
  %v4411 = vadd.f32 %v4082, %v4410
  %v4412 = vpop.f32.mrf.mxu0
  %v4413 = vadd.f32 %v4084, %v4412
  %4414 = vmatmul.bf16.gmra.mxu0 %v3546
  %v4415 = vpop.f32.mrf.mxu0
  %v4416 = vadd.f32 %v4087, %v4415
  %v4417 = vpop.f32.mrf.mxu0
  %v4418 = vadd.f32 %v4089, %v4417
  %4419 = vmatmul.bf16.gmra.mxu0 %v3548
  %v4420 = vpop.f32.mrf.mxu0
  %v4421 = vadd.f32 %v4092, %v4420
  %v4422 = vpop.f32.mrf.mxu0
  %v4423 = vadd.f32 %v4094, %v4422
  %4424 = vmatmul.bf16.gmra.mxu0 %v3550
  %v4425 = vpop.f32.mrf.mxu0
  %v4426 = vadd.f32 %v4097, %v4425
  %v4427 = vpop.f32.mrf.mxu0
  %v4428 = vadd.f32 %v4099, %v4427
  %4429 = vmatmul.bf16.gmra.mxu0 %v3552
  %v4430 = vpop.f32.mrf.mxu0
  %v4431 = vadd.f32 %v4102, %v4430
  %v4432 = vpop.f32.mrf.mxu0
  %v4433 = vadd.f32 %v4104, %v4432
  %4434 = vdwg.mxu0
  %v4435 = vpack.c.bf16 %v4116, %v4116
  %v4436 = vpack.c.bf16 %v4118, %v4118
  %v4437 = vpack.c.bf16 %v4121, %v4121
  %v4438 = vpack.c.bf16 %v4123, %v4123
  %v4439 = vpack.c.bf16 %v4126, %v4126
  %v4440 = vpack.c.bf16 %v4128, %v4128
  %v4441 = vpack.c.bf16 %v4131, %v4131
  %v4442 = vpack.c.bf16 %v4133, %v4133
  %v4443 = vpack.c.bf16 %v4136, %v4136
  %v4444 = vpack.c.bf16 %v4138, %v4138
  %v4445 = vpack.c.bf16 %v4141, %v4141
  %v4446 = vpack.c.bf16 %v4143, %v4143
  %v4447 = vpack.c.bf16 %v4146, %v4146
  %v4448 = vpack.c.bf16 %v4148, %v4148
  %v4449 = vpack.c.bf16 %v4151, %v4151
  %v4450 = vpack.c.bf16 %v4153, %v4153
  %v4451 = vpack.c.bf16 %v4156, %v4156
  %v4452 = vpack.c.bf16 %v4158, %v4158
  %v4453 = vpack.c.bf16 %v4161, %v4161
  %v4454 = vpack.c.bf16 %v4163, %v4163
  %v4455 = vpack.c.bf16 %v4166, %v4166
  %v4456 = vpack.c.bf16 %v4168, %v4168
  %v4457 = vpack.c.bf16 %v4171, %v4171
  %v4458 = vpack.c.bf16 %v4173, %v4173
  %v4459 = vpack.c.bf16 %v4176, %v4176
  %v4460 = vpack.c.bf16 %v4178, %v4178
  %v4461 = vpack.c.bf16 %v4181, %v4181
  %v4462 = vpack.c.bf16 %v4183, %v4183
  %v4463 = vpack.c.bf16 %v4186, %v4186
  %v4464 = vpack.c.bf16 %v4188, %v4188
  %v4465 = vpack.c.bf16 %v4191, %v4191
  %v4466 = vpack.c.bf16 %v4193, %v4193
  %v4467 = vpack.c.bf16 %v4196, %v4196
  %v4468 = vpack.c.bf16 %v4198, %v4198
  %v4469 = vpack.c.bf16 %v4201, %v4201
  %v4470 = vpack.c.bf16 %v4203, %v4203
  %v4471 = vpack.c.bf16 %v4206, %v4206
  %v4472 = vpack.c.bf16 %v4208, %v4208
  %v4473 = vpack.c.bf16 %v4211, %v4211
  %v4474 = vpack.c.bf16 %v4213, %v4213
  %v4475 = vpack.c.bf16 %v4216, %v4216
  %v4476 = vpack.c.bf16 %v4218, %v4218
  %v4477 = vpack.c.bf16 %v4221, %v4221
  %v4478 = vpack.c.bf16 %v4223, %v4223
  %v4479 = vpack.c.bf16 %v4226, %v4226
  %v4480 = vpack.c.bf16 %v4228, %v4228
  %v4481 = vpack.c.bf16 %v4231, %v4231
  %v4482 = vpack.c.bf16 %v4233, %v4233
  %v4483 = vpack.c.bf16 %v4236, %v4236
  %v4484 = vpack.c.bf16 %v4238, %v4238
  %v4485 = vpack.c.bf16 %v4241, %v4241
  %v4486 = vpack.c.bf16 %v4243, %v4243
  %v4487 = vpack.c.bf16 %v4246, %v4246
  %v4488 = vpack.c.bf16 %v4248, %v4248
  %v4489 = vpack.c.bf16 %v4251, %v4251
  %v4490 = vpack.c.bf16 %v4253, %v4253
  %v4491 = vpack.c.bf16 %v4256, %v4256
  %v4492 = vpack.c.bf16 %v4258, %v4258
  %v4493 = vpack.c.bf16 %v4261, %v4261
  %v4494 = vpack.c.bf16 %v4263, %v4263
  %v4495 = vpack.c.bf16 %v4266, %v4266
  %v4496 = vpack.c.bf16 %v4268, %v4268
  %v4497 = vpack.c.bf16 %v4271, %v4271
  %v4498 = vpack.c.bf16 %v4273, %v4273
  %v4499 = vpack.c.bf16 %v4276, %v4276
  %v4500 = vpack.c.bf16 %v4278, %v4278
  %v4501 = vpack.c.bf16 %v4281, %v4281
  %v4502 = vpack.c.bf16 %v4283, %v4283
  %v4503 = vpack.c.bf16 %v4286, %v4286
  %v4504 = vpack.c.bf16 %v4288, %v4288
  %v4505 = vpack.c.bf16 %v4291, %v4291
  %v4506 = vpack.c.bf16 %v4293, %v4293
  %v4507 = vpack.c.bf16 %v4296, %v4296
  %v4508 = vpack.c.bf16 %v4298, %v4298
  %v4509 = vpack.c.bf16 %v4301, %v4301
  %v4510 = vpack.c.bf16 %v4303, %v4303
  %v4511 = vpack.c.bf16 %v4306, %v4306
  %v4512 = vpack.c.bf16 %v4308, %v4308
  %v4513 = vpack.c.bf16 %v4311, %v4311
  %v4514 = vpack.c.bf16 %v4313, %v4313
  %v4515 = vpack.c.bf16 %v4316, %v4316
  %v4516 = vpack.c.bf16 %v4318, %v4318
  %v4517 = vpack.c.bf16 %v4321, %v4321
  %v4518 = vpack.c.bf16 %v4323, %v4323
  %v4519 = vpack.c.bf16 %v4326, %v4326
  %v4520 = vpack.c.bf16 %v4328, %v4328
  %v4521 = vpack.c.bf16 %v4331, %v4331
  %v4522 = vpack.c.bf16 %v4333, %v4333
  %v4523 = vpack.c.bf16 %v4336, %v4336
  %v4524 = vpack.c.bf16 %v4338, %v4338
  %v4525 = vpack.c.bf16 %v4341, %v4341
  %v4526 = vpack.c.bf16 %v4343, %v4343
  %v4527 = vpack.c.bf16 %v4346, %v4346
  %v4528 = vpack.c.bf16 %v4348, %v4348
  %v4529 = vpack.c.bf16 %v4351, %v4351
  %v4530 = vpack.c.bf16 %v4353, %v4353
  %v4531 = vpack.c.bf16 %v4356, %v4356
  %v4532 = vpack.c.bf16 %v4358, %v4358
  %v4533 = vpack.c.bf16 %v4361, %v4361
  %v4534 = vpack.c.bf16 %v4363, %v4363
  %v4535 = vpack.c.bf16 %v4366, %v4366
  %v4536 = vpack.c.bf16 %v4368, %v4368
  %v4537 = vpack.c.bf16 %v4371, %v4371
  %v4538 = vpack.c.bf16 %v4373, %v4373
  %v4539 = vpack.c.bf16 %v4376, %v4376
  %v4540 = vpack.c.bf16 %v4378, %v4378
  %v4541 = vpack.c.bf16 %v4381, %v4381
  %v4542 = vpack.c.bf16 %v4383, %v4383
  %v4543 = vpack.c.bf16 %v4386, %v4386
  %v4544 = vpack.c.bf16 %v4388, %v4388
  %v4545 = vpack.c.bf16 %v4391, %v4391
  %v4546 = vpack.c.bf16 %v4393, %v4393
  %v4547 = vpack.c.bf16 %v4396, %v4396
  %v4548 = vpack.c.bf16 %v4398, %v4398
  %v4549 = vpack.c.bf16 %v4401, %v4401
  %v4550 = vpack.c.bf16 %v4403, %v4403
  %v4551 = vpack.c.bf16 %v4406, %v4406
  %v4552 = vpack.c.bf16 %v4408, %v4408
  %v4553 = vpack.c.bf16 %v4411, %v4411
  %v4554 = vpack.c.bf16 %v4413, %v4413
  %v4555 = vpack.c.bf16 %v4416, %v4416
  %v4556 = vpack.c.bf16 %v4418, %v4418
  %v4557 = vpack.c.bf16 %v4421, %v4421
  %v4558 = vpack.c.bf16 %v4423, %v4423
  %v4559 = vpack.c.bf16 %v4426, %v4426
  %v4560 = vpack.c.bf16 %v4428, %v4428
  %v4561 = vpack.c.bf16 %v4431, %v4431
  %v4562 = vpack.c.bf16 %v4433, %v4433
  %4563 = vst.msk [vmem:[#allocation3 + $0x200] sm:$0xf] %vm1006, %v4435
  %4564 = vst.msk [vmem:[#allocation3 + $0x204] sm:$0xf] %vm1006, %v4436
  %4565 = vst.msk [vmem:[#allocation3 + $0x208] sm:$0xf] %vm1006, %v4437
  %4566 = vst.msk [vmem:[#allocation3 + $0x20c] sm:$0xf] %vm1006, %v4438
  %4567 = vst.msk [vmem:[#allocation3 + $0x210] sm:$0xf] %vm1006, %v4439
  %4568 = vst.msk [vmem:[#allocation3 + $0x214] sm:$0xf] %vm1006, %v4440
  %4569 = vst.msk [vmem:[#allocation3 + $0x218] sm:$0xf] %vm1006, %v4441
  %4570 = vst.msk [vmem:[#allocation3 + $0x21c] sm:$0xf] %vm1006, %v4442
  %4571 = vst.msk [vmem:[#allocation3 + $0x220] sm:$0xf] %vm1006, %v4443
  %4572 = vst.msk [vmem:[#allocation3 + $0x224] sm:$0xf] %vm1006, %v4444
  %4573 = vst.msk [vmem:[#allocation3 + $0x228] sm:$0xf] %vm1006, %v4445
  %4574 = vst.msk [vmem:[#allocation3 + $0x22c] sm:$0xf] %vm1006, %v4446
  %4575 = vst.msk [vmem:[#allocation3 + $0x230] sm:$0xf] %vm1006, %v4447
  %4576 = vst.msk [vmem:[#allocation3 + $0x234] sm:$0xf] %vm1006, %v4448
  %4577 = vst.msk [vmem:[#allocation3 + $0x238] sm:$0xf] %vm1006, %v4449
  %4578 = vst.msk [vmem:[#allocation3 + $0x23c] sm:$0xf] %vm1006, %v4450
  %4579 = vst.msk [vmem:[#allocation3 + $0x240] sm:$0xf] %vm1006, %v4451
  %4580 = vst.msk [vmem:[#allocation3 + $0x244] sm:$0xf] %vm1006, %v4452
  %4581 = vst.msk [vmem:[#allocation3 + $0x248] sm:$0xf] %vm1006, %v4453
  %4582 = vst.msk [vmem:[#allocation3 + $0x24c] sm:$0xf] %vm1006, %v4454
  %4583 = vst.msk [vmem:[#allocation3 + $0x250] sm:$0xf] %vm1006, %v4455
  %4584 = vst.msk [vmem:[#allocation3 + $0x254] sm:$0xf] %vm1006, %v4456
  %4585 = vst.msk [vmem:[#allocation3 + $0x258] sm:$0xf] %vm1006, %v4457
  %4586 = vst.msk [vmem:[#allocation3 + $0x25c] sm:$0xf] %vm1006, %v4458
  %4587 = vst.msk [vmem:[#allocation3 + $0x260] sm:$0xf] %vm1006, %v4459
  %4588 = vst.msk [vmem:[#allocation3 + $0x264] sm:$0xf] %vm1006, %v4460
  %4589 = vst.msk [vmem:[#allocation3 + $0x268] sm:$0xf] %vm1006, %v4461
  %4590 = vst.msk [vmem:[#allocation3 + $0x26c] sm:$0xf] %vm1006, %v4462
  %4591 = vst.msk [vmem:[#allocation3 + $0x270] sm:$0xf] %vm1006, %v4463
  %4592 = vst.msk [vmem:[#allocation3 + $0x274] sm:$0xf] %vm1006, %v4464
  %4593 = vst.msk [vmem:[#allocation3 + $0x278] sm:$0xf] %vm1006, %v4465
  %4594 = vst.msk [vmem:[#allocation3 + $0x27c] sm:$0xf] %vm1006, %v4466
  %4595 = vst.msk [vmem:[#allocation3 + $0x280] sm:$0xf] %vm1006, %v4467
  %4596 = vst.msk [vmem:[#allocation3 + $0x284] sm:$0xf] %vm1006, %v4468
  %4597 = vst.msk [vmem:[#allocation3 + $0x288] sm:$0xf] %vm1006, %v4469
  %4598 = vst.msk [vmem:[#allocation3 + $0x28c] sm:$0xf] %vm1006, %v4470
  %4599 = vst.msk [vmem:[#allocation3 + $0x290] sm:$0xf] %vm1006, %v4471
  %4600 = vst.msk [vmem:[#allocation3 + $0x294] sm:$0xf] %vm1006, %v4472
  %4601 = vst.msk [vmem:[#allocation3 + $0x298] sm:$0xf] %vm1006, %v4473
  %4602 = vst.msk [vmem:[#allocation3 + $0x29c] sm:$0xf] %vm1006, %v4474
  %4603 = vst.msk [vmem:[#allocation3 + $0x2a0] sm:$0xf] %vm1006, %v4475
  %4604 = vst.msk [vmem:[#allocation3 + $0x2a4] sm:$0xf] %vm1006, %v4476
  %4605 = vst.msk [vmem:[#allocation3 + $0x2a8] sm:$0xf] %vm1006, %v4477
  %4606 = vst.msk [vmem:[#allocation3 + $0x2ac] sm:$0xf] %vm1006, %v4478
  %4607 = vst.msk [vmem:[#allocation3 + $0x2b0] sm:$0xf] %vm1006, %v4479
  %4608 = vst.msk [vmem:[#allocation3 + $0x2b4] sm:$0xf] %vm1006, %v4480
  %4609 = vst.msk [vmem:[#allocation3 + $0x2b8] sm:$0xf] %vm1006, %v4481
  %4610 = vst.msk [vmem:[#allocation3 + $0x2bc] sm:$0xf] %vm1006, %v4482
  %4611 = vst.msk [vmem:[#allocation3 + $0x2c0] sm:$0xf] %vm1006, %v4483
  %4612 = vst.msk [vmem:[#allocation3 + $0x2c4] sm:$0xf] %vm1006, %v4484
  %4613 = vst.msk [vmem:[#allocation3 + $0x2c8] sm:$0xf] %vm1006, %v4485
  %4614 = vst.msk [vmem:[#allocation3 + $0x2cc] sm:$0xf] %vm1006, %v4486
  %4615 = vst.msk [vmem:[#allocation3 + $0x2d0] sm:$0xf] %vm1006, %v4487
  %4616 = vst.msk [vmem:[#allocation3 + $0x2d4] sm:$0xf] %vm1006, %v4488
  %4617 = vst.msk [vmem:[#allocation3 + $0x2d8] sm:$0xf] %vm1006, %v4489
  %4618 = vst.msk [vmem:[#allocation3 + $0x2dc] sm:$0xf] %vm1006, %v4490
  %4619 = vst.msk [vmem:[#allocation3 + $0x2e0] sm:$0xf] %vm1006, %v4491
  %4620 = vst.msk [vmem:[#allocation3 + $0x2e4] sm:$0xf] %vm1006, %v4492
  %4621 = vst.msk [vmem:[#allocation3 + $0x2e8] sm:$0xf] %vm1006, %v4493
  %4622 = vst.msk [vmem:[#allocation3 + $0x2ec] sm:$0xf] %vm1006, %v4494
  %4623 = vst.msk [vmem:[#allocation3 + $0x2f0] sm:$0xf] %vm1006, %v4495
  %4624 = vst.msk [vmem:[#allocation3 + $0x2f4] sm:$0xf] %vm1006, %v4496
  %4625 = vst.msk [vmem:[#allocation3 + $0x2f8] sm:$0xf] %vm1006, %v4497
  %4626 = vst.msk [vmem:[#allocation3 + $0x2fc] sm:$0xf] %vm1006, %v4498
  %4627 = vst.msk [vmem:[#allocation3 + $0x300] sm:$0xf] %vm1006, %v4499
  %4628 = vst.msk [vmem:[#allocation3 + $0x304] sm:$0xf] %vm1006, %v4500
  %4629 = vst.msk [vmem:[#allocation3 + $0x308] sm:$0xf] %vm1006, %v4501
  %4630 = vst.msk [vmem:[#allocation3 + $0x30c] sm:$0xf] %vm1006, %v4502
  %4631 = vst.msk [vmem:[#allocation3 + $0x310] sm:$0xf] %vm1006, %v4503
  %4632 = vst.msk [vmem:[#allocation3 + $0x314] sm:$0xf] %vm1006, %v4504
  %4633 = vst.msk [vmem:[#allocation3 + $0x318] sm:$0xf] %vm1006, %v4505
  %4634 = vst.msk [vmem:[#allocation3 + $0x31c] sm:$0xf] %vm1006, %v4506
  %4635 = vst.msk [vmem:[#allocation3 + $0x320] sm:$0xf] %vm1006, %v4507
  %4636 = vst.msk [vmem:[#allocation3 + $0x324] sm:$0xf] %vm1006, %v4508
  %4637 = vst.msk [vmem:[#allocation3 + $0x328] sm:$0xf] %vm1006, %v4509
  %4638 = vst.msk [vmem:[#allocation3 + $0x32c] sm:$0xf] %vm1006, %v4510
  %4639 = vst.msk [vmem:[#allocation3 + $0x330] sm:$0xf] %vm1006, %v4511
  %4640 = vst.msk [vmem:[#allocation3 + $0x334] sm:$0xf] %vm1006, %v4512
  %4641 = vst.msk [vmem:[#allocation3 + $0x338] sm:$0xf] %vm1006, %v4513
  %4642 = vst.msk [vmem:[#allocation3 + $0x33c] sm:$0xf] %vm1006, %v4514
  %4643 = vst.msk [vmem:[#allocation3 + $0x340] sm:$0xf] %vm1006, %v4515
  %4644 = vst.msk [vmem:[#allocation3 + $0x344] sm:$0xf] %vm1006, %v4516
  %4645 = vst.msk [vmem:[#allocation3 + $0x348] sm:$0xf] %vm1006, %v4517
  %4646 = vst.msk [vmem:[#allocation3 + $0x34c] sm:$0xf] %vm1006, %v4518
  %4647 = vst.msk [vmem:[#allocation3 + $0x350] sm:$0xf] %vm1006, %v4519
  %4648 = vst.msk [vmem:[#allocation3 + $0x354] sm:$0xf] %vm1006, %v4520
  %4649 = vst.msk [vmem:[#allocation3 + $0x358] sm:$0xf] %vm1006, %v4521
  %4650 = vst.msk [vmem:[#allocation3 + $0x35c] sm:$0xf] %vm1006, %v4522
  %4651 = vst.msk [vmem:[#allocation3 + $0x360] sm:$0xf] %vm1006, %v4523
  %4652 = vst.msk [vmem:[#allocation3 + $0x364] sm:$0xf] %vm1006, %v4524
  %4653 = vst.msk [vmem:[#allocation3 + $0x368] sm:$0xf] %vm1006, %v4525
  %4654 = vst.msk [vmem:[#allocation3 + $0x36c] sm:$0xf] %vm1006, %v4526
  %4655 = vst.msk [vmem:[#allocation3 + $0x370] sm:$0xf] %vm1006, %v4527
  %4656 = vst.msk [vmem:[#allocation3 + $0x374] sm:$0xf] %vm1006, %v4528
  %4657 = vst.msk [vmem:[#allocation3 + $0x378] sm:$0xf] %vm1006, %v4529
  %4658 = vst.msk [vmem:[#allocation3 + $0x37c] sm:$0xf] %vm1006, %v4530
  %4659 = vst.msk [vmem:[#allocation3 + $0x380] sm:$0xf] %vm1006, %v4531
  %4660 = vst.msk [vmem:[#allocation3 + $0x384] sm:$0xf] %vm1006, %v4532
  %4661 = vst.msk [vmem:[#allocation3 + $0x388] sm:$0xf] %vm1006, %v4533
  %4662 = vst.msk [vmem:[#allocation3 + $0x38c] sm:$0xf] %vm1006, %v4534
  %4663 = vst.msk [vmem:[#allocation3 + $0x390] sm:$0xf] %vm1006, %v4535
  %4664 = vst.msk [vmem:[#allocation3 + $0x394] sm:$0xf] %vm1006, %v4536
  %4665 = vst.msk [vmem:[#allocation3 + $0x398] sm:$0xf] %vm1006, %v4537
  %4666 = vst.msk [vmem:[#allocation3 + $0x39c] sm:$0xf] %vm1006, %v4538
  %4667 = vst.msk [vmem:[#allocation3 + $0x3a0] sm:$0xf] %vm1006, %v4539
  %4668 = vst.msk [vmem:[#allocation3 + $0x3a4] sm:$0xf] %vm1006, %v4540
  %4669 = vst.msk [vmem:[#allocation3 + $0x3a8] sm:$0xf] %vm1006, %v4541
  %4670 = vst.msk [vmem:[#allocation3 + $0x3ac] sm:$0xf] %vm1006, %v4542
  %4671 = vst.msk [vmem:[#allocation3 + $0x3b0] sm:$0xf] %vm1006, %v4543
  %4672 = vst.msk [vmem:[#allocation3 + $0x3b4] sm:$0xf] %vm1006, %v4544
  %4673 = vst.msk [vmem:[#allocation3 + $0x3b8] sm:$0xf] %vm1006, %v4545
  %4674 = vst.msk [vmem:[#allocation3 + $0x3bc] sm:$0xf] %vm1006, %v4546
  %4675 = vst.msk [vmem:[#allocation3 + $0x3c0] sm:$0xf] %vm1006, %v4547
  %4676 = vst.msk [vmem:[#allocation3 + $0x3c4] sm:$0xf] %vm1006, %v4548
  %4677 = vst.msk [vmem:[#allocation3 + $0x3c8] sm:$0xf] %vm1006, %v4549
  %4678 = vst.msk [vmem:[#allocation3 + $0x3cc] sm:$0xf] %vm1006, %v4550
  %4679 = vst.msk [vmem:[#allocation3 + $0x3d0] sm:$0xf] %vm1006, %v4551
  %4680 = vst.msk [vmem:[#allocation3 + $0x3d4] sm:$0xf] %vm1006, %v4552
  %4681 = vst.msk [vmem:[#allocation3 + $0x3d8] sm:$0xf] %vm1006, %v4553
  %4682 = vst.msk [vmem:[#allocation3 + $0x3dc] sm:$0xf] %vm1006, %v4554
  %4683 = vst.msk [vmem:[#allocation3 + $0x3e0] sm:$0xf] %vm1006, %v4555
  %4684 = vst.msk [vmem:[#allocation3 + $0x3e4] sm:$0xf] %vm1006, %v4556
  %4685 = vst.msk [vmem:[#allocation3 + $0x3e8] sm:$0xf] %vm1006, %v4557
  %4686 = vst.msk [vmem:[#allocation3 + $0x3ec] sm:$0xf] %vm1006, %v4558
  %4687 = vst.msk [vmem:[#allocation3 + $0x3f0] sm:$0xf] %vm1006, %v4559
  %4688 = vst.msk [vmem:[#allocation3 + $0x3f4] sm:$0xf] %vm1006, %v4560
  %4689 = vst.msk [vmem:[#allocation3 + $0x3f8] sm:$0xf] %vm1006, %v4561
  %4690 = vst.msk [vmem:[#allocation3 + $0x3fc] sm:$0xf] %vm1006, %v4562
  %v4691 = vld [vmem:[#allocation3] sm:$0xf]
  %v4692 = vld [vmem:[#allocation3 + $0x4] sm:$0xf]
  %v4693 = vld [vmem:[#allocation3 + $0x8] sm:$0xf]
  %v4694 = vld [vmem:[#allocation3 + $0xc] sm:$0xf]
  %v4695 = vld [vmem:[#allocation3 + $0x10] sm:$0xf]
  %v4696 = vld [vmem:[#allocation3 + $0x14] sm:$0xf]
  %v4697 = vld [vmem:[#allocation3 + $0x18] sm:$0xf]
  %v4698 = vld [vmem:[#allocation3 + $0x1c] sm:$0xf]
  %v4699 = vld [vmem:[#allocation3 + $0x200] sm:$0xf]
  %v4700 = vld [vmem:[#allocation3 + $0x204] sm:$0xf]
  %v4701 = vld [vmem:[#allocation3 + $0x208] sm:$0xf]
  %v4702 = vld [vmem:[#allocation3 + $0x20c] sm:$0xf]
  %v4703 = vld [vmem:[#allocation3 + $0x210] sm:$0xf]
  %v4704 = vld [vmem:[#allocation3 + $0x214] sm:$0xf]
  %v4705 = vld [vmem:[#allocation3 + $0x218] sm:$0xf]
  %v4706 = vld [vmem:[#allocation3 + $0x21c] sm:$0xf]
  %v4715 = vunpack.c.l.b16 %v4691
  %v4716 = vunpack.c.l.b16 %v4692
  %v4717 = vunpack.c.l.b16 %v4693
  %v4718 = vunpack.c.l.b16 %v4694
  %v4719 = vunpack.c.l.b16 %v4695
  %v4720 = vunpack.c.l.b16 %v4696
  %v4721 = vunpack.c.l.b16 %v4697
  %v4722 = vunpack.c.l.b16 %v4698
  %v4723 = vpack.c.b16 %v4716, %v4715
  %v4724 = vpack.c.b16 %v4718, %v4717
  %v4725 = vpack.c.b16 %v4720, %v4719
  %v4726 = vpack.c.b16 %v4722, %v4721
  %v4735 = vunpack.c.l.b16 %v4699
  %v4736 = vunpack.c.l.b16 %v4700
  %v4737 = vunpack.c.l.b16 %v4701
  %v4738 = vunpack.c.l.b16 %v4702
  %v4739 = vunpack.c.l.b16 %v4703
  %v4740 = vunpack.c.l.b16 %v4704
  %v4741 = vunpack.c.l.b16 %v4705
  %v4742 = vunpack.c.l.b16 %v4706
  %v4743 = vpack.c.b16 %v4736, %v4735
  %v4744 = vpack.c.b16 %v4738, %v4737
  %v4745 = vpack.c.b16 %v4740, %v4739
  %v4746 = vpack.c.b16 %v4742, %v4741
  %v4747 = vld [vmem:[%s4] sm:$0xf]
  %v4748 = vld [vmem:[%s4 + $0x4] sm:$0xf]
  %v4749 = vld [vmem:[%s4 + $0x8] sm:$0xf]
  %v4750 = vld [vmem:[%s4 + $0xc] sm:$0xf]
  %v4751 = vld [vmem:[%s4 + $0x10] sm:$0xf]
  %v4752 = vld [vmem:[%s4 + $0x14] sm:$0xf]
  %v4753 = vld [vmem:[%s4 + $0x18] sm:$0xf]
  %v4754 = vld [vmem:[%s4 + $0x1c] sm:$0xf]
  %v4755 = vld [vmem:[#allocation3 + $0x20] sm:$0xf]
  %v4756 = vld [vmem:[#allocation3 + $0x24] sm:$0xf]
  %v4757 = vld [vmem:[#allocation3 + $0x28] sm:$0xf]
  %v4758 = vld [vmem:[#allocation3 + $0x2c] sm:$0xf]
  %v4759 = vld [vmem:[#allocation3 + $0x30] sm:$0xf]
  %v4760 = vld [vmem:[#allocation3 + $0x34] sm:$0xf]
  %v4761 = vld [vmem:[#allocation3 + $0x38] sm:$0xf]
  %v4762 = vld [vmem:[#allocation3 + $0x3c] sm:$0xf]
  %v4763 = vld [vmem:[#allocation3 + $0x220] sm:$0xf]
  %v4764 = vld [vmem:[#allocation3 + $0x224] sm:$0xf]
  %v4765 = vld [vmem:[#allocation3 + $0x228] sm:$0xf]
  %v4766 = vld [vmem:[#allocation3 + $0x22c] sm:$0xf]
  %v4767 = vld [vmem:[#allocation3 + $0x230] sm:$0xf]
  %v4768 = vld [vmem:[#allocation3 + $0x234] sm:$0xf]
  %v4769 = vld [vmem:[#allocation3 + $0x238] sm:$0xf]
  %v4770 = vld [vmem:[#allocation3 + $0x23c] sm:$0xf]
  %v4779 = vunpack.c.l.b16 %v4755
  %v4780 = vunpack.c.l.b16 %v4756
  %v4781 = vunpack.c.l.b16 %v4757
  %v4782 = vunpack.c.l.b16 %v4758
  %v4783 = vunpack.c.l.b16 %v4759
  %v4784 = vunpack.c.l.b16 %v4760
  %v4785 = vunpack.c.l.b16 %v4761
  %v4786 = vunpack.c.l.b16 %v4762
  %v4787 = vpack.c.b16 %v4780, %v4779
  %v4788 = vpack.c.b16 %v4782, %v4781
  %v4789 = vpack.c.b16 %v4784, %v4783
  %v4790 = vpack.c.b16 %v4786, %v4785
  %v4799 = vunpack.c.l.b16 %v4763
  %v4800 = vunpack.c.l.b16 %v4764
  %v4801 = vunpack.c.l.b16 %v4765
  %v4802 = vunpack.c.l.b16 %v4766
  %v4803 = vunpack.c.l.b16 %v4767
  %v4804 = vunpack.c.l.b16 %v4768
  %v4805 = vunpack.c.l.b16 %v4769
  %v4806 = vunpack.c.l.b16 %v4770
  %v4807 = vpack.c.b16 %v4800, %v4799
  %v4808 = vpack.c.b16 %v4802, %v4801
  %v4809 = vpack.c.b16 %v4804, %v4803
  %v4810 = vpack.c.b16 %v4806, %v4805
  %v4811 = vld [vmem:[%s4 + $0x20] sm:$0xf]
  %v4812 = vld [vmem:[%s4 + $0x24] sm:$0xf]
  %v4813 = vld [vmem:[%s4 + $0x28] sm:$0xf]
  %v4814 = vld [vmem:[%s4 + $0x2c] sm:$0xf]
  %v4815 = vld [vmem:[%s4 + $0x30] sm:$0xf]
  %v4816 = vld [vmem:[%s4 + $0x34] sm:$0xf]
  %v4817 = vld [vmem:[%s4 + $0x38] sm:$0xf]
  %v4818 = vld [vmem:[%s4 + $0x3c] sm:$0xf]
  %v4819 = vld [vmem:[#allocation3 + $0x40] sm:$0xf]
  %v4820 = vld [vmem:[#allocation3 + $0x44] sm:$0xf]
  %v4821 = vld [vmem:[#allocation3 + $0x48] sm:$0xf]
  %v4822 = vld [vmem:[#allocation3 + $0x4c] sm:$0xf]
  %v4823 = vld [vmem:[#allocation3 + $0x50] sm:$0xf]
  %v4824 = vld [vmem:[#allocation3 + $0x54] sm:$0xf]
  %v4825 = vld [vmem:[#allocation3 + $0x58] sm:$0xf]
  %v4826 = vld [vmem:[#allocation3 + $0x5c] sm:$0xf]
  %v4827 = vld [vmem:[#allocation3 + $0x240] sm:$0xf]
  %v4828 = vld [vmem:[#allocation3 + $0x244] sm:$0xf]
  %v4829 = vld [vmem:[#allocation3 + $0x248] sm:$0xf]
  %v4830 = vld [vmem:[#allocation3 + $0x24c] sm:$0xf]
  %v4831 = vld [vmem:[#allocation3 + $0x250] sm:$0xf]
  %v4832 = vld [vmem:[#allocation3 + $0x254] sm:$0xf]
  %v4833 = vld [vmem:[#allocation3 + $0x258] sm:$0xf]
  %v4834 = vld [vmem:[#allocation3 + $0x25c] sm:$0xf]
  %v4843 = vunpack.c.l.b16 %v4819
  %v4844 = vunpack.c.l.b16 %v4820
  %v4845 = vunpack.c.l.b16 %v4821
  %v4846 = vunpack.c.l.b16 %v4822
  %v4847 = vunpack.c.l.b16 %v4823
  %v4848 = vunpack.c.l.b16 %v4824
  %v4849 = vunpack.c.l.b16 %v4825
  %v4850 = vunpack.c.l.b16 %v4826
  %v4851 = vpack.c.b16 %v4844, %v4843
  %v4852 = vpack.c.b16 %v4846, %v4845
  %v4853 = vpack.c.b16 %v4848, %v4847
  %v4854 = vpack.c.b16 %v4850, %v4849
  %v4863 = vunpack.c.l.b16 %v4827
  %v4864 = vunpack.c.l.b16 %v4828
  %v4865 = vunpack.c.l.b16 %v4829
  %v4866 = vunpack.c.l.b16 %v4830
  %v4867 = vunpack.c.l.b16 %v4831
  %v4868 = vunpack.c.l.b16 %v4832
  %v4869 = vunpack.c.l.b16 %v4833
  %v4870 = vunpack.c.l.b16 %v4834
  %v4871 = vpack.c.b16 %v4864, %v4863
  %v4872 = vpack.c.b16 %v4866, %v4865
  %v4873 = vpack.c.b16 %v4868, %v4867
  %v4874 = vpack.c.b16 %v4870, %v4869
  %v4875 = vld [vmem:[%s4 + $0x40] sm:$0xf]
  %v4876 = vld [vmem:[%s4 + $0x44] sm:$0xf]
  %v4877 = vld [vmem:[%s4 + $0x48] sm:$0xf]
  %v4878 = vld [vmem:[%s4 + $0x4c] sm:$0xf]
  %v4879 = vld [vmem:[%s4 + $0x50] sm:$0xf]
  %v4880 = vld [vmem:[%s4 + $0x54] sm:$0xf]
  %v4881 = vld [vmem:[%s4 + $0x58] sm:$0xf]
  %v4882 = vld [vmem:[%s4 + $0x5c] sm:$0xf]
  %v4891 = vunpack.c.l.b16 %v4875
  %v4892 = vunpack.c.l.b16 %v4876
  %v4893 = vunpack.c.l.b16 %v4877
  %v4894 = vunpack.c.l.b16 %v4878
  %v4895 = vunpack.c.l.b16 %v4879
  %v4896 = vunpack.c.l.b16 %v4880
  %v4897 = vunpack.c.l.b16 %v4881
  %v4898 = vunpack.c.l.b16 %v4882
  %v4899 = vpack.c.b16 %v4892, %v4891
  %v4900 = vpack.c.b16 %v4894, %v4893
  %v4901 = vpack.c.b16 %v4896, %v4895
  %v4902 = vpack.c.b16 %v4898, %v4897
  %vm4907 = vcmask 523264
  %v4909 = vsel %vm4907, %v4851, 0
  %v4912 = vsel %vm4907, %v4852, 0
  %v4915 = vsel %vm4907, %v4853, 0
  %v4918 = vsel %vm4907, %v4854, 0
  %v4921 = vsel %vm4907, %v4871, 0
  %v4924 = vsel %vm4907, %v4872, 0
  %v4927 = vsel %vm4907, %v4873, 0
  %v4930 = vsel %vm4907, %v4874, 0
  %4932 = vmatpush.bf16.msra.mxu0 0
  %4933 = vmatpush.bf16.msra.mxu0 0
  %4934 = vmatpush.bf16.msra.mxu0 0
  %4935 = vmatpush.bf16.msra.mxu0 0
  %4936 = vmatpush.bf16.msra.mxu0 %v4902
  %4937 = vmatpush.bf16.msra.mxu0 %v4901
  %4938 = vmatpush.bf16.msra.mxu0 %v4900
  %4939 = vmatpush.bf16.msra.mxu0 %v4899
  %4940 = vmatmul.bf16.gmra.mxu0 %v4909
  %v4941 = vpop.f32.mrf.mxu0
  %v4942 = vadd.f32 0.0, %v4941
  %v4943 = vpop.f32.mrf.mxu0
  %v4944 = vadd.f32 0.0, %v4943
  %4945 = vmatmul.bf16.gmra.mxu0 %v4912
  %v4946 = vpop.f32.mrf.mxu0
  %v4947 = vadd.f32 0.0, %v4946
  %v4948 = vpop.f32.mrf.mxu0
  %v4949 = vadd.f32 0.0, %v4948
  %4950 = vmatmul.bf16.gmra.mxu0 %v4915
  %v4951 = vpop.f32.mrf.mxu0
  %v4952 = vadd.f32 0.0, %v4951
  %v4953 = vpop.f32.mrf.mxu0
  %v4954 = vadd.f32 0.0, %v4953
  %4955 = vmatmul.bf16.gmra.mxu0 %v4918
  %v4956 = vpop.f32.mrf.mxu0
  %v4957 = vadd.f32 0.0, %v4956
  %v4958 = vpop.f32.mrf.mxu0
  %v4959 = vadd.f32 0.0, %v4958
  %4960 = vmatmul.bf16.gmra.mxu0 %v4921
  %v4961 = vpop.f32.mrf.mxu0
  %v4962 = vadd.f32 0.0, %v4961
  %v4963 = vpop.f32.mrf.mxu0
  %v4964 = vadd.f32 0.0, %v4963
  %4965 = vmatmul.bf16.gmra.mxu0 %v4924
  %v4966 = vpop.f32.mrf.mxu0
  %v4967 = vadd.f32 0.0, %v4966
  %v4968 = vpop.f32.mrf.mxu0
  %v4969 = vadd.f32 0.0, %v4968
  %4970 = vmatmul.bf16.gmra.mxu0 %v4927
  %v4971 = vpop.f32.mrf.mxu0
  %v4972 = vadd.f32 0.0, %v4971
  %v4973 = vpop.f32.mrf.mxu0
  %v4974 = vadd.f32 0.0, %v4973
  %4975 = vmatmul.bf16.gmra.mxu0 %v4930
  %v4976 = vpop.f32.mrf.mxu0
  %v4977 = vadd.f32 0.0, %v4976
  %v4978 = vpop.f32.mrf.mxu0
  %v4979 = vadd.f32 0.0, %v4978
  %4980 = vdwg.mxu0
  %v4989 = vunpack.c.l.b16 %v4747
  %v4990 = vunpack.c.l.b16 %v4748
  %v4991 = vunpack.c.l.b16 %v4749
  %v4992 = vunpack.c.l.b16 %v4750
  %v4993 = vunpack.c.l.b16 %v4751
  %v4994 = vunpack.c.l.b16 %v4752
  %v4995 = vunpack.c.l.b16 %v4753
  %v4996 = vunpack.c.l.b16 %v4754
  %v4997 = vpack.c.b16 %v4990, %v4989
  %v4998 = vpack.c.b16 %v4992, %v4991
  %v4999 = vpack.c.b16 %v4994, %v4993
  %v5000 = vpack.c.b16 %v4996, %v4995
  %v5006 = vsel %vm4907, %v4723, 0
  %v5009 = vsel %vm4907, %v4724, 0
  %v5012 = vsel %vm4907, %v4725, 0
  %v5015 = vsel %vm4907, %v4726, 0
  %v5018 = vsel %vm4907, %v4743, 0
  %v5021 = vsel %vm4907, %v4744, 0
  %v5024 = vsel %vm4907, %v4745, 0
  %v5027 = vsel %vm4907, %v4746, 0
  %5029 = vmatpush.bf16.msra.mxu0 0
  %5030 = vmatpush.bf16.msra.mxu0 0
  %5031 = vmatpush.bf16.msra.mxu0 0
  %5032 = vmatpush.bf16.msra.mxu0 0
  %5033 = vmatpush.bf16.msra.mxu0 %v5000
  %5034 = vmatpush.bf16.msra.mxu0 %v4999
  %5035 = vmatpush.bf16.msra.mxu0 %v4998
  %5036 = vmatpush.bf16.msra.mxu0 %v4997
  %5037 = vmatmul.bf16.gmra.mxu0 %v5006
  %v5038 = vpop.f32.mrf.mxu0
  %v5039 = vadd.f32 %v4942, %v5038
  %v5040 = vpop.f32.mrf.mxu0
  %v5041 = vadd.f32 %v4944, %v5040
  %5042 = vmatmul.bf16.gmra.mxu0 %v5009
  %v5043 = vpop.f32.mrf.mxu0
  %v5044 = vadd.f32 %v4947, %v5043
  %v5045 = vpop.f32.mrf.mxu0
  %v5046 = vadd.f32 %v4949, %v5045
  %5047 = vmatmul.bf16.gmra.mxu0 %v5012
  %v5048 = vpop.f32.mrf.mxu0
  %v5049 = vadd.f32 %v4952, %v5048
  %v5050 = vpop.f32.mrf.mxu0
  %v5051 = vadd.f32 %v4954, %v5050
  %5052 = vmatmul.bf16.gmra.mxu0 %v5015
  %v5053 = vpop.f32.mrf.mxu0
  %v5054 = vadd.f32 %v4957, %v5053
  %v5055 = vpop.f32.mrf.mxu0
  %v5056 = vadd.f32 %v4959, %v5055
  %5057 = vmatmul.bf16.gmra.mxu0 %v5018
  %v5058 = vpop.f32.mrf.mxu0
  %v5059 = vadd.f32 %v4962, %v5058
  %v5060 = vpop.f32.mrf.mxu0
  %v5061 = vadd.f32 %v4964, %v5060
  %5062 = vmatmul.bf16.gmra.mxu0 %v5021
  %v5063 = vpop.f32.mrf.mxu0
  %v5064 = vadd.f32 %v4967, %v5063
  %v5065 = vpop.f32.mrf.mxu0
  %v5066 = vadd.f32 %v4969, %v5065
  %5067 = vmatmul.bf16.gmra.mxu0 %v5024
  %v5068 = vpop.f32.mrf.mxu0
  %v5069 = vadd.f32 %v4972, %v5068
  %v5070 = vpop.f32.mrf.mxu0
  %v5071 = vadd.f32 %v4974, %v5070
  %5072 = vmatmul.bf16.gmra.mxu0 %v5027
  %v5073 = vpop.f32.mrf.mxu0
  %v5074 = vadd.f32 %v4977, %v5073
  %v5075 = vpop.f32.mrf.mxu0
  %v5076 = vadd.f32 %v4979, %v5075
  %5077 = vdwg.mxu0
  %v5078 = vld [vmem:[#allocation3 + $0x60] sm:$0xf]
  %v5079 = vld [vmem:[#allocation3 + $0x64] sm:$0xf]
  %v5080 = vld [vmem:[#allocation3 + $0x68] sm:$0xf]
  %v5081 = vld [vmem:[#allocation3 + $0x6c] sm:$0xf]
  %v5082 = vld [vmem:[#allocation3 + $0x70] sm:$0xf]
  %v5083 = vld [vmem:[#allocation3 + $0x74] sm:$0xf]
  %v5084 = vld [vmem:[#allocation3 + $0x78] sm:$0xf]
  %v5085 = vld [vmem:[#allocation3 + $0x7c] sm:$0xf]
  %v5086 = vld [vmem:[#allocation3 + $0x260] sm:$0xf]
  %v5087 = vld [vmem:[#allocation3 + $0x264] sm:$0xf]
  %v5088 = vld [vmem:[#allocation3 + $0x268] sm:$0xf]
  %v5089 = vld [vmem:[#allocation3 + $0x26c] sm:$0xf]
  %v5090 = vld [vmem:[#allocation3 + $0x270] sm:$0xf]
  %v5091 = vld [vmem:[#allocation3 + $0x274] sm:$0xf]
  %v5092 = vld [vmem:[#allocation3 + $0x278] sm:$0xf]
  %v5093 = vld [vmem:[#allocation3 + $0x27c] sm:$0xf]
  %v5102 = vunpack.c.l.b16 %v5078
  %v5103 = vunpack.c.l.b16 %v5079
  %v5104 = vunpack.c.l.b16 %v5080
  %v5105 = vunpack.c.l.b16 %v5081
  %v5106 = vunpack.c.l.b16 %v5082
  %v5107 = vunpack.c.l.b16 %v5083
  %v5108 = vunpack.c.l.b16 %v5084
  %v5109 = vunpack.c.l.b16 %v5085
  %v5110 = vpack.c.b16 %v5103, %v5102
  %v5111 = vpack.c.b16 %v5105, %v5104
  %v5112 = vpack.c.b16 %v5107, %v5106
  %v5113 = vpack.c.b16 %v5109, %v5108
  %v5122 = vunpack.c.l.b16 %v5086
  %v5123 = vunpack.c.l.b16 %v5087
  %v5124 = vunpack.c.l.b16 %v5088
  %v5125 = vunpack.c.l.b16 %v5089
  %v5126 = vunpack.c.l.b16 %v5090
  %v5127 = vunpack.c.l.b16 %v5091
  %v5128 = vunpack.c.l.b16 %v5092
  %v5129 = vunpack.c.l.b16 %v5093
  %v5130 = vpack.c.b16 %v5123, %v5122
  %v5131 = vpack.c.b16 %v5125, %v5124
  %v5132 = vpack.c.b16 %v5127, %v5126
  %v5133 = vpack.c.b16 %v5129, %v5128
  %v5134 = vld [vmem:[%s4 + $0x60] sm:$0xf]
  %v5135 = vld [vmem:[%s4 + $0x64] sm:$0xf]
  %v5136 = vld [vmem:[%s4 + $0x68] sm:$0xf]
  %v5137 = vld [vmem:[%s4 + $0x6c] sm:$0xf]
  %v5138 = vld [vmem:[%s4 + $0x70] sm:$0xf]
  %v5139 = vld [vmem:[%s4 + $0x74] sm:$0xf]
  %v5140 = vld [vmem:[%s4 + $0x78] sm:$0xf]
  %v5141 = vld [vmem:[%s4 + $0x7c] sm:$0xf]
  %v5150 = vunpack.c.l.b16 %v5134
  %v5151 = vunpack.c.l.b16 %v5135
  %v5152 = vunpack.c.l.b16 %v5136
  %v5153 = vunpack.c.l.b16 %v5137
  %v5154 = vunpack.c.l.b16 %v5138
  %v5155 = vunpack.c.l.b16 %v5139
  %v5156 = vunpack.c.l.b16 %v5140
  %v5157 = vunpack.c.l.b16 %v5141
  %v5158 = vpack.c.b16 %v5151, %v5150
  %v5159 = vpack.c.b16 %v5153, %v5152
  %v5160 = vpack.c.b16 %v5155, %v5154
  %v5161 = vpack.c.b16 %v5157, %v5156
  %v5167 = vsel %vm4907, %v5110, 0
  %v5170 = vsel %vm4907, %v5111, 0
  %v5173 = vsel %vm4907, %v5112, 0
  %v5176 = vsel %vm4907, %v5113, 0
  %v5179 = vsel %vm4907, %v5130, 0
  %v5182 = vsel %vm4907, %v5131, 0
  %v5185 = vsel %vm4907, %v5132, 0
  %v5188 = vsel %vm4907, %v5133, 0
  %5190 = vmatpush.bf16.msra.mxu0 0
  %5191 = vmatpush.bf16.msra.mxu0 0
  %5192 = vmatpush.bf16.msra.mxu0 0
  %5193 = vmatpush.bf16.msra.mxu0 0
  %5194 = vmatpush.bf16.msra.mxu0 %v5161
  %5195 = vmatpush.bf16.msra.mxu0 %v5160
  %5196 = vmatpush.bf16.msra.mxu0 %v5159
  %5197 = vmatpush.bf16.msra.mxu0 %v5158
  %5198 = vmatmul.bf16.gmra.mxu0 %v5167
  %v5199 = vpop.f32.mrf.mxu0
  %v5200 = vadd.f32 0.0, %v5199
  %v5201 = vpop.f32.mrf.mxu0
  %v5202 = vadd.f32 0.0, %v5201
  %5203 = vmatmul.bf16.gmra.mxu0 %v5170
  %v5204 = vpop.f32.mrf.mxu0
  %v5205 = vadd.f32 0.0, %v5204
  %v5206 = vpop.f32.mrf.mxu0
  %v5207 = vadd.f32 0.0, %v5206
  %5208 = vmatmul.bf16.gmra.mxu0 %v5173
  %v5209 = vpop.f32.mrf.mxu0
  %v5210 = vadd.f32 0.0, %v5209
  %v5211 = vpop.f32.mrf.mxu0
  %v5212 = vadd.f32 0.0, %v5211
  %5213 = vmatmul.bf16.gmra.mxu0 %v5176
  %v5214 = vpop.f32.mrf.mxu0
  %v5215 = vadd.f32 0.0, %v5214
  %v5216 = vpop.f32.mrf.mxu0
  %v5217 = vadd.f32 0.0, %v5216
  %5218 = vmatmul.bf16.gmra.mxu0 %v5179
  %v5219 = vpop.f32.mrf.mxu0
  %v5220 = vadd.f32 0.0, %v5219
  %v5221 = vpop.f32.mrf.mxu0
  %v5222 = vadd.f32 0.0, %v5221
  %5223 = vmatmul.bf16.gmra.mxu0 %v5182
  %v5224 = vpop.f32.mrf.mxu0
  %v5225 = vadd.f32 0.0, %v5224
  %v5226 = vpop.f32.mrf.mxu0
  %v5227 = vadd.f32 0.0, %v5226
  %5228 = vmatmul.bf16.gmra.mxu0 %v5185
  %v5229 = vpop.f32.mrf.mxu0
  %v5230 = vadd.f32 0.0, %v5229
  %v5231 = vpop.f32.mrf.mxu0
  %v5232 = vadd.f32 0.0, %v5231
  %5233 = vmatmul.bf16.gmra.mxu0 %v5188
  %v5234 = vpop.f32.mrf.mxu0
  %v5235 = vadd.f32 0.0, %v5234
  %v5236 = vpop.f32.mrf.mxu0
  %v5237 = vadd.f32 0.0, %v5236
  %5238 = vdwg.mxu0
  %v5247 = vunpack.c.l.b16 %v4811
  %v5248 = vunpack.c.l.b16 %v4812
  %v5249 = vunpack.c.l.b16 %v4813
  %v5250 = vunpack.c.l.b16 %v4814
  %v5251 = vunpack.c.l.b16 %v4815
  %v5252 = vunpack.c.l.b16 %v4816
  %v5253 = vunpack.c.l.b16 %v4817
  %v5254 = vunpack.c.l.b16 %v4818
  %v5255 = vpack.c.b16 %v5248, %v5247
  %v5256 = vpack.c.b16 %v5250, %v5249
  %v5257 = vpack.c.b16 %v5252, %v5251
  %v5258 = vpack.c.b16 %v5254, %v5253
  %v5264 = vsel %vm4907, %v4787, 0
  %v5267 = vsel %vm4907, %v4788, 0
  %v5270 = vsel %vm4907, %v4789, 0
  %v5273 = vsel %vm4907, %v4790, 0
  %v5276 = vsel %vm4907, %v4807, 0
  %v5279 = vsel %vm4907, %v4808, 0
  %v5282 = vsel %vm4907, %v4809, 0
  %v5285 = vsel %vm4907, %v4810, 0
  %5287 = vmatpush.bf16.msra.mxu0 0
  %5288 = vmatpush.bf16.msra.mxu0 0
  %5289 = vmatpush.bf16.msra.mxu0 0
  %5290 = vmatpush.bf16.msra.mxu0 0
  %5291 = vmatpush.bf16.msra.mxu0 %v5258
  %5292 = vmatpush.bf16.msra.mxu0 %v5257
  %5293 = vmatpush.bf16.msra.mxu0 %v5256
  %5294 = vmatpush.bf16.msra.mxu0 %v5255
  %5295 = vmatmul.bf16.gmra.mxu0 %v5264
  %v5296 = vpop.f32.mrf.mxu0
  %v5297 = vadd.f32 %v5200, %v5296
  %v5298 = vpop.f32.mrf.mxu0
  %v5299 = vadd.f32 %v5202, %v5298
  %5300 = vmatmul.bf16.gmra.mxu0 %v5267
  %v5301 = vpop.f32.mrf.mxu0
  %v5302 = vadd.f32 %v5205, %v5301
  %v5303 = vpop.f32.mrf.mxu0
  %v5304 = vadd.f32 %v5207, %v5303
  %5305 = vmatmul.bf16.gmra.mxu0 %v5270
  %v5306 = vpop.f32.mrf.mxu0
  %v5307 = vadd.f32 %v5210, %v5306
  %v5308 = vpop.f32.mrf.mxu0
  %v5309 = vadd.f32 %v5212, %v5308
  %5310 = vmatmul.bf16.gmra.mxu0 %v5273
  %v5311 = vpop.f32.mrf.mxu0
  %v5312 = vadd.f32 %v5215, %v5311
  %v5313 = vpop.f32.mrf.mxu0
  %v5314 = vadd.f32 %v5217, %v5313
  %5315 = vmatmul.bf16.gmra.mxu0 %v5276
  %v5316 = vpop.f32.mrf.mxu0
  %v5317 = vadd.f32 %v5220, %v5316
  %v5318 = vpop.f32.mrf.mxu0
  %v5319 = vadd.f32 %v5222, %v5318
  %5320 = vmatmul.bf16.gmra.mxu0 %v5279
  %v5321 = vpop.f32.mrf.mxu0
  %v5322 = vadd.f32 %v5225, %v5321
  %v5323 = vpop.f32.mrf.mxu0
  %v5324 = vadd.f32 %v5227, %v5323
  %5325 = vmatmul.bf16.gmra.mxu0 %v5282
  %v5326 = vpop.f32.mrf.mxu0
  %v5327 = vadd.f32 %v5230, %v5326
  %v5328 = vpop.f32.mrf.mxu0
  %v5329 = vadd.f32 %v5232, %v5328
  %5330 = vmatmul.bf16.gmra.mxu0 %v5285
  %v5331 = vpop.f32.mrf.mxu0
  %v5332 = vadd.f32 %v5235, %v5331
  %v5333 = vpop.f32.mrf.mxu0
  %v5334 = vadd.f32 %v5237, %v5333
  %5335 = vdwg.mxu0
  %v5336 = vld [vmem:[#allocation3 + $0x80] sm:$0xf]
  %v5337 = vld [vmem:[#allocation3 + $0x84] sm:$0xf]
  %v5338 = vld [vmem:[#allocation3 + $0x88] sm:$0xf]
  %v5339 = vld [vmem:[#allocation3 + $0x8c] sm:$0xf]
  %v5340 = vld [vmem:[#allocation3 + $0x90] sm:$0xf]
  %v5341 = vld [vmem:[#allocation3 + $0x94] sm:$0xf]
  %v5342 = vld [vmem:[#allocation3 + $0x98] sm:$0xf]
  %v5343 = vld [vmem:[#allocation3 + $0x9c] sm:$0xf]
  %v5344 = vld [vmem:[#allocation3 + $0x280] sm:$0xf]
  %v5345 = vld [vmem:[#allocation3 + $0x284] sm:$0xf]
  %v5346 = vld [vmem:[#allocation3 + $0x288] sm:$0xf]
  %v5347 = vld [vmem:[#allocation3 + $0x28c] sm:$0xf]
  %v5348 = vld [vmem:[#allocation3 + $0x290] sm:$0xf]
  %v5349 = vld [vmem:[#allocation3 + $0x294] sm:$0xf]
  %v5350 = vld [vmem:[#allocation3 + $0x298] sm:$0xf]
  %v5351 = vld [vmem:[#allocation3 + $0x29c] sm:$0xf]
  %v5360 = vunpack.c.l.b16 %v5336
  %v5361 = vunpack.c.l.b16 %v5337
  %v5362 = vunpack.c.l.b16 %v5338
  %v5363 = vunpack.c.l.b16 %v5339
  %v5364 = vunpack.c.l.b16 %v5340
  %v5365 = vunpack.c.l.b16 %v5341
  %v5366 = vunpack.c.l.b16 %v5342
  %v5367 = vunpack.c.l.b16 %v5343
  %v5368 = vpack.c.b16 %v5361, %v5360
  %v5369 = vpack.c.b16 %v5363, %v5362
  %v5370 = vpack.c.b16 %v5365, %v5364
  %v5371 = vpack.c.b16 %v5367, %v5366
  %v5380 = vunpack.c.l.b16 %v5344
  %v5381 = vunpack.c.l.b16 %v5345
  %v5382 = vunpack.c.l.b16 %v5346
  %v5383 = vunpack.c.l.b16 %v5347
  %v5384 = vunpack.c.l.b16 %v5348
  %v5385 = vunpack.c.l.b16 %v5349
  %v5386 = vunpack.c.l.b16 %v5350
  %v5387 = vunpack.c.l.b16 %v5351
  %v5388 = vpack.c.b16 %v5381, %v5380
  %v5389 = vpack.c.b16 %v5383, %v5382
  %v5390 = vpack.c.b16 %v5385, %v5384
  %v5391 = vpack.c.b16 %v5387, %v5386
  %v5392 = vld [vmem:[%s4 + $0x80] sm:$0xf]
  %v5393 = vld [vmem:[%s4 + $0x84] sm:$0xf]
  %v5394 = vld [vmem:[%s4 + $0x88] sm:$0xf]
  %v5395 = vld [vmem:[%s4 + $0x8c] sm:$0xf]
  %v5396 = vld [vmem:[%s4 + $0x90] sm:$0xf]
  %v5397 = vld [vmem:[%s4 + $0x94] sm:$0xf]
  %v5398 = vld [vmem:[%s4 + $0x98] sm:$0xf]
  %v5399 = vld [vmem:[%s4 + $0x9c] sm:$0xf]
  %v5408 = vunpack.c.l.b16 %v5392
  %v5409 = vunpack.c.l.b16 %v5393
  %v5410 = vunpack.c.l.b16 %v5394
  %v5411 = vunpack.c.l.b16 %v5395
  %v5412 = vunpack.c.l.b16 %v5396
  %v5413 = vunpack.c.l.b16 %v5397
  %v5414 = vunpack.c.l.b16 %v5398
  %v5415 = vunpack.c.l.b16 %v5399
  %v5416 = vpack.c.b16 %v5409, %v5408
  %v5417 = vpack.c.b16 %v5411, %v5410
  %v5418 = vpack.c.b16 %v5413, %v5412
  %v5419 = vpack.c.b16 %v5415, %v5414
  %v5425 = vsel %vm4907, %v5368, 0
  %v5428 = vsel %vm4907, %v5369, 0
  %v5431 = vsel %vm4907, %v5370, 0
  %v5434 = vsel %vm4907, %v5371, 0
  %v5437 = vsel %vm4907, %v5388, 0
  %v5440 = vsel %vm4907, %v5389, 0
  %v5443 = vsel %vm4907, %v5390, 0
  %v5446 = vsel %vm4907, %v5391, 0
  %5448 = vmatpush.bf16.msra.mxu0 0
  %5449 = vmatpush.bf16.msra.mxu0 0
  %5450 = vmatpush.bf16.msra.mxu0 0
  %5451 = vmatpush.bf16.msra.mxu0 0
  %5452 = vmatpush.bf16.msra.mxu0 %v5419
  %5453 = vmatpush.bf16.msra.mxu0 %v5418
  %5454 = vmatpush.bf16.msra.mxu0 %v5417
  %5455 = vmatpush.bf16.msra.mxu0 %v5416
  %5456 = vmatmul.bf16.gmra.mxu0 %v5425
  %v5457 = vpop.f32.mrf.mxu0
  %v5458 = vadd.f32 0.0, %v5457
  %v5459 = vpop.f32.mrf.mxu0
  %v5460 = vadd.f32 0.0, %v5459
  %5461 = vmatmul.bf16.gmra.mxu0 %v5428
  %v5462 = vpop.f32.mrf.mxu0
  %v5463 = vadd.f32 0.0, %v5462
  %v5464 = vpop.f32.mrf.mxu0
  %v5465 = vadd.f32 0.0, %v5464
  %5466 = vmatmul.bf16.gmra.mxu0 %v5431
  %v5467 = vpop.f32.mrf.mxu0
  %v5468 = vadd.f32 0.0, %v5467
  %v5469 = vpop.f32.mrf.mxu0
  %v5470 = vadd.f32 0.0, %v5469
  %5471 = vmatmul.bf16.gmra.mxu0 %v5434
  %v5472 = vpop.f32.mrf.mxu0
  %v5473 = vadd.f32 0.0, %v5472
  %v5474 = vpop.f32.mrf.mxu0
  %v5475 = vadd.f32 0.0, %v5474
  %5476 = vmatmul.bf16.gmra.mxu0 %v5437
  %v5477 = vpop.f32.mrf.mxu0
  %v5478 = vadd.f32 0.0, %v5477
  %v5479 = vpop.f32.mrf.mxu0
  %v5480 = vadd.f32 0.0, %v5479
  %5481 = vmatmul.bf16.gmra.mxu0 %v5440
  %v5482 = vpop.f32.mrf.mxu0
  %v5483 = vadd.f32 0.0, %v5482
  %v5484 = vpop.f32.mrf.mxu0
  %v5485 = vadd.f32 0.0, %v5484
  %5486 = vmatmul.bf16.gmra.mxu0 %v5443
  %v5487 = vpop.f32.mrf.mxu0
  %v5488 = vadd.f32 0.0, %v5487
  %v5489 = vpop.f32.mrf.mxu0
  %v5490 = vadd.f32 0.0, %v5489
  %5491 = vmatmul.bf16.gmra.mxu0 %v5446
  %v5492 = vpop.f32.mrf.mxu0
  %v5493 = vadd.f32 0.0, %v5492
  %v5494 = vpop.f32.mrf.mxu0
  %v5495 = vadd.f32 0.0, %v5494
  %5496 = vdwg.mxu0
  %v5497 = vadd.f32 %v5039, %v5458
  %v5498 = vadd.f32 %v5041, %v5460
  %v5499 = vadd.f32 %v5044, %v5463
  %v5500 = vadd.f32 %v5046, %v5465
  %v5501 = vadd.f32 %v5049, %v5468
  %v5502 = vadd.f32 %v5051, %v5470
  %v5503 = vadd.f32 %v5054, %v5473
  %v5504 = vadd.f32 %v5056, %v5475
  %v5505 = vadd.f32 %v5059, %v5478
  %v5506 = vadd.f32 %v5061, %v5480
  %v5507 = vadd.f32 %v5064, %v5483
  %v5508 = vadd.f32 %v5066, %v5485
  %v5509 = vadd.f32 %v5069, %v5488
  %v5510 = vadd.f32 %v5071, %v5490
  %v5511 = vadd.f32 %v5074, %v5493
  %v5512 = vadd.f32 %v5076, %v5495
  %v5513 = vld [vmem:[#allocation3 + $0xa0] sm:$0xf]
  %v5514 = vld [vmem:[#allocation3 + $0xa4] sm:$0xf]
  %v5515 = vld [vmem:[#allocation3 + $0xa8] sm:$0xf]
  %v5516 = vld [vmem:[#allocation3 + $0xac] sm:$0xf]
  %v5517 = vld [vmem:[#allocation3 + $0xb0] sm:$0xf]
  %v5518 = vld [vmem:[#allocation3 + $0xb4] sm:$0xf]
  %v5519 = vld [vmem:[#allocation3 + $0xb8] sm:$0xf]
  %v5520 = vld [vmem:[#allocation3 + $0xbc] sm:$0xf]
  %v5521 = vld [vmem:[#allocation3 + $0x2a0] sm:$0xf]
  %v5522 = vld [vmem:[#allocation3 + $0x2a4] sm:$0xf]
  %v5523 = vld [vmem:[#allocation3 + $0x2a8] sm:$0xf]
  %v5524 = vld [vmem:[#allocation3 + $0x2ac] sm:$0xf]
  %v5525 = vld [vmem:[#allocation3 + $0x2b0] sm:$0xf]
  %v5526 = vld [vmem:[#allocation3 + $0x2b4] sm:$0xf]
  %v5527 = vld [vmem:[#allocation3 + $0x2b8] sm:$0xf]
  %v5528 = vld [vmem:[#allocation3 + $0x2bc] sm:$0xf]
  %v5537 = vunpack.c.l.b16 %v5513
  %v5538 = vunpack.c.l.b16 %v5514
  %v5539 = vunpack.c.l.b16 %v5515
  %v5540 = vunpack.c.l.b16 %v5516
  %v5541 = vunpack.c.l.b16 %v5517
  %v5542 = vunpack.c.l.b16 %v5518
  %v5543 = vunpack.c.l.b16 %v5519
  %v5544 = vunpack.c.l.b16 %v5520
  %v5545 = vpack.c.b16 %v5538, %v5537
  %v5546 = vpack.c.b16 %v5540, %v5539
  %v5547 = vpack.c.b16 %v5542, %v5541
  %v5548 = vpack.c.b16 %v5544, %v5543
  %v5557 = vunpack.c.l.b16 %v5521
  %v5558 = vunpack.c.l.b16 %v5522
  %v5559 = vunpack.c.l.b16 %v5523
  %v5560 = vunpack.c.l.b16 %v5524
  %v5561 = vunpack.c.l.b16 %v5525
  %v5562 = vunpack.c.l.b16 %v5526
  %v5563 = vunpack.c.l.b16 %v5527
  %v5564 = vunpack.c.l.b16 %v5528
  %v5565 = vpack.c.b16 %v5558, %v5557
  %v5566 = vpack.c.b16 %v5560, %v5559
  %v5567 = vpack.c.b16 %v5562, %v5561
  %v5568 = vpack.c.b16 %v5564, %v5563
  %v5569 = vld [vmem:[%s4 + $0xa0] sm:$0xf]
  %v5570 = vld [vmem:[%s4 + $0xa4] sm:$0xf]
  %v5571 = vld [vmem:[%s4 + $0xa8] sm:$0xf]
  %v5572 = vld [vmem:[%s4 + $0xac] sm:$0xf]
  %v5573 = vld [vmem:[%s4 + $0xb0] sm:$0xf]
  %v5574 = vld [vmem:[%s4 + $0xb4] sm:$0xf]
  %v5575 = vld [vmem:[%s4 + $0xb8] sm:$0xf]
  %v5576 = vld [vmem:[%s4 + $0xbc] sm:$0xf]
  %v5585 = vunpack.c.l.b16 %v5569
  %v5586 = vunpack.c.l.b16 %v5570
  %v5587 = vunpack.c.l.b16 %v5571
  %v5588 = vunpack.c.l.b16 %v5572
  %v5589 = vunpack.c.l.b16 %v5573
  %v5590 = vunpack.c.l.b16 %v5574
  %v5591 = vunpack.c.l.b16 %v5575
  %v5592 = vunpack.c.l.b16 %v5576
  %v5593 = vpack.c.b16 %v5586, %v5585
  %v5594 = vpack.c.b16 %v5588, %v5587
  %v5595 = vpack.c.b16 %v5590, %v5589
  %v5596 = vpack.c.b16 %v5592, %v5591
  %v5602 = vsel %vm4907, %v5545, 0
  %v5605 = vsel %vm4907, %v5546, 0
  %v5608 = vsel %vm4907, %v5547, 0
  %v5611 = vsel %vm4907, %v5548, 0
  %v5614 = vsel %vm4907, %v5565, 0
  %v5617 = vsel %vm4907, %v5566, 0
  %v5620 = vsel %vm4907, %v5567, 0
  %v5623 = vsel %vm4907, %v5568, 0
  %5625 = vmatpush.bf16.msra.mxu0 0
  %5626 = vmatpush.bf16.msra.mxu0 0
  %5627 = vmatpush.bf16.msra.mxu0 0
  %5628 = vmatpush.bf16.msra.mxu0 0
  %5629 = vmatpush.bf16.msra.mxu0 %v5596
  %5630 = vmatpush.bf16.msra.mxu0 %v5595
  %5631 = vmatpush.bf16.msra.mxu0 %v5594
  %5632 = vmatpush.bf16.msra.mxu0 %v5593
  %5633 = vmatmul.bf16.gmra.mxu0 %v5602
  %v5634 = vpop.f32.mrf.mxu0
  %v5635 = vadd.f32 0.0, %v5634
  %v5636 = vpop.f32.mrf.mxu0
  %v5637 = vadd.f32 0.0, %v5636
  %5638 = vmatmul.bf16.gmra.mxu0 %v5605
  %v5639 = vpop.f32.mrf.mxu0
  %v5640 = vadd.f32 0.0, %v5639
  %v5641 = vpop.f32.mrf.mxu0
  %v5642 = vadd.f32 0.0, %v5641
  %5643 = vmatmul.bf16.gmra.mxu0 %v5608
  %v5644 = vpop.f32.mrf.mxu0
  %v5645 = vadd.f32 0.0, %v5644
  %v5646 = vpop.f32.mrf.mxu0
  %v5647 = vadd.f32 0.0, %v5646
  %5648 = vmatmul.bf16.gmra.mxu0 %v5611
  %v5649 = vpop.f32.mrf.mxu0
  %v5650 = vadd.f32 0.0, %v5649
  %v5651 = vpop.f32.mrf.mxu0
  %v5652 = vadd.f32 0.0, %v5651
  %5653 = vmatmul.bf16.gmra.mxu0 %v5614
  %v5654 = vpop.f32.mrf.mxu0
  %v5655 = vadd.f32 0.0, %v5654
  %v5656 = vpop.f32.mrf.mxu0
  %v5657 = vadd.f32 0.0, %v5656
  %5658 = vmatmul.bf16.gmra.mxu0 %v5617
  %v5659 = vpop.f32.mrf.mxu0
  %v5660 = vadd.f32 0.0, %v5659
  %v5661 = vpop.f32.mrf.mxu0
  %v5662 = vadd.f32 0.0, %v5661
  %5663 = vmatmul.bf16.gmra.mxu0 %v5620
  %v5664 = vpop.f32.mrf.mxu0
  %v5665 = vadd.f32 0.0, %v5664
  %v5666 = vpop.f32.mrf.mxu0
  %v5667 = vadd.f32 0.0, %v5666
  %5668 = vmatmul.bf16.gmra.mxu0 %v5623
  %v5669 = vpop.f32.mrf.mxu0
  %v5670 = vadd.f32 0.0, %v5669
  %v5671 = vpop.f32.mrf.mxu0
  %v5672 = vadd.f32 0.0, %v5671
  %5673 = vdwg.mxu0
  %v5674 = vadd.f32 %v5297, %v5635
  %v5675 = vadd.f32 %v5299, %v5637
  %v5676 = vadd.f32 %v5302, %v5640
  %v5677 = vadd.f32 %v5304, %v5642
  %v5678 = vadd.f32 %v5307, %v5645
  %v5679 = vadd.f32 %v5309, %v5647
  %v5680 = vadd.f32 %v5312, %v5650
  %v5681 = vadd.f32 %v5314, %v5652
  %v5682 = vadd.f32 %v5317, %v5655
  %v5683 = vadd.f32 %v5319, %v5657
  %v5684 = vadd.f32 %v5322, %v5660
  %v5685 = vadd.f32 %v5324, %v5662
  %v5686 = vadd.f32 %v5327, %v5665
  %v5687 = vadd.f32 %v5329, %v5667
  %v5688 = vadd.f32 %v5332, %v5670
  %v5689 = vadd.f32 %v5334, %v5672
  %v5690 = vld [vmem:[#allocation3 + $0xc0] sm:$0xf]
  %v5691 = vld [vmem:[#allocation3 + $0xc4] sm:$0xf]
  %v5692 = vld [vmem:[#allocation3 + $0xc8] sm:$0xf]
  %v5693 = vld [vmem:[#allocation3 + $0xcc] sm:$0xf]
  %v5694 = vld [vmem:[#allocation3 + $0xd0] sm:$0xf]
  %v5695 = vld [vmem:[#allocation3 + $0xd4] sm:$0xf]
  %v5696 = vld [vmem:[#allocation3 + $0xd8] sm:$0xf]
  %v5697 = vld [vmem:[#allocation3 + $0xdc] sm:$0xf]
  %v5698 = vld [vmem:[#allocation3 + $0x2c0] sm:$0xf]
  %v5699 = vld [vmem:[#allocation3 + $0x2c4] sm:$0xf]
  %v5700 = vld [vmem:[#allocation3 + $0x2c8] sm:$0xf]
  %v5701 = vld [vmem:[#allocation3 + $0x2cc] sm:$0xf]
  %v5702 = vld [vmem:[#allocation3 + $0x2d0] sm:$0xf]
  %v5703 = vld [vmem:[#allocation3 + $0x2d4] sm:$0xf]
  %v5704 = vld [vmem:[#allocation3 + $0x2d8] sm:$0xf]
  %v5705 = vld [vmem:[#allocation3 + $0x2dc] sm:$0xf]
  %v5714 = vunpack.c.l.b16 %v5690
  %v5715 = vunpack.c.l.b16 %v5691
  %v5716 = vunpack.c.l.b16 %v5692
  %v5717 = vunpack.c.l.b16 %v5693
  %v5718 = vunpack.c.l.b16 %v5694
  %v5719 = vunpack.c.l.b16 %v5695
  %v5720 = vunpack.c.l.b16 %v5696
  %v5721 = vunpack.c.l.b16 %v5697
  %v5722 = vpack.c.b16 %v5715, %v5714
  %v5723 = vpack.c.b16 %v5717, %v5716
  %v5724 = vpack.c.b16 %v5719, %v5718
  %v5725 = vpack.c.b16 %v5721, %v5720
  %v5734 = vunpack.c.l.b16 %v5698
  %v5735 = vunpack.c.l.b16 %v5699
  %v5736 = vunpack.c.l.b16 %v5700
  %v5737 = vunpack.c.l.b16 %v5701
  %v5738 = vunpack.c.l.b16 %v5702
  %v5739 = vunpack.c.l.b16 %v5703
  %v5740 = vunpack.c.l.b16 %v5704
  %v5741 = vunpack.c.l.b16 %v5705
  %v5742 = vpack.c.b16 %v5735, %v5734
  %v5743 = vpack.c.b16 %v5737, %v5736
  %v5744 = vpack.c.b16 %v5739, %v5738
  %v5745 = vpack.c.b16 %v5741, %v5740
  %v5746 = vld [vmem:[%s4 + $0xc0] sm:$0xf]
  %v5747 = vld [vmem:[%s4 + $0xc4] sm:$0xf]
  %v5748 = vld [vmem:[%s4 + $0xc8] sm:$0xf]
  %v5749 = vld [vmem:[%s4 + $0xcc] sm:$0xf]
  %v5750 = vld [vmem:[%s4 + $0xd0] sm:$0xf]
  %v5751 = vld [vmem:[%s4 + $0xd4] sm:$0xf]
  %v5752 = vld [vmem:[%s4 + $0xd8] sm:$0xf]
  %v5753 = vld [vmem:[%s4 + $0xdc] sm:$0xf]
  %v5762 = vunpack.c.l.b16 %v5746
  %v5763 = vunpack.c.l.b16 %v5747
  %v5764 = vunpack.c.l.b16 %v5748
  %v5765 = vunpack.c.l.b16 %v5749
  %v5766 = vunpack.c.l.b16 %v5750
  %v5767 = vunpack.c.l.b16 %v5751
  %v5768 = vunpack.c.l.b16 %v5752
  %v5769 = vunpack.c.l.b16 %v5753
  %v5770 = vpack.c.b16 %v5763, %v5762
  %v5771 = vpack.c.b16 %v5765, %v5764
  %v5772 = vpack.c.b16 %v5767, %v5766
  %v5773 = vpack.c.b16 %v5769, %v5768
  %v5779 = vsel %vm4907, %v5722, 0
  %v5782 = vsel %vm4907, %v5723, 0
  %v5785 = vsel %vm4907, %v5724, 0
  %v5788 = vsel %vm4907, %v5725, 0
  %v5791 = vsel %vm4907, %v5742, 0
  %v5794 = vsel %vm4907, %v5743, 0
  %v5797 = vsel %vm4907, %v5744, 0
  %v5800 = vsel %vm4907, %v5745, 0
  %5802 = vmatpush.bf16.msra.mxu0 0
  %5803 = vmatpush.bf16.msra.mxu0 0
  %5804 = vmatpush.bf16.msra.mxu0 0
  %5805 = vmatpush.bf16.msra.mxu0 0
  %5806 = vmatpush.bf16.msra.mxu0 %v5773
  %5807 = vmatpush.bf16.msra.mxu0 %v5772
  %5808 = vmatpush.bf16.msra.mxu0 %v5771
  %5809 = vmatpush.bf16.msra.mxu0 %v5770
  %5810 = vmatmul.bf16.gmra.mxu0 %v5779
  %v5811 = vpop.f32.mrf.mxu0
  %v5812 = vadd.f32 0.0, %v5811
  %v5813 = vpop.f32.mrf.mxu0
  %v5814 = vadd.f32 0.0, %v5813
  %5815 = vmatmul.bf16.gmra.mxu0 %v5782
  %v5816 = vpop.f32.mrf.mxu0
  %v5817 = vadd.f32 0.0, %v5816
  %v5818 = vpop.f32.mrf.mxu0
  %v5819 = vadd.f32 0.0, %v5818
  %5820 = vmatmul.bf16.gmra.mxu0 %v5785
  %v5821 = vpop.f32.mrf.mxu0
  %v5822 = vadd.f32 0.0, %v5821
  %v5823 = vpop.f32.mrf.mxu0
  %v5824 = vadd.f32 0.0, %v5823
  %5825 = vmatmul.bf16.gmra.mxu0 %v5788
  %v5826 = vpop.f32.mrf.mxu0
  %v5827 = vadd.f32 0.0, %v5826
  %v5828 = vpop.f32.mrf.mxu0
  %v5829 = vadd.f32 0.0, %v5828
  %5830 = vmatmul.bf16.gmra.mxu0 %v5791
  %v5831 = vpop.f32.mrf.mxu0
  %v5832 = vadd.f32 0.0, %v5831
  %v5833 = vpop.f32.mrf.mxu0
  %v5834 = vadd.f32 0.0, %v5833
  %5835 = vmatmul.bf16.gmra.mxu0 %v5794
  %v5836 = vpop.f32.mrf.mxu0
  %v5837 = vadd.f32 0.0, %v5836
  %v5838 = vpop.f32.mrf.mxu0
  %v5839 = vadd.f32 0.0, %v5838
  %5840 = vmatmul.bf16.gmra.mxu0 %v5797
  %v5841 = vpop.f32.mrf.mxu0
  %v5842 = vadd.f32 0.0, %v5841
  %v5843 = vpop.f32.mrf.mxu0
  %v5844 = vadd.f32 0.0, %v5843
  %5845 = vmatmul.bf16.gmra.mxu0 %v5800
  %v5846 = vpop.f32.mrf.mxu0
  %v5847 = vadd.f32 0.0, %v5846
  %v5848 = vpop.f32.mrf.mxu0
  %v5849 = vadd.f32 0.0, %v5848
  %5850 = vdwg.mxu0
  %v5851 = vadd.f32 %v5497, %v5812
  %v5852 = vadd.f32 %v5498, %v5814
  %v5853 = vadd.f32 %v5499, %v5817
  %v5854 = vadd.f32 %v5500, %v5819
  %v5855 = vadd.f32 %v5501, %v5822
  %v5856 = vadd.f32 %v5502, %v5824
  %v5857 = vadd.f32 %v5503, %v5827
  %v5858 = vadd.f32 %v5504, %v5829
  %v5859 = vadd.f32 %v5505, %v5832
  %v5860 = vadd.f32 %v5506, %v5834
  %v5861 = vadd.f32 %v5507, %v5837
  %v5862 = vadd.f32 %v5508, %v5839
  %v5863 = vadd.f32 %v5509, %v5842
  %v5864 = vadd.f32 %v5510, %v5844
  %v5865 = vadd.f32 %v5511, %v5847
  %v5866 = vadd.f32 %v5512, %v5849
  %v5867 = vld [vmem:[#allocation3 + $0xe0] sm:$0xf]
  %v5868 = vld [vmem:[#allocation3 + $0xe4] sm:$0xf]
  %v5869 = vld [vmem:[#allocation3 + $0xe8] sm:$0xf]
  %v5870 = vld [vmem:[#allocation3 + $0xec] sm:$0xf]
  %v5871 = vld [vmem:[#allocation3 + $0xf0] sm:$0xf]
  %v5872 = vld [vmem:[#allocation3 + $0xf4] sm:$0xf]
  %v5873 = vld [vmem:[#allocation3 + $0xf8] sm:$0xf]
  %v5874 = vld [vmem:[#allocation3 + $0xfc] sm:$0xf]
  %v5875 = vld [vmem:[#allocation3 + $0x2e0] sm:$0xf]
  %v5876 = vld [vmem:[#allocation3 + $0x2e4] sm:$0xf]
  %v5877 = vld [vmem:[#allocation3 + $0x2e8] sm:$0xf]
  %v5878 = vld [vmem:[#allocation3 + $0x2ec] sm:$0xf]
  %v5879 = vld [vmem:[#allocation3 + $0x2f0] sm:$0xf]
  %v5880 = vld [vmem:[#allocation3 + $0x2f4] sm:$0xf]
  %v5881 = vld [vmem:[#allocation3 + $0x2f8] sm:$0xf]
  %v5882 = vld [vmem:[#allocation3 + $0x2fc] sm:$0xf]
  %v5891 = vunpack.c.l.b16 %v5867
  %v5892 = vunpack.c.l.b16 %v5868
  %v5893 = vunpack.c.l.b16 %v5869
  %v5894 = vunpack.c.l.b16 %v5870
  %v5895 = vunpack.c.l.b16 %v5871
  %v5896 = vunpack.c.l.b16 %v5872
  %v5897 = vunpack.c.l.b16 %v5873
  %v5898 = vunpack.c.l.b16 %v5874
  %v5899 = vpack.c.b16 %v5892, %v5891
  %v5900 = vpack.c.b16 %v5894, %v5893
  %v5901 = vpack.c.b16 %v5896, %v5895
  %v5902 = vpack.c.b16 %v5898, %v5897
  %v5911 = vunpack.c.l.b16 %v5875
  %v5912 = vunpack.c.l.b16 %v5876
  %v5913 = vunpack.c.l.b16 %v5877
  %v5914 = vunpack.c.l.b16 %v5878
  %v5915 = vunpack.c.l.b16 %v5879
  %v5916 = vunpack.c.l.b16 %v5880
  %v5917 = vunpack.c.l.b16 %v5881
  %v5918 = vunpack.c.l.b16 %v5882
  %v5919 = vpack.c.b16 %v5912, %v5911
  %v5920 = vpack.c.b16 %v5914, %v5913
  %v5921 = vpack.c.b16 %v5916, %v5915
  %v5922 = vpack.c.b16 %v5918, %v5917
  %v5923 = vld [vmem:[%s4 + $0xe0] sm:$0xf]
  %v5924 = vld [vmem:[%s4 + $0xe4] sm:$0xf]
  %v5925 = vld [vmem:[%s4 + $0xe8] sm:$0xf]
  %v5926 = vld [vmem:[%s4 + $0xec] sm:$0xf]
  %v5927 = vld [vmem:[%s4 + $0xf0] sm:$0xf]
  %v5928 = vld [vmem:[%s4 + $0xf4] sm:$0xf]
  %v5929 = vld [vmem:[%s4 + $0xf8] sm:$0xf]
  %v5930 = vld [vmem:[%s4 + $0xfc] sm:$0xf]
  %v5939 = vunpack.c.l.b16 %v5923
  %v5940 = vunpack.c.l.b16 %v5924
  %v5941 = vunpack.c.l.b16 %v5925
  %v5942 = vunpack.c.l.b16 %v5926
  %v5943 = vunpack.c.l.b16 %v5927
  %v5944 = vunpack.c.l.b16 %v5928
  %v5945 = vunpack.c.l.b16 %v5929
  %v5946 = vunpack.c.l.b16 %v5930
  %v5947 = vpack.c.b16 %v5940, %v5939
  %v5948 = vpack.c.b16 %v5942, %v5941
  %v5949 = vpack.c.b16 %v5944, %v5943
  %v5950 = vpack.c.b16 %v5946, %v5945
  %v5956 = vsel %vm4907, %v5899, 0
  %v5959 = vsel %vm4907, %v5900, 0
  %v5962 = vsel %vm4907, %v5901, 0
  %v5965 = vsel %vm4907, %v5902, 0
  %v5968 = vsel %vm4907, %v5919, 0
  %v5971 = vsel %vm4907, %v5920, 0
  %v5974 = vsel %vm4907, %v5921, 0
  %v5977 = vsel %vm4907, %v5922, 0
  %5979 = vmatpush.bf16.msra.mxu0 0
  %5980 = vmatpush.bf16.msra.mxu0 0
  %5981 = vmatpush.bf16.msra.mxu0 0
  %5982 = vmatpush.bf16.msra.mxu0 0
  %5983 = vmatpush.bf16.msra.mxu0 %v5950
  %5984 = vmatpush.bf16.msra.mxu0 %v5949
  %5985 = vmatpush.bf16.msra.mxu0 %v5948
  %5986 = vmatpush.bf16.msra.mxu0 %v5947
  %5987 = vmatmul.bf16.gmra.mxu0 %v5956
  %v5988 = vpop.f32.mrf.mxu0
  %v5989 = vadd.f32 0.0, %v5988
  %v5990 = vpop.f32.mrf.mxu0
  %v5991 = vadd.f32 0.0, %v5990
  %5992 = vmatmul.bf16.gmra.mxu0 %v5959
  %v5993 = vpop.f32.mrf.mxu0
  %v5994 = vadd.f32 0.0, %v5993
  %v5995 = vpop.f32.mrf.mxu0
  %v5996 = vadd.f32 0.0, %v5995
  %5997 = vmatmul.bf16.gmra.mxu0 %v5962
  %v5998 = vpop.f32.mrf.mxu0
  %v5999 = vadd.f32 0.0, %v5998
  %v6000 = vpop.f32.mrf.mxu0
  %v6001 = vadd.f32 0.0, %v6000
  %6002 = vmatmul.bf16.gmra.mxu0 %v5965
  %v6003 = vpop.f32.mrf.mxu0
  %v6004 = vadd.f32 0.0, %v6003
  %v6005 = vpop.f32.mrf.mxu0
  %v6006 = vadd.f32 0.0, %v6005
  %6007 = vmatmul.bf16.gmra.mxu0 %v5968
  %v6008 = vpop.f32.mrf.mxu0
  %v6009 = vadd.f32 0.0, %v6008
  %v6010 = vpop.f32.mrf.mxu0
  %v6011 = vadd.f32 0.0, %v6010
  %6012 = vmatmul.bf16.gmra.mxu0 %v5971
  %v6013 = vpop.f32.mrf.mxu0
  %v6014 = vadd.f32 0.0, %v6013
  %v6015 = vpop.f32.mrf.mxu0
  %v6016 = vadd.f32 0.0, %v6015
  %6017 = vmatmul.bf16.gmra.mxu0 %v5974
  %v6018 = vpop.f32.mrf.mxu0
  %v6019 = vadd.f32 0.0, %v6018
  %v6020 = vpop.f32.mrf.mxu0
  %v6021 = vadd.f32 0.0, %v6020
  %6022 = vmatmul.bf16.gmra.mxu0 %v5977
  %v6023 = vpop.f32.mrf.mxu0
  %v6024 = vadd.f32 0.0, %v6023
  %v6025 = vpop.f32.mrf.mxu0
  %v6026 = vadd.f32 0.0, %v6025
  %6027 = vdwg.mxu0
  %v6028 = vadd.f32 %v5674, %v5989
  %v6029 = vadd.f32 %v5675, %v5991
  %v6030 = vadd.f32 %v5676, %v5994
  %v6031 = vadd.f32 %v5677, %v5996
  %v6032 = vadd.f32 %v5678, %v5999
  %v6033 = vadd.f32 %v5679, %v6001
  %v6034 = vadd.f32 %v5680, %v6004
  %v6035 = vadd.f32 %v5681, %v6006
  %v6036 = vadd.f32 %v5682, %v6009
  %v6037 = vadd.f32 %v5683, %v6011
  %v6038 = vadd.f32 %v5684, %v6014
  %v6039 = vadd.f32 %v5685, %v6016
  %v6040 = vadd.f32 %v5686, %v6019
  %v6041 = vadd.f32 %v5687, %v6021
  %v6042 = vadd.f32 %v5688, %v6024
  %v6043 = vadd.f32 %v5689, %v6026
  %v6044 = vld [vmem:[#allocation3 + $0x100] sm:$0xf]
  %v6045 = vld [vmem:[#allocation3 + $0x104] sm:$0xf]
  %v6046 = vld [vmem:[#allocation3 + $0x108] sm:$0xf]
  %v6047 = vld [vmem:[#allocation3 + $0x10c] sm:$0xf]
  %v6048 = vld [vmem:[#allocation3 + $0x110] sm:$0xf]
  %v6049 = vld [vmem:[#allocation3 + $0x114] sm:$0xf]
  %v6050 = vld [vmem:[#allocation3 + $0x118] sm:$0xf]
  %v6051 = vld [vmem:[#allocation3 + $0x11c] sm:$0xf]
  %v6052 = vld [vmem:[#allocation3 + $0x300] sm:$0xf]
  %v6053 = vld [vmem:[#allocation3 + $0x304] sm:$0xf]
  %v6054 = vld [vmem:[#allocation3 + $0x308] sm:$0xf]
  %v6055 = vld [vmem:[#allocation3 + $0x30c] sm:$0xf]
  %v6056 = vld [vmem:[#allocation3 + $0x310] sm:$0xf]
  %v6057 = vld [vmem:[#allocation3 + $0x314] sm:$0xf]
  %v6058 = vld [vmem:[#allocation3 + $0x318] sm:$0xf]
  %v6059 = vld [vmem:[#allocation3 + $0x31c] sm:$0xf]
  %v6068 = vunpack.c.l.b16 %v6044
  %v6069 = vunpack.c.l.b16 %v6045
  %v6070 = vunpack.c.l.b16 %v6046
  %v6071 = vunpack.c.l.b16 %v6047
  %v6072 = vunpack.c.l.b16 %v6048
  %v6073 = vunpack.c.l.b16 %v6049
  %v6074 = vunpack.c.l.b16 %v6050
  %v6075 = vunpack.c.l.b16 %v6051
  %v6076 = vpack.c.b16 %v6069, %v6068
  %v6077 = vpack.c.b16 %v6071, %v6070
  %v6078 = vpack.c.b16 %v6073, %v6072
  %v6079 = vpack.c.b16 %v6075, %v6074
  %v6088 = vunpack.c.l.b16 %v6052
  %v6089 = vunpack.c.l.b16 %v6053
  %v6090 = vunpack.c.l.b16 %v6054
  %v6091 = vunpack.c.l.b16 %v6055
  %v6092 = vunpack.c.l.b16 %v6056
  %v6093 = vunpack.c.l.b16 %v6057
  %v6094 = vunpack.c.l.b16 %v6058
  %v6095 = vunpack.c.l.b16 %v6059
  %v6096 = vpack.c.b16 %v6089, %v6088
  %v6097 = vpack.c.b16 %v6091, %v6090
  %v6098 = vpack.c.b16 %v6093, %v6092
  %v6099 = vpack.c.b16 %v6095, %v6094
  %v6100 = vld [vmem:[%s4 + $0x100] sm:$0xf]
  %v6101 = vld [vmem:[%s4 + $0x104] sm:$0xf]
  %v6102 = vld [vmem:[%s4 + $0x108] sm:$0xf]
  %v6103 = vld [vmem:[%s4 + $0x10c] sm:$0xf]
  %v6104 = vld [vmem:[%s4 + $0x110] sm:$0xf]
  %v6105 = vld [vmem:[%s4 + $0x114] sm:$0xf]
  %v6106 = vld [vmem:[%s4 + $0x118] sm:$0xf]
  %v6107 = vld [vmem:[%s4 + $0x11c] sm:$0xf]
  %v6116 = vunpack.c.l.b16 %v6100
  %v6117 = vunpack.c.l.b16 %v6101
  %v6118 = vunpack.c.l.b16 %v6102
  %v6119 = vunpack.c.l.b16 %v6103
  %v6120 = vunpack.c.l.b16 %v6104
  %v6121 = vunpack.c.l.b16 %v6105
  %v6122 = vunpack.c.l.b16 %v6106
  %v6123 = vunpack.c.l.b16 %v6107
  %v6124 = vpack.c.b16 %v6117, %v6116
  %v6125 = vpack.c.b16 %v6119, %v6118
  %v6126 = vpack.c.b16 %v6121, %v6120
  %v6127 = vpack.c.b16 %v6123, %v6122
  %v6133 = vsel %vm4907, %v6076, 0
  %v6136 = vsel %vm4907, %v6077, 0
  %v6139 = vsel %vm4907, %v6078, 0
  %v6142 = vsel %vm4907, %v6079, 0
  %v6145 = vsel %vm4907, %v6096, 0
  %v6148 = vsel %vm4907, %v6097, 0
  %v6151 = vsel %vm4907, %v6098, 0
  %v6154 = vsel %vm4907, %v6099, 0
  %6156 = vmatpush.bf16.msra.mxu0 0
  %6157 = vmatpush.bf16.msra.mxu0 0
  %6158 = vmatpush.bf16.msra.mxu0 0
  %6159 = vmatpush.bf16.msra.mxu0 0
  %6160 = vmatpush.bf16.msra.mxu0 %v6127
  %6161 = vmatpush.bf16.msra.mxu0 %v6126
  %6162 = vmatpush.bf16.msra.mxu0 %v6125
  %6163 = vmatpush.bf16.msra.mxu0 %v6124
  %6164 = vmatmul.bf16.gmra.mxu0 %v6133
  %v6165 = vpop.f32.mrf.mxu0
  %v6166 = vadd.f32 0.0, %v6165
  %v6167 = vpop.f32.mrf.mxu0
  %v6168 = vadd.f32 0.0, %v6167
  %6169 = vmatmul.bf16.gmra.mxu0 %v6136
  %v6170 = vpop.f32.mrf.mxu0
  %v6171 = vadd.f32 0.0, %v6170
  %v6172 = vpop.f32.mrf.mxu0
  %v6173 = vadd.f32 0.0, %v6172
  %6174 = vmatmul.bf16.gmra.mxu0 %v6139
  %v6175 = vpop.f32.mrf.mxu0
  %v6176 = vadd.f32 0.0, %v6175
  %v6177 = vpop.f32.mrf.mxu0
  %v6178 = vadd.f32 0.0, %v6177
  %6179 = vmatmul.bf16.gmra.mxu0 %v6142
  %v6180 = vpop.f32.mrf.mxu0
  %v6181 = vadd.f32 0.0, %v6180
  %v6182 = vpop.f32.mrf.mxu0
  %v6183 = vadd.f32 0.0, %v6182
  %6184 = vmatmul.bf16.gmra.mxu0 %v6145
  %v6185 = vpop.f32.mrf.mxu0
  %v6186 = vadd.f32 0.0, %v6185
  %v6187 = vpop.f32.mrf.mxu0
  %v6188 = vadd.f32 0.0, %v6187
  %6189 = vmatmul.bf16.gmra.mxu0 %v6148
  %v6190 = vpop.f32.mrf.mxu0
  %v6191 = vadd.f32 0.0, %v6190
  %v6192 = vpop.f32.mrf.mxu0
  %v6193 = vadd.f32 0.0, %v6192
  %6194 = vmatmul.bf16.gmra.mxu0 %v6151
  %v6195 = vpop.f32.mrf.mxu0
  %v6196 = vadd.f32 0.0, %v6195
  %v6197 = vpop.f32.mrf.mxu0
  %v6198 = vadd.f32 0.0, %v6197
  %6199 = vmatmul.bf16.gmra.mxu0 %v6154
  %v6200 = vpop.f32.mrf.mxu0
  %v6201 = vadd.f32 0.0, %v6200
  %v6202 = vpop.f32.mrf.mxu0
  %v6203 = vadd.f32 0.0, %v6202
  %6204 = vdwg.mxu0
  %v6205 = vadd.f32 %v5851, %v6166
  %v6206 = vadd.f32 %v5852, %v6168
  %v6207 = vadd.f32 %v5853, %v6171
  %v6208 = vadd.f32 %v5854, %v6173
  %v6209 = vadd.f32 %v5855, %v6176
  %v6210 = vadd.f32 %v5856, %v6178
  %v6211 = vadd.f32 %v5857, %v6181
  %v6212 = vadd.f32 %v5858, %v6183
  %v6213 = vadd.f32 %v5859, %v6186
  %v6214 = vadd.f32 %v5860, %v6188
  %v6215 = vadd.f32 %v5861, %v6191
  %v6216 = vadd.f32 %v5862, %v6193
  %v6217 = vadd.f32 %v5863, %v6196
  %v6218 = vadd.f32 %v5864, %v6198
  %v6219 = vadd.f32 %v5865, %v6201
  %v6220 = vadd.f32 %v5866, %v6203
  %v6221 = vld [vmem:[#allocation3 + $0x120] sm:$0xf]
  %v6222 = vld [vmem:[#allocation3 + $0x124] sm:$0xf]
  %v6223 = vld [vmem:[#allocation3 + $0x128] sm:$0xf]
  %v6224 = vld [vmem:[#allocation3 + $0x12c] sm:$0xf]
  %v6225 = vld [vmem:[#allocation3 + $0x130] sm:$0xf]
  %v6226 = vld [vmem:[#allocation3 + $0x134] sm:$0xf]
  %v6227 = vld [vmem:[#allocation3 + $0x138] sm:$0xf]
  %v6228 = vld [vmem:[#allocation3 + $0x13c] sm:$0xf]
  %v6229 = vld [vmem:[#allocation3 + $0x320] sm:$0xf]
  %v6230 = vld [vmem:[#allocation3 + $0x324] sm:$0xf]
  %v6231 = vld [vmem:[#allocation3 + $0x328] sm:$0xf]
  %v6232 = vld [vmem:[#allocation3 + $0x32c] sm:$0xf]
  %v6233 = vld [vmem:[#allocation3 + $0x330] sm:$0xf]
  %v6234 = vld [vmem:[#allocation3 + $0x334] sm:$0xf]
  %v6235 = vld [vmem:[#allocation3 + $0x338] sm:$0xf]
  %v6236 = vld [vmem:[#allocation3 + $0x33c] sm:$0xf]
  %v6245 = vunpack.c.l.b16 %v6221
  %v6246 = vunpack.c.l.b16 %v6222
  %v6247 = vunpack.c.l.b16 %v6223
  %v6248 = vunpack.c.l.b16 %v6224
  %v6249 = vunpack.c.l.b16 %v6225
  %v6250 = vunpack.c.l.b16 %v6226
  %v6251 = vunpack.c.l.b16 %v6227
  %v6252 = vunpack.c.l.b16 %v6228
  %v6253 = vpack.c.b16 %v6246, %v6245
  %v6254 = vpack.c.b16 %v6248, %v6247
  %v6255 = vpack.c.b16 %v6250, %v6249
  %v6256 = vpack.c.b16 %v6252, %v6251
  %v6265 = vunpack.c.l.b16 %v6229
  %v6266 = vunpack.c.l.b16 %v6230
  %v6267 = vunpack.c.l.b16 %v6231
  %v6268 = vunpack.c.l.b16 %v6232
  %v6269 = vunpack.c.l.b16 %v6233
  %v6270 = vunpack.c.l.b16 %v6234
  %v6271 = vunpack.c.l.b16 %v6235
  %v6272 = vunpack.c.l.b16 %v6236
  %v6273 = vpack.c.b16 %v6266, %v6265
  %v6274 = vpack.c.b16 %v6268, %v6267
  %v6275 = vpack.c.b16 %v6270, %v6269
  %v6276 = vpack.c.b16 %v6272, %v6271
  %v6277 = vld [vmem:[%s4 + $0x120] sm:$0xf]
  %v6278 = vld [vmem:[%s4 + $0x124] sm:$0xf]
  %v6279 = vld [vmem:[%s4 + $0x128] sm:$0xf]
  %v6280 = vld [vmem:[%s4 + $0x12c] sm:$0xf]
  %v6281 = vld [vmem:[%s4 + $0x130] sm:$0xf]
  %v6282 = vld [vmem:[%s4 + $0x134] sm:$0xf]
  %v6283 = vld [vmem:[%s4 + $0x138] sm:$0xf]
  %v6284 = vld [vmem:[%s4 + $0x13c] sm:$0xf]
  %v6293 = vunpack.c.l.b16 %v6277
  %v6294 = vunpack.c.l.b16 %v6278
  %v6295 = vunpack.c.l.b16 %v6279
  %v6296 = vunpack.c.l.b16 %v6280
  %v6297 = vunpack.c.l.b16 %v6281
  %v6298 = vunpack.c.l.b16 %v6282
  %v6299 = vunpack.c.l.b16 %v6283
  %v6300 = vunpack.c.l.b16 %v6284
  %v6301 = vpack.c.b16 %v6294, %v6293
  %v6302 = vpack.c.b16 %v6296, %v6295
  %v6303 = vpack.c.b16 %v6298, %v6297
  %v6304 = vpack.c.b16 %v6300, %v6299
  %v6310 = vsel %vm4907, %v6253, 0
  %v6313 = vsel %vm4907, %v6254, 0
  %v6316 = vsel %vm4907, %v6255, 0
  %v6319 = vsel %vm4907, %v6256, 0
  %v6322 = vsel %vm4907, %v6273, 0
  %v6325 = vsel %vm4907, %v6274, 0
  %v6328 = vsel %vm4907, %v6275, 0
  %v6331 = vsel %vm4907, %v6276, 0
  %6333 = vmatpush.bf16.msra.mxu0 0
  %6334 = vmatpush.bf16.msra.mxu0 0
  %6335 = vmatpush.bf16.msra.mxu0 0
  %6336 = vmatpush.bf16.msra.mxu0 0
  %6337 = vmatpush.bf16.msra.mxu0 %v6304
  %6338 = vmatpush.bf16.msra.mxu0 %v6303
  %6339 = vmatpush.bf16.msra.mxu0 %v6302
  %6340 = vmatpush.bf16.msra.mxu0 %v6301
  %6341 = vmatmul.bf16.gmra.mxu0 %v6310
  %v6342 = vpop.f32.mrf.mxu0
  %v6343 = vadd.f32 0.0, %v6342
  %v6344 = vpop.f32.mrf.mxu0
  %v6345 = vadd.f32 0.0, %v6344
  %6346 = vmatmul.bf16.gmra.mxu0 %v6313
  %v6347 = vpop.f32.mrf.mxu0
  %v6348 = vadd.f32 0.0, %v6347
  %v6349 = vpop.f32.mrf.mxu0
  %v6350 = vadd.f32 0.0, %v6349
  %6351 = vmatmul.bf16.gmra.mxu0 %v6316
  %v6352 = vpop.f32.mrf.mxu0
  %v6353 = vadd.f32 0.0, %v6352
  %v6354 = vpop.f32.mrf.mxu0
  %v6355 = vadd.f32 0.0, %v6354
  %6356 = vmatmul.bf16.gmra.mxu0 %v6319
  %v6357 = vpop.f32.mrf.mxu0
  %v6358 = vadd.f32 0.0, %v6357
  %v6359 = vpop.f32.mrf.mxu0
  %v6360 = vadd.f32 0.0, %v6359
  %6361 = vmatmul.bf16.gmra.mxu0 %v6322
  %v6362 = vpop.f32.mrf.mxu0
  %v6363 = vadd.f32 0.0, %v6362
  %v6364 = vpop.f32.mrf.mxu0
  %v6365 = vadd.f32 0.0, %v6364
  %6366 = vmatmul.bf16.gmra.mxu0 %v6325
  %v6367 = vpop.f32.mrf.mxu0
  %v6368 = vadd.f32 0.0, %v6367
  %v6369 = vpop.f32.mrf.mxu0
  %v6370 = vadd.f32 0.0, %v6369
  %6371 = vmatmul.bf16.gmra.mxu0 %v6328
  %v6372 = vpop.f32.mrf.mxu0
  %v6373 = vadd.f32 0.0, %v6372
  %v6374 = vpop.f32.mrf.mxu0
  %v6375 = vadd.f32 0.0, %v6374
  %6376 = vmatmul.bf16.gmra.mxu0 %v6331
  %v6377 = vpop.f32.mrf.mxu0
  %v6378 = vadd.f32 0.0, %v6377
  %v6379 = vpop.f32.mrf.mxu0
  %v6380 = vadd.f32 0.0, %v6379
  %6381 = vdwg.mxu0
  %v6382 = vadd.f32 %v6028, %v6343
  %v6383 = vadd.f32 %v6029, %v6345
  %v6384 = vadd.f32 %v6030, %v6348
  %v6385 = vadd.f32 %v6031, %v6350
  %v6386 = vadd.f32 %v6032, %v6353
  %v6387 = vadd.f32 %v6033, %v6355
  %v6388 = vadd.f32 %v6034, %v6358
  %v6389 = vadd.f32 %v6035, %v6360
  %v6390 = vadd.f32 %v6036, %v6363
  %v6391 = vadd.f32 %v6037, %v6365
  %v6392 = vadd.f32 %v6038, %v6368
  %v6393 = vadd.f32 %v6039, %v6370
  %v6394 = vadd.f32 %v6040, %v6373
  %v6395 = vadd.f32 %v6041, %v6375
  %v6396 = vadd.f32 %v6042, %v6378
  %v6397 = vadd.f32 %v6043, %v6380
  %v6398 = vld [vmem:[#allocation3 + $0x140] sm:$0xf]
  %v6399 = vld [vmem:[#allocation3 + $0x144] sm:$0xf]
  %v6400 = vld [vmem:[#allocation3 + $0x148] sm:$0xf]
  %v6401 = vld [vmem:[#allocation3 + $0x14c] sm:$0xf]
  %v6402 = vld [vmem:[#allocation3 + $0x150] sm:$0xf]
  %v6403 = vld [vmem:[#allocation3 + $0x154] sm:$0xf]
  %v6404 = vld [vmem:[#allocation3 + $0x158] sm:$0xf]
  %v6405 = vld [vmem:[#allocation3 + $0x15c] sm:$0xf]
  %v6406 = vld [vmem:[#allocation3 + $0x340] sm:$0xf]
  %v6407 = vld [vmem:[#allocation3 + $0x344] sm:$0xf]
  %v6408 = vld [vmem:[#allocation3 + $0x348] sm:$0xf]
  %v6409 = vld [vmem:[#allocation3 + $0x34c] sm:$0xf]
  %v6410 = vld [vmem:[#allocation3 + $0x350] sm:$0xf]
  %v6411 = vld [vmem:[#allocation3 + $0x354] sm:$0xf]
  %v6412 = vld [vmem:[#allocation3 + $0x358] sm:$0xf]
  %v6413 = vld [vmem:[#allocation3 + $0x35c] sm:$0xf]
  %v6422 = vunpack.c.l.b16 %v6398
  %v6423 = vunpack.c.l.b16 %v6399
  %v6424 = vunpack.c.l.b16 %v6400
  %v6425 = vunpack.c.l.b16 %v6401
  %v6426 = vunpack.c.l.b16 %v6402
  %v6427 = vunpack.c.l.b16 %v6403
  %v6428 = vunpack.c.l.b16 %v6404
  %v6429 = vunpack.c.l.b16 %v6405
  %v6430 = vpack.c.b16 %v6423, %v6422
  %v6431 = vpack.c.b16 %v6425, %v6424
  %v6432 = vpack.c.b16 %v6427, %v6426
  %v6433 = vpack.c.b16 %v6429, %v6428
  %v6442 = vunpack.c.l.b16 %v6406
  %v6443 = vunpack.c.l.b16 %v6407
  %v6444 = vunpack.c.l.b16 %v6408
  %v6445 = vunpack.c.l.b16 %v6409
  %v6446 = vunpack.c.l.b16 %v6410
  %v6447 = vunpack.c.l.b16 %v6411
  %v6448 = vunpack.c.l.b16 %v6412
  %v6449 = vunpack.c.l.b16 %v6413
  %v6450 = vpack.c.b16 %v6443, %v6442
  %v6451 = vpack.c.b16 %v6445, %v6444
  %v6452 = vpack.c.b16 %v6447, %v6446
  %v6453 = vpack.c.b16 %v6449, %v6448
  %v6454 = vld [vmem:[%s4 + $0x140] sm:$0xf]
  %v6455 = vld [vmem:[%s4 + $0x144] sm:$0xf]
  %v6456 = vld [vmem:[%s4 + $0x148] sm:$0xf]
  %v6457 = vld [vmem:[%s4 + $0x14c] sm:$0xf]
  %v6458 = vld [vmem:[%s4 + $0x150] sm:$0xf]
  %v6459 = vld [vmem:[%s4 + $0x154] sm:$0xf]
  %v6460 = vld [vmem:[%s4 + $0x158] sm:$0xf]
  %v6461 = vld [vmem:[%s4 + $0x15c] sm:$0xf]
  %v6470 = vunpack.c.l.b16 %v6454
  %v6471 = vunpack.c.l.b16 %v6455
  %v6472 = vunpack.c.l.b16 %v6456
  %v6473 = vunpack.c.l.b16 %v6457
  %v6474 = vunpack.c.l.b16 %v6458
  %v6475 = vunpack.c.l.b16 %v6459
  %v6476 = vunpack.c.l.b16 %v6460
  %v6477 = vunpack.c.l.b16 %v6461
  %v6478 = vpack.c.b16 %v6471, %v6470
  %v6479 = vpack.c.b16 %v6473, %v6472
  %v6480 = vpack.c.b16 %v6475, %v6474
  %v6481 = vpack.c.b16 %v6477, %v6476
  %v6487 = vsel %vm4907, %v6430, 0
  %v6490 = vsel %vm4907, %v6431, 0
  %v6493 = vsel %vm4907, %v6432, 0
  %v6496 = vsel %vm4907, %v6433, 0
  %v6499 = vsel %vm4907, %v6450, 0
  %v6502 = vsel %vm4907, %v6451, 0
  %v6505 = vsel %vm4907, %v6452, 0
  %v6508 = vsel %vm4907, %v6453, 0
  %6510 = vmatpush.bf16.msra.mxu0 0
  %6511 = vmatpush.bf16.msra.mxu0 0
  %6512 = vmatpush.bf16.msra.mxu0 0
  %6513 = vmatpush.bf16.msra.mxu0 0
  %6514 = vmatpush.bf16.msra.mxu0 %v6481
  %6515 = vmatpush.bf16.msra.mxu0 %v6480
  %6516 = vmatpush.bf16.msra.mxu0 %v6479
  %6517 = vmatpush.bf16.msra.mxu0 %v6478
  %6518 = vmatmul.bf16.gmra.mxu0 %v6487
  %v6519 = vpop.f32.mrf.mxu0
  %v6520 = vadd.f32 0.0, %v6519
  %v6521 = vpop.f32.mrf.mxu0
  %v6522 = vadd.f32 0.0, %v6521
  %6523 = vmatmul.bf16.gmra.mxu0 %v6490
  %v6524 = vpop.f32.mrf.mxu0
  %v6525 = vadd.f32 0.0, %v6524
  %v6526 = vpop.f32.mrf.mxu0
  %v6527 = vadd.f32 0.0, %v6526
  %6528 = vmatmul.bf16.gmra.mxu0 %v6493
  %v6529 = vpop.f32.mrf.mxu0
  %v6530 = vadd.f32 0.0, %v6529
  %v6531 = vpop.f32.mrf.mxu0
  %v6532 = vadd.f32 0.0, %v6531
  %6533 = vmatmul.bf16.gmra.mxu0 %v6496
  %v6534 = vpop.f32.mrf.mxu0
  %v6535 = vadd.f32 0.0, %v6534
  %v6536 = vpop.f32.mrf.mxu0
  %v6537 = vadd.f32 0.0, %v6536
  %6538 = vmatmul.bf16.gmra.mxu0 %v6499
  %v6539 = vpop.f32.mrf.mxu0
  %v6540 = vadd.f32 0.0, %v6539
  %v6541 = vpop.f32.mrf.mxu0
  %v6542 = vadd.f32 0.0, %v6541
  %6543 = vmatmul.bf16.gmra.mxu0 %v6502
  %v6544 = vpop.f32.mrf.mxu0
  %v6545 = vadd.f32 0.0, %v6544
  %v6546 = vpop.f32.mrf.mxu0
  %v6547 = vadd.f32 0.0, %v6546
  %6548 = vmatmul.bf16.gmra.mxu0 %v6505
  %v6549 = vpop.f32.mrf.mxu0
  %v6550 = vadd.f32 0.0, %v6549
  %v6551 = vpop.f32.mrf.mxu0
  %v6552 = vadd.f32 0.0, %v6551
  %6553 = vmatmul.bf16.gmra.mxu0 %v6508
  %v6554 = vpop.f32.mrf.mxu0
  %v6555 = vadd.f32 0.0, %v6554
  %v6556 = vpop.f32.mrf.mxu0
  %v6557 = vadd.f32 0.0, %v6556
  %6558 = vdwg.mxu0
  %v6559 = vadd.f32 %v6205, %v6520
  %v6560 = vadd.f32 %v6206, %v6522
  %v6561 = vadd.f32 %v6207, %v6525
  %v6562 = vadd.f32 %v6208, %v6527
  %v6563 = vadd.f32 %v6209, %v6530
  %v6564 = vadd.f32 %v6210, %v6532
  %v6565 = vadd.f32 %v6211, %v6535
  %v6566 = vadd.f32 %v6212, %v6537
  %v6567 = vadd.f32 %v6213, %v6540
  %v6568 = vadd.f32 %v6214, %v6542
  %v6569 = vadd.f32 %v6215, %v6545
  %v6570 = vadd.f32 %v6216, %v6547
  %v6571 = vadd.f32 %v6217, %v6550
  %v6572 = vadd.f32 %v6218, %v6552
  %v6573 = vadd.f32 %v6219, %v6555
  %v6574 = vadd.f32 %v6220, %v6557
  %v6575 = vld [vmem:[#allocation3 + $0x160] sm:$0xf]
  %v6576 = vld [vmem:[#allocation3 + $0x164] sm:$0xf]
  %v6577 = vld [vmem:[#allocation3 + $0x168] sm:$0xf]
  %v6578 = vld [vmem:[#allocation3 + $0x16c] sm:$0xf]
  %v6579 = vld [vmem:[#allocation3 + $0x170] sm:$0xf]
  %v6580 = vld [vmem:[#allocation3 + $0x174] sm:$0xf]
  %v6581 = vld [vmem:[#allocation3 + $0x178] sm:$0xf]
  %v6582 = vld [vmem:[#allocation3 + $0x17c] sm:$0xf]
  %v6583 = vld [vmem:[#allocation3 + $0x360] sm:$0xf]
  %v6584 = vld [vmem:[#allocation3 + $0x364] sm:$0xf]
  %v6585 = vld [vmem:[#allocation3 + $0x368] sm:$0xf]
  %v6586 = vld [vmem:[#allocation3 + $0x36c] sm:$0xf]
  %v6587 = vld [vmem:[#allocation3 + $0x370] sm:$0xf]
  %v6588 = vld [vmem:[#allocation3 + $0x374] sm:$0xf]
  %v6589 = vld [vmem:[#allocation3 + $0x378] sm:$0xf]
  %v6590 = vld [vmem:[#allocation3 + $0x37c] sm:$0xf]
  %v6599 = vunpack.c.l.b16 %v6575
  %v6600 = vunpack.c.l.b16 %v6576
  %v6601 = vunpack.c.l.b16 %v6577
  %v6602 = vunpack.c.l.b16 %v6578
  %v6603 = vunpack.c.l.b16 %v6579
  %v6604 = vunpack.c.l.b16 %v6580
  %v6605 = vunpack.c.l.b16 %v6581
  %v6606 = vunpack.c.l.b16 %v6582
  %v6607 = vpack.c.b16 %v6600, %v6599
  %v6608 = vpack.c.b16 %v6602, %v6601
  %v6609 = vpack.c.b16 %v6604, %v6603
  %v6610 = vpack.c.b16 %v6606, %v6605
  %v6619 = vunpack.c.l.b16 %v6583
  %v6620 = vunpack.c.l.b16 %v6584
  %v6621 = vunpack.c.l.b16 %v6585
  %v6622 = vunpack.c.l.b16 %v6586
  %v6623 = vunpack.c.l.b16 %v6587
  %v6624 = vunpack.c.l.b16 %v6588
  %v6625 = vunpack.c.l.b16 %v6589
  %v6626 = vunpack.c.l.b16 %v6590
  %v6627 = vpack.c.b16 %v6620, %v6619
  %v6628 = vpack.c.b16 %v6622, %v6621
  %v6629 = vpack.c.b16 %v6624, %v6623
  %v6630 = vpack.c.b16 %v6626, %v6625
  %v6631 = vld [vmem:[%s4 + $0x160] sm:$0xf]
  %v6632 = vld [vmem:[%s4 + $0x164] sm:$0xf]
  %v6633 = vld [vmem:[%s4 + $0x168] sm:$0xf]
  %v6634 = vld [vmem:[%s4 + $0x16c] sm:$0xf]
  %v6635 = vld [vmem:[%s4 + $0x170] sm:$0xf]
  %v6636 = vld [vmem:[%s4 + $0x174] sm:$0xf]
  %v6637 = vld [vmem:[%s4 + $0x178] sm:$0xf]
  %v6638 = vld [vmem:[%s4 + $0x17c] sm:$0xf]
  %v6647 = vunpack.c.l.b16 %v6631
  %v6648 = vunpack.c.l.b16 %v6632
  %v6649 = vunpack.c.l.b16 %v6633
  %v6650 = vunpack.c.l.b16 %v6634
  %v6651 = vunpack.c.l.b16 %v6635
  %v6652 = vunpack.c.l.b16 %v6636
  %v6653 = vunpack.c.l.b16 %v6637
  %v6654 = vunpack.c.l.b16 %v6638
  %v6655 = vpack.c.b16 %v6648, %v6647
  %v6656 = vpack.c.b16 %v6650, %v6649
  %v6657 = vpack.c.b16 %v6652, %v6651
  %v6658 = vpack.c.b16 %v6654, %v6653
  %v6664 = vsel %vm4907, %v6607, 0
  %v6667 = vsel %vm4907, %v6608, 0
  %v6670 = vsel %vm4907, %v6609, 0
  %v6673 = vsel %vm4907, %v6610, 0
  %v6676 = vsel %vm4907, %v6627, 0
  %v6679 = vsel %vm4907, %v6628, 0
  %v6682 = vsel %vm4907, %v6629, 0
  %v6685 = vsel %vm4907, %v6630, 0
  %6687 = vmatpush.bf16.msra.mxu0 0
  %6688 = vmatpush.bf16.msra.mxu0 0
  %6689 = vmatpush.bf16.msra.mxu0 0
  %6690 = vmatpush.bf16.msra.mxu0 0
  %6691 = vmatpush.bf16.msra.mxu0 %v6658
  %6692 = vmatpush.bf16.msra.mxu0 %v6657
  %6693 = vmatpush.bf16.msra.mxu0 %v6656
  %6694 = vmatpush.bf16.msra.mxu0 %v6655
  %6695 = vmatmul.bf16.gmra.mxu0 %v6664
  %v6696 = vpop.f32.mrf.mxu0
  %v6697 = vadd.f32 0.0, %v6696
  %v6698 = vpop.f32.mrf.mxu0
  %v6699 = vadd.f32 0.0, %v6698
  %6700 = vmatmul.bf16.gmra.mxu0 %v6667
  %v6701 = vpop.f32.mrf.mxu0
  %v6702 = vadd.f32 0.0, %v6701
  %v6703 = vpop.f32.mrf.mxu0
  %v6704 = vadd.f32 0.0, %v6703
  %6705 = vmatmul.bf16.gmra.mxu0 %v6670
  %v6706 = vpop.f32.mrf.mxu0
  %v6707 = vadd.f32 0.0, %v6706
  %v6708 = vpop.f32.mrf.mxu0
  %v6709 = vadd.f32 0.0, %v6708
  %6710 = vmatmul.bf16.gmra.mxu0 %v6673
  %v6711 = vpop.f32.mrf.mxu0
  %v6712 = vadd.f32 0.0, %v6711
  %v6713 = vpop.f32.mrf.mxu0
  %v6714 = vadd.f32 0.0, %v6713
  %6715 = vmatmul.bf16.gmra.mxu0 %v6676
  %v6716 = vpop.f32.mrf.mxu0
  %v6717 = vadd.f32 0.0, %v6716
  %v6718 = vpop.f32.mrf.mxu0
  %v6719 = vadd.f32 0.0, %v6718
  %6720 = vmatmul.bf16.gmra.mxu0 %v6679
  %v6721 = vpop.f32.mrf.mxu0
  %v6722 = vadd.f32 0.0, %v6721
  %v6723 = vpop.f32.mrf.mxu0
  %v6724 = vadd.f32 0.0, %v6723
  %6725 = vmatmul.bf16.gmra.mxu0 %v6682
  %v6726 = vpop.f32.mrf.mxu0
  %v6727 = vadd.f32 0.0, %v6726
  %v6728 = vpop.f32.mrf.mxu0
  %v6729 = vadd.f32 0.0, %v6728
  %6730 = vmatmul.bf16.gmra.mxu0 %v6685
  %v6731 = vpop.f32.mrf.mxu0
  %v6732 = vadd.f32 0.0, %v6731
  %v6733 = vpop.f32.mrf.mxu0
  %v6734 = vadd.f32 0.0, %v6733
  %6735 = vdwg.mxu0
  %v6736 = vadd.f32 %v6382, %v6697
  %v6737 = vadd.f32 %v6383, %v6699
  %v6738 = vadd.f32 %v6384, %v6702
  %v6739 = vadd.f32 %v6385, %v6704
  %v6740 = vadd.f32 %v6386, %v6707
  %v6741 = vadd.f32 %v6387, %v6709
  %v6742 = vadd.f32 %v6388, %v6712
  %v6743 = vadd.f32 %v6389, %v6714
  %v6744 = vadd.f32 %v6390, %v6717
  %v6745 = vadd.f32 %v6391, %v6719
  %v6746 = vadd.f32 %v6392, %v6722
  %v6747 = vadd.f32 %v6393, %v6724
  %v6748 = vadd.f32 %v6394, %v6727
  %v6749 = vadd.f32 %v6395, %v6729
  %v6750 = vadd.f32 %v6396, %v6732
  %v6751 = vadd.f32 %v6397, %v6734
  %v6752 = vld [vmem:[#allocation3 + $0x180] sm:$0xf]
  %v6753 = vld [vmem:[#allocation3 + $0x184] sm:$0xf]
  %v6754 = vld [vmem:[#allocation3 + $0x188] sm:$0xf]
  %v6755 = vld [vmem:[#allocation3 + $0x18c] sm:$0xf]
  %v6756 = vld [vmem:[#allocation3 + $0x190] sm:$0xf]
  %v6757 = vld [vmem:[#allocation3 + $0x194] sm:$0xf]
  %v6758 = vld [vmem:[#allocation3 + $0x198] sm:$0xf]
  %v6759 = vld [vmem:[#allocation3 + $0x19c] sm:$0xf]
  %v6760 = vld [vmem:[#allocation3 + $0x380] sm:$0xf]
  %v6761 = vld [vmem:[#allocation3 + $0x384] sm:$0xf]
  %v6762 = vld [vmem:[#allocation3 + $0x388] sm:$0xf]
  %v6763 = vld [vmem:[#allocation3 + $0x38c] sm:$0xf]
  %v6764 = vld [vmem:[#allocation3 + $0x390] sm:$0xf]
  %v6765 = vld [vmem:[#allocation3 + $0x394] sm:$0xf]
  %v6766 = vld [vmem:[#allocation3 + $0x398] sm:$0xf]
  %v6767 = vld [vmem:[#allocation3 + $0x39c] sm:$0xf]
  %v6776 = vunpack.c.l.b16 %v6752
  %v6777 = vunpack.c.l.b16 %v6753
  %v6778 = vunpack.c.l.b16 %v6754
  %v6779 = vunpack.c.l.b16 %v6755
  %v6780 = vunpack.c.l.b16 %v6756
  %v6781 = vunpack.c.l.b16 %v6757
  %v6782 = vunpack.c.l.b16 %v6758
  %v6783 = vunpack.c.l.b16 %v6759
  %v6784 = vpack.c.b16 %v6777, %v6776
  %v6785 = vpack.c.b16 %v6779, %v6778
  %v6786 = vpack.c.b16 %v6781, %v6780
  %v6787 = vpack.c.b16 %v6783, %v6782
  %v6796 = vunpack.c.l.b16 %v6760
  %v6797 = vunpack.c.l.b16 %v6761
  %v6798 = vunpack.c.l.b16 %v6762
  %v6799 = vunpack.c.l.b16 %v6763
  %v6800 = vunpack.c.l.b16 %v6764
  %v6801 = vunpack.c.l.b16 %v6765
  %v6802 = vunpack.c.l.b16 %v6766
  %v6803 = vunpack.c.l.b16 %v6767
  %v6804 = vpack.c.b16 %v6797, %v6796
  %v6805 = vpack.c.b16 %v6799, %v6798
  %v6806 = vpack.c.b16 %v6801, %v6800
  %v6807 = vpack.c.b16 %v6803, %v6802
  %v6808 = vld [vmem:[%s4 + $0x180] sm:$0xf]
  %v6809 = vld [vmem:[%s4 + $0x184] sm:$0xf]
  %v6810 = vld [vmem:[%s4 + $0x188] sm:$0xf]
  %v6811 = vld [vmem:[%s4 + $0x18c] sm:$0xf]
  %v6812 = vld [vmem:[%s4 + $0x190] sm:$0xf]
  %v6813 = vld [vmem:[%s4 + $0x194] sm:$0xf]
  %v6814 = vld [vmem:[%s4 + $0x198] sm:$0xf]
  %v6815 = vld [vmem:[%s4 + $0x19c] sm:$0xf]
  %v6824 = vunpack.c.l.b16 %v6808
  %v6825 = vunpack.c.l.b16 %v6809
  %v6826 = vunpack.c.l.b16 %v6810
  %v6827 = vunpack.c.l.b16 %v6811
  %v6828 = vunpack.c.l.b16 %v6812
  %v6829 = vunpack.c.l.b16 %v6813
  %v6830 = vunpack.c.l.b16 %v6814
  %v6831 = vunpack.c.l.b16 %v6815
  %v6832 = vpack.c.b16 %v6825, %v6824
  %v6833 = vpack.c.b16 %v6827, %v6826
  %v6834 = vpack.c.b16 %v6829, %v6828
  %v6835 = vpack.c.b16 %v6831, %v6830
  %v6841 = vsel %vm4907, %v6784, 0
  %v6844 = vsel %vm4907, %v6785, 0
  %v6847 = vsel %vm4907, %v6786, 0
  %v6850 = vsel %vm4907, %v6787, 0
  %v6853 = vsel %vm4907, %v6804, 0
  %v6856 = vsel %vm4907, %v6805, 0
  %v6859 = vsel %vm4907, %v6806, 0
  %v6862 = vsel %vm4907, %v6807, 0
  %6864 = vmatpush.bf16.msra.mxu0 0
  %6865 = vmatpush.bf16.msra.mxu0 0
  %6866 = vmatpush.bf16.msra.mxu0 0
  %6867 = vmatpush.bf16.msra.mxu0 0
  %6868 = vmatpush.bf16.msra.mxu0 %v6835
  %6869 = vmatpush.bf16.msra.mxu0 %v6834
  %6870 = vmatpush.bf16.msra.mxu0 %v6833
  %6871 = vmatpush.bf16.msra.mxu0 %v6832
  %6872 = vmatmul.bf16.gmra.mxu0 %v6841
  %v6873 = vpop.f32.mrf.mxu0
  %v6874 = vadd.f32 0.0, %v6873
  %v6875 = vpop.f32.mrf.mxu0
  %v6876 = vadd.f32 0.0, %v6875
  %6877 = vmatmul.bf16.gmra.mxu0 %v6844
  %v6878 = vpop.f32.mrf.mxu0
  %v6879 = vadd.f32 0.0, %v6878
  %v6880 = vpop.f32.mrf.mxu0
  %v6881 = vadd.f32 0.0, %v6880
  %6882 = vmatmul.bf16.gmra.mxu0 %v6847
  %v6883 = vpop.f32.mrf.mxu0
  %v6884 = vadd.f32 0.0, %v6883
  %v6885 = vpop.f32.mrf.mxu0
  %v6886 = vadd.f32 0.0, %v6885
  %6887 = vmatmul.bf16.gmra.mxu0 %v6850
  %v6888 = vpop.f32.mrf.mxu0
  %v6889 = vadd.f32 0.0, %v6888
  %v6890 = vpop.f32.mrf.mxu0
  %v6891 = vadd.f32 0.0, %v6890
  %6892 = vmatmul.bf16.gmra.mxu0 %v6853
  %v6893 = vpop.f32.mrf.mxu0
  %v6894 = vadd.f32 0.0, %v6893
  %v6895 = vpop.f32.mrf.mxu0
  %v6896 = vadd.f32 0.0, %v6895
  %6897 = vmatmul.bf16.gmra.mxu0 %v6856
  %v6898 = vpop.f32.mrf.mxu0
  %v6899 = vadd.f32 0.0, %v6898
  %v6900 = vpop.f32.mrf.mxu0
  %v6901 = vadd.f32 0.0, %v6900
  %6902 = vmatmul.bf16.gmra.mxu0 %v6859
  %v6903 = vpop.f32.mrf.mxu0
  %v6904 = vadd.f32 0.0, %v6903
  %v6905 = vpop.f32.mrf.mxu0
  %v6906 = vadd.f32 0.0, %v6905
  %6907 = vmatmul.bf16.gmra.mxu0 %v6862
  %v6908 = vpop.f32.mrf.mxu0
  %v6909 = vadd.f32 0.0, %v6908
  %v6910 = vpop.f32.mrf.mxu0
  %v6911 = vadd.f32 0.0, %v6910
  %6912 = vdwg.mxu0
  %v6913 = vadd.f32 %v6559, %v6874
  %v6914 = vadd.f32 %v6560, %v6876
  %v6915 = vadd.f32 %v6561, %v6879
  %v6916 = vadd.f32 %v6562, %v6881
  %v6917 = vadd.f32 %v6563, %v6884
  %v6918 = vadd.f32 %v6564, %v6886
  %v6919 = vadd.f32 %v6565, %v6889
  %v6920 = vadd.f32 %v6566, %v6891
  %v6921 = vadd.f32 %v6567, %v6894
  %v6922 = vadd.f32 %v6568, %v6896
  %v6923 = vadd.f32 %v6569, %v6899
  %v6924 = vadd.f32 %v6570, %v6901
  %v6925 = vadd.f32 %v6571, %v6904
  %v6926 = vadd.f32 %v6572, %v6906
  %v6927 = vadd.f32 %v6573, %v6909
  %v6928 = vadd.f32 %v6574, %v6911
  %v6929 = vld [vmem:[#allocation3 + $0x1a0] sm:$0xf]
  %v6930 = vld [vmem:[#allocation3 + $0x1a4] sm:$0xf]
  %v6931 = vld [vmem:[#allocation3 + $0x1a8] sm:$0xf]
  %v6932 = vld [vmem:[#allocation3 + $0x1ac] sm:$0xf]
  %v6933 = vld [vmem:[#allocation3 + $0x1b0] sm:$0xf]
  %v6934 = vld [vmem:[#allocation3 + $0x1b4] sm:$0xf]
  %v6935 = vld [vmem:[#allocation3 + $0x1b8] sm:$0xf]
  %v6936 = vld [vmem:[#allocation3 + $0x1bc] sm:$0xf]
  %v6937 = vld [vmem:[#allocation3 + $0x3a0] sm:$0xf]
  %v6938 = vld [vmem:[#allocation3 + $0x3a4] sm:$0xf]
  %v6939 = vld [vmem:[#allocation3 + $0x3a8] sm:$0xf]
  %v6940 = vld [vmem:[#allocation3 + $0x3ac] sm:$0xf]
  %v6941 = vld [vmem:[#allocation3 + $0x3b0] sm:$0xf]
  %v6942 = vld [vmem:[#allocation3 + $0x3b4] sm:$0xf]
  %v6943 = vld [vmem:[#allocation3 + $0x3b8] sm:$0xf]
  %v6944 = vld [vmem:[#allocation3 + $0x3bc] sm:$0xf]
  %v6953 = vunpack.c.l.b16 %v6929
  %v6954 = vunpack.c.l.b16 %v6930
  %v6955 = vunpack.c.l.b16 %v6931
  %v6956 = vunpack.c.l.b16 %v6932
  %v6957 = vunpack.c.l.b16 %v6933
  %v6958 = vunpack.c.l.b16 %v6934
  %v6959 = vunpack.c.l.b16 %v6935
  %v6960 = vunpack.c.l.b16 %v6936
  %v6961 = vpack.c.b16 %v6954, %v6953
  %v6962 = vpack.c.b16 %v6956, %v6955
  %v6963 = vpack.c.b16 %v6958, %v6957
  %v6964 = vpack.c.b16 %v6960, %v6959
  %v6973 = vunpack.c.l.b16 %v6937
  %v6974 = vunpack.c.l.b16 %v6938
  %v6975 = vunpack.c.l.b16 %v6939
  %v6976 = vunpack.c.l.b16 %v6940
  %v6977 = vunpack.c.l.b16 %v6941
  %v6978 = vunpack.c.l.b16 %v6942
  %v6979 = vunpack.c.l.b16 %v6943
  %v6980 = vunpack.c.l.b16 %v6944
  %v6981 = vpack.c.b16 %v6974, %v6973
  %v6982 = vpack.c.b16 %v6976, %v6975
  %v6983 = vpack.c.b16 %v6978, %v6977
  %v6984 = vpack.c.b16 %v6980, %v6979
  %v6985 = vld [vmem:[%s4 + $0x1a0] sm:$0xf]
  %v6986 = vld [vmem:[%s4 + $0x1a4] sm:$0xf]
  %v6987 = vld [vmem:[%s4 + $0x1a8] sm:$0xf]
  %v6988 = vld [vmem:[%s4 + $0x1ac] sm:$0xf]
  %v6989 = vld [vmem:[%s4 + $0x1b0] sm:$0xf]
  %v6990 = vld [vmem:[%s4 + $0x1b4] sm:$0xf]
  %v6991 = vld [vmem:[%s4 + $0x1b8] sm:$0xf]
  %v6992 = vld [vmem:[%s4 + $0x1bc] sm:$0xf]
  %v7001 = vunpack.c.l.b16 %v6985
  %v7002 = vunpack.c.l.b16 %v6986
  %v7003 = vunpack.c.l.b16 %v6987
  %v7004 = vunpack.c.l.b16 %v6988
  %v7005 = vunpack.c.l.b16 %v6989
  %v7006 = vunpack.c.l.b16 %v6990
  %v7007 = vunpack.c.l.b16 %v6991
  %v7008 = vunpack.c.l.b16 %v6992
  %v7009 = vpack.c.b16 %v7002, %v7001
  %v7010 = vpack.c.b16 %v7004, %v7003
  %v7011 = vpack.c.b16 %v7006, %v7005
  %v7012 = vpack.c.b16 %v7008, %v7007
  %v7018 = vsel %vm4907, %v6961, 0
  %v7021 = vsel %vm4907, %v6962, 0
  %v7024 = vsel %vm4907, %v6963, 0
  %v7027 = vsel %vm4907, %v6964, 0
  %v7030 = vsel %vm4907, %v6981, 0
  %v7033 = vsel %vm4907, %v6982, 0
  %v7036 = vsel %vm4907, %v6983, 0
  %v7039 = vsel %vm4907, %v6984, 0
  %7041 = vmatpush.bf16.msra.mxu0 0
  %7042 = vmatpush.bf16.msra.mxu0 0
  %7043 = vmatpush.bf16.msra.mxu0 0
  %7044 = vmatpush.bf16.msra.mxu0 0
  %7045 = vmatpush.bf16.msra.mxu0 %v7012
  %7046 = vmatpush.bf16.msra.mxu0 %v7011
  %7047 = vmatpush.bf16.msra.mxu0 %v7010
  %7048 = vmatpush.bf16.msra.mxu0 %v7009
  %7049 = vmatmul.bf16.gmra.mxu0 %v7018
  %v7050 = vpop.f32.mrf.mxu0
  %v7051 = vadd.f32 0.0, %v7050
  %v7052 = vpop.f32.mrf.mxu0
  %v7053 = vadd.f32 0.0, %v7052
  %7054 = vmatmul.bf16.gmra.mxu0 %v7021
  %v7055 = vpop.f32.mrf.mxu0
  %v7056 = vadd.f32 0.0, %v7055
  %v7057 = vpop.f32.mrf.mxu0
  %v7058 = vadd.f32 0.0, %v7057
  %7059 = vmatmul.bf16.gmra.mxu0 %v7024
  %v7060 = vpop.f32.mrf.mxu0
  %v7061 = vadd.f32 0.0, %v7060
  %v7062 = vpop.f32.mrf.mxu0
  %v7063 = vadd.f32 0.0, %v7062
  %7064 = vmatmul.bf16.gmra.mxu0 %v7027
  %v7065 = vpop.f32.mrf.mxu0
  %v7066 = vadd.f32 0.0, %v7065
  %v7067 = vpop.f32.mrf.mxu0
  %v7068 = vadd.f32 0.0, %v7067
  %7069 = vmatmul.bf16.gmra.mxu0 %v7030
  %v7070 = vpop.f32.mrf.mxu0
  %v7071 = vadd.f32 0.0, %v7070
  %v7072 = vpop.f32.mrf.mxu0
  %v7073 = vadd.f32 0.0, %v7072
  %7074 = vmatmul.bf16.gmra.mxu0 %v7033
  %v7075 = vpop.f32.mrf.mxu0
  %v7076 = vadd.f32 0.0, %v7075
  %v7077 = vpop.f32.mrf.mxu0
  %v7078 = vadd.f32 0.0, %v7077
  %7079 = vmatmul.bf16.gmra.mxu0 %v7036
  %v7080 = vpop.f32.mrf.mxu0
  %v7081 = vadd.f32 0.0, %v7080
  %v7082 = vpop.f32.mrf.mxu0
  %v7083 = vadd.f32 0.0, %v7082
  %7084 = vmatmul.bf16.gmra.mxu0 %v7039
  %v7085 = vpop.f32.mrf.mxu0
  %v7086 = vadd.f32 0.0, %v7085
  %v7087 = vpop.f32.mrf.mxu0
  %v7088 = vadd.f32 0.0, %v7087
  %7089 = vdwg.mxu0
  %v7090 = vadd.f32 %v6736, %v7051
  %v7091 = vadd.f32 %v6737, %v7053
  %v7092 = vadd.f32 %v6738, %v7056
  %v7093 = vadd.f32 %v6739, %v7058
  %v7094 = vadd.f32 %v6740, %v7061
  %v7095 = vadd.f32 %v6741, %v7063
  %v7096 = vadd.f32 %v6742, %v7066
  %v7097 = vadd.f32 %v6743, %v7068
  %v7098 = vadd.f32 %v6744, %v7071
  %v7099 = vadd.f32 %v6745, %v7073
  %v7100 = vadd.f32 %v6746, %v7076
  %v7101 = vadd.f32 %v6747, %v7078
  %v7102 = vadd.f32 %v6748, %v7081
  %v7103 = vadd.f32 %v6749, %v7083
  %v7104 = vadd.f32 %v6750, %v7086
  %v7105 = vadd.f32 %v6751, %v7088
  %v7106 = vld [vmem:[#allocation3 + $0x1c0] sm:$0xf]
  %v7107 = vld [vmem:[#allocation3 + $0x1c4] sm:$0xf]
  %v7108 = vld [vmem:[#allocation3 + $0x1c8] sm:$0xf]
  %v7109 = vld [vmem:[#allocation3 + $0x1cc] sm:$0xf]
  %v7110 = vld [vmem:[#allocation3 + $0x1d0] sm:$0xf]
  %v7111 = vld [vmem:[#allocation3 + $0x1d4] sm:$0xf]
  %v7112 = vld [vmem:[#allocation3 + $0x1d8] sm:$0xf]
  %v7113 = vld [vmem:[#allocation3 + $0x1dc] sm:$0xf]
  %v7114 = vld [vmem:[#allocation3 + $0x3c0] sm:$0xf]
  %v7115 = vld [vmem:[#allocation3 + $0x3c4] sm:$0xf]
  %v7116 = vld [vmem:[#allocation3 + $0x3c8] sm:$0xf]
  %v7117 = vld [vmem:[#allocation3 + $0x3cc] sm:$0xf]
  %v7118 = vld [vmem:[#allocation3 + $0x3d0] sm:$0xf]
  %v7119 = vld [vmem:[#allocation3 + $0x3d4] sm:$0xf]
  %v7120 = vld [vmem:[#allocation3 + $0x3d8] sm:$0xf]
  %v7121 = vld [vmem:[#allocation3 + $0x3dc] sm:$0xf]
  %v7130 = vunpack.c.l.b16 %v7106
  %v7131 = vunpack.c.l.b16 %v7107
  %v7132 = vunpack.c.l.b16 %v7108
  %v7133 = vunpack.c.l.b16 %v7109
  %v7134 = vunpack.c.l.b16 %v7110
  %v7135 = vunpack.c.l.b16 %v7111
  %v7136 = vunpack.c.l.b16 %v7112
  %v7137 = vunpack.c.l.b16 %v7113
  %v7138 = vpack.c.b16 %v7131, %v7130
  %v7139 = vpack.c.b16 %v7133, %v7132
  %v7140 = vpack.c.b16 %v7135, %v7134
  %v7141 = vpack.c.b16 %v7137, %v7136
  %v7150 = vunpack.c.l.b16 %v7114
  %v7151 = vunpack.c.l.b16 %v7115
  %v7152 = vunpack.c.l.b16 %v7116
  %v7153 = vunpack.c.l.b16 %v7117
  %v7154 = vunpack.c.l.b16 %v7118
  %v7155 = vunpack.c.l.b16 %v7119
  %v7156 = vunpack.c.l.b16 %v7120
  %v7157 = vunpack.c.l.b16 %v7121
  %v7158 = vpack.c.b16 %v7151, %v7150
  %v7159 = vpack.c.b16 %v7153, %v7152
  %v7160 = vpack.c.b16 %v7155, %v7154
  %v7161 = vpack.c.b16 %v7157, %v7156
  %v7162 = vld [vmem:[%s4 + $0x1c0] sm:$0xf]
  %v7163 = vld [vmem:[%s4 + $0x1c4] sm:$0xf]
  %v7164 = vld [vmem:[%s4 + $0x1c8] sm:$0xf]
  %v7165 = vld [vmem:[%s4 + $0x1cc] sm:$0xf]
  %v7166 = vld [vmem:[%s4 + $0x1d0] sm:$0xf]
  %v7167 = vld [vmem:[%s4 + $0x1d4] sm:$0xf]
  %v7168 = vld [vmem:[%s4 + $0x1d8] sm:$0xf]
  %v7169 = vld [vmem:[%s4 + $0x1dc] sm:$0xf]
  %v7178 = vunpack.c.l.b16 %v7162
  %v7179 = vunpack.c.l.b16 %v7163
  %v7180 = vunpack.c.l.b16 %v7164
  %v7181 = vunpack.c.l.b16 %v7165
  %v7182 = vunpack.c.l.b16 %v7166
  %v7183 = vunpack.c.l.b16 %v7167
  %v7184 = vunpack.c.l.b16 %v7168
  %v7185 = vunpack.c.l.b16 %v7169
  %v7186 = vpack.c.b16 %v7179, %v7178
  %v7187 = vpack.c.b16 %v7181, %v7180
  %v7188 = vpack.c.b16 %v7183, %v7182
  %v7189 = vpack.c.b16 %v7185, %v7184
  %v7195 = vsel %vm4907, %v7138, 0
  %v7198 = vsel %vm4907, %v7139, 0
  %v7201 = vsel %vm4907, %v7140, 0
  %v7204 = vsel %vm4907, %v7141, 0
  %v7207 = vsel %vm4907, %v7158, 0
  %v7210 = vsel %vm4907, %v7159, 0
  %v7213 = vsel %vm4907, %v7160, 0
  %v7216 = vsel %vm4907, %v7161, 0
  %7218 = vmatpush.bf16.msra.mxu0 0
  %7219 = vmatpush.bf16.msra.mxu0 0
  %7220 = vmatpush.bf16.msra.mxu0 0
  %7221 = vmatpush.bf16.msra.mxu0 0
  %7222 = vmatpush.bf16.msra.mxu0 %v7189
  %7223 = vmatpush.bf16.msra.mxu0 %v7188
  %7224 = vmatpush.bf16.msra.mxu0 %v7187
  %7225 = vmatpush.bf16.msra.mxu0 %v7186
  %7226 = vmatmul.bf16.gmra.mxu0 %v7195
  %v7227 = vpop.f32.mrf.mxu0
  %v7228 = vadd.f32 0.0, %v7227
  %v7229 = vpop.f32.mrf.mxu0
  %v7230 = vadd.f32 0.0, %v7229
  %7231 = vmatmul.bf16.gmra.mxu0 %v7198
  %v7232 = vpop.f32.mrf.mxu0
  %v7233 = vadd.f32 0.0, %v7232
  %v7234 = vpop.f32.mrf.mxu0
  %v7235 = vadd.f32 0.0, %v7234
  %7236 = vmatmul.bf16.gmra.mxu0 %v7201
  %v7237 = vpop.f32.mrf.mxu0
  %v7238 = vadd.f32 0.0, %v7237
  %v7239 = vpop.f32.mrf.mxu0
  %v7240 = vadd.f32 0.0, %v7239
  %7241 = vmatmul.bf16.gmra.mxu0 %v7204
  %v7242 = vpop.f32.mrf.mxu0
  %v7243 = vadd.f32 0.0, %v7242
  %v7244 = vpop.f32.mrf.mxu0
  %v7245 = vadd.f32 0.0, %v7244
  %7246 = vmatmul.bf16.gmra.mxu0 %v7207
  %v7247 = vpop.f32.mrf.mxu0
  %v7248 = vadd.f32 0.0, %v7247
  %v7249 = vpop.f32.mrf.mxu0
  %v7250 = vadd.f32 0.0, %v7249
  %7251 = vmatmul.bf16.gmra.mxu0 %v7210
  %v7252 = vpop.f32.mrf.mxu0
  %v7253 = vadd.f32 0.0, %v7252
  %v7254 = vpop.f32.mrf.mxu0
  %v7255 = vadd.f32 0.0, %v7254
  %7256 = vmatmul.bf16.gmra.mxu0 %v7213
  %v7257 = vpop.f32.mrf.mxu0
  %v7258 = vadd.f32 0.0, %v7257
  %v7259 = vpop.f32.mrf.mxu0
  %v7260 = vadd.f32 0.0, %v7259
  %7261 = vmatmul.bf16.gmra.mxu0 %v7216
  %v7262 = vpop.f32.mrf.mxu0
  %v7263 = vadd.f32 0.0, %v7262
  %v7264 = vpop.f32.mrf.mxu0
  %v7265 = vadd.f32 0.0, %v7264
  %7266 = vdwg.mxu0
  %v7267 = vadd.f32 %v6913, %v7228
  %v7268 = vadd.f32 %v6914, %v7230
  %v7269 = vadd.f32 %v6915, %v7233
  %v7270 = vadd.f32 %v6916, %v7235
  %v7271 = vadd.f32 %v6917, %v7238
  %v7272 = vadd.f32 %v6918, %v7240
  %v7273 = vadd.f32 %v6919, %v7243
  %v7274 = vadd.f32 %v6920, %v7245
  %v7275 = vadd.f32 %v6921, %v7248
  %v7276 = vadd.f32 %v6922, %v7250
  %v7277 = vadd.f32 %v6923, %v7253
  %v7278 = vadd.f32 %v6924, %v7255
  %v7279 = vadd.f32 %v6925, %v7258
  %v7280 = vadd.f32 %v6926, %v7260
  %v7281 = vadd.f32 %v6927, %v7263
  %v7282 = vadd.f32 %v6928, %v7265
  %v7283 = vld [vmem:[#allocation3 + $0x1e0] sm:$0xf]
  %v7284 = vld [vmem:[#allocation3 + $0x1e4] sm:$0xf]
  %v7285 = vld [vmem:[#allocation3 + $0x1e8] sm:$0xf]
  %v7286 = vld [vmem:[#allocation3 + $0x1ec] sm:$0xf]
  %v7287 = vld [vmem:[#allocation3 + $0x1f0] sm:$0xf]
  %v7288 = vld [vmem:[#allocation3 + $0x1f4] sm:$0xf]
  %v7289 = vld [vmem:[#allocation3 + $0x1f8] sm:$0xf]
  %v7290 = vld [vmem:[#allocation3 + $0x1fc] sm:$0xf]
  %v7291 = vld [vmem:[#allocation3 + $0x3e0] sm:$0xf]
  %v7292 = vld [vmem:[#allocation3 + $0x3e4] sm:$0xf]
  %v7293 = vld [vmem:[#allocation3 + $0x3e8] sm:$0xf]
  %v7294 = vld [vmem:[#allocation3 + $0x3ec] sm:$0xf]
  %v7295 = vld [vmem:[#allocation3 + $0x3f0] sm:$0xf]
  %v7296 = vld [vmem:[#allocation3 + $0x3f4] sm:$0xf]
  %v7297 = vld [vmem:[#allocation3 + $0x3f8] sm:$0xf]
  %v7298 = vld [vmem:[#allocation3 + $0x3fc] sm:$0xf]
  %v7307 = vunpack.c.l.b16 %v7283
  %v7308 = vunpack.c.l.b16 %v7284
  %v7309 = vunpack.c.l.b16 %v7285
  %v7310 = vunpack.c.l.b16 %v7286
  %v7311 = vunpack.c.l.b16 %v7287
  %v7312 = vunpack.c.l.b16 %v7288
  %v7313 = vunpack.c.l.b16 %v7289
  %v7314 = vunpack.c.l.b16 %v7290
  %v7315 = vpack.c.b16 %v7308, %v7307
  %v7316 = vpack.c.b16 %v7310, %v7309
  %v7317 = vpack.c.b16 %v7312, %v7311
  %v7318 = vpack.c.b16 %v7314, %v7313
  %v7327 = vunpack.c.l.b16 %v7291
  %v7328 = vunpack.c.l.b16 %v7292
  %v7329 = vunpack.c.l.b16 %v7293
  %v7330 = vunpack.c.l.b16 %v7294
  %v7331 = vunpack.c.l.b16 %v7295
  %v7332 = vunpack.c.l.b16 %v7296
  %v7333 = vunpack.c.l.b16 %v7297
  %v7334 = vunpack.c.l.b16 %v7298
  %v7335 = vpack.c.b16 %v7328, %v7327
  %v7336 = vpack.c.b16 %v7330, %v7329
  %v7337 = vpack.c.b16 %v7332, %v7331
  %v7338 = vpack.c.b16 %v7334, %v7333
  %v7339 = vld [vmem:[%s4 + $0x1e0] sm:$0xf]
  %v7340 = vld [vmem:[%s4 + $0x1e4] sm:$0xf]
  %v7341 = vld [vmem:[%s4 + $0x1e8] sm:$0xf]
  %v7342 = vld [vmem:[%s4 + $0x1ec] sm:$0xf]
  %v7343 = vld [vmem:[%s4 + $0x1f0] sm:$0xf]
  %v7344 = vld [vmem:[%s4 + $0x1f4] sm:$0xf]
  %v7345 = vld [vmem:[%s4 + $0x1f8] sm:$0xf]
  %v7346 = vld [vmem:[%s4 + $0x1fc] sm:$0xf]
  %v7355 = vunpack.c.l.b16 %v7339
  %v7356 = vunpack.c.l.b16 %v7340
  %v7357 = vunpack.c.l.b16 %v7341
  %v7358 = vunpack.c.l.b16 %v7342
  %v7359 = vunpack.c.l.b16 %v7343
  %v7360 = vunpack.c.l.b16 %v7344
  %v7361 = vunpack.c.l.b16 %v7345
  %v7362 = vunpack.c.l.b16 %v7346
  %v7363 = vpack.c.b16 %v7356, %v7355
  %v7364 = vpack.c.b16 %v7358, %v7357
  %v7365 = vpack.c.b16 %v7360, %v7359
  %v7366 = vpack.c.b16 %v7362, %v7361
  %v7372 = vsel %vm4907, %v7315, 0
  %v7375 = vsel %vm4907, %v7316, 0
  %v7378 = vsel %vm4907, %v7317, 0
  %v7381 = vsel %vm4907, %v7318, 0
  %v7384 = vsel %vm4907, %v7335, 0
  %v7387 = vsel %vm4907, %v7336, 0
  %v7390 = vsel %vm4907, %v7337, 0
  %v7393 = vsel %vm4907, %v7338, 0
  %7395 = vmatpush.bf16.msra.mxu0 0
  %7396 = vmatpush.bf16.msra.mxu0 0
  %7397 = vmatpush.bf16.msra.mxu0 0
  %7398 = vmatpush.bf16.msra.mxu0 0
  %7399 = vmatpush.bf16.msra.mxu0 %v7366
  %7400 = vmatpush.bf16.msra.mxu0 %v7365
  %7401 = vmatpush.bf16.msra.mxu0 %v7364
  %7402 = vmatpush.bf16.msra.mxu0 %v7363
  %7403 = vmatmul.bf16.gmra.mxu0 %v7372
  %v7404 = vpop.f32.mrf.mxu0
  %v7405 = vadd.f32 0.0, %v7404
  %v7406 = vpop.f32.mrf.mxu0
  %v7407 = vadd.f32 0.0, %v7406
  %7408 = vmatmul.bf16.gmra.mxu0 %v7375
  %v7409 = vpop.f32.mrf.mxu0
  %v7410 = vadd.f32 0.0, %v7409
  %v7411 = vpop.f32.mrf.mxu0
  %v7412 = vadd.f32 0.0, %v7411
  %7413 = vmatmul.bf16.gmra.mxu0 %v7378
  %v7414 = vpop.f32.mrf.mxu0
  %v7415 = vadd.f32 0.0, %v7414
  %v7416 = vpop.f32.mrf.mxu0
  %v7417 = vadd.f32 0.0, %v7416
  %7418 = vmatmul.bf16.gmra.mxu0 %v7381
  %v7419 = vpop.f32.mrf.mxu0
  %v7420 = vadd.f32 0.0, %v7419
  %v7421 = vpop.f32.mrf.mxu0
  %v7422 = vadd.f32 0.0, %v7421
  %7423 = vmatmul.bf16.gmra.mxu0 %v7384
  %v7424 = vpop.f32.mrf.mxu0
  %v7425 = vadd.f32 0.0, %v7424
  %v7426 = vpop.f32.mrf.mxu0
  %v7427 = vadd.f32 0.0, %v7426
  %7428 = vmatmul.bf16.gmra.mxu0 %v7387
  %v7429 = vpop.f32.mrf.mxu0
  %v7430 = vadd.f32 0.0, %v7429
  %v7431 = vpop.f32.mrf.mxu0
  %v7432 = vadd.f32 0.0, %v7431
  %7433 = vmatmul.bf16.gmra.mxu0 %v7390
  %v7434 = vpop.f32.mrf.mxu0
  %v7435 = vadd.f32 0.0, %v7434
  %v7436 = vpop.f32.mrf.mxu0
  %v7437 = vadd.f32 0.0, %v7436
  %7438 = vmatmul.bf16.gmra.mxu0 %v7393
  %v7439 = vpop.f32.mrf.mxu0
  %v7440 = vadd.f32 0.0, %v7439
  %v7441 = vpop.f32.mrf.mxu0
  %v7442 = vadd.f32 0.0, %v7441
  %7443 = vdwg.mxu0
  %v7444 = vadd.f32 %v7090, %v7405
  %v7445 = vadd.f32 %v7091, %v7407
  %v7446 = vadd.f32 %v7092, %v7410
  %v7447 = vadd.f32 %v7093, %v7412
  %v7448 = vadd.f32 %v7094, %v7415
  %v7449 = vadd.f32 %v7095, %v7417
  %v7450 = vadd.f32 %v7096, %v7420
  %v7451 = vadd.f32 %v7097, %v7422
  %v7452 = vadd.f32 %v7098, %v7425
  %v7453 = vadd.f32 %v7099, %v7427
  %v7454 = vadd.f32 %v7100, %v7430
  %v7455 = vadd.f32 %v7101, %v7432
  %v7456 = vadd.f32 %v7102, %v7435
  %v7457 = vadd.f32 %v7103, %v7437
  %v7458 = vadd.f32 %v7104, %v7440
  %v7459 = vadd.f32 %v7105, %v7442
  %v7460 = vadd.f32 %v7267, %v7444
  %v7461 = vadd.f32 %v7268, %v7445
  %v7462 = vadd.f32 %v7269, %v7446
  %v7463 = vadd.f32 %v7270, %v7447
  %v7464 = vadd.f32 %v7271, %v7448
  %v7465 = vadd.f32 %v7272, %v7449
  %v7466 = vadd.f32 %v7273, %v7450
  %v7467 = vadd.f32 %v7274, %v7451
  %v7468 = vadd.f32 %v7275, %v7452
  %v7469 = vadd.f32 %v7276, %v7453
  %v7470 = vadd.f32 %v7277, %v7454
  %v7471 = vadd.f32 %v7278, %v7455
  %v7472 = vadd.f32 %v7279, %v7456
  %v7473 = vadd.f32 %v7280, %v7457
  %v7474 = vadd.f32 %v7281, %v7458
  %v7475 = vadd.f32 %v7282, %v7459
  %v7476 = vld [vmem:[%s5] sm:$0x1]
  %v7478 = vperm.slane %v7476, 0
  %v7480 = vadd.f32 %v7460, %v7478
  %v7481 = vadd.f32 %v7461, %v7478
  %v7482 = vadd.f32 %v7462, %v7478
  %v7483 = vadd.f32 %v7463, %v7478
  %v7484 = vadd.f32 %v7464, %v7478
  %v7485 = vadd.f32 %v7465, %v7478
  %v7486 = vadd.f32 %v7466, %v7478
  %v7487 = vadd.f32 %v7467, %v7478
  %v7488 = vadd.f32 %v7468, %v7478
  %v7489 = vadd.f32 %v7469, %v7478
  %v7490 = vadd.f32 %v7470, %v7478
  %v7491 = vadd.f32 %v7471, %v7478
  %v7492 = vadd.f32 %v7472, %v7478
  %v7493 = vadd.f32 %v7473, %v7478
  %v7494 = vadd.f32 %v7474, %v7478
  %v7495 = vadd.f32 %v7475, %v7478
  %v7496 = vld [vmem:[%s6] sm:$0x1]
  %v7497 = vld [vmem:[%s7] sm:$0x1]
  %v7498 = vadd.f32 %v7480, %v7481
  %v7499 = vadd.f32 %v7498, %v7482
  %v7500 = vadd.f32 %v7499, %v7483
  %v7501 = vadd.f32 %v7500, %v7484
  %v7502 = vadd.f32 %v7501, %v7485
  %v7503 = vadd.f32 %v7502, %v7486
  %v7504 = vadd.f32 %v7503, %v7487
  %v7505 = vadd.f32 %v7504, %v7488
  %v7506 = vadd.f32 %v7505, %v7489
  %v7507 = vadd.f32 %v7506, %v7490
  %v7508 = vadd.f32 %v7507, %v7491
  %v7509 = vadd.f32 %v7508, %v7492
  %v7510 = vadd.f32 %v7509, %v7493
  %v7511 = vadd.f32 %v7510, %v7494
  %v7512 = vadd.f32 %v7511, %v7495
  %v7513 = vrot.slane %v7512, 4
  %v7514 = vadd.f32 %v7512, %v7513
  %v7515 = vrot.slane %v7514, 2
  %v7516 = vadd.f32 %v7514, %v7515
  %v7517 = vrot.slane %v7516, 1
  %v7518 = vadd.f32 %v7516, %v7517
  %v7519 = vrcp.pop 128.0
  %v7520 = vmul.f32 128.0, %v7519
  %v7521 = vsub.f32 1.0, %v7520
  %v7522 = vmul.f32 %v7519, %v7521
  %v7523 = vadd.f32 %v7519, %v7522
  %vm7524 = vweird.f32 %v7519
  %v7525 = vsel %vm7524, %v7519, %v7523
  %v7526 = vmul.f32 %v7518, %v7525
  %v7527 = vsub.f32 %v7480, %v7526
  %v7528 = vsub.f32 %v7481, %v7526
  %v7529 = vsub.f32 %v7482, %v7526
  %v7530 = vsub.f32 %v7483, %v7526
  %v7531 = vsub.f32 %v7484, %v7526
  %v7532 = vsub.f32 %v7485, %v7526
  %v7533 = vsub.f32 %v7486, %v7526
  %v7534 = vsub.f32 %v7487, %v7526
  %v7535 = vsub.f32 %v7488, %v7526
  %v7536 = vsub.f32 %v7489, %v7526
  %v7537 = vsub.f32 %v7490, %v7526
  %v7538 = vsub.f32 %v7491, %v7526
  %v7539 = vsub.f32 %v7492, %v7526
  %v7540 = vsub.f32 %v7493, %v7526
  %v7541 = vsub.f32 %v7494, %v7526
  %v7542 = vsub.f32 %v7495, %v7526
  %v7543 = vmul.f32 %v7527, %v7527
  %v7544 = vmul.f32 %v7528, %v7528
  %v7545 = vmul.f32 %v7529, %v7529
  %v7546 = vmul.f32 %v7530, %v7530
  %v7547 = vmul.f32 %v7531, %v7531
  %v7548 = vmul.f32 %v7532, %v7532
  %v7549 = vmul.f32 %v7533, %v7533
  %v7550 = vmul.f32 %v7534, %v7534
  %v7551 = vmul.f32 %v7535, %v7535
  %v7552 = vmul.f32 %v7536, %v7536
  %v7553 = vmul.f32 %v7537, %v7537
  %v7554 = vmul.f32 %v7538, %v7538
  %v7555 = vmul.f32 %v7539, %v7539
  %v7556 = vmul.f32 %v7540, %v7540
  %v7557 = vmul.f32 %v7541, %v7541
  %v7558 = vmul.f32 %v7542, %v7542
  %v7559 = vadd.f32 %v7543, %v7544
  %v7560 = vadd.f32 %v7559, %v7545
  %v7561 = vadd.f32 %v7560, %v7546
  %v7562 = vadd.f32 %v7561, %v7547
  %v7563 = vadd.f32 %v7562, %v7548
  %v7564 = vadd.f32 %v7563, %v7549
  %v7565 = vadd.f32 %v7564, %v7550
  %v7566 = vadd.f32 %v7565, %v7551
  %v7567 = vadd.f32 %v7566, %v7552
  %v7568 = vadd.f32 %v7567, %v7553
  %v7569 = vadd.f32 %v7568, %v7554
  %v7570 = vadd.f32 %v7569, %v7555
  %v7571 = vadd.f32 %v7570, %v7556
  %v7572 = vadd.f32 %v7571, %v7557
  %v7573 = vadd.f32 %v7572, %v7558
  %v7574 = vrot.slane %v7573, 4
  %v7575 = vadd.f32 %v7573, %v7574
  %v7576 = vrot.slane %v7575, 2
  %v7577 = vadd.f32 %v7575, %v7576
  %v7578 = vrot.slane %v7577, 1
  %v7579 = vadd.f32 %v7577, %v7578
  %v7580 = vmul.f32 %v7579, %v7525
  %v7581 = vadd.f32 %v7580, 1e-05
  %v7582 = vrsqrt.pop %v7581
  %v7583 = vmul.f32 %v7582, %v7581
  %v7584 = vmul.f32 %v7583, %v7582
  %v7585 = vmul.f32 0.5, %v7584
  %v7586 = vsub.f32 1.5, %v7585
  %v7587 = vmul.f32 %v7582, %v7586
  %vm7588 = vweird.f32 %v7581
  %vm7589 = vweird.f32 %v7582
  %vm7590 = vmor %vm7588, %vm7589
  %v7591 = vsel %vm7590, %v7582, %v7587
  %v7592 = vmul.f32 %v7527, %v7591
  %v7593 = vmul.f32 %v7528, %v7591
  %v7594 = vmul.f32 %v7529, %v7591
  %v7595 = vmul.f32 %v7530, %v7591
  %v7596 = vmul.f32 %v7531, %v7591
  %v7597 = vmul.f32 %v7532, %v7591
  %v7598 = vmul.f32 %v7533, %v7591
  %v7599 = vmul.f32 %v7534, %v7591
  %v7600 = vmul.f32 %v7535, %v7591
  %v7601 = vmul.f32 %v7536, %v7591
  %v7602 = vmul.f32 %v7537, %v7591
  %v7603 = vmul.f32 %v7538, %v7591
  %v7604 = vmul.f32 %v7539, %v7591
  %v7605 = vmul.f32 %v7540, %v7591
  %v7606 = vmul.f32 %v7541, %v7591
  %v7607 = vmul.f32 %v7542, %v7591
  %v7609 = vperm.slane %v7496, 0
  %v7611 = vmul.f32 %v7592, %v7609
  %v7612 = vmul.f32 %v7593, %v7609
  %v7613 = vmul.f32 %v7594, %v7609
  %v7614 = vmul.f32 %v7595, %v7609
  %v7615 = vmul.f32 %v7596, %v7609
  %v7616 = vmul.f32 %v7597, %v7609
  %v7617 = vmul.f32 %v7598, %v7609
  %v7618 = vmul.f32 %v7599, %v7609
  %v7619 = vmul.f32 %v7600, %v7609
  %v7620 = vmul.f32 %v7601, %v7609
  %v7621 = vmul.f32 %v7602, %v7609
  %v7622 = vmul.f32 %v7603, %v7609
  %v7623 = vmul.f32 %v7604, %v7609
  %v7624 = vmul.f32 %v7605, %v7609
  %v7625 = vmul.f32 %v7606, %v7609
  %v7626 = vmul.f32 %v7607, %v7609
  %v7628 = vperm.slane %v7497, 0
  %v7630 = vadd.f32 %v7611, %v7628
  %v7631 = vadd.f32 %v7612, %v7628
  %v7632 = vadd.f32 %v7613, %v7628
  %v7633 = vadd.f32 %v7614, %v7628
  %v7634 = vadd.f32 %v7615, %v7628
  %v7635 = vadd.f32 %v7616, %v7628
  %v7636 = vadd.f32 %v7617, %v7628
  %v7637 = vadd.f32 %v7618, %v7628
  %v7638 = vadd.f32 %v7619, %v7628
  %v7639 = vadd.f32 %v7620, %v7628
  %v7640 = vadd.f32 %v7621, %v7628
  %v7641 = vadd.f32 %v7622, %v7628
  %v7642 = vadd.f32 %v7623, %v7628
  %v7643 = vadd.f32 %v7624, %v7628
  %v7644 = vadd.f32 %v7625, %v7628
  %v7645 = vadd.f32 %v7626, %v7628
  %v7646 = vmul.f32 %v7630, 0.2
  %v7647 = vmul.f32 %v7631, 0.2
  %v7648 = vmul.f32 %v7632, 0.2
  %v7649 = vmul.f32 %v7633, 0.2
  %v7650 = vmul.f32 %v7634, 0.2
  %v7651 = vmul.f32 %v7635, 0.2
  %v7652 = vmul.f32 %v7636, 0.2
  %v7653 = vmul.f32 %v7637, 0.2
  %v7654 = vmul.f32 %v7638, 0.2
  %v7655 = vmul.f32 %v7639, 0.2
  %v7656 = vmul.f32 %v7640, 0.2
  %v7657 = vmul.f32 %v7641, 0.2
  %v7658 = vmul.f32 %v7642, 0.2
  %v7659 = vmul.f32 %v7643, 0.2
  %v7660 = vmul.f32 %v7644, 0.2
  %v7661 = vmul.f32 %v7645, 0.2
  %v7662 = vmax.f32 %v7630, %v7646
  %v7663 = vmax.f32 %v7631, %v7647
  %v7664 = vmax.f32 %v7632, %v7648
  %v7665 = vmax.f32 %v7633, %v7649
  %v7666 = vmax.f32 %v7634, %v7650
  %v7667 = vmax.f32 %v7635, %v7651
  %v7668 = vmax.f32 %v7636, %v7652
  %v7669 = vmax.f32 %v7637, %v7653
  %v7670 = vmax.f32 %v7638, %v7654
  %v7671 = vmax.f32 %v7639, %v7655
  %v7672 = vmax.f32 %v7640, %v7656
  %v7673 = vmax.f32 %v7641, %v7657
  %v7674 = vmax.f32 %v7642, %v7658
  %v7675 = vmax.f32 %v7643, %v7659
  %v7676 = vmax.f32 %v7644, %v7660
  %v7677 = vmax.f32 %v7645, %v7661
  %v7678 = vpack.c.bf16 %v7662, %v7662
  %v7679 = vpack.c.bf16 %v7663, %v7663
  %v7680 = vpack.c.bf16 %v7664, %v7664
  %v7681 = vpack.c.bf16 %v7665, %v7665
  %v7682 = vpack.c.bf16 %v7666, %v7666
  %v7683 = vpack.c.bf16 %v7667, %v7667
  %v7684 = vpack.c.bf16 %v7668, %v7668
  %v7685 = vpack.c.bf16 %v7669, %v7669
  %v7686 = vpack.c.bf16 %v7670, %v7670
  %v7687 = vpack.c.bf16 %v7671, %v7671
  %v7688 = vpack.c.bf16 %v7672, %v7672
  %v7689 = vpack.c.bf16 %v7673, %v7673
  %v7690 = vpack.c.bf16 %v7674, %v7674
  %v7691 = vpack.c.bf16 %v7675, %v7675
  %v7692 = vpack.c.bf16 %v7676, %v7676
  %v7693 = vpack.c.bf16 %v7677, %v7677
  %7694 = vst [vmem:[#allocation4] sm:$0xf] %v7678
  %7695 = vst [vmem:[#allocation4 + $0x4] sm:$0xf] %v7679
  %7696 = vst [vmem:[#allocation4 + $0x8] sm:$0xf] %v7680
  %7697 = vst [vmem:[#allocation4 + $0xc] sm:$0xf] %v7681
  %7698 = vst [vmem:[#allocation4 + $0x10] sm:$0xf] %v7682
  %7699 = vst [vmem:[#allocation4 + $0x14] sm:$0xf] %v7683
  %7700 = vst [vmem:[#allocation4 + $0x18] sm:$0xf] %v7684
  %7701 = vst [vmem:[#allocation4 + $0x1c] sm:$0xf] %v7685
  %7702 = vst [vmem:[#allocation4 + $0x20] sm:$0xf] %v7686
  %7703 = vst [vmem:[#allocation4 + $0x24] sm:$0xf] %v7687
  %7704 = vst [vmem:[#allocation4 + $0x28] sm:$0xf] %v7688
  %7705 = vst [vmem:[#allocation4 + $0x2c] sm:$0xf] %v7689
  %7706 = vst [vmem:[#allocation4 + $0x30] sm:$0xf] %v7690
  %7707 = vst [vmem:[#allocation4 + $0x34] sm:$0xf] %v7691
  %7708 = vst [vmem:[#allocation4 + $0x38] sm:$0xf] %v7692
  %7709 = vst [vmem:[#allocation4 + $0x3c] sm:$0xf] %v7693
  %v7710 = vld [vmem:[%s8] sm:$0xf]
  %v7711 = vld [vmem:[%s8 + $0x4] sm:$0xf]
  %v7712 = vld [vmem:[%s8 + $0x8] sm:$0xf]
  %v7713 = vld [vmem:[%s8 + $0xc] sm:$0xf]
  %v7714 = vld [vmem:[%s8 + $0x10] sm:$0xf]
  %v7715 = vld [vmem:[%s8 + $0x14] sm:$0xf]
  %v7716 = vld [vmem:[%s8 + $0x18] sm:$0xf]
  %v7717 = vld [vmem:[%s8 + $0x1c] sm:$0xf]
  %v7718 = vld [vmem:[%s8 + $0x20] sm:$0xf]
  %v7719 = vld [vmem:[%s8 + $0x24] sm:$0xf]
  %v7720 = vld [vmem:[%s8 + $0x28] sm:$0xf]
  %v7721 = vld [vmem:[%s8 + $0x2c] sm:$0xf]
  %v7722 = vld [vmem:[%s8 + $0x30] sm:$0xf]
  %v7723 = vld [vmem:[%s8 + $0x34] sm:$0xf]
  %v7724 = vld [vmem:[%s8 + $0x38] sm:$0xf]
  %v7725 = vld [vmem:[%s8 + $0x3c] sm:$0xf]
  %v7726 = vld [vmem:[%s8 + $0x40] sm:$0xf]
  %v7727 = vld [vmem:[%s8 + $0x44] sm:$0xf]
  %v7728 = vld [vmem:[%s8 + $0x48] sm:$0xf]
  %v7729 = vld [vmem:[%s8 + $0x4c] sm:$0xf]
  %v7730 = vld [vmem:[%s8 + $0x50] sm:$0xf]
  %v7731 = vld [vmem:[%s8 + $0x54] sm:$0xf]
  %v7732 = vld [vmem:[%s8 + $0x58] sm:$0xf]
  %v7733 = vld [vmem:[%s8 + $0x5c] sm:$0xf]
  %v7734 = vld [vmem:[%s8 + $0x60] sm:$0xf]
  %v7735 = vld [vmem:[%s8 + $0x64] sm:$0xf]
  %v7736 = vld [vmem:[%s8 + $0x68] sm:$0xf]
  %v7737 = vld [vmem:[%s8 + $0x6c] sm:$0xf]
  %v7738 = vld [vmem:[%s8 + $0x70] sm:$0xf]
  %v7739 = vld [vmem:[%s8 + $0x74] sm:$0xf]
  %v7740 = vld [vmem:[%s8 + $0x78] sm:$0xf]
  %v7741 = vld [vmem:[%s8 + $0x7c] sm:$0xf]
  %v7742 = vld [vmem:[#allocation4] sm:$0xf]
  %v7743 = vld [vmem:[#allocation4 + $0x4] sm:$0xf]
  %v7744 = vld [vmem:[#allocation4 + $0x8] sm:$0xf]
  %v7745 = vld [vmem:[#allocation4 + $0xc] sm:$0xf]
  %v7746 = vld [vmem:[#allocation4 + $0x10] sm:$0xf]
  %v7747 = vld [vmem:[#allocation4 + $0x14] sm:$0xf]
  %v7748 = vld [vmem:[#allocation4 + $0x18] sm:$0xf]
  %v7749 = vld [vmem:[#allocation4 + $0x1c] sm:$0xf]
  %v7782 = vunpack.c.l.b16 %v7710
  %v7783 = vunpack.c.l.b16 %v7711
  %v7784 = vunpack.c.l.b16 %v7712
  %v7785 = vunpack.c.l.b16 %v7713
  %v7786 = vunpack.c.l.b16 %v7714
  %v7787 = vunpack.c.l.b16 %v7715
  %v7788 = vunpack.c.l.b16 %v7716
  %v7789 = vunpack.c.l.b16 %v7717
  %v7790 = vunpack.c.l.b16 %v7718
  %v7791 = vunpack.c.l.b16 %v7719
  %v7792 = vunpack.c.l.b16 %v7720
  %v7793 = vunpack.c.l.b16 %v7721
  %v7794 = vunpack.c.l.b16 %v7722
  %v7795 = vunpack.c.l.b16 %v7723
  %v7796 = vunpack.c.l.b16 %v7724
  %v7797 = vunpack.c.l.b16 %v7725
  %v7798 = vunpack.c.l.b16 %v7726
  %v7799 = vunpack.c.l.b16 %v7727
  %v7800 = vunpack.c.l.b16 %v7728
  %v7801 = vunpack.c.l.b16 %v7729
  %v7802 = vunpack.c.l.b16 %v7730
  %v7803 = vunpack.c.l.b16 %v7731
  %v7804 = vunpack.c.l.b16 %v7732
  %v7805 = vunpack.c.l.b16 %v7733
  %v7806 = vunpack.c.l.b16 %v7734
  %v7807 = vunpack.c.l.b16 %v7735
  %v7808 = vunpack.c.l.b16 %v7736
  %v7809 = vunpack.c.l.b16 %v7737
  %v7810 = vunpack.c.l.b16 %v7738
  %v7811 = vunpack.c.l.b16 %v7739
  %v7812 = vunpack.c.l.b16 %v7740
  %v7813 = vunpack.c.l.b16 %v7741
  %v7814 = vpack.c.b16 %v7783, %v7782
  %v7815 = vpack.c.b16 %v7785, %v7784
  %v7816 = vpack.c.b16 %v7787, %v7786
  %v7817 = vpack.c.b16 %v7789, %v7788
  %v7818 = vpack.c.b16 %v7791, %v7790
  %v7819 = vpack.c.b16 %v7793, %v7792
  %v7820 = vpack.c.b16 %v7795, %v7794
  %v7821 = vpack.c.b16 %v7797, %v7796
  %v7822 = vpack.c.b16 %v7799, %v7798
  %v7823 = vpack.c.b16 %v7801, %v7800
  %v7824 = vpack.c.b16 %v7803, %v7802
  %v7825 = vpack.c.b16 %v7805, %v7804
  %v7826 = vpack.c.b16 %v7807, %v7806
  %v7827 = vpack.c.b16 %v7809, %v7808
  %v7828 = vpack.c.b16 %v7811, %v7810
  %v7829 = vpack.c.b16 %v7813, %v7812
  %v7838 = vunpack.c.l.b16 %v7742
  %v7839 = vunpack.c.l.b16 %v7743
  %v7840 = vunpack.c.l.b16 %v7744
  %v7841 = vunpack.c.l.b16 %v7745
  %v7842 = vunpack.c.l.b16 %v7746
  %v7843 = vunpack.c.l.b16 %v7747
  %v7844 = vunpack.c.l.b16 %v7748
  %v7845 = vunpack.c.l.b16 %v7749
  %v7846 = vpack.c.b16 %v7839, %v7838
  %v7847 = vpack.c.b16 %v7841, %v7840
  %v7848 = vpack.c.b16 %v7843, %v7842
  %v7849 = vpack.c.b16 %v7845, %v7844
  %v7855 = vsel %vm4907, %v7814, 0
  %v7858 = vsel %vm4907, %v7815, 0
  %v7861 = vsel %vm4907, %v7816, 0
  %v7864 = vsel %vm4907, %v7817, 0
  %v7867 = vsel %vm4907, %v7818, 0
  %v7870 = vsel %vm4907, %v7819, 0
  %v7873 = vsel %vm4907, %v7820, 0
  %v7876 = vsel %vm4907, %v7821, 0
  %v7879 = vsel %vm4907, %v7822, 0
  %v7882 = vsel %vm4907, %v7823, 0
  %v7885 = vsel %vm4907, %v7824, 0
  %v7888 = vsel %vm4907, %v7825, 0
  %v7891 = vsel %vm4907, %v7826, 0
  %v7894 = vsel %vm4907, %v7827, 0
  %v7897 = vsel %vm4907, %v7828, 0
  %v7900 = vsel %vm4907, %v7829, 0
  %7902 = vmatpush.bf16.msra.mxu0 0
  %7903 = vmatpush.bf16.msra.mxu0 0
  %7904 = vmatpush.bf16.msra.mxu0 0
  %7905 = vmatpush.bf16.msra.mxu0 0
  %7906 = vmatpush.bf16.msra.mxu0 %v7849
  %7907 = vmatpush.bf16.msra.mxu0 %v7848
  %7908 = vmatpush.bf16.msra.mxu0 %v7847
  %7909 = vmatpush.bf16.msra.mxu0 %v7846
  %7910 = vmatmul.bf16.gmra.mxu0 %v7855
  %v7911 = vpop.f32.mrf.mxu0
  %v7912 = vadd.f32 0.0, %v7911
  %v7913 = vpop.f32.mrf.mxu0
  %v7914 = vadd.f32 0.0, %v7913
  %7915 = vmatmul.bf16.gmra.mxu0 %v7858
  %v7916 = vpop.f32.mrf.mxu0
  %v7917 = vadd.f32 0.0, %v7916
  %v7918 = vpop.f32.mrf.mxu0
  %v7919 = vadd.f32 0.0, %v7918
  %7920 = vmatmul.bf16.gmra.mxu0 %v7861
  %v7921 = vpop.f32.mrf.mxu0
  %v7922 = vadd.f32 0.0, %v7921
  %v7923 = vpop.f32.mrf.mxu0
  %v7924 = vadd.f32 0.0, %v7923
  %7925 = vmatmul.bf16.gmra.mxu0 %v7864
  %v7926 = vpop.f32.mrf.mxu0
  %v7927 = vadd.f32 0.0, %v7926
  %v7928 = vpop.f32.mrf.mxu0
  %v7929 = vadd.f32 0.0, %v7928
  %7930 = vmatmul.bf16.gmra.mxu0 %v7867
  %v7931 = vpop.f32.mrf.mxu0
  %v7932 = vadd.f32 0.0, %v7931
  %v7933 = vpop.f32.mrf.mxu0
  %v7934 = vadd.f32 0.0, %v7933
  %7935 = vmatmul.bf16.gmra.mxu0 %v7870
  %v7936 = vpop.f32.mrf.mxu0
  %v7937 = vadd.f32 0.0, %v7936
  %v7938 = vpop.f32.mrf.mxu0
  %v7939 = vadd.f32 0.0, %v7938
  %7940 = vmatmul.bf16.gmra.mxu0 %v7873
  %v7941 = vpop.f32.mrf.mxu0
  %v7942 = vadd.f32 0.0, %v7941
  %v7943 = vpop.f32.mrf.mxu0
  %v7944 = vadd.f32 0.0, %v7943
  %7945 = vmatmul.bf16.gmra.mxu0 %v7876
  %v7946 = vpop.f32.mrf.mxu0
  %v7947 = vadd.f32 0.0, %v7946
  %v7948 = vpop.f32.mrf.mxu0
  %v7949 = vadd.f32 0.0, %v7948
  %7950 = vmatmul.bf16.gmra.mxu0 %v7879
  %v7951 = vpop.f32.mrf.mxu0
  %v7952 = vadd.f32 0.0, %v7951
  %v7953 = vpop.f32.mrf.mxu0
  %v7954 = vadd.f32 0.0, %v7953
  %7955 = vmatmul.bf16.gmra.mxu0 %v7882
  %v7956 = vpop.f32.mrf.mxu0
  %v7957 = vadd.f32 0.0, %v7956
  %v7958 = vpop.f32.mrf.mxu0
  %v7959 = vadd.f32 0.0, %v7958
  %7960 = vmatmul.bf16.gmra.mxu0 %v7885
  %v7961 = vpop.f32.mrf.mxu0
  %v7962 = vadd.f32 0.0, %v7961
  %v7963 = vpop.f32.mrf.mxu0
  %v7964 = vadd.f32 0.0, %v7963
  %7965 = vmatmul.bf16.gmra.mxu0 %v7888
  %v7966 = vpop.f32.mrf.mxu0
  %v7967 = vadd.f32 0.0, %v7966
  %v7968 = vpop.f32.mrf.mxu0
  %v7969 = vadd.f32 0.0, %v7968
  %7970 = vmatmul.bf16.gmra.mxu0 %v7891
  %v7971 = vpop.f32.mrf.mxu0
  %v7972 = vadd.f32 0.0, %v7971
  %v7973 = vpop.f32.mrf.mxu0
  %v7974 = vadd.f32 0.0, %v7973
  %7975 = vmatmul.bf16.gmra.mxu0 %v7894
  %v7976 = vpop.f32.mrf.mxu0
  %v7977 = vadd.f32 0.0, %v7976
  %v7978 = vpop.f32.mrf.mxu0
  %v7979 = vadd.f32 0.0, %v7978
  %7980 = vmatmul.bf16.gmra.mxu0 %v7897
  %v7981 = vpop.f32.mrf.mxu0
  %v7982 = vadd.f32 0.0, %v7981
  %v7983 = vpop.f32.mrf.mxu0
  %v7984 = vadd.f32 0.0, %v7983
  %7985 = vmatmul.bf16.gmra.mxu0 %v7900
  %v7986 = vpop.f32.mrf.mxu0
  %v7987 = vadd.f32 0.0, %v7986
  %v7988 = vpop.f32.mrf.mxu0
  %v7989 = vadd.f32 0.0, %v7988
  %7990 = vdwg.mxu0
  %v7991 = vpack.c.bf16 %v7912, %v7912
  %v7992 = vpack.c.bf16 %v7914, %v7914
  %v7993 = vpack.c.bf16 %v7917, %v7917
  %v7994 = vpack.c.bf16 %v7919, %v7919
  %v7995 = vpack.c.bf16 %v7922, %v7922
  %v7996 = vpack.c.bf16 %v7924, %v7924
  %v7997 = vpack.c.bf16 %v7927, %v7927
  %v7998 = vpack.c.bf16 %v7929, %v7929
  %v7999 = vpack.c.bf16 %v7932, %v7932
  %v8000 = vpack.c.bf16 %v7934, %v7934
  %v8001 = vpack.c.bf16 %v7937, %v7937
  %v8002 = vpack.c.bf16 %v7939, %v7939
  %v8003 = vpack.c.bf16 %v7942, %v7942
  %v8004 = vpack.c.bf16 %v7944, %v7944
  %v8005 = vpack.c.bf16 %v7947, %v7947
  %v8006 = vpack.c.bf16 %v7949, %v7949
  %v8007 = vpack.c.bf16 %v7952, %v7952
  %v8008 = vpack.c.bf16 %v7954, %v7954
  %v8009 = vpack.c.bf16 %v7957, %v7957
  %v8010 = vpack.c.bf16 %v7959, %v7959
  %v8011 = vpack.c.bf16 %v7962, %v7962
  %v8012 = vpack.c.bf16 %v7964, %v7964
  %v8013 = vpack.c.bf16 %v7967, %v7967
  %v8014 = vpack.c.bf16 %v7969, %v7969
  %v8015 = vpack.c.bf16 %v7972, %v7972
  %v8016 = vpack.c.bf16 %v7974, %v7974
  %v8017 = vpack.c.bf16 %v7977, %v7977
  %v8018 = vpack.c.bf16 %v7979, %v7979
  %v8019 = vpack.c.bf16 %v7982, %v7982
  %v8020 = vpack.c.bf16 %v7984, %v7984
  %v8021 = vpack.c.bf16 %v7987, %v7987
  %v8022 = vpack.c.bf16 %v7989, %v7989
  %8023 = vst [vmem:[#allocation5] sm:$0xf] %v7991
  %8024 = vst [vmem:[#allocation5 + $0x4] sm:$0xf] %v7992
  %8025 = vst [vmem:[#allocation5 + $0x8] sm:$0xf] %v7993
  %8026 = vst [vmem:[#allocation5 + $0xc] sm:$0xf] %v7994
  %8027 = vst [vmem:[#allocation5 + $0x10] sm:$0xf] %v7995
  %8028 = vst [vmem:[#allocation5 + $0x14] sm:$0xf] %v7996
  %8029 = vst [vmem:[#allocation5 + $0x18] sm:$0xf] %v7997
  %8030 = vst [vmem:[#allocation5 + $0x1c] sm:$0xf] %v7998
  %8031 = vst [vmem:[#allocation5 + $0x20] sm:$0xf] %v7999
  %8032 = vst [vmem:[#allocation5 + $0x24] sm:$0xf] %v8000
  %8033 = vst [vmem:[#allocation5 + $0x28] sm:$0xf] %v8001
  %8034 = vst [vmem:[#allocation5 + $0x2c] sm:$0xf] %v8002
  %8035 = vst [vmem:[#allocation5 + $0x30] sm:$0xf] %v8003
  %8036 = vst [vmem:[#allocation5 + $0x34] sm:$0xf] %v8004
  %8037 = vst [vmem:[#allocation5 + $0x38] sm:$0xf] %v8005
  %8038 = vst [vmem:[#allocation5 + $0x3c] sm:$0xf] %v8006
  %8039 = vst [vmem:[#allocation5 + $0x40] sm:$0xf] %v8007
  %8040 = vst [vmem:[#allocation5 + $0x44] sm:$0xf] %v8008
  %8041 = vst [vmem:[#allocation5 + $0x48] sm:$0xf] %v8009
  %8042 = vst [vmem:[#allocation5 + $0x4c] sm:$0xf] %v8010
  %8043 = vst [vmem:[#allocation5 + $0x50] sm:$0xf] %v8011
  %8044 = vst [vmem:[#allocation5 + $0x54] sm:$0xf] %v8012
  %8045 = vst [vmem:[#allocation5 + $0x58] sm:$0xf] %v8013
  %8046 = vst [vmem:[#allocation5 + $0x5c] sm:$0xf] %v8014
  %8047 = vst [vmem:[#allocation5 + $0x60] sm:$0xf] %v8015
  %8048 = vst [vmem:[#allocation5 + $0x64] sm:$0xf] %v8016
  %8049 = vst [vmem:[#allocation5 + $0x68] sm:$0xf] %v8017
  %8050 = vst [vmem:[#allocation5 + $0x6c] sm:$0xf] %v8018
  %8051 = vst [vmem:[#allocation5 + $0x70] sm:$0xf] %v8019
  %8052 = vst [vmem:[#allocation5 + $0x74] sm:$0xf] %v8020
  %8053 = vst [vmem:[#allocation5 + $0x78] sm:$0xf] %v8021
  %8054 = vst [vmem:[#allocation5 + $0x7c] sm:$0xf] %v8022
  %v8055 = vld [vmem:[%s8] sm:$0xf]
  %v8056 = vld [vmem:[%s8 + $0x4] sm:$0xf]
  %v8057 = vld [vmem:[%s8 + $0x8] sm:$0xf]
  %v8058 = vld [vmem:[%s8 + $0xc] sm:$0xf]
  %v8059 = vld [vmem:[%s8 + $0x10] sm:$0xf]
  %v8060 = vld [vmem:[%s8 + $0x14] sm:$0xf]
  %v8061 = vld [vmem:[%s8 + $0x18] sm:$0xf]
  %v8062 = vld [vmem:[%s8 + $0x1c] sm:$0xf]
  %v8063 = vld [vmem:[%s8 + $0x20] sm:$0xf]
  %v8064 = vld [vmem:[%s8 + $0x24] sm:$0xf]
  %v8065 = vld [vmem:[%s8 + $0x28] sm:$0xf]
  %v8066 = vld [vmem:[%s8 + $0x2c] sm:$0xf]
  %v8067 = vld [vmem:[%s8 + $0x30] sm:$0xf]
  %v8068 = vld [vmem:[%s8 + $0x34] sm:$0xf]
  %v8069 = vld [vmem:[%s8 + $0x38] sm:$0xf]
  %v8070 = vld [vmem:[%s8 + $0x3c] sm:$0xf]
  %v8071 = vld [vmem:[%s8 + $0x40] sm:$0xf]
  %v8072 = vld [vmem:[%s8 + $0x44] sm:$0xf]
  %v8073 = vld [vmem:[%s8 + $0x48] sm:$0xf]
  %v8074 = vld [vmem:[%s8 + $0x4c] sm:$0xf]
  %v8075 = vld [vmem:[%s8 + $0x50] sm:$0xf]
  %v8076 = vld [vmem:[%s8 + $0x54] sm:$0xf]
  %v8077 = vld [vmem:[%s8 + $0x58] sm:$0xf]
  %v8078 = vld [vmem:[%s8 + $0x5c] sm:$0xf]
  %v8079 = vld [vmem:[%s8 + $0x60] sm:$0xf]
  %v8080 = vld [vmem:[%s8 + $0x64] sm:$0xf]
  %v8081 = vld [vmem:[%s8 + $0x68] sm:$0xf]
  %v8082 = vld [vmem:[%s8 + $0x6c] sm:$0xf]
  %v8083 = vld [vmem:[%s8 + $0x70] sm:$0xf]
  %v8084 = vld [vmem:[%s8 + $0x74] sm:$0xf]
  %v8085 = vld [vmem:[%s8 + $0x78] sm:$0xf]
  %v8086 = vld [vmem:[%s8 + $0x7c] sm:$0xf]
  %v8087 = vld [vmem:[#allocation4 + $0x20] sm:$0xf]
  %v8088 = vld [vmem:[#allocation4 + $0x24] sm:$0xf]
  %v8089 = vld [vmem:[#allocation4 + $0x28] sm:$0xf]
  %v8090 = vld [vmem:[#allocation4 + $0x2c] sm:$0xf]
  %v8091 = vld [vmem:[#allocation4 + $0x30] sm:$0xf]
  %v8092 = vld [vmem:[#allocation4 + $0x34] sm:$0xf]
  %v8093 = vld [vmem:[#allocation4 + $0x38] sm:$0xf]
  %v8094 = vld [vmem:[#allocation4 + $0x3c] sm:$0xf]
  %v8127 = vunpack.c.l.b16 %v8055
  %v8128 = vunpack.c.l.b16 %v8056
  %v8129 = vunpack.c.l.b16 %v8057
  %v8130 = vunpack.c.l.b16 %v8058
  %v8131 = vunpack.c.l.b16 %v8059
  %v8132 = vunpack.c.l.b16 %v8060
  %v8133 = vunpack.c.l.b16 %v8061
  %v8134 = vunpack.c.l.b16 %v8062
  %v8135 = vunpack.c.l.b16 %v8063
  %v8136 = vunpack.c.l.b16 %v8064
  %v8137 = vunpack.c.l.b16 %v8065
  %v8138 = vunpack.c.l.b16 %v8066
  %v8139 = vunpack.c.l.b16 %v8067
  %v8140 = vunpack.c.l.b16 %v8068
  %v8141 = vunpack.c.l.b16 %v8069
  %v8142 = vunpack.c.l.b16 %v8070
  %v8143 = vunpack.c.l.b16 %v8071
  %v8144 = vunpack.c.l.b16 %v8072
  %v8145 = vunpack.c.l.b16 %v8073
  %v8146 = vunpack.c.l.b16 %v8074
  %v8147 = vunpack.c.l.b16 %v8075
  %v8148 = vunpack.c.l.b16 %v8076
  %v8149 = vunpack.c.l.b16 %v8077
  %v8150 = vunpack.c.l.b16 %v8078
  %v8151 = vunpack.c.l.b16 %v8079
  %v8152 = vunpack.c.l.b16 %v8080
  %v8153 = vunpack.c.l.b16 %v8081
  %v8154 = vunpack.c.l.b16 %v8082
  %v8155 = vunpack.c.l.b16 %v8083
  %v8156 = vunpack.c.l.b16 %v8084
  %v8157 = vunpack.c.l.b16 %v8085
  %v8158 = vunpack.c.l.b16 %v8086
  %v8159 = vpack.c.b16 %v8128, %v8127
  %v8160 = vpack.c.b16 %v8130, %v8129
  %v8161 = vpack.c.b16 %v8132, %v8131
  %v8162 = vpack.c.b16 %v8134, %v8133
  %v8163 = vpack.c.b16 %v8136, %v8135
  %v8164 = vpack.c.b16 %v8138, %v8137
  %v8165 = vpack.c.b16 %v8140, %v8139
  %v8166 = vpack.c.b16 %v8142, %v8141
  %v8167 = vpack.c.b16 %v8144, %v8143
  %v8168 = vpack.c.b16 %v8146, %v8145
  %v8169 = vpack.c.b16 %v8148, %v8147
  %v8170 = vpack.c.b16 %v8150, %v8149
  %v8171 = vpack.c.b16 %v8152, %v8151
  %v8172 = vpack.c.b16 %v8154, %v8153
  %v8173 = vpack.c.b16 %v8156, %v8155
  %v8174 = vpack.c.b16 %v8158, %v8157
  %v8183 = vunpack.c.l.b16 %v8087
  %v8184 = vunpack.c.l.b16 %v8088
  %v8185 = vunpack.c.l.b16 %v8089
  %v8186 = vunpack.c.l.b16 %v8090
  %v8187 = vunpack.c.l.b16 %v8091
  %v8188 = vunpack.c.l.b16 %v8092
  %v8189 = vunpack.c.l.b16 %v8093
  %v8190 = vunpack.c.l.b16 %v8094
  %v8191 = vpack.c.b16 %v8184, %v8183
  %v8192 = vpack.c.b16 %v8186, %v8185
  %v8193 = vpack.c.b16 %v8188, %v8187
  %v8194 = vpack.c.b16 %v8190, %v8189
  %v8200 = vsel %vm4907, %v8159, 0
  %v8203 = vsel %vm4907, %v8160, 0
  %v8206 = vsel %vm4907, %v8161, 0
  %v8209 = vsel %vm4907, %v8162, 0
  %v8212 = vsel %vm4907, %v8163, 0
  %v8215 = vsel %vm4907, %v8164, 0
  %v8218 = vsel %vm4907, %v8165, 0
  %v8221 = vsel %vm4907, %v8166, 0
  %v8224 = vsel %vm4907, %v8167, 0
  %v8227 = vsel %vm4907, %v8168, 0
  %v8230 = vsel %vm4907, %v8169, 0
  %v8233 = vsel %vm4907, %v8170, 0
  %v8236 = vsel %vm4907, %v8171, 0
  %v8239 = vsel %vm4907, %v8172, 0
  %v8242 = vsel %vm4907, %v8173, 0
  %v8245 = vsel %vm4907, %v8174, 0
  %8247 = vmatpush.bf16.msra.mxu0 0
  %8248 = vmatpush.bf16.msra.mxu0 0
  %8249 = vmatpush.bf16.msra.mxu0 0
  %8250 = vmatpush.bf16.msra.mxu0 0
  %8251 = vmatpush.bf16.msra.mxu0 %v8194
  %8252 = vmatpush.bf16.msra.mxu0 %v8193
  %8253 = vmatpush.bf16.msra.mxu0 %v8192
  %8254 = vmatpush.bf16.msra.mxu0 %v8191
  %8255 = vmatmul.bf16.gmra.mxu0 %v8200
  %v8256 = vpop.f32.mrf.mxu0
  %v8257 = vadd.f32 0.0, %v8256
  %v8258 = vpop.f32.mrf.mxu0
  %v8259 = vadd.f32 0.0, %v8258
  %8260 = vmatmul.bf16.gmra.mxu0 %v8203
  %v8261 = vpop.f32.mrf.mxu0
  %v8262 = vadd.f32 0.0, %v8261
  %v8263 = vpop.f32.mrf.mxu0
  %v8264 = vadd.f32 0.0, %v8263
  %8265 = vmatmul.bf16.gmra.mxu0 %v8206
  %v8266 = vpop.f32.mrf.mxu0
  %v8267 = vadd.f32 0.0, %v8266
  %v8268 = vpop.f32.mrf.mxu0
  %v8269 = vadd.f32 0.0, %v8268
  %8270 = vmatmul.bf16.gmra.mxu0 %v8209
  %v8271 = vpop.f32.mrf.mxu0
  %v8272 = vadd.f32 0.0, %v8271
  %v8273 = vpop.f32.mrf.mxu0
  %v8274 = vadd.f32 0.0, %v8273
  %8275 = vmatmul.bf16.gmra.mxu0 %v8212
  %v8276 = vpop.f32.mrf.mxu0
  %v8277 = vadd.f32 0.0, %v8276
  %v8278 = vpop.f32.mrf.mxu0
  %v8279 = vadd.f32 0.0, %v8278
  %8280 = vmatmul.bf16.gmra.mxu0 %v8215
  %v8281 = vpop.f32.mrf.mxu0
  %v8282 = vadd.f32 0.0, %v8281
  %v8283 = vpop.f32.mrf.mxu0
  %v8284 = vadd.f32 0.0, %v8283
  %8285 = vmatmul.bf16.gmra.mxu0 %v8218
  %v8286 = vpop.f32.mrf.mxu0
  %v8287 = vadd.f32 0.0, %v8286
  %v8288 = vpop.f32.mrf.mxu0
  %v8289 = vadd.f32 0.0, %v8288
  %8290 = vmatmul.bf16.gmra.mxu0 %v8221
  %v8291 = vpop.f32.mrf.mxu0
  %v8292 = vadd.f32 0.0, %v8291
  %v8293 = vpop.f32.mrf.mxu0
  %v8294 = vadd.f32 0.0, %v8293
  %8295 = vmatmul.bf16.gmra.mxu0 %v8224
  %v8296 = vpop.f32.mrf.mxu0
  %v8297 = vadd.f32 0.0, %v8296
  %v8298 = vpop.f32.mrf.mxu0
  %v8299 = vadd.f32 0.0, %v8298
  %8300 = vmatmul.bf16.gmra.mxu0 %v8227
  %v8301 = vpop.f32.mrf.mxu0
  %v8302 = vadd.f32 0.0, %v8301
  %v8303 = vpop.f32.mrf.mxu0
  %v8304 = vadd.f32 0.0, %v8303
  %8305 = vmatmul.bf16.gmra.mxu0 %v8230
  %v8306 = vpop.f32.mrf.mxu0
  %v8307 = vadd.f32 0.0, %v8306
  %v8308 = vpop.f32.mrf.mxu0
  %v8309 = vadd.f32 0.0, %v8308
  %8310 = vmatmul.bf16.gmra.mxu0 %v8233
  %v8311 = vpop.f32.mrf.mxu0
  %v8312 = vadd.f32 0.0, %v8311
  %v8313 = vpop.f32.mrf.mxu0
  %v8314 = vadd.f32 0.0, %v8313
  %8315 = vmatmul.bf16.gmra.mxu0 %v8236
  %v8316 = vpop.f32.mrf.mxu0
  %v8317 = vadd.f32 0.0, %v8316
  %v8318 = vpop.f32.mrf.mxu0
  %v8319 = vadd.f32 0.0, %v8318
  %8320 = vmatmul.bf16.gmra.mxu0 %v8239
  %v8321 = vpop.f32.mrf.mxu0
  %v8322 = vadd.f32 0.0, %v8321
  %v8323 = vpop.f32.mrf.mxu0
  %v8324 = vadd.f32 0.0, %v8323
  %8325 = vmatmul.bf16.gmra.mxu0 %v8242
  %v8326 = vpop.f32.mrf.mxu0
  %v8327 = vadd.f32 0.0, %v8326
  %v8328 = vpop.f32.mrf.mxu0
  %v8329 = vadd.f32 0.0, %v8328
  %8330 = vmatmul.bf16.gmra.mxu0 %v8245
  %v8331 = vpop.f32.mrf.mxu0
  %v8332 = vadd.f32 0.0, %v8331
  %v8333 = vpop.f32.mrf.mxu0
  %v8334 = vadd.f32 0.0, %v8333
  %8335 = vdwg.mxu0
  %v8336 = vpack.c.bf16 %v8257, %v8257
  %v8337 = vpack.c.bf16 %v8259, %v8259
  %v8338 = vpack.c.bf16 %v8262, %v8262
  %v8339 = vpack.c.bf16 %v8264, %v8264
  %v8340 = vpack.c.bf16 %v8267, %v8267
  %v8341 = vpack.c.bf16 %v8269, %v8269
  %v8342 = vpack.c.bf16 %v8272, %v8272
  %v8343 = vpack.c.bf16 %v8274, %v8274
  %v8344 = vpack.c.bf16 %v8277, %v8277
  %v8345 = vpack.c.bf16 %v8279, %v8279
  %v8346 = vpack.c.bf16 %v8282, %v8282
  %v8347 = vpack.c.bf16 %v8284, %v8284
  %v8348 = vpack.c.bf16 %v8287, %v8287
  %v8349 = vpack.c.bf16 %v8289, %v8289
  %v8350 = vpack.c.bf16 %v8292, %v8292
  %v8351 = vpack.c.bf16 %v8294, %v8294
  %v8352 = vpack.c.bf16 %v8297, %v8297
  %v8353 = vpack.c.bf16 %v8299, %v8299
  %v8354 = vpack.c.bf16 %v8302, %v8302
  %v8355 = vpack.c.bf16 %v8304, %v8304
  %v8356 = vpack.c.bf16 %v8307, %v8307
  %v8357 = vpack.c.bf16 %v8309, %v8309
  %v8358 = vpack.c.bf16 %v8312, %v8312
  %v8359 = vpack.c.bf16 %v8314, %v8314
  %v8360 = vpack.c.bf16 %v8317, %v8317
  %v8361 = vpack.c.bf16 %v8319, %v8319
  %v8362 = vpack.c.bf16 %v8322, %v8322
  %v8363 = vpack.c.bf16 %v8324, %v8324
  %v8364 = vpack.c.bf16 %v8327, %v8327
  %v8365 = vpack.c.bf16 %v8329, %v8329
  %v8366 = vpack.c.bf16 %v8332, %v8332
  %v8367 = vpack.c.bf16 %v8334, %v8334
  %8368 = vst [vmem:[#allocation5 + $0x80] sm:$0xf] %v8336
  %8369 = vst [vmem:[#allocation5 + $0x84] sm:$0xf] %v8337
  %8370 = vst [vmem:[#allocation5 + $0x88] sm:$0xf] %v8338
  %8371 = vst [vmem:[#allocation5 + $0x8c] sm:$0xf] %v8339
  %8372 = vst [vmem:[#allocation5 + $0x90] sm:$0xf] %v8340
  %8373 = vst [vmem:[#allocation5 + $0x94] sm:$0xf] %v8341
  %8374 = vst [vmem:[#allocation5 + $0x98] sm:$0xf] %v8342
  %8375 = vst [vmem:[#allocation5 + $0x9c] sm:$0xf] %v8343
  %8376 = vst [vmem:[#allocation5 + $0xa0] sm:$0xf] %v8344
  %8377 = vst [vmem:[#allocation5 + $0xa4] sm:$0xf] %v8345
  %8378 = vst [vmem:[#allocation5 + $0xa8] sm:$0xf] %v8346
  %8379 = vst [vmem:[#allocation5 + $0xac] sm:$0xf] %v8347
  %8380 = vst [vmem:[#allocation5 + $0xb0] sm:$0xf] %v8348
  %8381 = vst [vmem:[#allocation5 + $0xb4] sm:$0xf] %v8349
  %8382 = vst [vmem:[#allocation5 + $0xb8] sm:$0xf] %v8350
  %8383 = vst [vmem:[#allocation5 + $0xbc] sm:$0xf] %v8351
  %8384 = vst [vmem:[#allocation5 + $0xc0] sm:$0xf] %v8352
  %8385 = vst [vmem:[#allocation5 + $0xc4] sm:$0xf] %v8353
  %8386 = vst [vmem:[#allocation5 + $0xc8] sm:$0xf] %v8354
  %8387 = vst [vmem:[#allocation5 + $0xcc] sm:$0xf] %v8355
  %8388 = vst [vmem:[#allocation5 + $0xd0] sm:$0xf] %v8356
  %8389 = vst [vmem:[#allocation5 + $0xd4] sm:$0xf] %v8357
  %8390 = vst [vmem:[#allocation5 + $0xd8] sm:$0xf] %v8358
  %8391 = vst [vmem:[#allocation5 + $0xdc] sm:$0xf] %v8359
  %8392 = vst [vmem:[#allocation5 + $0xe0] sm:$0xf] %v8360
  %8393 = vst [vmem:[#allocation5 + $0xe4] sm:$0xf] %v8361
  %8394 = vst [vmem:[#allocation5 + $0xe8] sm:$0xf] %v8362
  %8395 = vst [vmem:[#allocation5 + $0xec] sm:$0xf] %v8363
  %8396 = vst [vmem:[#allocation5 + $0xf0] sm:$0xf] %v8364
  %8397 = vst [vmem:[#allocation5 + $0xf4] sm:$0xf] %v8365
  %8398 = vst [vmem:[#allocation5 + $0xf8] sm:$0xf] %v8366
  %8399 = vst [vmem:[#allocation5 + $0xfc] sm:$0xf] %v8367
  %v8400 = vld [vmem:[#allocation5] sm:$0xf]
  %v8401 = vld [vmem:[#allocation5 + $0x4] sm:$0xf]
  %v8402 = vld [vmem:[#allocation5 + $0x80] sm:$0xf]
  %v8403 = vld [vmem:[#allocation5 + $0x84] sm:$0xf]
  %v8406 = vunpack.c.l.b16 %v8400
  %v8407 = vunpack.c.l.b16 %v8401
  %v8408 = vpack.c.b16 %v8407, %v8406
  %v8412 = vunpack.c.l.b16 %v8402
  %v8413 = vunpack.c.l.b16 %v8403
  %v8414 = vpack.c.b16 %v8413, %v8412
  %v8416 = vld [vmem:[%s9] sm:$0xff]
  %v8417 = vld [vmem:[%s9 + $0x8] sm:$0xff]
  %v8418 = vld [vmem:[%s9 + $0x10] sm:$0xff]
  %v8419 = vld [vmem:[%s9 + $0x18] sm:$0xff]
  %v8420 = vld [vmem:[%s9 + $0x20] sm:$0xff]
  %v8421 = vld [vmem:[%s9 + $0x28] sm:$0xff]
  %v8422 = vld [vmem:[%s9 + $0x30] sm:$0xff]
  %v8423 = vld [vmem:[%s9 + $0x38] sm:$0xff]
  %v8424 = vld [vmem:[%s9 + $0x40] sm:$0xff]
  %v8425 = vld [vmem:[%s9 + $0x48] sm:$0xff]
  %v8426 = vld [vmem:[%s9 + $0x50] sm:$0xff]
  %v8427 = vld [vmem:[%s9 + $0x58] sm:$0xff]
  %v8428 = vld [vmem:[%s9 + $0x60] sm:$0xff]
  %v8429 = vld [vmem:[%s9 + $0x68] sm:$0xff]
  %v8430 = vld [vmem:[%s9 + $0x70] sm:$0xff]
  %v8431 = vld [vmem:[%s9 + $0x78] sm:$0xff]
  %v8432 = vld [vmem:[#allocation5 + $0x8] sm:$0xf]
  %v8433 = vld [vmem:[#allocation5 + $0xc] sm:$0xf]
  %v8434 = vld [vmem:[#allocation5 + $0x88] sm:$0xf]
  %v8435 = vld [vmem:[#allocation5 + $0x8c] sm:$0xf]
  %v8438 = vunpack.c.l.b16 %v8432
  %v8439 = vunpack.c.l.b16 %v8433
  %v8440 = vpack.c.b16 %v8439, %v8438
  %v8444 = vunpack.c.l.b16 %v8434
  %v8445 = vunpack.c.l.b16 %v8435
  %v8446 = vpack.c.b16 %v8445, %v8444
  %v8448 = vld [vmem:[%s9 + $0x80] sm:$0xff]
  %v8449 = vld [vmem:[%s9 + $0x88] sm:$0xff]
  %v8450 = vld [vmem:[%s9 + $0x90] sm:$0xff]
  %v8451 = vld [vmem:[%s9 + $0x98] sm:$0xff]
  %v8452 = vld [vmem:[%s9 + $0xa0] sm:$0xff]
  %v8453 = vld [vmem:[%s9 + $0xa8] sm:$0xff]
  %v8454 = vld [vmem:[%s9 + $0xb0] sm:$0xff]
  %v8455 = vld [vmem:[%s9 + $0xb8] sm:$0xff]
  %v8456 = vld [vmem:[%s9 + $0xc0] sm:$0xff]
  %v8457 = vld [vmem:[%s9 + $0xc8] sm:$0xff]
  %v8458 = vld [vmem:[%s9 + $0xd0] sm:$0xff]
  %v8459 = vld [vmem:[%s9 + $0xd8] sm:$0xff]
  %v8460 = vld [vmem:[%s9 + $0xe0] sm:$0xff]
  %v8461 = vld [vmem:[%s9 + $0xe8] sm:$0xff]
  %v8462 = vld [vmem:[%s9 + $0xf0] sm:$0xff]
  %v8463 = vld [vmem:[%s9 + $0xf8] sm:$0xff]
  %v8464 = vld [vmem:[#allocation5 + $0x10] sm:$0xf]
  %v8465 = vld [vmem:[#allocation5 + $0x14] sm:$0xf]
  %v8466 = vld [vmem:[#allocation5 + $0x90] sm:$0xf]
  %v8467 = vld [vmem:[#allocation5 + $0x94] sm:$0xf]
  %v8470 = vunpack.c.l.b16 %v8464
  %v8471 = vunpack.c.l.b16 %v8465
  %v8472 = vpack.c.b16 %v8471, %v8470
  %v8476 = vunpack.c.l.b16 %v8466
  %v8477 = vunpack.c.l.b16 %v8467
  %v8478 = vpack.c.b16 %v8477, %v8476
  %v8480 = vld [vmem:[%s9 + $0x100] sm:$0xff]
  %v8481 = vld [vmem:[%s9 + $0x108] sm:$0xff]
  %v8482 = vld [vmem:[%s9 + $0x110] sm:$0xff]
  %v8483 = vld [vmem:[%s9 + $0x118] sm:$0xff]
  %v8484 = vld [vmem:[%s9 + $0x120] sm:$0xff]
  %v8485 = vld [vmem:[%s9 + $0x128] sm:$0xff]
  %v8486 = vld [vmem:[%s9 + $0x130] sm:$0xff]
  %v8487 = vld [vmem:[%s9 + $0x138] sm:$0xff]
  %v8488 = vld [vmem:[%s9 + $0x140] sm:$0xff]
  %v8489 = vld [vmem:[%s9 + $0x148] sm:$0xff]
  %v8490 = vld [vmem:[%s9 + $0x150] sm:$0xff]
  %v8491 = vld [vmem:[%s9 + $0x158] sm:$0xff]
  %v8492 = vld [vmem:[%s9 + $0x160] sm:$0xff]
  %v8493 = vld [vmem:[%s9 + $0x168] sm:$0xff]
  %v8494 = vld [vmem:[%s9 + $0x170] sm:$0xff]
  %v8495 = vld [vmem:[%s9 + $0x178] sm:$0xff]
  %v8512 = vunpack.c.l.b16 %v8480
  %v8513 = vunpack.c.h.b16 %v8480
  %v8514 = vunpack.c.l.b16 %v8481
  %v8515 = vunpack.c.h.b16 %v8481
  %v8516 = vunpack.c.l.b16 %v8482
  %v8517 = vunpack.c.h.b16 %v8482
  %v8518 = vunpack.c.l.b16 %v8483
  %v8519 = vunpack.c.h.b16 %v8483
  %v8520 = vunpack.c.l.b16 %v8484
  %v8521 = vunpack.c.h.b16 %v8484
  %v8522 = vunpack.c.l.b16 %v8485
  %v8523 = vunpack.c.h.b16 %v8485
  %v8524 = vunpack.c.l.b16 %v8486
  %v8525 = vunpack.c.h.b16 %v8486
  %v8526 = vunpack.c.l.b16 %v8487
  %v8527 = vunpack.c.h.b16 %v8487
  %v8528 = vunpack.c.l.b16 %v8488
  %v8529 = vunpack.c.h.b16 %v8488
  %v8530 = vunpack.c.l.b16 %v8489
  %v8531 = vunpack.c.h.b16 %v8489
  %v8532 = vunpack.c.l.b16 %v8490
  %v8533 = vunpack.c.h.b16 %v8490
  %v8534 = vunpack.c.l.b16 %v8491
  %v8535 = vunpack.c.h.b16 %v8491
  %v8536 = vunpack.c.l.b16 %v8492
  %v8537 = vunpack.c.h.b16 %v8492
  %v8538 = vunpack.c.l.b16 %v8493
  %v8539 = vunpack.c.h.b16 %v8493
  %v8540 = vunpack.c.l.b16 %v8494
  %v8541 = vunpack.c.h.b16 %v8494
  %v8542 = vunpack.c.l.b16 %v8495
  %v8543 = vunpack.c.h.b16 %v8495
  %v8544 = vpack.c.b16 %v8514, %v8512
  %v8545 = vpack.c.b16 %v8515, %v8513
  %v8546 = vpack.c.b16 %v8518, %v8516
  %v8547 = vpack.c.b16 %v8519, %v8517
  %v8548 = vpack.c.b16 %v8522, %v8520
  %v8549 = vpack.c.b16 %v8523, %v8521
  %v8550 = vpack.c.b16 %v8526, %v8524
  %v8551 = vpack.c.b16 %v8527, %v8525
  %v8552 = vpack.c.b16 %v8530, %v8528
  %v8553 = vpack.c.b16 %v8531, %v8529
  %v8554 = vpack.c.b16 %v8534, %v8532
  %v8555 = vpack.c.b16 %v8535, %v8533
  %v8556 = vpack.c.b16 %v8538, %v8536
  %v8557 = vpack.c.b16 %v8539, %v8537
  %v8558 = vpack.c.b16 %v8542, %v8540
  %v8559 = vpack.c.b16 %v8543, %v8541
  %8576 = vmatpush.bf16.msra.mxu0 %v8558
  %8577 = vmatpush.bf16.msra.mxu0 %v8556
  %8578 = vmatpush.bf16.msra.mxu0 %v8554
  %8579 = vmatpush.bf16.msra.mxu0 %v8552
  %8580 = vmatpush.bf16.msra.mxu0 %v8550
  %8581 = vmatpush.bf16.msra.mxu0 %v8548
  %8582 = vmatpush.bf16.msra.mxu0 %v8546
  %8583 = vmatpush.bf16.msra.mxu0 %v8544
  %8584 = vmatmul.bf16.gmra.mxu0 %v8472
  %v8585 = vpop.f32.mrf.mxu0
  %v8586 = vadd.f32 0.0, %v8585
  %v8587 = vpop.f32.mrf.mxu0
  %v8588 = vadd.f32 0.0, %v8587
  %8589 = vmatmul.bf16.gmra.mxu0 %v8478
  %v8590 = vpop.f32.mrf.mxu0
  %v8591 = vadd.f32 0.0, %v8590
  %v8592 = vpop.f32.mrf.mxu0
  %v8593 = vadd.f32 0.0, %v8592
  %8594 = vdwg.mxu0
  %8595 = vmatpush.bf16.msra.mxu0 %v8559
  %8596 = vmatpush.bf16.msra.mxu0 %v8557
  %8597 = vmatpush.bf16.msra.mxu0 %v8555
  %8598 = vmatpush.bf16.msra.mxu0 %v8553
  %8599 = vmatpush.bf16.msra.mxu0 %v8551
  %8600 = vmatpush.bf16.msra.mxu0 %v8549
  %8601 = vmatpush.bf16.msra.mxu0 %v8547
  %8602 = vmatpush.bf16.msra.mxu0 %v8545
  %8603 = vmatmul.bf16.gmra.mxu0 %v8472
  %v8604 = vpop.f32.mrf.mxu0
  %v8605 = vadd.f32 0.0, %v8604
  %v8606 = vpop.f32.mrf.mxu0
  %v8607 = vadd.f32 0.0, %v8606
  %8608 = vmatmul.bf16.gmra.mxu0 %v8478
  %v8609 = vpop.f32.mrf.mxu0
  %v8610 = vadd.f32 0.0, %v8609
  %v8611 = vpop.f32.mrf.mxu0
  %v8612 = vadd.f32 0.0, %v8611
  %8613 = vdwg.mxu0
  %v8630 = vunpack.c.l.b16 %v8416
  %v8631 = vunpack.c.h.b16 %v8416
  %v8632 = vunpack.c.l.b16 %v8417
  %v8633 = vunpack.c.h.b16 %v8417
  %v8634 = vunpack.c.l.b16 %v8418
  %v8635 = vunpack.c.h.b16 %v8418
  %v8636 = vunpack.c.l.b16 %v8419
  %v8637 = vunpack.c.h.b16 %v8419
  %v8638 = vunpack.c.l.b16 %v8420
  %v8639 = vunpack.c.h.b16 %v8420
  %v8640 = vunpack.c.l.b16 %v8421
  %v8641 = vunpack.c.h.b16 %v8421
  %v8642 = vunpack.c.l.b16 %v8422
  %v8643 = vunpack.c.h.b16 %v8422
  %v8644 = vunpack.c.l.b16 %v8423
  %v8645 = vunpack.c.h.b16 %v8423
  %v8646 = vunpack.c.l.b16 %v8424
  %v8647 = vunpack.c.h.b16 %v8424
  %v8648 = vunpack.c.l.b16 %v8425
  %v8649 = vunpack.c.h.b16 %v8425
  %v8650 = vunpack.c.l.b16 %v8426
  %v8651 = vunpack.c.h.b16 %v8426
  %v8652 = vunpack.c.l.b16 %v8427
  %v8653 = vunpack.c.h.b16 %v8427
  %v8654 = vunpack.c.l.b16 %v8428
  %v8655 = vunpack.c.h.b16 %v8428
  %v8656 = vunpack.c.l.b16 %v8429
  %v8657 = vunpack.c.h.b16 %v8429
  %v8658 = vunpack.c.l.b16 %v8430
  %v8659 = vunpack.c.h.b16 %v8430
  %v8660 = vunpack.c.l.b16 %v8431
  %v8661 = vunpack.c.h.b16 %v8431
  %v8662 = vpack.c.b16 %v8632, %v8630
  %v8663 = vpack.c.b16 %v8633, %v8631
  %v8664 = vpack.c.b16 %v8636, %v8634
  %v8665 = vpack.c.b16 %v8637, %v8635
  %v8666 = vpack.c.b16 %v8640, %v8638
  %v8667 = vpack.c.b16 %v8641, %v8639
  %v8668 = vpack.c.b16 %v8644, %v8642
  %v8669 = vpack.c.b16 %v8645, %v8643
  %v8670 = vpack.c.b16 %v8648, %v8646
  %v8671 = vpack.c.b16 %v8649, %v8647
  %v8672 = vpack.c.b16 %v8652, %v8650
  %v8673 = vpack.c.b16 %v8653, %v8651
  %v8674 = vpack.c.b16 %v8656, %v8654
  %v8675 = vpack.c.b16 %v8657, %v8655
  %v8676 = vpack.c.b16 %v8660, %v8658
  %v8677 = vpack.c.b16 %v8661, %v8659
  %8694 = vmatpush.bf16.msra.mxu0 %v8676
  %8695 = vmatpush.bf16.msra.mxu0 %v8674
  %8696 = vmatpush.bf16.msra.mxu0 %v8672
  %8697 = vmatpush.bf16.msra.mxu0 %v8670
  %8698 = vmatpush.bf16.msra.mxu0 %v8668
  %8699 = vmatpush.bf16.msra.mxu0 %v8666
  %8700 = vmatpush.bf16.msra.mxu0 %v8664
  %8701 = vmatpush.bf16.msra.mxu0 %v8662
  %8702 = vmatmul.bf16.gmra.mxu0 %v8408
  %v8703 = vpop.f32.mrf.mxu0
  %v8704 = vadd.f32 %v8586, %v8703
  %v8705 = vpop.f32.mrf.mxu0
  %v8706 = vadd.f32 %v8588, %v8705
  %8707 = vmatmul.bf16.gmra.mxu0 %v8414
  %v8708 = vpop.f32.mrf.mxu0
  %v8709 = vadd.f32 %v8591, %v8708
  %v8710 = vpop.f32.mrf.mxu0
  %v8711 = vadd.f32 %v8593, %v8710
  %8712 = vdwg.mxu0
  %8713 = vmatpush.bf16.msra.mxu0 %v8677
  %8714 = vmatpush.bf16.msra.mxu0 %v8675
  %8715 = vmatpush.bf16.msra.mxu0 %v8673
  %8716 = vmatpush.bf16.msra.mxu0 %v8671
  %8717 = vmatpush.bf16.msra.mxu0 %v8669
  %8718 = vmatpush.bf16.msra.mxu0 %v8667
  %8719 = vmatpush.bf16.msra.mxu0 %v8665
  %8720 = vmatpush.bf16.msra.mxu0 %v8663
  %8721 = vmatmul.bf16.gmra.mxu0 %v8408
  %v8722 = vpop.f32.mrf.mxu0
  %v8723 = vadd.f32 %v8605, %v8722
  %v8724 = vpop.f32.mrf.mxu0
  %v8725 = vadd.f32 %v8607, %v8724
  %8726 = vmatmul.bf16.gmra.mxu0 %v8414
  %v8727 = vpop.f32.mrf.mxu0
  %v8728 = vadd.f32 %v8610, %v8727
  %v8729 = vpop.f32.mrf.mxu0
  %v8730 = vadd.f32 %v8612, %v8729
  %8731 = vdwg.mxu0
  %v8732 = vld [vmem:[#allocation5 + $0x18] sm:$0xf]
  %v8733 = vld [vmem:[#allocation5 + $0x1c] sm:$0xf]
  %v8734 = vld [vmem:[#allocation5 + $0x98] sm:$0xf]
  %v8735 = vld [vmem:[#allocation5 + $0x9c] sm:$0xf]
  %v8738 = vunpack.c.l.b16 %v8732
  %v8739 = vunpack.c.l.b16 %v8733
  %v8740 = vpack.c.b16 %v8739, %v8738
  %v8744 = vunpack.c.l.b16 %v8734
  %v8745 = vunpack.c.l.b16 %v8735
  %v8746 = vpack.c.b16 %v8745, %v8744
  %v8748 = vld [vmem:[%s9 + $0x180] sm:$0xff]
  %v8749 = vld [vmem:[%s9 + $0x188] sm:$0xff]
  %v8750 = vld [vmem:[%s9 + $0x190] sm:$0xff]
  %v8751 = vld [vmem:[%s9 + $0x198] sm:$0xff]
  %v8752 = vld [vmem:[%s9 + $0x1a0] sm:$0xff]
  %v8753 = vld [vmem:[%s9 + $0x1a8] sm:$0xff]
  %v8754 = vld [vmem:[%s9 + $0x1b0] sm:$0xff]
  %v8755 = vld [vmem:[%s9 + $0x1b8] sm:$0xff]
  %v8756 = vld [vmem:[%s9 + $0x1c0] sm:$0xff]
  %v8757 = vld [vmem:[%s9 + $0x1c8] sm:$0xff]
  %v8758 = vld [vmem:[%s9 + $0x1d0] sm:$0xff]
  %v8759 = vld [vmem:[%s9 + $0x1d8] sm:$0xff]
  %v8760 = vld [vmem:[%s9 + $0x1e0] sm:$0xff]
  %v8761 = vld [vmem:[%s9 + $0x1e8] sm:$0xff]
  %v8762 = vld [vmem:[%s9 + $0x1f0] sm:$0xff]
  %v8763 = vld [vmem:[%s9 + $0x1f8] sm:$0xff]
  %v8780 = vunpack.c.l.b16 %v8748
  %v8781 = vunpack.c.h.b16 %v8748
  %v8782 = vunpack.c.l.b16 %v8749
  %v8783 = vunpack.c.h.b16 %v8749
  %v8784 = vunpack.c.l.b16 %v8750
  %v8785 = vunpack.c.h.b16 %v8750
  %v8786 = vunpack.c.l.b16 %v8751
  %v8787 = vunpack.c.h.b16 %v8751
  %v8788 = vunpack.c.l.b16 %v8752
  %v8789 = vunpack.c.h.b16 %v8752
  %v8790 = vunpack.c.l.b16 %v8753
  %v8791 = vunpack.c.h.b16 %v8753
  %v8792 = vunpack.c.l.b16 %v8754
  %v8793 = vunpack.c.h.b16 %v8754
  %v8794 = vunpack.c.l.b16 %v8755
  %v8795 = vunpack.c.h.b16 %v8755
  %v8796 = vunpack.c.l.b16 %v8756
  %v8797 = vunpack.c.h.b16 %v8756
  %v8798 = vunpack.c.l.b16 %v8757
  %v8799 = vunpack.c.h.b16 %v8757
  %v8800 = vunpack.c.l.b16 %v8758
  %v8801 = vunpack.c.h.b16 %v8758
  %v8802 = vunpack.c.l.b16 %v8759
  %v8803 = vunpack.c.h.b16 %v8759
  %v8804 = vunpack.c.l.b16 %v8760
  %v8805 = vunpack.c.h.b16 %v8760
  %v8806 = vunpack.c.l.b16 %v8761
  %v8807 = vunpack.c.h.b16 %v8761
  %v8808 = vunpack.c.l.b16 %v8762
  %v8809 = vunpack.c.h.b16 %v8762
  %v8810 = vunpack.c.l.b16 %v8763
  %v8811 = vunpack.c.h.b16 %v8763
  %v8812 = vpack.c.b16 %v8782, %v8780
  %v8813 = vpack.c.b16 %v8783, %v8781
  %v8814 = vpack.c.b16 %v8786, %v8784
  %v8815 = vpack.c.b16 %v8787, %v8785
  %v8816 = vpack.c.b16 %v8790, %v8788
  %v8817 = vpack.c.b16 %v8791, %v8789
  %v8818 = vpack.c.b16 %v8794, %v8792
  %v8819 = vpack.c.b16 %v8795, %v8793
  %v8820 = vpack.c.b16 %v8798, %v8796
  %v8821 = vpack.c.b16 %v8799, %v8797
  %v8822 = vpack.c.b16 %v8802, %v8800
  %v8823 = vpack.c.b16 %v8803, %v8801
  %v8824 = vpack.c.b16 %v8806, %v8804
  %v8825 = vpack.c.b16 %v8807, %v8805
  %v8826 = vpack.c.b16 %v8810, %v8808
  %v8827 = vpack.c.b16 %v8811, %v8809
  %8844 = vmatpush.bf16.msra.mxu0 %v8826
  %8845 = vmatpush.bf16.msra.mxu0 %v8824
  %8846 = vmatpush.bf16.msra.mxu0 %v8822
  %8847 = vmatpush.bf16.msra.mxu0 %v8820
  %8848 = vmatpush.bf16.msra.mxu0 %v8818
  %8849 = vmatpush.bf16.msra.mxu0 %v8816
  %8850 = vmatpush.bf16.msra.mxu0 %v8814
  %8851 = vmatpush.bf16.msra.mxu0 %v8812
  %8852 = vmatmul.bf16.gmra.mxu0 %v8740
  %v8853 = vpop.f32.mrf.mxu0
  %v8854 = vadd.f32 0.0, %v8853
  %v8855 = vpop.f32.mrf.mxu0
  %v8856 = vadd.f32 0.0, %v8855
  %8857 = vmatmul.bf16.gmra.mxu0 %v8746
  %v8858 = vpop.f32.mrf.mxu0
  %v8859 = vadd.f32 0.0, %v8858
  %v8860 = vpop.f32.mrf.mxu0
  %v8861 = vadd.f32 0.0, %v8860
  %8862 = vdwg.mxu0
  %8863 = vmatpush.bf16.msra.mxu0 %v8827
  %8864 = vmatpush.bf16.msra.mxu0 %v8825
  %8865 = vmatpush.bf16.msra.mxu0 %v8823
  %8866 = vmatpush.bf16.msra.mxu0 %v8821
  %8867 = vmatpush.bf16.msra.mxu0 %v8819
  %8868 = vmatpush.bf16.msra.mxu0 %v8817
  %8869 = vmatpush.bf16.msra.mxu0 %v8815
  %8870 = vmatpush.bf16.msra.mxu0 %v8813
  %8871 = vmatmul.bf16.gmra.mxu0 %v8740
  %v8872 = vpop.f32.mrf.mxu0
  %v8873 = vadd.f32 0.0, %v8872
  %v8874 = vpop.f32.mrf.mxu0
  %v8875 = vadd.f32 0.0, %v8874
  %8876 = vmatmul.bf16.gmra.mxu0 %v8746
  %v8877 = vpop.f32.mrf.mxu0
  %v8878 = vadd.f32 0.0, %v8877
  %v8879 = vpop.f32.mrf.mxu0
  %v8880 = vadd.f32 0.0, %v8879
  %8881 = vdwg.mxu0
  %v8898 = vunpack.c.l.b16 %v8448
  %v8899 = vunpack.c.h.b16 %v8448
  %v8900 = vunpack.c.l.b16 %v8449
  %v8901 = vunpack.c.h.b16 %v8449
  %v8902 = vunpack.c.l.b16 %v8450
  %v8903 = vunpack.c.h.b16 %v8450
  %v8904 = vunpack.c.l.b16 %v8451
  %v8905 = vunpack.c.h.b16 %v8451
  %v8906 = vunpack.c.l.b16 %v8452
  %v8907 = vunpack.c.h.b16 %v8452
  %v8908 = vunpack.c.l.b16 %v8453
  %v8909 = vunpack.c.h.b16 %v8453
  %v8910 = vunpack.c.l.b16 %v8454
  %v8911 = vunpack.c.h.b16 %v8454
  %v8912 = vunpack.c.l.b16 %v8455
  %v8913 = vunpack.c.h.b16 %v8455
  %v8914 = vunpack.c.l.b16 %v8456
  %v8915 = vunpack.c.h.b16 %v8456
  %v8916 = vunpack.c.l.b16 %v8457
  %v8917 = vunpack.c.h.b16 %v8457
  %v8918 = vunpack.c.l.b16 %v8458
  %v8919 = vunpack.c.h.b16 %v8458
  %v8920 = vunpack.c.l.b16 %v8459
  %v8921 = vunpack.c.h.b16 %v8459
  %v8922 = vunpack.c.l.b16 %v8460
  %v8923 = vunpack.c.h.b16 %v8460
  %v8924 = vunpack.c.l.b16 %v8461
  %v8925 = vunpack.c.h.b16 %v8461
  %v8926 = vunpack.c.l.b16 %v8462
  %v8927 = vunpack.c.h.b16 %v8462
  %v8928 = vunpack.c.l.b16 %v8463
  %v8929 = vunpack.c.h.b16 %v8463
  %v8930 = vpack.c.b16 %v8900, %v8898
  %v8931 = vpack.c.b16 %v8901, %v8899
  %v8932 = vpack.c.b16 %v8904, %v8902
  %v8933 = vpack.c.b16 %v8905, %v8903
  %v8934 = vpack.c.b16 %v8908, %v8906
  %v8935 = vpack.c.b16 %v8909, %v8907
  %v8936 = vpack.c.b16 %v8912, %v8910
  %v8937 = vpack.c.b16 %v8913, %v8911
  %v8938 = vpack.c.b16 %v8916, %v8914
  %v8939 = vpack.c.b16 %v8917, %v8915
  %v8940 = vpack.c.b16 %v8920, %v8918
  %v8941 = vpack.c.b16 %v8921, %v8919
  %v8942 = vpack.c.b16 %v8924, %v8922
  %v8943 = vpack.c.b16 %v8925, %v8923
  %v8944 = vpack.c.b16 %v8928, %v8926
  %v8945 = vpack.c.b16 %v8929, %v8927
  %8962 = vmatpush.bf16.msra.mxu0 %v8944
  %8963 = vmatpush.bf16.msra.mxu0 %v8942
  %8964 = vmatpush.bf16.msra.mxu0 %v8940
  %8965 = vmatpush.bf16.msra.mxu0 %v8938
  %8966 = vmatpush.bf16.msra.mxu0 %v8936
  %8967 = vmatpush.bf16.msra.mxu0 %v8934
  %8968 = vmatpush.bf16.msra.mxu0 %v8932
  %8969 = vmatpush.bf16.msra.mxu0 %v8930
  %8970 = vmatmul.bf16.gmra.mxu0 %v8440
  %v8971 = vpop.f32.mrf.mxu0
  %v8972 = vadd.f32 %v8854, %v8971
  %v8973 = vpop.f32.mrf.mxu0
  %v8974 = vadd.f32 %v8856, %v8973
  %8975 = vmatmul.bf16.gmra.mxu0 %v8446
  %v8976 = vpop.f32.mrf.mxu0
  %v8977 = vadd.f32 %v8859, %v8976
  %v8978 = vpop.f32.mrf.mxu0
  %v8979 = vadd.f32 %v8861, %v8978
  %8980 = vdwg.mxu0
  %8981 = vmatpush.bf16.msra.mxu0 %v8945
  %8982 = vmatpush.bf16.msra.mxu0 %v8943
  %8983 = vmatpush.bf16.msra.mxu0 %v8941
  %8984 = vmatpush.bf16.msra.mxu0 %v8939
  %8985 = vmatpush.bf16.msra.mxu0 %v8937
  %8986 = vmatpush.bf16.msra.mxu0 %v8935
  %8987 = vmatpush.bf16.msra.mxu0 %v8933
  %8988 = vmatpush.bf16.msra.mxu0 %v8931
  %8989 = vmatmul.bf16.gmra.mxu0 %v8440
  %v8990 = vpop.f32.mrf.mxu0
  %v8991 = vadd.f32 %v8873, %v8990
  %v8992 = vpop.f32.mrf.mxu0
  %v8993 = vadd.f32 %v8875, %v8992
  %8994 = vmatmul.bf16.gmra.mxu0 %v8446
  %v8995 = vpop.f32.mrf.mxu0
  %v8996 = vadd.f32 %v8878, %v8995
  %v8997 = vpop.f32.mrf.mxu0
  %v8998 = vadd.f32 %v8880, %v8997
  %8999 = vdwg.mxu0
  %v9000 = vld [vmem:[#allocation5 + $0x20] sm:$0xf]
  %v9001 = vld [vmem:[#allocation5 + $0x24] sm:$0xf]
  %v9002 = vld [vmem:[#allocation5 + $0xa0] sm:$0xf]
  %v9003 = vld [vmem:[#allocation5 + $0xa4] sm:$0xf]
  %v9006 = vunpack.c.l.b16 %v9000
  %v9007 = vunpack.c.l.b16 %v9001
  %v9008 = vpack.c.b16 %v9007, %v9006
  %v9012 = vunpack.c.l.b16 %v9002
  %v9013 = vunpack.c.l.b16 %v9003
  %v9014 = vpack.c.b16 %v9013, %v9012
  %v9016 = vld [vmem:[%s9 + $0x200] sm:$0xff]
  %v9017 = vld [vmem:[%s9 + $0x208] sm:$0xff]
  %v9018 = vld [vmem:[%s9 + $0x210] sm:$0xff]
  %v9019 = vld [vmem:[%s9 + $0x218] sm:$0xff]
  %v9020 = vld [vmem:[%s9 + $0x220] sm:$0xff]
  %v9021 = vld [vmem:[%s9 + $0x228] sm:$0xff]
  %v9022 = vld [vmem:[%s9 + $0x230] sm:$0xff]
  %v9023 = vld [vmem:[%s9 + $0x238] sm:$0xff]
  %v9024 = vld [vmem:[%s9 + $0x240] sm:$0xff]
  %v9025 = vld [vmem:[%s9 + $0x248] sm:$0xff]
  %v9026 = vld [vmem:[%s9 + $0x250] sm:$0xff]
  %v9027 = vld [vmem:[%s9 + $0x258] sm:$0xff]
  %v9028 = vld [vmem:[%s9 + $0x260] sm:$0xff]
  %v9029 = vld [vmem:[%s9 + $0x268] sm:$0xff]
  %v9030 = vld [vmem:[%s9 + $0x270] sm:$0xff]
  %v9031 = vld [vmem:[%s9 + $0x278] sm:$0xff]
  %v9048 = vunpack.c.l.b16 %v9016
  %v9049 = vunpack.c.h.b16 %v9016
  %v9050 = vunpack.c.l.b16 %v9017
  %v9051 = vunpack.c.h.b16 %v9017
  %v9052 = vunpack.c.l.b16 %v9018
  %v9053 = vunpack.c.h.b16 %v9018
  %v9054 = vunpack.c.l.b16 %v9019
  %v9055 = vunpack.c.h.b16 %v9019
  %v9056 = vunpack.c.l.b16 %v9020
  %v9057 = vunpack.c.h.b16 %v9020
  %v9058 = vunpack.c.l.b16 %v9021
  %v9059 = vunpack.c.h.b16 %v9021
  %v9060 = vunpack.c.l.b16 %v9022
  %v9061 = vunpack.c.h.b16 %v9022
  %v9062 = vunpack.c.l.b16 %v9023
  %v9063 = vunpack.c.h.b16 %v9023
  %v9064 = vunpack.c.l.b16 %v9024
  %v9065 = vunpack.c.h.b16 %v9024
  %v9066 = vunpack.c.l.b16 %v9025
  %v9067 = vunpack.c.h.b16 %v9025
  %v9068 = vunpack.c.l.b16 %v9026
  %v9069 = vunpack.c.h.b16 %v9026
  %v9070 = vunpack.c.l.b16 %v9027
  %v9071 = vunpack.c.h.b16 %v9027
  %v9072 = vunpack.c.l.b16 %v9028
  %v9073 = vunpack.c.h.b16 %v9028
  %v9074 = vunpack.c.l.b16 %v9029
  %v9075 = vunpack.c.h.b16 %v9029
  %v9076 = vunpack.c.l.b16 %v9030
  %v9077 = vunpack.c.h.b16 %v9030
  %v9078 = vunpack.c.l.b16 %v9031
  %v9079 = vunpack.c.h.b16 %v9031
  %v9080 = vpack.c.b16 %v9050, %v9048
  %v9081 = vpack.c.b16 %v9051, %v9049
  %v9082 = vpack.c.b16 %v9054, %v9052
  %v9083 = vpack.c.b16 %v9055, %v9053
  %v9084 = vpack.c.b16 %v9058, %v9056
  %v9085 = vpack.c.b16 %v9059, %v9057
  %v9086 = vpack.c.b16 %v9062, %v9060
  %v9087 = vpack.c.b16 %v9063, %v9061
  %v9088 = vpack.c.b16 %v9066, %v9064
  %v9089 = vpack.c.b16 %v9067, %v9065
  %v9090 = vpack.c.b16 %v9070, %v9068
  %v9091 = vpack.c.b16 %v9071, %v9069
  %v9092 = vpack.c.b16 %v9074, %v9072
  %v9093 = vpack.c.b16 %v9075, %v9073
  %v9094 = vpack.c.b16 %v9078, %v9076
  %v9095 = vpack.c.b16 %v9079, %v9077
  %9112 = vmatpush.bf16.msra.mxu0 %v9094
  %9113 = vmatpush.bf16.msra.mxu0 %v9092
  %9114 = vmatpush.bf16.msra.mxu0 %v9090
  %9115 = vmatpush.bf16.msra.mxu0 %v9088
  %9116 = vmatpush.bf16.msra.mxu0 %v9086
  %9117 = vmatpush.bf16.msra.mxu0 %v9084
  %9118 = vmatpush.bf16.msra.mxu0 %v9082
  %9119 = vmatpush.bf16.msra.mxu0 %v9080
  %9120 = vmatmul.bf16.gmra.mxu0 %v9008
  %v9121 = vpop.f32.mrf.mxu0
  %v9122 = vadd.f32 0.0, %v9121
  %v9123 = vpop.f32.mrf.mxu0
  %v9124 = vadd.f32 0.0, %v9123
  %9125 = vmatmul.bf16.gmra.mxu0 %v9014
  %v9126 = vpop.f32.mrf.mxu0
  %v9127 = vadd.f32 0.0, %v9126
  %v9128 = vpop.f32.mrf.mxu0
  %v9129 = vadd.f32 0.0, %v9128
  %9130 = vdwg.mxu0
  %9131 = vmatpush.bf16.msra.mxu0 %v9095
  %9132 = vmatpush.bf16.msra.mxu0 %v9093
  %9133 = vmatpush.bf16.msra.mxu0 %v9091
  %9134 = vmatpush.bf16.msra.mxu0 %v9089
  %9135 = vmatpush.bf16.msra.mxu0 %v9087
  %9136 = vmatpush.bf16.msra.mxu0 %v9085
  %9137 = vmatpush.bf16.msra.mxu0 %v9083
  %9138 = vmatpush.bf16.msra.mxu0 %v9081
  %9139 = vmatmul.bf16.gmra.mxu0 %v9008
  %v9140 = vpop.f32.mrf.mxu0
  %v9141 = vadd.f32 0.0, %v9140
  %v9142 = vpop.f32.mrf.mxu0
  %v9143 = vadd.f32 0.0, %v9142
  %9144 = vmatmul.bf16.gmra.mxu0 %v9014
  %v9145 = vpop.f32.mrf.mxu0
  %v9146 = vadd.f32 0.0, %v9145
  %v9147 = vpop.f32.mrf.mxu0
  %v9148 = vadd.f32 0.0, %v9147
  %9149 = vdwg.mxu0
  %v9150 = vadd.f32 %v8704, %v9122
  %v9151 = vadd.f32 %v8723, %v9141
  %v9152 = vadd.f32 %v8706, %v9124
  %v9153 = vadd.f32 %v8725, %v9143
  %v9154 = vadd.f32 %v8709, %v9127
  %v9155 = vadd.f32 %v8728, %v9146
  %v9156 = vadd.f32 %v8711, %v9129
  %v9157 = vadd.f32 %v8730, %v9148
  %v9158 = vld [vmem:[#allocation5 + $0x28] sm:$0xf]
  %v9159 = vld [vmem:[#allocation5 + $0x2c] sm:$0xf]
  %v9160 = vld [vmem:[#allocation5 + $0xa8] sm:$0xf]
  %v9161 = vld [vmem:[#allocation5 + $0xac] sm:$0xf]
  %v9164 = vunpack.c.l.b16 %v9158
  %v9165 = vunpack.c.l.b16 %v9159
  %v9166 = vpack.c.b16 %v9165, %v9164
  %v9170 = vunpack.c.l.b16 %v9160
  %v9171 = vunpack.c.l.b16 %v9161
  %v9172 = vpack.c.b16 %v9171, %v9170
  %v9174 = vld [vmem:[%s9 + $0x280] sm:$0xff]
  %v9175 = vld [vmem:[%s9 + $0x288] sm:$0xff]
  %v9176 = vld [vmem:[%s9 + $0x290] sm:$0xff]
  %v9177 = vld [vmem:[%s9 + $0x298] sm:$0xff]
  %v9178 = vld [vmem:[%s9 + $0x2a0] sm:$0xff]
  %v9179 = vld [vmem:[%s9 + $0x2a8] sm:$0xff]
  %v9180 = vld [vmem:[%s9 + $0x2b0] sm:$0xff]
  %v9181 = vld [vmem:[%s9 + $0x2b8] sm:$0xff]
  %v9182 = vld [vmem:[%s9 + $0x2c0] sm:$0xff]
  %v9183 = vld [vmem:[%s9 + $0x2c8] sm:$0xff]
  %v9184 = vld [vmem:[%s9 + $0x2d0] sm:$0xff]
  %v9185 = vld [vmem:[%s9 + $0x2d8] sm:$0xff]
  %v9186 = vld [vmem:[%s9 + $0x2e0] sm:$0xff]
  %v9187 = vld [vmem:[%s9 + $0x2e8] sm:$0xff]
  %v9188 = vld [vmem:[%s9 + $0x2f0] sm:$0xff]
  %v9189 = vld [vmem:[%s9 + $0x2f8] sm:$0xff]
  %v9206 = vunpack.c.l.b16 %v9174
  %v9207 = vunpack.c.h.b16 %v9174
  %v9208 = vunpack.c.l.b16 %v9175
  %v9209 = vunpack.c.h.b16 %v9175
  %v9210 = vunpack.c.l.b16 %v9176
  %v9211 = vunpack.c.h.b16 %v9176
  %v9212 = vunpack.c.l.b16 %v9177
  %v9213 = vunpack.c.h.b16 %v9177
  %v9214 = vunpack.c.l.b16 %v9178
  %v9215 = vunpack.c.h.b16 %v9178
  %v9216 = vunpack.c.l.b16 %v9179
  %v9217 = vunpack.c.h.b16 %v9179
  %v9218 = vunpack.c.l.b16 %v9180
  %v9219 = vunpack.c.h.b16 %v9180
  %v9220 = vunpack.c.l.b16 %v9181
  %v9221 = vunpack.c.h.b16 %v9181
  %v9222 = vunpack.c.l.b16 %v9182
  %v9223 = vunpack.c.h.b16 %v9182
  %v9224 = vunpack.c.l.b16 %v9183
  %v9225 = vunpack.c.h.b16 %v9183
  %v9226 = vunpack.c.l.b16 %v9184
  %v9227 = vunpack.c.h.b16 %v9184
  %v9228 = vunpack.c.l.b16 %v9185
  %v9229 = vunpack.c.h.b16 %v9185
  %v9230 = vunpack.c.l.b16 %v9186
  %v9231 = vunpack.c.h.b16 %v9186
  %v9232 = vunpack.c.l.b16 %v9187
  %v9233 = vunpack.c.h.b16 %v9187
  %v9234 = vunpack.c.l.b16 %v9188
  %v9235 = vunpack.c.h.b16 %v9188
  %v9236 = vunpack.c.l.b16 %v9189
  %v9237 = vunpack.c.h.b16 %v9189
  %v9238 = vpack.c.b16 %v9208, %v9206
  %v9239 = vpack.c.b16 %v9209, %v9207
  %v9240 = vpack.c.b16 %v9212, %v9210
  %v9241 = vpack.c.b16 %v9213, %v9211
  %v9242 = vpack.c.b16 %v9216, %v9214
  %v9243 = vpack.c.b16 %v9217, %v9215
  %v9244 = vpack.c.b16 %v9220, %v9218
  %v9245 = vpack.c.b16 %v9221, %v9219
  %v9246 = vpack.c.b16 %v9224, %v9222
  %v9247 = vpack.c.b16 %v9225, %v9223
  %v9248 = vpack.c.b16 %v9228, %v9226
  %v9249 = vpack.c.b16 %v9229, %v9227
  %v9250 = vpack.c.b16 %v9232, %v9230
  %v9251 = vpack.c.b16 %v9233, %v9231
  %v9252 = vpack.c.b16 %v9236, %v9234
  %v9253 = vpack.c.b16 %v9237, %v9235
  %9270 = vmatpush.bf16.msra.mxu0 %v9252
  %9271 = vmatpush.bf16.msra.mxu0 %v9250
  %9272 = vmatpush.bf16.msra.mxu0 %v9248
  %9273 = vmatpush.bf16.msra.mxu0 %v9246
  %9274 = vmatpush.bf16.msra.mxu0 %v9244
  %9275 = vmatpush.bf16.msra.mxu0 %v9242
  %9276 = vmatpush.bf16.msra.mxu0 %v9240
  %9277 = vmatpush.bf16.msra.mxu0 %v9238
  %9278 = vmatmul.bf16.gmra.mxu0 %v9166
  %v9279 = vpop.f32.mrf.mxu0
  %v9280 = vadd.f32 0.0, %v9279
  %v9281 = vpop.f32.mrf.mxu0
  %v9282 = vadd.f32 0.0, %v9281
  %9283 = vmatmul.bf16.gmra.mxu0 %v9172
  %v9284 = vpop.f32.mrf.mxu0
  %v9285 = vadd.f32 0.0, %v9284
  %v9286 = vpop.f32.mrf.mxu0
  %v9287 = vadd.f32 0.0, %v9286
  %9288 = vdwg.mxu0
  %9289 = vmatpush.bf16.msra.mxu0 %v9253
  %9290 = vmatpush.bf16.msra.mxu0 %v9251
  %9291 = vmatpush.bf16.msra.mxu0 %v9249
  %9292 = vmatpush.bf16.msra.mxu0 %v9247
  %9293 = vmatpush.bf16.msra.mxu0 %v9245
  %9294 = vmatpush.bf16.msra.mxu0 %v9243
  %9295 = vmatpush.bf16.msra.mxu0 %v9241
  %9296 = vmatpush.bf16.msra.mxu0 %v9239
  %9297 = vmatmul.bf16.gmra.mxu0 %v9166
  %v9298 = vpop.f32.mrf.mxu0
  %v9299 = vadd.f32 0.0, %v9298
  %v9300 = vpop.f32.mrf.mxu0
  %v9301 = vadd.f32 0.0, %v9300
  %9302 = vmatmul.bf16.gmra.mxu0 %v9172
  %v9303 = vpop.f32.mrf.mxu0
  %v9304 = vadd.f32 0.0, %v9303
  %v9305 = vpop.f32.mrf.mxu0
  %v9306 = vadd.f32 0.0, %v9305
  %9307 = vdwg.mxu0
  %v9308 = vadd.f32 %v8972, %v9280
  %v9309 = vadd.f32 %v8991, %v9299
  %v9310 = vadd.f32 %v8974, %v9282
  %v9311 = vadd.f32 %v8993, %v9301
  %v9312 = vadd.f32 %v8977, %v9285
  %v9313 = vadd.f32 %v8996, %v9304
  %v9314 = vadd.f32 %v8979, %v9287
  %v9315 = vadd.f32 %v8998, %v9306
  %v9316 = vld [vmem:[#allocation5 + $0x30] sm:$0xf]
  %v9317 = vld [vmem:[#allocation5 + $0x34] sm:$0xf]
  %v9318 = vld [vmem:[#allocation5 + $0xb0] sm:$0xf]
  %v9319 = vld [vmem:[#allocation5 + $0xb4] sm:$0xf]
  %v9322 = vunpack.c.l.b16 %v9316
  %v9323 = vunpack.c.l.b16 %v9317
  %v9324 = vpack.c.b16 %v9323, %v9322
  %v9328 = vunpack.c.l.b16 %v9318
  %v9329 = vunpack.c.l.b16 %v9319
  %v9330 = vpack.c.b16 %v9329, %v9328
  %v9332 = vld [vmem:[%s9 + $0x300] sm:$0xff]
  %v9333 = vld [vmem:[%s9 + $0x308] sm:$0xff]
  %v9334 = vld [vmem:[%s9 + $0x310] sm:$0xff]
  %v9335 = vld [vmem:[%s9 + $0x318] sm:$0xff]
  %v9336 = vld [vmem:[%s9 + $0x320] sm:$0xff]
  %v9337 = vld [vmem:[%s9 + $0x328] sm:$0xff]
  %v9338 = vld [vmem:[%s9 + $0x330] sm:$0xff]
  %v9339 = vld [vmem:[%s9 + $0x338] sm:$0xff]
  %v9340 = vld [vmem:[%s9 + $0x340] sm:$0xff]
  %v9341 = vld [vmem:[%s9 + $0x348] sm:$0xff]
  %v9342 = vld [vmem:[%s9 + $0x350] sm:$0xff]
  %v9343 = vld [vmem:[%s9 + $0x358] sm:$0xff]
  %v9344 = vld [vmem:[%s9 + $0x360] sm:$0xff]
  %v9345 = vld [vmem:[%s9 + $0x368] sm:$0xff]
  %v9346 = vld [vmem:[%s9 + $0x370] sm:$0xff]
  %v9347 = vld [vmem:[%s9 + $0x378] sm:$0xff]
  %v9364 = vunpack.c.l.b16 %v9332
  %v9365 = vunpack.c.h.b16 %v9332
  %v9366 = vunpack.c.l.b16 %v9333
  %v9367 = vunpack.c.h.b16 %v9333
  %v9368 = vunpack.c.l.b16 %v9334
  %v9369 = vunpack.c.h.b16 %v9334
  %v9370 = vunpack.c.l.b16 %v9335
  %v9371 = vunpack.c.h.b16 %v9335
  %v9372 = vunpack.c.l.b16 %v9336
  %v9373 = vunpack.c.h.b16 %v9336
  %v9374 = vunpack.c.l.b16 %v9337
  %v9375 = vunpack.c.h.b16 %v9337
  %v9376 = vunpack.c.l.b16 %v9338
  %v9377 = vunpack.c.h.b16 %v9338
  %v9378 = vunpack.c.l.b16 %v9339
  %v9379 = vunpack.c.h.b16 %v9339
  %v9380 = vunpack.c.l.b16 %v9340
  %v9381 = vunpack.c.h.b16 %v9340
  %v9382 = vunpack.c.l.b16 %v9341
  %v9383 = vunpack.c.h.b16 %v9341
  %v9384 = vunpack.c.l.b16 %v9342
  %v9385 = vunpack.c.h.b16 %v9342
  %v9386 = vunpack.c.l.b16 %v9343
  %v9387 = vunpack.c.h.b16 %v9343
  %v9388 = vunpack.c.l.b16 %v9344
  %v9389 = vunpack.c.h.b16 %v9344
  %v9390 = vunpack.c.l.b16 %v9345
  %v9391 = vunpack.c.h.b16 %v9345
  %v9392 = vunpack.c.l.b16 %v9346
  %v9393 = vunpack.c.h.b16 %v9346
  %v9394 = vunpack.c.l.b16 %v9347
  %v9395 = vunpack.c.h.b16 %v9347
  %v9396 = vpack.c.b16 %v9366, %v9364
  %v9397 = vpack.c.b16 %v9367, %v9365
  %v9398 = vpack.c.b16 %v9370, %v9368
  %v9399 = vpack.c.b16 %v9371, %v9369
  %v9400 = vpack.c.b16 %v9374, %v9372
  %v9401 = vpack.c.b16 %v9375, %v9373
  %v9402 = vpack.c.b16 %v9378, %v9376
  %v9403 = vpack.c.b16 %v9379, %v9377
  %v9404 = vpack.c.b16 %v9382, %v9380
  %v9405 = vpack.c.b16 %v9383, %v9381
  %v9406 = vpack.c.b16 %v9386, %v9384
  %v9407 = vpack.c.b16 %v9387, %v9385
  %v9408 = vpack.c.b16 %v9390, %v9388
  %v9409 = vpack.c.b16 %v9391, %v9389
  %v9410 = vpack.c.b16 %v9394, %v9392
  %v9411 = vpack.c.b16 %v9395, %v9393
  %9428 = vmatpush.bf16.msra.mxu0 %v9410
  %9429 = vmatpush.bf16.msra.mxu0 %v9408
  %9430 = vmatpush.bf16.msra.mxu0 %v9406
  %9431 = vmatpush.bf16.msra.mxu0 %v9404
  %9432 = vmatpush.bf16.msra.mxu0 %v9402
  %9433 = vmatpush.bf16.msra.mxu0 %v9400
  %9434 = vmatpush.bf16.msra.mxu0 %v9398
  %9435 = vmatpush.bf16.msra.mxu0 %v9396
  %9436 = vmatmul.bf16.gmra.mxu0 %v9324
  %v9437 = vpop.f32.mrf.mxu0
  %v9438 = vadd.f32 0.0, %v9437
  %v9439 = vpop.f32.mrf.mxu0
  %v9440 = vadd.f32 0.0, %v9439
  %9441 = vmatmul.bf16.gmra.mxu0 %v9330
  %v9442 = vpop.f32.mrf.mxu0
  %v9443 = vadd.f32 0.0, %v9442
  %v9444 = vpop.f32.mrf.mxu0
  %v9445 = vadd.f32 0.0, %v9444
  %9446 = vdwg.mxu0
  %9447 = vmatpush.bf16.msra.mxu0 %v9411
  %9448 = vmatpush.bf16.msra.mxu0 %v9409
  %9449 = vmatpush.bf16.msra.mxu0 %v9407
  %9450 = vmatpush.bf16.msra.mxu0 %v9405
  %9451 = vmatpush.bf16.msra.mxu0 %v9403
  %9452 = vmatpush.bf16.msra.mxu0 %v9401
  %9453 = vmatpush.bf16.msra.mxu0 %v9399
  %9454 = vmatpush.bf16.msra.mxu0 %v9397
  %9455 = vmatmul.bf16.gmra.mxu0 %v9324
  %v9456 = vpop.f32.mrf.mxu0
  %v9457 = vadd.f32 0.0, %v9456
  %v9458 = vpop.f32.mrf.mxu0
  %v9459 = vadd.f32 0.0, %v9458
  %9460 = vmatmul.bf16.gmra.mxu0 %v9330
  %v9461 = vpop.f32.mrf.mxu0
  %v9462 = vadd.f32 0.0, %v9461
  %v9463 = vpop.f32.mrf.mxu0
  %v9464 = vadd.f32 0.0, %v9463
  %9465 = vdwg.mxu0
  %v9466 = vadd.f32 %v9150, %v9438
  %v9467 = vadd.f32 %v9151, %v9457
  %v9468 = vadd.f32 %v9152, %v9440
  %v9469 = vadd.f32 %v9153, %v9459
  %v9470 = vadd.f32 %v9154, %v9443
  %v9471 = vadd.f32 %v9155, %v9462
  %v9472 = vadd.f32 %v9156, %v9445
  %v9473 = vadd.f32 %v9157, %v9464
  %v9474 = vld [vmem:[#allocation5 + $0x38] sm:$0xf]
  %v9475 = vld [vmem:[#allocation5 + $0x3c] sm:$0xf]
  %v9476 = vld [vmem:[#allocation5 + $0xb8] sm:$0xf]
  %v9477 = vld [vmem:[#allocation5 + $0xbc] sm:$0xf]
  %v9480 = vunpack.c.l.b16 %v9474
  %v9481 = vunpack.c.l.b16 %v9475
  %v9482 = vpack.c.b16 %v9481, %v9480
  %v9486 = vunpack.c.l.b16 %v9476
  %v9487 = vunpack.c.l.b16 %v9477
  %v9488 = vpack.c.b16 %v9487, %v9486
  %v9490 = vld [vmem:[%s9 + $0x380] sm:$0xff]
  %v9491 = vld [vmem:[%s9 + $0x388] sm:$0xff]
  %v9492 = vld [vmem:[%s9 + $0x390] sm:$0xff]
  %v9493 = vld [vmem:[%s9 + $0x398] sm:$0xff]
  %v9494 = vld [vmem:[%s9 + $0x3a0] sm:$0xff]
  %v9495 = vld [vmem:[%s9 + $0x3a8] sm:$0xff]
  %v9496 = vld [vmem:[%s9 + $0x3b0] sm:$0xff]
  %v9497 = vld [vmem:[%s9 + $0x3b8] sm:$0xff]
  %v9498 = vld [vmem:[%s9 + $0x3c0] sm:$0xff]
  %v9499 = vld [vmem:[%s9 + $0x3c8] sm:$0xff]
  %v9500 = vld [vmem:[%s9 + $0x3d0] sm:$0xff]
  %v9501 = vld [vmem:[%s9 + $0x3d8] sm:$0xff]
  %v9502 = vld [vmem:[%s9 + $0x3e0] sm:$0xff]
  %v9503 = vld [vmem:[%s9 + $0x3e8] sm:$0xff]
  %v9504 = vld [vmem:[%s9 + $0x3f0] sm:$0xff]
  %v9505 = vld [vmem:[%s9 + $0x3f8] sm:$0xff]
  %v9522 = vunpack.c.l.b16 %v9490
  %v9523 = vunpack.c.h.b16 %v9490
  %v9524 = vunpack.c.l.b16 %v9491
  %v9525 = vunpack.c.h.b16 %v9491
  %v9526 = vunpack.c.l.b16 %v9492
  %v9527 = vunpack.c.h.b16 %v9492
  %v9528 = vunpack.c.l.b16 %v9493
  %v9529 = vunpack.c.h.b16 %v9493
  %v9530 = vunpack.c.l.b16 %v9494
  %v9531 = vunpack.c.h.b16 %v9494
  %v9532 = vunpack.c.l.b16 %v9495
  %v9533 = vunpack.c.h.b16 %v9495
  %v9534 = vunpack.c.l.b16 %v9496
  %v9535 = vunpack.c.h.b16 %v9496
  %v9536 = vunpack.c.l.b16 %v9497
  %v9537 = vunpack.c.h.b16 %v9497
  %v9538 = vunpack.c.l.b16 %v9498
  %v9539 = vunpack.c.h.b16 %v9498
  %v9540 = vunpack.c.l.b16 %v9499
  %v9541 = vunpack.c.h.b16 %v9499
  %v9542 = vunpack.c.l.b16 %v9500
  %v9543 = vunpack.c.h.b16 %v9500
  %v9544 = vunpack.c.l.b16 %v9501
  %v9545 = vunpack.c.h.b16 %v9501
  %v9546 = vunpack.c.l.b16 %v9502
  %v9547 = vunpack.c.h.b16 %v9502
  %v9548 = vunpack.c.l.b16 %v9503
  %v9549 = vunpack.c.h.b16 %v9503
  %v9550 = vunpack.c.l.b16 %v9504
  %v9551 = vunpack.c.h.b16 %v9504
  %v9552 = vunpack.c.l.b16 %v9505
  %v9553 = vunpack.c.h.b16 %v9505
  %v9554 = vpack.c.b16 %v9524, %v9522
  %v9555 = vpack.c.b16 %v9525, %v9523
  %v9556 = vpack.c.b16 %v9528, %v9526
  %v9557 = vpack.c.b16 %v9529, %v9527
  %v9558 = vpack.c.b16 %v9532, %v9530
  %v9559 = vpack.c.b16 %v9533, %v9531
  %v9560 = vpack.c.b16 %v9536, %v9534
  %v9561 = vpack.c.b16 %v9537, %v9535
  %v9562 = vpack.c.b16 %v9540, %v9538
  %v9563 = vpack.c.b16 %v9541, %v9539
  %v9564 = vpack.c.b16 %v9544, %v9542
  %v9565 = vpack.c.b16 %v9545, %v9543
  %v9566 = vpack.c.b16 %v9548, %v9546
  %v9567 = vpack.c.b16 %v9549, %v9547
  %v9568 = vpack.c.b16 %v9552, %v9550
  %v9569 = vpack.c.b16 %v9553, %v9551
  %9586 = vmatpush.bf16.msra.mxu0 %v9568
  %9587 = vmatpush.bf16.msra.mxu0 %v9566
  %9588 = vmatpush.bf16.msra.mxu0 %v9564
  %9589 = vmatpush.bf16.msra.mxu0 %v9562
  %9590 = vmatpush.bf16.msra.mxu0 %v9560
  %9591 = vmatpush.bf16.msra.mxu0 %v9558
  %9592 = vmatpush.bf16.msra.mxu0 %v9556
  %9593 = vmatpush.bf16.msra.mxu0 %v9554
  %9594 = vmatmul.bf16.gmra.mxu0 %v9482
  %v9595 = vpop.f32.mrf.mxu0
  %v9596 = vadd.f32 0.0, %v9595
  %v9597 = vpop.f32.mrf.mxu0
  %v9598 = vadd.f32 0.0, %v9597
  %9599 = vmatmul.bf16.gmra.mxu0 %v9488
  %v9600 = vpop.f32.mrf.mxu0
  %v9601 = vadd.f32 0.0, %v9600
  %v9602 = vpop.f32.mrf.mxu0
  %v9603 = vadd.f32 0.0, %v9602
  %9604 = vdwg.mxu0
  %9605 = vmatpush.bf16.msra.mxu0 %v9569
  %9606 = vmatpush.bf16.msra.mxu0 %v9567
  %9607 = vmatpush.bf16.msra.mxu0 %v9565
  %9608 = vmatpush.bf16.msra.mxu0 %v9563
  %9609 = vmatpush.bf16.msra.mxu0 %v9561
  %9610 = vmatpush.bf16.msra.mxu0 %v9559
  %9611 = vmatpush.bf16.msra.mxu0 %v9557
  %9612 = vmatpush.bf16.msra.mxu0 %v9555
  %9613 = vmatmul.bf16.gmra.mxu0 %v9482
  %v9614 = vpop.f32.mrf.mxu0
  %v9615 = vadd.f32 0.0, %v9614
  %v9616 = vpop.f32.mrf.mxu0
  %v9617 = vadd.f32 0.0, %v9616
  %9618 = vmatmul.bf16.gmra.mxu0 %v9488
  %v9619 = vpop.f32.mrf.mxu0
  %v9620 = vadd.f32 0.0, %v9619
  %v9621 = vpop.f32.mrf.mxu0
  %v9622 = vadd.f32 0.0, %v9621
  %9623 = vdwg.mxu0
  %v9624 = vadd.f32 %v9308, %v9596
  %v9625 = vadd.f32 %v9309, %v9615
  %v9626 = vadd.f32 %v9310, %v9598
  %v9627 = vadd.f32 %v9311, %v9617
  %v9628 = vadd.f32 %v9312, %v9601
  %v9629 = vadd.f32 %v9313, %v9620
  %v9630 = vadd.f32 %v9314, %v9603
  %v9631 = vadd.f32 %v9315, %v9622
  %v9632 = vld [vmem:[#allocation5 + $0x40] sm:$0xf]
  %v9633 = vld [vmem:[#allocation5 + $0x44] sm:$0xf]
  %v9634 = vld [vmem:[#allocation5 + $0xc0] sm:$0xf]
  %v9635 = vld [vmem:[#allocation5 + $0xc4] sm:$0xf]
  %v9638 = vunpack.c.l.b16 %v9632
  %v9639 = vunpack.c.l.b16 %v9633
  %v9640 = vpack.c.b16 %v9639, %v9638
  %v9644 = vunpack.c.l.b16 %v9634
  %v9645 = vunpack.c.l.b16 %v9635
  %v9646 = vpack.c.b16 %v9645, %v9644
  %v9648 = vld [vmem:[%s9 + $0x400] sm:$0xff]
  %v9649 = vld [vmem:[%s9 + $0x408] sm:$0xff]
  %v9650 = vld [vmem:[%s9 + $0x410] sm:$0xff]
  %v9651 = vld [vmem:[%s9 + $0x418] sm:$0xff]
  %v9652 = vld [vmem:[%s9 + $0x420] sm:$0xff]
  %v9653 = vld [vmem:[%s9 + $0x428] sm:$0xff]
  %v9654 = vld [vmem:[%s9 + $0x430] sm:$0xff]
  %v9655 = vld [vmem:[%s9 + $0x438] sm:$0xff]
  %v9656 = vld [vmem:[%s9 + $0x440] sm:$0xff]
  %v9657 = vld [vmem:[%s9 + $0x448] sm:$0xff]
  %v9658 = vld [vmem:[%s9 + $0x450] sm:$0xff]
  %v9659 = vld [vmem:[%s9 + $0x458] sm:$0xff]
  %v9660 = vld [vmem:[%s9 + $0x460] sm:$0xff]
  %v9661 = vld [vmem:[%s9 + $0x468] sm:$0xff]
  %v9662 = vld [vmem:[%s9 + $0x470] sm:$0xff]
  %v9663 = vld [vmem:[%s9 + $0x478] sm:$0xff]
  %v9680 = vunpack.c.l.b16 %v9648
  %v9681 = vunpack.c.h.b16 %v9648
  %v9682 = vunpack.c.l.b16 %v9649
  %v9683 = vunpack.c.h.b16 %v9649
  %v9684 = vunpack.c.l.b16 %v9650
  %v9685 = vunpack.c.h.b16 %v9650
  %v9686 = vunpack.c.l.b16 %v9651
  %v9687 = vunpack.c.h.b16 %v9651
  %v9688 = vunpack.c.l.b16 %v9652
  %v9689 = vunpack.c.h.b16 %v9652
  %v9690 = vunpack.c.l.b16 %v9653
  %v9691 = vunpack.c.h.b16 %v9653
  %v9692 = vunpack.c.l.b16 %v9654
  %v9693 = vunpack.c.h.b16 %v9654
  %v9694 = vunpack.c.l.b16 %v9655
  %v9695 = vunpack.c.h.b16 %v9655
  %v9696 = vunpack.c.l.b16 %v9656
  %v9697 = vunpack.c.h.b16 %v9656
  %v9698 = vunpack.c.l.b16 %v9657
  %v9699 = vunpack.c.h.b16 %v9657
  %v9700 = vunpack.c.l.b16 %v9658
  %v9701 = vunpack.c.h.b16 %v9658
  %v9702 = vunpack.c.l.b16 %v9659
  %v9703 = vunpack.c.h.b16 %v9659
  %v9704 = vunpack.c.l.b16 %v9660
  %v9705 = vunpack.c.h.b16 %v9660
  %v9706 = vunpack.c.l.b16 %v9661
  %v9707 = vunpack.c.h.b16 %v9661
  %v9708 = vunpack.c.l.b16 %v9662
  %v9709 = vunpack.c.h.b16 %v9662
  %v9710 = vunpack.c.l.b16 %v9663
  %v9711 = vunpack.c.h.b16 %v9663
  %v9712 = vpack.c.b16 %v9682, %v9680
  %v9713 = vpack.c.b16 %v9683, %v9681
  %v9714 = vpack.c.b16 %v9686, %v9684
  %v9715 = vpack.c.b16 %v9687, %v9685
  %v9716 = vpack.c.b16 %v9690, %v9688
  %v9717 = vpack.c.b16 %v9691, %v9689
  %v9718 = vpack.c.b16 %v9694, %v9692
  %v9719 = vpack.c.b16 %v9695, %v9693
  %v9720 = vpack.c.b16 %v9698, %v9696
  %v9721 = vpack.c.b16 %v9699, %v9697
  %v9722 = vpack.c.b16 %v9702, %v9700
  %v9723 = vpack.c.b16 %v9703, %v9701
  %v9724 = vpack.c.b16 %v9706, %v9704
  %v9725 = vpack.c.b16 %v9707, %v9705
  %v9726 = vpack.c.b16 %v9710, %v9708
  %v9727 = vpack.c.b16 %v9711, %v9709
  %9744 = vmatpush.bf16.msra.mxu0 %v9726
  %9745 = vmatpush.bf16.msra.mxu0 %v9724
  %9746 = vmatpush.bf16.msra.mxu0 %v9722
  %9747 = vmatpush.bf16.msra.mxu0 %v9720
  %9748 = vmatpush.bf16.msra.mxu0 %v9718
  %9749 = vmatpush.bf16.msra.mxu0 %v9716
  %9750 = vmatpush.bf16.msra.mxu0 %v9714
  %9751 = vmatpush.bf16.msra.mxu0 %v9712
  %9752 = vmatmul.bf16.gmra.mxu0 %v9640
  %v9753 = vpop.f32.mrf.mxu0
  %v9754 = vadd.f32 0.0, %v9753
  %v9755 = vpop.f32.mrf.mxu0
  %v9756 = vadd.f32 0.0, %v9755
  %9757 = vmatmul.bf16.gmra.mxu0 %v9646
  %v9758 = vpop.f32.mrf.mxu0
  %v9759 = vadd.f32 0.0, %v9758
  %v9760 = vpop.f32.mrf.mxu0
  %v9761 = vadd.f32 0.0, %v9760
  %9762 = vdwg.mxu0
  %9763 = vmatpush.bf16.msra.mxu0 %v9727
  %9764 = vmatpush.bf16.msra.mxu0 %v9725
  %9765 = vmatpush.bf16.msra.mxu0 %v9723
  %9766 = vmatpush.bf16.msra.mxu0 %v9721
  %9767 = vmatpush.bf16.msra.mxu0 %v9719
  %9768 = vmatpush.bf16.msra.mxu0 %v9717
  %9769 = vmatpush.bf16.msra.mxu0 %v9715
  %9770 = vmatpush.bf16.msra.mxu0 %v9713
  %9771 = vmatmul.bf16.gmra.mxu0 %v9640
  %v9772 = vpop.f32.mrf.mxu0
  %v9773 = vadd.f32 0.0, %v9772
  %v9774 = vpop.f32.mrf.mxu0
  %v9775 = vadd.f32 0.0, %v9774
  %9776 = vmatmul.bf16.gmra.mxu0 %v9646
  %v9777 = vpop.f32.mrf.mxu0
  %v9778 = vadd.f32 0.0, %v9777
  %v9779 = vpop.f32.mrf.mxu0
  %v9780 = vadd.f32 0.0, %v9779
  %9781 = vdwg.mxu0
  %v9782 = vadd.f32 %v9466, %v9754
  %v9783 = vadd.f32 %v9467, %v9773
  %v9784 = vadd.f32 %v9468, %v9756
  %v9785 = vadd.f32 %v9469, %v9775
  %v9786 = vadd.f32 %v9470, %v9759
  %v9787 = vadd.f32 %v9471, %v9778
  %v9788 = vadd.f32 %v9472, %v9761
  %v9789 = vadd.f32 %v9473, %v9780
  %v9790 = vld [vmem:[#allocation5 + $0x48] sm:$0xf]
  %v9791 = vld [vmem:[#allocation5 + $0x4c] sm:$0xf]
  %v9792 = vld [vmem:[#allocation5 + $0xc8] sm:$0xf]
  %v9793 = vld [vmem:[#allocation5 + $0xcc] sm:$0xf]
  %v9796 = vunpack.c.l.b16 %v9790
  %v9797 = vunpack.c.l.b16 %v9791
  %v9798 = vpack.c.b16 %v9797, %v9796
  %v9802 = vunpack.c.l.b16 %v9792
  %v9803 = vunpack.c.l.b16 %v9793
  %v9804 = vpack.c.b16 %v9803, %v9802
  %v9806 = vld [vmem:[%s9 + $0x480] sm:$0xff]
  %v9807 = vld [vmem:[%s9 + $0x488] sm:$0xff]
  %v9808 = vld [vmem:[%s9 + $0x490] sm:$0xff]
  %v9809 = vld [vmem:[%s9 + $0x498] sm:$0xff]
  %v9810 = vld [vmem:[%s9 + $0x4a0] sm:$0xff]
  %v9811 = vld [vmem:[%s9 + $0x4a8] sm:$0xff]
  %v9812 = vld [vmem:[%s9 + $0x4b0] sm:$0xff]
  %v9813 = vld [vmem:[%s9 + $0x4b8] sm:$0xff]
  %v9814 = vld [vmem:[%s9 + $0x4c0] sm:$0xff]
  %v9815 = vld [vmem:[%s9 + $0x4c8] sm:$0xff]
  %v9816 = vld [vmem:[%s9 + $0x4d0] sm:$0xff]
  %v9817 = vld [vmem:[%s9 + $0x4d8] sm:$0xff]
  %v9818 = vld [vmem:[%s9 + $0x4e0] sm:$0xff]
  %v9819 = vld [vmem:[%s9 + $0x4e8] sm:$0xff]
  %v9820 = vld [vmem:[%s9 + $0x4f0] sm:$0xff]
  %v9821 = vld [vmem:[%s9 + $0x4f8] sm:$0xff]
  %v9838 = vunpack.c.l.b16 %v9806
  %v9839 = vunpack.c.h.b16 %v9806
  %v9840 = vunpack.c.l.b16 %v9807
  %v9841 = vunpack.c.h.b16 %v9807
  %v9842 = vunpack.c.l.b16 %v9808
  %v9843 = vunpack.c.h.b16 %v9808
  %v9844 = vunpack.c.l.b16 %v9809
  %v9845 = vunpack.c.h.b16 %v9809
  %v9846 = vunpack.c.l.b16 %v9810
  %v9847 = vunpack.c.h.b16 %v9810
  %v9848 = vunpack.c.l.b16 %v9811
  %v9849 = vunpack.c.h.b16 %v9811
  %v9850 = vunpack.c.l.b16 %v9812
  %v9851 = vunpack.c.h.b16 %v9812
  %v9852 = vunpack.c.l.b16 %v9813
  %v9853 = vunpack.c.h.b16 %v9813
  %v9854 = vunpack.c.l.b16 %v9814
  %v9855 = vunpack.c.h.b16 %v9814
  %v9856 = vunpack.c.l.b16 %v9815
  %v9857 = vunpack.c.h.b16 %v9815
  %v9858 = vunpack.c.l.b16 %v9816
  %v9859 = vunpack.c.h.b16 %v9816
  %v9860 = vunpack.c.l.b16 %v9817
  %v9861 = vunpack.c.h.b16 %v9817
  %v9862 = vunpack.c.l.b16 %v9818
  %v9863 = vunpack.c.h.b16 %v9818
  %v9864 = vunpack.c.l.b16 %v9819
  %v9865 = vunpack.c.h.b16 %v9819
  %v9866 = vunpack.c.l.b16 %v9820
  %v9867 = vunpack.c.h.b16 %v9820
  %v9868 = vunpack.c.l.b16 %v9821
  %v9869 = vunpack.c.h.b16 %v9821
  %v9870 = vpack.c.b16 %v9840, %v9838
  %v9871 = vpack.c.b16 %v9841, %v9839
  %v9872 = vpack.c.b16 %v9844, %v9842
  %v9873 = vpack.c.b16 %v9845, %v9843
  %v9874 = vpack.c.b16 %v9848, %v9846
  %v9875 = vpack.c.b16 %v9849, %v9847
  %v9876 = vpack.c.b16 %v9852, %v9850
  %v9877 = vpack.c.b16 %v9853, %v9851
  %v9878 = vpack.c.b16 %v9856, %v9854
  %v9879 = vpack.c.b16 %v9857, %v9855
  %v9880 = vpack.c.b16 %v9860, %v9858
  %v9881 = vpack.c.b16 %v9861, %v9859
  %v9882 = vpack.c.b16 %v9864, %v9862
  %v9883 = vpack.c.b16 %v9865, %v9863
  %v9884 = vpack.c.b16 %v9868, %v9866
  %v9885 = vpack.c.b16 %v9869, %v9867
  %9902 = vmatpush.bf16.msra.mxu0 %v9884
  %9903 = vmatpush.bf16.msra.mxu0 %v9882
  %9904 = vmatpush.bf16.msra.mxu0 %v9880
  %9905 = vmatpush.bf16.msra.mxu0 %v9878
  %9906 = vmatpush.bf16.msra.mxu0 %v9876
  %9907 = vmatpush.bf16.msra.mxu0 %v9874
  %9908 = vmatpush.bf16.msra.mxu0 %v9872
  %9909 = vmatpush.bf16.msra.mxu0 %v9870
  %9910 = vmatmul.bf16.gmra.mxu0 %v9798
  %v9911 = vpop.f32.mrf.mxu0
  %v9912 = vadd.f32 0.0, %v9911
  %v9913 = vpop.f32.mrf.mxu0
  %v9914 = vadd.f32 0.0, %v9913
  %9915 = vmatmul.bf16.gmra.mxu0 %v9804
  %v9916 = vpop.f32.mrf.mxu0
  %v9917 = vadd.f32 0.0, %v9916
  %v9918 = vpop.f32.mrf.mxu0
  %v9919 = vadd.f32 0.0, %v9918
  %9920 = vdwg.mxu0
  %9921 = vmatpush.bf16.msra.mxu0 %v9885
  %9922 = vmatpush.bf16.msra.mxu0 %v9883
  %9923 = vmatpush.bf16.msra.mxu0 %v9881
  %9924 = vmatpush.bf16.msra.mxu0 %v9879
  %9925 = vmatpush.bf16.msra.mxu0 %v9877
  %9926 = vmatpush.bf16.msra.mxu0 %v9875
  %9927 = vmatpush.bf16.msra.mxu0 %v9873
  %9928 = vmatpush.bf16.msra.mxu0 %v9871
  %9929 = vmatmul.bf16.gmra.mxu0 %v9798
  %v9930 = vpop.f32.mrf.mxu0
  %v9931 = vadd.f32 0.0, %v9930
  %v9932 = vpop.f32.mrf.mxu0
  %v9933 = vadd.f32 0.0, %v9932
  %9934 = vmatmul.bf16.gmra.mxu0 %v9804
  %v9935 = vpop.f32.mrf.mxu0
  %v9936 = vadd.f32 0.0, %v9935
  %v9937 = vpop.f32.mrf.mxu0
  %v9938 = vadd.f32 0.0, %v9937
  %9939 = vdwg.mxu0
  %v9940 = vadd.f32 %v9624, %v9912
  %v9941 = vadd.f32 %v9625, %v9931
  %v9942 = vadd.f32 %v9626, %v9914
  %v9943 = vadd.f32 %v9627, %v9933
  %v9944 = vadd.f32 %v9628, %v9917
  %v9945 = vadd.f32 %v9629, %v9936
  %v9946 = vadd.f32 %v9630, %v9919
  %v9947 = vadd.f32 %v9631, %v9938
  %v9948 = vld [vmem:[#allocation5 + $0x50] sm:$0xf]
  %v9949 = vld [vmem:[#allocation5 + $0x54] sm:$0xf]
  %v9950 = vld [vmem:[#allocation5 + $0xd0] sm:$0xf]
  %v9951 = vld [vmem:[#allocation5 + $0xd4] sm:$0xf]
  %v9954 = vunpack.c.l.b16 %v9948
  %v9955 = vunpack.c.l.b16 %v9949
  %v9956 = vpack.c.b16 %v9955, %v9954
  %v9960 = vunpack.c.l.b16 %v9950
  %v9961 = vunpack.c.l.b16 %v9951
  %v9962 = vpack.c.b16 %v9961, %v9960
  %v9964 = vld [vmem:[%s9 + $0x500] sm:$0xff]
  %v9965 = vld [vmem:[%s9 + $0x508] sm:$0xff]
  %v9966 = vld [vmem:[%s9 + $0x510] sm:$0xff]
  %v9967 = vld [vmem:[%s9 + $0x518] sm:$0xff]
  %v9968 = vld [vmem:[%s9 + $0x520] sm:$0xff]
  %v9969 = vld [vmem:[%s9 + $0x528] sm:$0xff]
  %v9970 = vld [vmem:[%s9 + $0x530] sm:$0xff]
  %v9971 = vld [vmem:[%s9 + $0x538] sm:$0xff]
  %v9972 = vld [vmem:[%s9 + $0x540] sm:$0xff]
  %v9973 = vld [vmem:[%s9 + $0x548] sm:$0xff]
  %v9974 = vld [vmem:[%s9 + $0x550] sm:$0xff]
  %v9975 = vld [vmem:[%s9 + $0x558] sm:$0xff]
  %v9976 = vld [vmem:[%s9 + $0x560] sm:$0xff]
  %v9977 = vld [vmem:[%s9 + $0x568] sm:$0xff]
  %v9978 = vld [vmem:[%s9 + $0x570] sm:$0xff]
  %v9979 = vld [vmem:[%s9 + $0x578] sm:$0xff]
  %v9996 = vunpack.c.l.b16 %v9964
  %v9997 = vunpack.c.h.b16 %v9964
  %v9998 = vunpack.c.l.b16 %v9965
  %v9999 = vunpack.c.h.b16 %v9965
  %v10000 = vunpack.c.l.b16 %v9966
  %v10001 = vunpack.c.h.b16 %v9966
  %v10002 = vunpack.c.l.b16 %v9967
  %v10003 = vunpack.c.h.b16 %v9967
  %v10004 = vunpack.c.l.b16 %v9968
  %v10005 = vunpack.c.h.b16 %v9968
  %v10006 = vunpack.c.l.b16 %v9969
  %v10007 = vunpack.c.h.b16 %v9969
  %v10008 = vunpack.c.l.b16 %v9970
  %v10009 = vunpack.c.h.b16 %v9970
  %v10010 = vunpack.c.l.b16 %v9971
  %v10011 = vunpack.c.h.b16 %v9971
  %v10012 = vunpack.c.l.b16 %v9972
  %v10013 = vunpack.c.h.b16 %v9972
  %v10014 = vunpack.c.l.b16 %v9973
  %v10015 = vunpack.c.h.b16 %v9973
  %v10016 = vunpack.c.l.b16 %v9974
  %v10017 = vunpack.c.h.b16 %v9974
  %v10018 = vunpack.c.l.b16 %v9975
  %v10019 = vunpack.c.h.b16 %v9975
  %v10020 = vunpack.c.l.b16 %v9976
  %v10021 = vunpack.c.h.b16 %v9976
  %v10022 = vunpack.c.l.b16 %v9977
  %v10023 = vunpack.c.h.b16 %v9977
  %v10024 = vunpack.c.l.b16 %v9978
  %v10025 = vunpack.c.h.b16 %v9978
  %v10026 = vunpack.c.l.b16 %v9979
  %v10027 = vunpack.c.h.b16 %v9979
  %v10028 = vpack.c.b16 %v9998, %v9996
  %v10029 = vpack.c.b16 %v9999, %v9997
  %v10030 = vpack.c.b16 %v10002, %v10000
  %v10031 = vpack.c.b16 %v10003, %v10001
  %v10032 = vpack.c.b16 %v10006, %v10004
  %v10033 = vpack.c.b16 %v10007, %v10005
  %v10034 = vpack.c.b16 %v10010, %v10008
  %v10035 = vpack.c.b16 %v10011, %v10009
  %v10036 = vpack.c.b16 %v10014, %v10012
  %v10037 = vpack.c.b16 %v10015, %v10013
  %v10038 = vpack.c.b16 %v10018, %v10016
  %v10039 = vpack.c.b16 %v10019, %v10017
  %v10040 = vpack.c.b16 %v10022, %v10020
  %v10041 = vpack.c.b16 %v10023, %v10021
  %v10042 = vpack.c.b16 %v10026, %v10024
  %v10043 = vpack.c.b16 %v10027, %v10025
  %10060 = vmatpush.bf16.msra.mxu0 %v10042
  %10061 = vmatpush.bf16.msra.mxu0 %v10040
  %10062 = vmatpush.bf16.msra.mxu0 %v10038
  %10063 = vmatpush.bf16.msra.mxu0 %v10036
  %10064 = vmatpush.bf16.msra.mxu0 %v10034
  %10065 = vmatpush.bf16.msra.mxu0 %v10032
  %10066 = vmatpush.bf16.msra.mxu0 %v10030
  %10067 = vmatpush.bf16.msra.mxu0 %v10028
  %10068 = vmatmul.bf16.gmra.mxu0 %v9956
  %v10069 = vpop.f32.mrf.mxu0
  %v10070 = vadd.f32 0.0, %v10069
  %v10071 = vpop.f32.mrf.mxu0
  %v10072 = vadd.f32 0.0, %v10071
  %10073 = vmatmul.bf16.gmra.mxu0 %v9962
  %v10074 = vpop.f32.mrf.mxu0
  %v10075 = vadd.f32 0.0, %v10074
  %v10076 = vpop.f32.mrf.mxu0
  %v10077 = vadd.f32 0.0, %v10076
  %10078 = vdwg.mxu0
  %10079 = vmatpush.bf16.msra.mxu0 %v10043
  %10080 = vmatpush.bf16.msra.mxu0 %v10041
  %10081 = vmatpush.bf16.msra.mxu0 %v10039
  %10082 = vmatpush.bf16.msra.mxu0 %v10037
  %10083 = vmatpush.bf16.msra.mxu0 %v10035
  %10084 = vmatpush.bf16.msra.mxu0 %v10033
  %10085 = vmatpush.bf16.msra.mxu0 %v10031
  %10086 = vmatpush.bf16.msra.mxu0 %v10029
  %10087 = vmatmul.bf16.gmra.mxu0 %v9956
  %v10088 = vpop.f32.mrf.mxu0
  %v10089 = vadd.f32 0.0, %v10088
  %v10090 = vpop.f32.mrf.mxu0
  %v10091 = vadd.f32 0.0, %v10090
  %10092 = vmatmul.bf16.gmra.mxu0 %v9962
  %v10093 = vpop.f32.mrf.mxu0
  %v10094 = vadd.f32 0.0, %v10093
  %v10095 = vpop.f32.mrf.mxu0
  %v10096 = vadd.f32 0.0, %v10095
  %10097 = vdwg.mxu0
  %v10098 = vadd.f32 %v9782, %v10070
  %v10099 = vadd.f32 %v9783, %v10089
  %v10100 = vadd.f32 %v9784, %v10072
  %v10101 = vadd.f32 %v9785, %v10091
  %v10102 = vadd.f32 %v9786, %v10075
  %v10103 = vadd.f32 %v9787, %v10094
  %v10104 = vadd.f32 %v9788, %v10077
  %v10105 = vadd.f32 %v9789, %v10096
  %v10106 = vld [vmem:[#allocation5 + $0x58] sm:$0xf]
  %v10107 = vld [vmem:[#allocation5 + $0x5c] sm:$0xf]
  %v10108 = vld [vmem:[#allocation5 + $0xd8] sm:$0xf]
  %v10109 = vld [vmem:[#allocation5 + $0xdc] sm:$0xf]
  %v10112 = vunpack.c.l.b16 %v10106
  %v10113 = vunpack.c.l.b16 %v10107
  %v10114 = vpack.c.b16 %v10113, %v10112
  %v10118 = vunpack.c.l.b16 %v10108
  %v10119 = vunpack.c.l.b16 %v10109
  %v10120 = vpack.c.b16 %v10119, %v10118
  %v10122 = vld [vmem:[%s9 + $0x580] sm:$0xff]
  %v10123 = vld [vmem:[%s9 + $0x588] sm:$0xff]
  %v10124 = vld [vmem:[%s9 + $0x590] sm:$0xff]
  %v10125 = vld [vmem:[%s9 + $0x598] sm:$0xff]
  %v10126 = vld [vmem:[%s9 + $0x5a0] sm:$0xff]
  %v10127 = vld [vmem:[%s9 + $0x5a8] sm:$0xff]
  %v10128 = vld [vmem:[%s9 + $0x5b0] sm:$0xff]
  %v10129 = vld [vmem:[%s9 + $0x5b8] sm:$0xff]
  %v10130 = vld [vmem:[%s9 + $0x5c0] sm:$0xff]
  %v10131 = vld [vmem:[%s9 + $0x5c8] sm:$0xff]
  %v10132 = vld [vmem:[%s9 + $0x5d0] sm:$0xff]
  %v10133 = vld [vmem:[%s9 + $0x5d8] sm:$0xff]
  %v10134 = vld [vmem:[%s9 + $0x5e0] sm:$0xff]
  %v10135 = vld [vmem:[%s9 + $0x5e8] sm:$0xff]
  %v10136 = vld [vmem:[%s9 + $0x5f0] sm:$0xff]
  %v10137 = vld [vmem:[%s9 + $0x5f8] sm:$0xff]
  %v10154 = vunpack.c.l.b16 %v10122
  %v10155 = vunpack.c.h.b16 %v10122
  %v10156 = vunpack.c.l.b16 %v10123
  %v10157 = vunpack.c.h.b16 %v10123
  %v10158 = vunpack.c.l.b16 %v10124
  %v10159 = vunpack.c.h.b16 %v10124
  %v10160 = vunpack.c.l.b16 %v10125
  %v10161 = vunpack.c.h.b16 %v10125
  %v10162 = vunpack.c.l.b16 %v10126
  %v10163 = vunpack.c.h.b16 %v10126
  %v10164 = vunpack.c.l.b16 %v10127
  %v10165 = vunpack.c.h.b16 %v10127
  %v10166 = vunpack.c.l.b16 %v10128
  %v10167 = vunpack.c.h.b16 %v10128
  %v10168 = vunpack.c.l.b16 %v10129
  %v10169 = vunpack.c.h.b16 %v10129
  %v10170 = vunpack.c.l.b16 %v10130
  %v10171 = vunpack.c.h.b16 %v10130
  %v10172 = vunpack.c.l.b16 %v10131
  %v10173 = vunpack.c.h.b16 %v10131
  %v10174 = vunpack.c.l.b16 %v10132
  %v10175 = vunpack.c.h.b16 %v10132
  %v10176 = vunpack.c.l.b16 %v10133
  %v10177 = vunpack.c.h.b16 %v10133
  %v10178 = vunpack.c.l.b16 %v10134
  %v10179 = vunpack.c.h.b16 %v10134
  %v10180 = vunpack.c.l.b16 %v10135
  %v10181 = vunpack.c.h.b16 %v10135
  %v10182 = vunpack.c.l.b16 %v10136
  %v10183 = vunpack.c.h.b16 %v10136
  %v10184 = vunpack.c.l.b16 %v10137
  %v10185 = vunpack.c.h.b16 %v10137
  %v10186 = vpack.c.b16 %v10156, %v10154
  %v10187 = vpack.c.b16 %v10157, %v10155
  %v10188 = vpack.c.b16 %v10160, %v10158
  %v10189 = vpack.c.b16 %v10161, %v10159
  %v10190 = vpack.c.b16 %v10164, %v10162
  %v10191 = vpack.c.b16 %v10165, %v10163
  %v10192 = vpack.c.b16 %v10168, %v10166
  %v10193 = vpack.c.b16 %v10169, %v10167
  %v10194 = vpack.c.b16 %v10172, %v10170
  %v10195 = vpack.c.b16 %v10173, %v10171
  %v10196 = vpack.c.b16 %v10176, %v10174
  %v10197 = vpack.c.b16 %v10177, %v10175
  %v10198 = vpack.c.b16 %v10180, %v10178
  %v10199 = vpack.c.b16 %v10181, %v10179
  %v10200 = vpack.c.b16 %v10184, %v10182
  %v10201 = vpack.c.b16 %v10185, %v10183
  %10218 = vmatpush.bf16.msra.mxu0 %v10200
  %10219 = vmatpush.bf16.msra.mxu0 %v10198
  %10220 = vmatpush.bf16.msra.mxu0 %v10196
  %10221 = vmatpush.bf16.msra.mxu0 %v10194
  %10222 = vmatpush.bf16.msra.mxu0 %v10192
  %10223 = vmatpush.bf16.msra.mxu0 %v10190
  %10224 = vmatpush.bf16.msra.mxu0 %v10188
  %10225 = vmatpush.bf16.msra.mxu0 %v10186
  %10226 = vmatmul.bf16.gmra.mxu0 %v10114
  %v10227 = vpop.f32.mrf.mxu0
  %v10228 = vadd.f32 0.0, %v10227
  %v10229 = vpop.f32.mrf.mxu0
  %v10230 = vadd.f32 0.0, %v10229
  %10231 = vmatmul.bf16.gmra.mxu0 %v10120
  %v10232 = vpop.f32.mrf.mxu0
  %v10233 = vadd.f32 0.0, %v10232
  %v10234 = vpop.f32.mrf.mxu0
  %v10235 = vadd.f32 0.0, %v10234
  %10236 = vdwg.mxu0
  %10237 = vmatpush.bf16.msra.mxu0 %v10201
  %10238 = vmatpush.bf16.msra.mxu0 %v10199
  %10239 = vmatpush.bf16.msra.mxu0 %v10197
  %10240 = vmatpush.bf16.msra.mxu0 %v10195
  %10241 = vmatpush.bf16.msra.mxu0 %v10193
  %10242 = vmatpush.bf16.msra.mxu0 %v10191
  %10243 = vmatpush.bf16.msra.mxu0 %v10189
  %10244 = vmatpush.bf16.msra.mxu0 %v10187
  %10245 = vmatmul.bf16.gmra.mxu0 %v10114
  %v10246 = vpop.f32.mrf.mxu0
  %v10247 = vadd.f32 0.0, %v10246
  %v10248 = vpop.f32.mrf.mxu0
  %v10249 = vadd.f32 0.0, %v10248
  %10250 = vmatmul.bf16.gmra.mxu0 %v10120
  %v10251 = vpop.f32.mrf.mxu0
  %v10252 = vadd.f32 0.0, %v10251
  %v10253 = vpop.f32.mrf.mxu0
  %v10254 = vadd.f32 0.0, %v10253
  %10255 = vdwg.mxu0
  %v10256 = vadd.f32 %v9940, %v10228
  %v10257 = vadd.f32 %v9941, %v10247
  %v10258 = vadd.f32 %v9942, %v10230
  %v10259 = vadd.f32 %v9943, %v10249
  %v10260 = vadd.f32 %v9944, %v10233
  %v10261 = vadd.f32 %v9945, %v10252
  %v10262 = vadd.f32 %v9946, %v10235
  %v10263 = vadd.f32 %v9947, %v10254
  %v10264 = vld [vmem:[#allocation5 + $0x60] sm:$0xf]
  %v10265 = vld [vmem:[#allocation5 + $0x64] sm:$0xf]
  %v10266 = vld [vmem:[#allocation5 + $0xe0] sm:$0xf]
  %v10267 = vld [vmem:[#allocation5 + $0xe4] sm:$0xf]
  %v10270 = vunpack.c.l.b16 %v10264
  %v10271 = vunpack.c.l.b16 %v10265
  %v10272 = vpack.c.b16 %v10271, %v10270
  %v10276 = vunpack.c.l.b16 %v10266
  %v10277 = vunpack.c.l.b16 %v10267
  %v10278 = vpack.c.b16 %v10277, %v10276
  %v10280 = vld [vmem:[%s9 + $0x600] sm:$0xff]
  %v10281 = vld [vmem:[%s9 + $0x608] sm:$0xff]
  %v10282 = vld [vmem:[%s9 + $0x610] sm:$0xff]
  %v10283 = vld [vmem:[%s9 + $0x618] sm:$0xff]
  %v10284 = vld [vmem:[%s9 + $0x620] sm:$0xff]
  %v10285 = vld [vmem:[%s9 + $0x628] sm:$0xff]
  %v10286 = vld [vmem:[%s9 + $0x630] sm:$0xff]
  %v10287 = vld [vmem:[%s9 + $0x638] sm:$0xff]
  %v10288 = vld [vmem:[%s9 + $0x640] sm:$0xff]
  %v10289 = vld [vmem:[%s9 + $0x648] sm:$0xff]
  %v10290 = vld [vmem:[%s9 + $0x650] sm:$0xff]
  %v10291 = vld [vmem:[%s9 + $0x658] sm:$0xff]
  %v10292 = vld [vmem:[%s9 + $0x660] sm:$0xff]
  %v10293 = vld [vmem:[%s9 + $0x668] sm:$0xff]
  %v10294 = vld [vmem:[%s9 + $0x670] sm:$0xff]
  %v10295 = vld [vmem:[%s9 + $0x678] sm:$0xff]
  %v10312 = vunpack.c.l.b16 %v10280
  %v10313 = vunpack.c.h.b16 %v10280
  %v10314 = vunpack.c.l.b16 %v10281
  %v10315 = vunpack.c.h.b16 %v10281
  %v10316 = vunpack.c.l.b16 %v10282
  %v10317 = vunpack.c.h.b16 %v10282
  %v10318 = vunpack.c.l.b16 %v10283
  %v10319 = vunpack.c.h.b16 %v10283
  %v10320 = vunpack.c.l.b16 %v10284
  %v10321 = vunpack.c.h.b16 %v10284
  %v10322 = vunpack.c.l.b16 %v10285
  %v10323 = vunpack.c.h.b16 %v10285
  %v10324 = vunpack.c.l.b16 %v10286
  %v10325 = vunpack.c.h.b16 %v10286
  %v10326 = vunpack.c.l.b16 %v10287
  %v10327 = vunpack.c.h.b16 %v10287
  %v10328 = vunpack.c.l.b16 %v10288
  %v10329 = vunpack.c.h.b16 %v10288
  %v10330 = vunpack.c.l.b16 %v10289
  %v10331 = vunpack.c.h.b16 %v10289
  %v10332 = vunpack.c.l.b16 %v10290
  %v10333 = vunpack.c.h.b16 %v10290
  %v10334 = vunpack.c.l.b16 %v10291
  %v10335 = vunpack.c.h.b16 %v10291
  %v10336 = vunpack.c.l.b16 %v10292
  %v10337 = vunpack.c.h.b16 %v10292
  %v10338 = vunpack.c.l.b16 %v10293
  %v10339 = vunpack.c.h.b16 %v10293
  %v10340 = vunpack.c.l.b16 %v10294
  %v10341 = vunpack.c.h.b16 %v10294
  %v10342 = vunpack.c.l.b16 %v10295
  %v10343 = vunpack.c.h.b16 %v10295
  %v10344 = vpack.c.b16 %v10314, %v10312
  %v10345 = vpack.c.b16 %v10315, %v10313
  %v10346 = vpack.c.b16 %v10318, %v10316
  %v10347 = vpack.c.b16 %v10319, %v10317
  %v10348 = vpack.c.b16 %v10322, %v10320
  %v10349 = vpack.c.b16 %v10323, %v10321
  %v10350 = vpack.c.b16 %v10326, %v10324
  %v10351 = vpack.c.b16 %v10327, %v10325
  %v10352 = vpack.c.b16 %v10330, %v10328
  %v10353 = vpack.c.b16 %v10331, %v10329
  %v10354 = vpack.c.b16 %v10334, %v10332
  %v10355 = vpack.c.b16 %v10335, %v10333
  %v10356 = vpack.c.b16 %v10338, %v10336
  %v10357 = vpack.c.b16 %v10339, %v10337
  %v10358 = vpack.c.b16 %v10342, %v10340
  %v10359 = vpack.c.b16 %v10343, %v10341
  %10376 = vmatpush.bf16.msra.mxu0 %v10358
  %10377 = vmatpush.bf16.msra.mxu0 %v10356
  %10378 = vmatpush.bf16.msra.mxu0 %v10354
  %10379 = vmatpush.bf16.msra.mxu0 %v10352
  %10380 = vmatpush.bf16.msra.mxu0 %v10350
  %10381 = vmatpush.bf16.msra.mxu0 %v10348
  %10382 = vmatpush.bf16.msra.mxu0 %v10346
  %10383 = vmatpush.bf16.msra.mxu0 %v10344
  %10384 = vmatmul.bf16.gmra.mxu0 %v10272
  %v10385 = vpop.f32.mrf.mxu0
  %v10386 = vadd.f32 0.0, %v10385
  %v10387 = vpop.f32.mrf.mxu0
  %v10388 = vadd.f32 0.0, %v10387
  %10389 = vmatmul.bf16.gmra.mxu0 %v10278
  %v10390 = vpop.f32.mrf.mxu0
  %v10391 = vadd.f32 0.0, %v10390
  %v10392 = vpop.f32.mrf.mxu0
  %v10393 = vadd.f32 0.0, %v10392
  %10394 = vdwg.mxu0
  %10395 = vmatpush.bf16.msra.mxu0 %v10359
  %10396 = vmatpush.bf16.msra.mxu0 %v10357
  %10397 = vmatpush.bf16.msra.mxu0 %v10355
  %10398 = vmatpush.bf16.msra.mxu0 %v10353
  %10399 = vmatpush.bf16.msra.mxu0 %v10351
  %10400 = vmatpush.bf16.msra.mxu0 %v10349
  %10401 = vmatpush.bf16.msra.mxu0 %v10347
  %10402 = vmatpush.bf16.msra.mxu0 %v10345
  %10403 = vmatmul.bf16.gmra.mxu0 %v10272
  %v10404 = vpop.f32.mrf.mxu0
  %v10405 = vadd.f32 0.0, %v10404
  %v10406 = vpop.f32.mrf.mxu0
  %v10407 = vadd.f32 0.0, %v10406
  %10408 = vmatmul.bf16.gmra.mxu0 %v10278
  %v10409 = vpop.f32.mrf.mxu0
  %v10410 = vadd.f32 0.0, %v10409
  %v10411 = vpop.f32.mrf.mxu0
  %v10412 = vadd.f32 0.0, %v10411
  %10413 = vdwg.mxu0
  %v10414 = vadd.f32 %v10098, %v10386
  %v10415 = vadd.f32 %v10099, %v10405
  %v10416 = vadd.f32 %v10100, %v10388
  %v10417 = vadd.f32 %v10101, %v10407
  %v10418 = vadd.f32 %v10102, %v10391
  %v10419 = vadd.f32 %v10103, %v10410
  %v10420 = vadd.f32 %v10104, %v10393
  %v10421 = vadd.f32 %v10105, %v10412
  %v10422 = vld [vmem:[#allocation5 + $0x68] sm:$0xf]
  %v10423 = vld [vmem:[#allocation5 + $0x6c] sm:$0xf]
  %v10424 = vld [vmem:[#allocation5 + $0xe8] sm:$0xf]
  %v10425 = vld [vmem:[#allocation5 + $0xec] sm:$0xf]
  %v10428 = vunpack.c.l.b16 %v10422
  %v10429 = vunpack.c.l.b16 %v10423
  %v10430 = vpack.c.b16 %v10429, %v10428
  %v10434 = vunpack.c.l.b16 %v10424
  %v10435 = vunpack.c.l.b16 %v10425
  %v10436 = vpack.c.b16 %v10435, %v10434
  %v10438 = vld [vmem:[%s9 + $0x680] sm:$0xff]
  %v10439 = vld [vmem:[%s9 + $0x688] sm:$0xff]
  %v10440 = vld [vmem:[%s9 + $0x690] sm:$0xff]
  %v10441 = vld [vmem:[%s9 + $0x698] sm:$0xff]
  %v10442 = vld [vmem:[%s9 + $0x6a0] sm:$0xff]
  %v10443 = vld [vmem:[%s9 + $0x6a8] sm:$0xff]
  %v10444 = vld [vmem:[%s9 + $0x6b0] sm:$0xff]
  %v10445 = vld [vmem:[%s9 + $0x6b8] sm:$0xff]
  %v10446 = vld [vmem:[%s9 + $0x6c0] sm:$0xff]
  %v10447 = vld [vmem:[%s9 + $0x6c8] sm:$0xff]
  %v10448 = vld [vmem:[%s9 + $0x6d0] sm:$0xff]
  %v10449 = vld [vmem:[%s9 + $0x6d8] sm:$0xff]
  %v10450 = vld [vmem:[%s9 + $0x6e0] sm:$0xff]
  %v10451 = vld [vmem:[%s9 + $0x6e8] sm:$0xff]
  %v10452 = vld [vmem:[%s9 + $0x6f0] sm:$0xff]
  %v10453 = vld [vmem:[%s9 + $0x6f8] sm:$0xff]
  %v10470 = vunpack.c.l.b16 %v10438
  %v10471 = vunpack.c.h.b16 %v10438
  %v10472 = vunpack.c.l.b16 %v10439
  %v10473 = vunpack.c.h.b16 %v10439
  %v10474 = vunpack.c.l.b16 %v10440
  %v10475 = vunpack.c.h.b16 %v10440
  %v10476 = vunpack.c.l.b16 %v10441
  %v10477 = vunpack.c.h.b16 %v10441
  %v10478 = vunpack.c.l.b16 %v10442
  %v10479 = vunpack.c.h.b16 %v10442
  %v10480 = vunpack.c.l.b16 %v10443
  %v10481 = vunpack.c.h.b16 %v10443
  %v10482 = vunpack.c.l.b16 %v10444
  %v10483 = vunpack.c.h.b16 %v10444
  %v10484 = vunpack.c.l.b16 %v10445
  %v10485 = vunpack.c.h.b16 %v10445
  %v10486 = vunpack.c.l.b16 %v10446
  %v10487 = vunpack.c.h.b16 %v10446
  %v10488 = vunpack.c.l.b16 %v10447
  %v10489 = vunpack.c.h.b16 %v10447
  %v10490 = vunpack.c.l.b16 %v10448
  %v10491 = vunpack.c.h.b16 %v10448
  %v10492 = vunpack.c.l.b16 %v10449
  %v10493 = vunpack.c.h.b16 %v10449
  %v10494 = vunpack.c.l.b16 %v10450
  %v10495 = vunpack.c.h.b16 %v10450
  %v10496 = vunpack.c.l.b16 %v10451
  %v10497 = vunpack.c.h.b16 %v10451
  %v10498 = vunpack.c.l.b16 %v10452
  %v10499 = vunpack.c.h.b16 %v10452
  %v10500 = vunpack.c.l.b16 %v10453
  %v10501 = vunpack.c.h.b16 %v10453
  %v10502 = vpack.c.b16 %v10472, %v10470
  %v10503 = vpack.c.b16 %v10473, %v10471
  %v10504 = vpack.c.b16 %v10476, %v10474
  %v10505 = vpack.c.b16 %v10477, %v10475
  %v10506 = vpack.c.b16 %v10480, %v10478
  %v10507 = vpack.c.b16 %v10481, %v10479
  %v10508 = vpack.c.b16 %v10484, %v10482
  %v10509 = vpack.c.b16 %v10485, %v10483
  %v10510 = vpack.c.b16 %v10488, %v10486
  %v10511 = vpack.c.b16 %v10489, %v10487
  %v10512 = vpack.c.b16 %v10492, %v10490
  %v10513 = vpack.c.b16 %v10493, %v10491
  %v10514 = vpack.c.b16 %v10496, %v10494
  %v10515 = vpack.c.b16 %v10497, %v10495
  %v10516 = vpack.c.b16 %v10500, %v10498
  %v10517 = vpack.c.b16 %v10501, %v10499
  %10534 = vmatpush.bf16.msra.mxu0 %v10516
  %10535 = vmatpush.bf16.msra.mxu0 %v10514
  %10536 = vmatpush.bf16.msra.mxu0 %v10512
  %10537 = vmatpush.bf16.msra.mxu0 %v10510
  %10538 = vmatpush.bf16.msra.mxu0 %v10508
  %10539 = vmatpush.bf16.msra.mxu0 %v10506
  %10540 = vmatpush.bf16.msra.mxu0 %v10504
  %10541 = vmatpush.bf16.msra.mxu0 %v10502
  %10542 = vmatmul.bf16.gmra.mxu0 %v10430
  %v10543 = vpop.f32.mrf.mxu0
  %v10544 = vadd.f32 0.0, %v10543
  %v10545 = vpop.f32.mrf.mxu0
  %v10546 = vadd.f32 0.0, %v10545
  %10547 = vmatmul.bf16.gmra.mxu0 %v10436
  %v10548 = vpop.f32.mrf.mxu0
  %v10549 = vadd.f32 0.0, %v10548
  %v10550 = vpop.f32.mrf.mxu0
  %v10551 = vadd.f32 0.0, %v10550
  %10552 = vdwg.mxu0
  %10553 = vmatpush.bf16.msra.mxu0 %v10517
  %10554 = vmatpush.bf16.msra.mxu0 %v10515
  %10555 = vmatpush.bf16.msra.mxu0 %v10513
  %10556 = vmatpush.bf16.msra.mxu0 %v10511
  %10557 = vmatpush.bf16.msra.mxu0 %v10509
  %10558 = vmatpush.bf16.msra.mxu0 %v10507
  %10559 = vmatpush.bf16.msra.mxu0 %v10505
  %10560 = vmatpush.bf16.msra.mxu0 %v10503
  %10561 = vmatmul.bf16.gmra.mxu0 %v10430
  %v10562 = vpop.f32.mrf.mxu0
  %v10563 = vadd.f32 0.0, %v10562
  %v10564 = vpop.f32.mrf.mxu0
  %v10565 = vadd.f32 0.0, %v10564
  %10566 = vmatmul.bf16.gmra.mxu0 %v10436
  %v10567 = vpop.f32.mrf.mxu0
  %v10568 = vadd.f32 0.0, %v10567
  %v10569 = vpop.f32.mrf.mxu0
  %v10570 = vadd.f32 0.0, %v10569
  %10571 = vdwg.mxu0
  %v10572 = vadd.f32 %v10256, %v10544
  %v10573 = vadd.f32 %v10257, %v10563
  %v10574 = vadd.f32 %v10258, %v10546
  %v10575 = vadd.f32 %v10259, %v10565
  %v10576 = vadd.f32 %v10260, %v10549
  %v10577 = vadd.f32 %v10261, %v10568
  %v10578 = vadd.f32 %v10262, %v10551
  %v10579 = vadd.f32 %v10263, %v10570
  %v10580 = vld [vmem:[#allocation5 + $0x70] sm:$0xf]
  %v10581 = vld [vmem:[#allocation5 + $0x74] sm:$0xf]
  %v10582 = vld [vmem:[#allocation5 + $0xf0] sm:$0xf]
  %v10583 = vld [vmem:[#allocation5 + $0xf4] sm:$0xf]
  %v10586 = vunpack.c.l.b16 %v10580
  %v10587 = vunpack.c.l.b16 %v10581
  %v10588 = vpack.c.b16 %v10587, %v10586
  %v10592 = vunpack.c.l.b16 %v10582
  %v10593 = vunpack.c.l.b16 %v10583
  %v10594 = vpack.c.b16 %v10593, %v10592
  %v10596 = vld [vmem:[%s9 + $0x700] sm:$0xff]
  %v10597 = vld [vmem:[%s9 + $0x708] sm:$0xff]
  %v10598 = vld [vmem:[%s9 + $0x710] sm:$0xff]
  %v10599 = vld [vmem:[%s9 + $0x718] sm:$0xff]
  %v10600 = vld [vmem:[%s9 + $0x720] sm:$0xff]
  %v10601 = vld [vmem:[%s9 + $0x728] sm:$0xff]
  %v10602 = vld [vmem:[%s9 + $0x730] sm:$0xff]
  %v10603 = vld [vmem:[%s9 + $0x738] sm:$0xff]
  %v10604 = vld [vmem:[%s9 + $0x740] sm:$0xff]
  %v10605 = vld [vmem:[%s9 + $0x748] sm:$0xff]
  %v10606 = vld [vmem:[%s9 + $0x750] sm:$0xff]
  %v10607 = vld [vmem:[%s9 + $0x758] sm:$0xff]
  %v10608 = vld [vmem:[%s9 + $0x760] sm:$0xff]
  %v10609 = vld [vmem:[%s9 + $0x768] sm:$0xff]
  %v10610 = vld [vmem:[%s9 + $0x770] sm:$0xff]
  %v10611 = vld [vmem:[%s9 + $0x778] sm:$0xff]
  %v10628 = vunpack.c.l.b16 %v10596
  %v10629 = vunpack.c.h.b16 %v10596
  %v10630 = vunpack.c.l.b16 %v10597
  %v10631 = vunpack.c.h.b16 %v10597
  %v10632 = vunpack.c.l.b16 %v10598
  %v10633 = vunpack.c.h.b16 %v10598
  %v10634 = vunpack.c.l.b16 %v10599
  %v10635 = vunpack.c.h.b16 %v10599
  %v10636 = vunpack.c.l.b16 %v10600
  %v10637 = vunpack.c.h.b16 %v10600
  %v10638 = vunpack.c.l.b16 %v10601
  %v10639 = vunpack.c.h.b16 %v10601
  %v10640 = vunpack.c.l.b16 %v10602
  %v10641 = vunpack.c.h.b16 %v10602
  %v10642 = vunpack.c.l.b16 %v10603
  %v10643 = vunpack.c.h.b16 %v10603
  %v10644 = vunpack.c.l.b16 %v10604
  %v10645 = vunpack.c.h.b16 %v10604
  %v10646 = vunpack.c.l.b16 %v10605
  %v10647 = vunpack.c.h.b16 %v10605
  %v10648 = vunpack.c.l.b16 %v10606
  %v10649 = vunpack.c.h.b16 %v10606
  %v10650 = vunpack.c.l.b16 %v10607
  %v10651 = vunpack.c.h.b16 %v10607
  %v10652 = vunpack.c.l.b16 %v10608
  %v10653 = vunpack.c.h.b16 %v10608
  %v10654 = vunpack.c.l.b16 %v10609
  %v10655 = vunpack.c.h.b16 %v10609
  %v10656 = vunpack.c.l.b16 %v10610
  %v10657 = vunpack.c.h.b16 %v10610
  %v10658 = vunpack.c.l.b16 %v10611
  %v10659 = vunpack.c.h.b16 %v10611
  %v10660 = vpack.c.b16 %v10630, %v10628
  %v10661 = vpack.c.b16 %v10631, %v10629
  %v10662 = vpack.c.b16 %v10634, %v10632
  %v10663 = vpack.c.b16 %v10635, %v10633
  %v10664 = vpack.c.b16 %v10638, %v10636
  %v10665 = vpack.c.b16 %v10639, %v10637
  %v10666 = vpack.c.b16 %v10642, %v10640
  %v10667 = vpack.c.b16 %v10643, %v10641
  %v10668 = vpack.c.b16 %v10646, %v10644
  %v10669 = vpack.c.b16 %v10647, %v10645
  %v10670 = vpack.c.b16 %v10650, %v10648
  %v10671 = vpack.c.b16 %v10651, %v10649
  %v10672 = vpack.c.b16 %v10654, %v10652
  %v10673 = vpack.c.b16 %v10655, %v10653
  %v10674 = vpack.c.b16 %v10658, %v10656
  %v10675 = vpack.c.b16 %v10659, %v10657
  %10692 = vmatpush.bf16.msra.mxu0 %v10674
  %10693 = vmatpush.bf16.msra.mxu0 %v10672
  %10694 = vmatpush.bf16.msra.mxu0 %v10670
  %10695 = vmatpush.bf16.msra.mxu0 %v10668
  %10696 = vmatpush.bf16.msra.mxu0 %v10666
  %10697 = vmatpush.bf16.msra.mxu0 %v10664
  %10698 = vmatpush.bf16.msra.mxu0 %v10662
  %10699 = vmatpush.bf16.msra.mxu0 %v10660
  %10700 = vmatmul.bf16.gmra.mxu0 %v10588
  %v10701 = vpop.f32.mrf.mxu0
  %v10702 = vadd.f32 0.0, %v10701
  %v10703 = vpop.f32.mrf.mxu0
  %v10704 = vadd.f32 0.0, %v10703
  %10705 = vmatmul.bf16.gmra.mxu0 %v10594
  %v10706 = vpop.f32.mrf.mxu0
  %v10707 = vadd.f32 0.0, %v10706
  %v10708 = vpop.f32.mrf.mxu0
  %v10709 = vadd.f32 0.0, %v10708
  %10710 = vdwg.mxu0
  %10711 = vmatpush.bf16.msra.mxu0 %v10675
  %10712 = vmatpush.bf16.msra.mxu0 %v10673
  %10713 = vmatpush.bf16.msra.mxu0 %v10671
  %10714 = vmatpush.bf16.msra.mxu0 %v10669
  %10715 = vmatpush.bf16.msra.mxu0 %v10667
  %10716 = vmatpush.bf16.msra.mxu0 %v10665
  %10717 = vmatpush.bf16.msra.mxu0 %v10663
  %10718 = vmatpush.bf16.msra.mxu0 %v10661
  %10719 = vmatmul.bf16.gmra.mxu0 %v10588
  %v10720 = vpop.f32.mrf.mxu0
  %v10721 = vadd.f32 0.0, %v10720
  %v10722 = vpop.f32.mrf.mxu0
  %v10723 = vadd.f32 0.0, %v10722
  %10724 = vmatmul.bf16.gmra.mxu0 %v10594
  %v10725 = vpop.f32.mrf.mxu0
  %v10726 = vadd.f32 0.0, %v10725
  %v10727 = vpop.f32.mrf.mxu0
  %v10728 = vadd.f32 0.0, %v10727
  %10729 = vdwg.mxu0
  %v10730 = vadd.f32 %v10414, %v10702
  %v10731 = vadd.f32 %v10415, %v10721
  %v10732 = vadd.f32 %v10416, %v10704
  %v10733 = vadd.f32 %v10417, %v10723
  %v10734 = vadd.f32 %v10418, %v10707
  %v10735 = vadd.f32 %v10419, %v10726
  %v10736 = vadd.f32 %v10420, %v10709
  %v10737 = vadd.f32 %v10421, %v10728
  %v10738 = vld [vmem:[#allocation5 + $0x78] sm:$0xf]
  %v10739 = vld [vmem:[#allocation5 + $0x7c] sm:$0xf]
  %v10740 = vld [vmem:[#allocation5 + $0xf8] sm:$0xf]
  %v10741 = vld [vmem:[#allocation5 + $0xfc] sm:$0xf]
  %v10744 = vunpack.c.l.b16 %v10738
  %v10745 = vunpack.c.l.b16 %v10739
  %v10746 = vpack.c.b16 %v10745, %v10744
  %v10750 = vunpack.c.l.b16 %v10740
  %v10751 = vunpack.c.l.b16 %v10741
  %v10752 = vpack.c.b16 %v10751, %v10750
  %v10754 = vld [vmem:[%s9 + $0x780] sm:$0xff]
  %v10755 = vld [vmem:[%s9 + $0x788] sm:$0xff]
  %v10756 = vld [vmem:[%s9 + $0x790] sm:$0xff]
  %v10757 = vld [vmem:[%s9 + $0x798] sm:$0xff]
  %v10758 = vld [vmem:[%s9 + $0x7a0] sm:$0xff]
  %v10759 = vld [vmem:[%s9 + $0x7a8] sm:$0xff]
  %v10760 = vld [vmem:[%s9 + $0x7b0] sm:$0xff]
  %v10761 = vld [vmem:[%s9 + $0x7b8] sm:$0xff]
  %v10762 = vld [vmem:[%s9 + $0x7c0] sm:$0xff]
  %v10763 = vld [vmem:[%s9 + $0x7c8] sm:$0xff]
  %v10764 = vld [vmem:[%s9 + $0x7d0] sm:$0xff]
  %v10765 = vld [vmem:[%s9 + $0x7d8] sm:$0xff]
  %v10766 = vld [vmem:[%s9 + $0x7e0] sm:$0xff]
  %v10767 = vld [vmem:[%s9 + $0x7e8] sm:$0xff]
  %v10768 = vld [vmem:[%s9 + $0x7f0] sm:$0xff]
  %v10769 = vld [vmem:[%s9 + $0x7f8] sm:$0xff]
  %v10786 = vunpack.c.l.b16 %v10754
  %v10787 = vunpack.c.h.b16 %v10754
  %v10788 = vunpack.c.l.b16 %v10755
  %v10789 = vunpack.c.h.b16 %v10755
  %v10790 = vunpack.c.l.b16 %v10756
  %v10791 = vunpack.c.h.b16 %v10756
  %v10792 = vunpack.c.l.b16 %v10757
  %v10793 = vunpack.c.h.b16 %v10757
  %v10794 = vunpack.c.l.b16 %v10758
  %v10795 = vunpack.c.h.b16 %v10758
  %v10796 = vunpack.c.l.b16 %v10759
  %v10797 = vunpack.c.h.b16 %v10759
  %v10798 = vunpack.c.l.b16 %v10760
  %v10799 = vunpack.c.h.b16 %v10760
  %v10800 = vunpack.c.l.b16 %v10761
  %v10801 = vunpack.c.h.b16 %v10761
  %v10802 = vunpack.c.l.b16 %v10762
  %v10803 = vunpack.c.h.b16 %v10762
  %v10804 = vunpack.c.l.b16 %v10763
  %v10805 = vunpack.c.h.b16 %v10763
  %v10806 = vunpack.c.l.b16 %v10764
  %v10807 = vunpack.c.h.b16 %v10764
  %v10808 = vunpack.c.l.b16 %v10765
  %v10809 = vunpack.c.h.b16 %v10765
  %v10810 = vunpack.c.l.b16 %v10766
  %v10811 = vunpack.c.h.b16 %v10766
  %v10812 = vunpack.c.l.b16 %v10767
  %v10813 = vunpack.c.h.b16 %v10767
  %v10814 = vunpack.c.l.b16 %v10768
  %v10815 = vunpack.c.h.b16 %v10768
  %v10816 = vunpack.c.l.b16 %v10769
  %v10817 = vunpack.c.h.b16 %v10769
  %v10818 = vpack.c.b16 %v10788, %v10786
  %v10819 = vpack.c.b16 %v10789, %v10787
  %v10820 = vpack.c.b16 %v10792, %v10790
  %v10821 = vpack.c.b16 %v10793, %v10791
  %v10822 = vpack.c.b16 %v10796, %v10794
  %v10823 = vpack.c.b16 %v10797, %v10795
  %v10824 = vpack.c.b16 %v10800, %v10798
  %v10825 = vpack.c.b16 %v10801, %v10799
  %v10826 = vpack.c.b16 %v10804, %v10802
  %v10827 = vpack.c.b16 %v10805, %v10803
  %v10828 = vpack.c.b16 %v10808, %v10806
  %v10829 = vpack.c.b16 %v10809, %v10807
  %v10830 = vpack.c.b16 %v10812, %v10810
  %v10831 = vpack.c.b16 %v10813, %v10811
  %v10832 = vpack.c.b16 %v10816, %v10814
  %v10833 = vpack.c.b16 %v10817, %v10815
  %10850 = vmatpush.bf16.msra.mxu0 %v10832
  %10851 = vmatpush.bf16.msra.mxu0 %v10830
  %10852 = vmatpush.bf16.msra.mxu0 %v10828
  %10853 = vmatpush.bf16.msra.mxu0 %v10826
  %10854 = vmatpush.bf16.msra.mxu0 %v10824
  %10855 = vmatpush.bf16.msra.mxu0 %v10822
  %10856 = vmatpush.bf16.msra.mxu0 %v10820
  %10857 = vmatpush.bf16.msra.mxu0 %v10818
  %10858 = vmatmul.bf16.gmra.mxu0 %v10746
  %v10859 = vpop.f32.mrf.mxu0
  %v10860 = vadd.f32 0.0, %v10859
  %v10861 = vpop.f32.mrf.mxu0
  %v10862 = vadd.f32 0.0, %v10861
  %10863 = vmatmul.bf16.gmra.mxu0 %v10752
  %v10864 = vpop.f32.mrf.mxu0
  %v10865 = vadd.f32 0.0, %v10864
  %v10866 = vpop.f32.mrf.mxu0
  %v10867 = vadd.f32 0.0, %v10866
  %10868 = vdwg.mxu0
  %10869 = vmatpush.bf16.msra.mxu0 %v10833
  %10870 = vmatpush.bf16.msra.mxu0 %v10831
  %10871 = vmatpush.bf16.msra.mxu0 %v10829
  %10872 = vmatpush.bf16.msra.mxu0 %v10827
  %10873 = vmatpush.bf16.msra.mxu0 %v10825
  %10874 = vmatpush.bf16.msra.mxu0 %v10823
  %10875 = vmatpush.bf16.msra.mxu0 %v10821
  %10876 = vmatpush.bf16.msra.mxu0 %v10819
  %10877 = vmatmul.bf16.gmra.mxu0 %v10746
  %v10878 = vpop.f32.mrf.mxu0
  %v10879 = vadd.f32 0.0, %v10878
  %v10880 = vpop.f32.mrf.mxu0
  %v10881 = vadd.f32 0.0, %v10880
  %10882 = vmatmul.bf16.gmra.mxu0 %v10752
  %v10883 = vpop.f32.mrf.mxu0
  %v10884 = vadd.f32 0.0, %v10883
  %v10885 = vpop.f32.mrf.mxu0
  %v10886 = vadd.f32 0.0, %v10885
  %10887 = vdwg.mxu0
  %v10888 = vadd.f32 %v10572, %v10860
  %v10889 = vadd.f32 %v10573, %v10879
  %v10890 = vadd.f32 %v10574, %v10862
  %v10891 = vadd.f32 %v10575, %v10881
  %v10892 = vadd.f32 %v10576, %v10865
  %v10893 = vadd.f32 %v10577, %v10884
  %v10894 = vadd.f32 %v10578, %v10867
  %v10895 = vadd.f32 %v10579, %v10886
  %v10896 = vadd.f32 %v10730, %v10888
  %v10897 = vadd.f32 %v10731, %v10889
  %v10898 = vadd.f32 %v10732, %v10890
  %v10899 = vadd.f32 %v10733, %v10891
  %v10900 = vadd.f32 %v10734, %v10892
  %v10901 = vadd.f32 %v10735, %v10893
  %v10902 = vadd.f32 %v10736, %v10894
  %v10903 = vadd.f32 %v10737, %v10895
  %v10904 = vld [vmem:[%s10] sm:$0x3]
  %v10906 = vperm.slane %v10904, 0
  %v10907 = vperm.slane %v10904, 1
  %v10910 = vadd.f32 %v10896, %v10906
  %v10911 = vadd.f32 %v10897, %v10907
  %v10912 = vadd.f32 %v10898, %v10906
  %v10913 = vadd.f32 %v10899, %v10907
  %v10914 = vadd.f32 %v10900, %v10906
  %v10915 = vadd.f32 %v10901, %v10907
  %v10916 = vadd.f32 %v10902, %v10906
  %v10917 = vadd.f32 %v10903, %v10907
  %v10918 = vld [vmem:[%s11] sm:$0x3]
  %v10919 = vld [vmem:[%s12] sm:$0x3]
  %v10920 = vadd.f32 %v10910, %v10912
  %v10921 = vadd.f32 %v10920, %v10914
  %v10922 = vadd.f32 %v10921, %v10916
  %v10923 = vrot.slane %v10922, 4
  %v10924 = vadd.f32 %v10922, %v10923
  %v10925 = vrot.slane %v10924, 2
  %v10926 = vadd.f32 %v10924, %v10925
  %v10927 = vrot.slane %v10926, 1
  %v10928 = vadd.f32 %v10926, %v10927
  %v10929 = vadd.f32 %v10911, %v10913
  %v10930 = vadd.f32 %v10929, %v10915
  %v10931 = vadd.f32 %v10930, %v10917
  %v10932 = vrot.slane %v10931, 4
  %v10933 = vadd.f32 %v10931, %v10932
  %v10934 = vrot.slane %v10933, 2
  %v10935 = vadd.f32 %v10933, %v10934
  %v10936 = vrot.slane %v10935, 1
  %v10937 = vadd.f32 %v10935, %v10936
  %v10938 = vrcp.pop 32.0
  %v10939 = vmul.f32 32.0, %v10938
  %v10940 = vsub.f32 1.0, %v10939
  %v10941 = vmul.f32 %v10938, %v10940
  %v10942 = vadd.f32 %v10938, %v10941
  %vm10943 = vweird.f32 %v10938
  %v10944 = vsel %vm10943, %v10938, %v10942
  %v10945 = vmul.f32 %v10928, %v10944
  %v10946 = vmul.f32 %v10937, %v10944
  %v10947 = vsub.f32 %v10910, %v10945
  %v10948 = vsub.f32 %v10911, %v10946
  %v10949 = vsub.f32 %v10912, %v10945
  %v10950 = vsub.f32 %v10913, %v10946
  %v10951 = vsub.f32 %v10914, %v10945
  %v10952 = vsub.f32 %v10915, %v10946
  %v10953 = vsub.f32 %v10916, %v10945
  %v10954 = vsub.f32 %v10917, %v10946
  %v10955 = vmul.f32 %v10947, %v10947
  %v10956 = vmul.f32 %v10948, %v10948
  %v10957 = vmul.f32 %v10949, %v10949
  %v10958 = vmul.f32 %v10950, %v10950
  %v10959 = vmul.f32 %v10951, %v10951
  %v10960 = vmul.f32 %v10952, %v10952
  %v10961 = vmul.f32 %v10953, %v10953
  %v10962 = vmul.f32 %v10954, %v10954
  %v10963 = vadd.f32 %v10955, %v10957
  %v10964 = vadd.f32 %v10963, %v10959
  %v10965 = vadd.f32 %v10964, %v10961
  %v10966 = vrot.slane %v10965, 4
  %v10967 = vadd.f32 %v10965, %v10966
  %v10968 = vrot.slane %v10967, 2
  %v10969 = vadd.f32 %v10967, %v10968
  %v10970 = vrot.slane %v10969, 1
  %v10971 = vadd.f32 %v10969, %v10970
  %v10972 = vadd.f32 %v10956, %v10958
  %v10973 = vadd.f32 %v10972, %v10960
  %v10974 = vadd.f32 %v10973, %v10962
  %v10975 = vrot.slane %v10974, 4
  %v10976 = vadd.f32 %v10974, %v10975
  %v10977 = vrot.slane %v10976, 2
  %v10978 = vadd.f32 %v10976, %v10977
  %v10979 = vrot.slane %v10978, 1
  %v10980 = vadd.f32 %v10978, %v10979
  %v10981 = vmul.f32 %v10971, %v10944
  %v10982 = vmul.f32 %v10980, %v10944
  %v10983 = vadd.f32 %v10981, 1e-05
  %v10984 = vadd.f32 %v10982, 1e-05
  %v10985 = vrsqrt.pop %v10983
  %v10986 = vmul.f32 %v10985, %v10983
  %v10987 = vmul.f32 %v10986, %v10985
  %v10988 = vmul.f32 0.5, %v10987
  %v10989 = vsub.f32 1.5, %v10988
  %v10990 = vmul.f32 %v10985, %v10989
  %vm10991 = vweird.f32 %v10983
  %vm10992 = vweird.f32 %v10985
  %vm10993 = vmor %vm10991, %vm10992
  %v10994 = vsel %vm10993, %v10985, %v10990
  %v10995 = vrsqrt.pop %v10984
  %v10996 = vmul.f32 %v10995, %v10984
  %v10997 = vmul.f32 %v10996, %v10995
  %v10998 = vmul.f32 0.5, %v10997
  %v10999 = vsub.f32 1.5, %v10998
  %v11000 = vmul.f32 %v10995, %v10999
  %vm11001 = vweird.f32 %v10984
  %vm11002 = vweird.f32 %v10995
  %vm11003 = vmor %vm11001, %vm11002
  %v11004 = vsel %vm11003, %v10995, %v11000
  %v11005 = vmul.f32 %v10947, %v10994
  %v11006 = vmul.f32 %v10948, %v11004
  %v11007 = vmul.f32 %v10949, %v10994
  %v11008 = vmul.f32 %v10950, %v11004
  %v11009 = vmul.f32 %v10951, %v10994
  %v11010 = vmul.f32 %v10952, %v11004
  %v11011 = vmul.f32 %v10953, %v10994
  %v11012 = vmul.f32 %v10954, %v11004
  %v11014 = vperm.slane %v10918, 0
  %v11015 = vperm.slane %v10918, 1
  %v11018 = vmul.f32 %v11005, %v11014
  %v11019 = vmul.f32 %v11006, %v11015
  %v11020 = vmul.f32 %v11007, %v11014
  %v11021 = vmul.f32 %v11008, %v11015
  %v11022 = vmul.f32 %v11009, %v11014
  %v11023 = vmul.f32 %v11010, %v11015
  %v11024 = vmul.f32 %v11011, %v11014
  %v11025 = vmul.f32 %v11012, %v11015
  %v11027 = vperm.slane %v10919, 0
  %v11028 = vperm.slane %v10919, 1
  %v11031 = vadd.f32 %v11018, %v11027
  %v11032 = vadd.f32 %v11019, %v11028
  %v11033 = vadd.f32 %v11020, %v11027
  %v11034 = vadd.f32 %v11021, %v11028
  %v11035 = vadd.f32 %v11022, %v11027
  %v11036 = vadd.f32 %v11023, %v11028
  %v11037 = vadd.f32 %v11024, %v11027
  %v11038 = vadd.f32 %v11025, %v11028
  %v11039 = vmul.f32 %v11031, 0.2
  %v11040 = vmul.f32 %v11032, 0.2
  %v11041 = vmul.f32 %v11033, 0.2
  %v11042 = vmul.f32 %v11034, 0.2
  %v11043 = vmul.f32 %v11035, 0.2
  %v11044 = vmul.f32 %v11036, 0.2
  %v11045 = vmul.f32 %v11037, 0.2
  %v11046 = vmul.f32 %v11038, 0.2
  %v11047 = vmax.f32 %v11031, %v11039
  %v11048 = vmax.f32 %v11032, %v11040
  %v11049 = vmax.f32 %v11033, %v11041
  %v11050 = vmax.f32 %v11034, %v11042
  %v11051 = vmax.f32 %v11035, %v11043
  %v11052 = vmax.f32 %v11036, %v11044
  %v11053 = vmax.f32 %v11037, %v11045
  %v11054 = vmax.f32 %v11038, %v11046
  %v11055 = vld [vmem:[%s13] sm:$0xff]
  %v11056 = vld [vmem:[%s13 + $0x8] sm:$0xff]
  %v11057 = vld [vmem:[%s13 + $0x10] sm:$0xff]
  %v11058 = vld [vmem:[%s13 + $0x18] sm:$0xff]
  %v11059 = vmul.f32 %v11047, %v11055
  %v11060 = vmul.f32 %v11048, %v11056
  %v11061 = vmul.f32 %v11049, %v11057
  %v11062 = vmul.f32 %v11050, %v11058
  %v11063 = vmul.f32 %v11051, %v11055
  %v11064 = vmul.f32 %v11052, %v11056
  %v11065 = vmul.f32 %v11053, %v11057
  %v11066 = vmul.f32 %v11054, %v11058
  %v11067 = vadd.f32 %v11059, %v11060
  %11068 = vadd.xlane.f32.xlu0 %v11067
  %v11069 = vpop.xlane.xlu0 %11068
  %v11070 = vadd.f32 %v11061, %v11062
  %11071 = vadd.xlane.f32.xlu0 %v11070
  %v11072 = vpop.xlane.xlu0 %11071
  %v11073 = vadd.f32 %v11063, %v11064
  %11074 = vadd.xlane.f32.xlu0 %v11073
  %v11075 = vpop.xlane.xlu0 %11074
  %v11076 = vadd.f32 %v11065, %v11066
  %11077 = vadd.xlane.f32.xlu0 %v11076
  %v11078 = vpop.xlane.xlu0 %11077
  %v11083 = vlaneseq
  %v11084 = vand.u32 %v11083, 127
  %v11085 = vperm.slane %v11069, %v11084
  %v11086 = vadd.s32 %v11084, 4294967288
  %v11087 = vperm.slane %v11072, %v11086
  %vm11088 = vcmask 130112
  %v11089 = vsel %vm11088, %v11087, %v11085
  %v11090 = vperm.slane %v11075, %v11084
  %v11091 = vperm.slane %v11078, %v11086
  %v11092 = vsel %vm11088, %v11091, %v11090
  %vm11093 = vcmask 1041409
  %v11094 = vsel %vm11093, %v11092, %v11089
  %vm11096 = vcmask 123904
  %v11097 = vsel %vm11096, %v11094, 0.0
  %11098 = vadd.xlane.f32.xlu0 %v11097
  %v11099 = vpop.xlane.xlu0 %11098
  %v11100 = vld [vmem:[#allocation6] sm:$0x1]
  %v11102 = vperm.slane %v11100, 0
  %v11104 = vadd.f32 %v11099, %v11102
  %v11105 = vsub.f32 0.0, %v11104
  %v11106 = vmul.f32 %v11105, 1.442695
  %v11107 = vpow.pop %v11106
  %v11108 = vadd.f32 %v11107, 1.0
  %v11109 = vrcp.pop %v11108
  %v11110 = vmul.f32 %v11108, %v11109
  %v11111 = vsub.f32 1.0, %v11110
  %v11112 = vmul.f32 %v11109, %v11111
  %v11113 = vadd.f32 %v11109, %v11112
  %vm11114 = vweird.f32 %v11108
  %vm11115 = vweird.f32 %v11109
  %vm11116 = vmor %vm11114, %vm11115
  %v11117 = vsel %vm11116, %v11109, %v11113
  %v11118 = vand.u32 2147483647, %v11108
  %vm11119 = vcmp.eq.f32.partialorder %v11118, 8.507059e+37
  %v11120 = vand.u32 %v11108, 2147483648
  %v11121 = vor.u32 1.1754944e-38, %v11120
  %v11122 = vsel %vm11119, %v11121, %v11117
  %v11123 = vmul.f32 1.0, %v11122
  %vm11124 = vcmask 1024
  %11125 = vst.msk [vmem:[%s15] sm:$0x3] %vm11124, %v11123
  // Predicated region
  $region62: #{discriminator_forward.1} parent=0 // pred_check
    _
  $region63: #{discriminator_forward.1} parent=0 // pred_check_branch
    %11127 = sbr.rel (0) target = $region65
  $region64: #{discriminator_forward.1} parent=0 // pred_region
    _
  $region65: #{discriminator_forward.1} parent=0 // pred_fallthru
    _
  // Predicated region
  $region66: #{discriminator_forward.1} parent=0 // pred_check
    _
  $region67: #{discriminator_forward.1} parent=0 // pred_check_branch
    %11129 = sbr.rel (0) target = $region69
  $region68: #{discriminator_forward.1} parent=0 // pred_region
    _
  $region69: #{discriminator_forward.1} parent=0 // pred_fallthru
    _

</llo_original>
